<compile_context>
chip_gen: v5e
topology: v5e:2x2
jax: 0.10.0
libtpu: 0.0.40
codegen_flags: <defaults>
</compile_context>

<pallas_src>
import jax
import jax.numpy as jnp
from jax.experimental import pallas as pl
from jax.experimental.pallas import tpu as pltpu


def response_kernel(x_ref,
                    w1_ref, b1_ref,
                    w2_ref, b2_ref,
                    w3_ref, b3_ref,
                    w4_ref, b4_ref,
                    w5_ref, b5_ref,
                    out_ref):
    """Whole fused forward pass for one batch tile (all operands resident in VMEM)."""
    # block1: conv1d(1024->512, k=5, p=2) center tap + BN(folded) + ReLU (Dropout=id)
    h = jnp.dot(x_ref[...], w1_ref[...], preferred_element_type=jnp.float32)
    h = jnp.maximum(h + b1_ref[...], 0.0)

    # block2: conv1d(512->256, k=3, p=1) + BN + ReLU
    h = jnp.dot(h.astype(jnp.bfloat16), w2_ref[...], preferred_element_type=jnp.float32)
    h = jnp.maximum(h + b2_ref[...], 0.0)

    # block3: conv1d(256->128, k=3, p=1) + BN + ReLU
    h = jnp.dot(h.astype(jnp.bfloat16), w3_ref[...], preferred_element_type=jnp.float32)
    h = jnp.maximum(h + b3_ref[...], 0.0)

    # block4: conv1d(128->64, k=3, p=1) + BN + ReLU
    h = jnp.dot(h.astype(jnp.bfloat16), w4_ref[...], preferred_element_type=jnp.float32)
    h = jnp.maximum(h + b4_ref[...], 0.0)

    # lastcnn: conv1d(64->1, k=1) -> VPU multiply + lane reduction (avoids wasting
    # an MXU pass on an N=1 matmul and its result-FIFO pop).
    out_ref[...] = (jnp.sum(h * w5_ref[...], axis=-1, keepdims=True)
                    + b5_ref[...])


def fold_block(conv_w, conv_b, gamma, beta, run_mean, run_var, eps=1e-5):
    """Fold center conv tap + inference BatchNorm into (W_folded[bf16], bias[f32])."""
    k = conv_w.shape[-1]
    w_center = conv_w[:, :, k // 2]                       # (C_out, C_in)
    a = gamma / jnp.sqrt(run_var + eps)                   # (C_out,)
    w_folded = (w_center * a[:, None]).T                  # (C_in, C_out), BN scale folded in
    bias = ((conv_b - run_mean) * a + beta).reshape(1, -1)
    return w_folded.astype(jnp.bfloat16), bias.astype(jnp.float32)


def make_params(key):
    """Deterministic synthetic parameters with the module's shapes."""
    dims = [(1024, 512, 5), (512, 256, 3), (256, 128, 3), (128, 64, 3)]
    params = []
    for i, (c_in, c_out, k) in enumerate(dims):
        kw, kb = jax.random.split(jax.random.fold_in(key, i))
        conv_w = jax.random.normal(kw, (c_out, c_in, k), jnp.float32) * 0.02
        conv_b = jax.random.normal(kb, (c_out,), jnp.float32) * 0.02
        gamma = jnp.ones((c_out,), jnp.float32)           # nn.BatchNorm1d defaults (eval)
        beta = jnp.zeros((c_out,), jnp.float32)
        run_mean = jnp.zeros((c_out,), jnp.float32)
        run_var = jnp.ones((c_out,), jnp.float32)
        params.append(fold_block(conv_w, conv_b, gamma, beta, run_mean, run_var))
    k5w, k5b = jax.random.split(jax.random.fold_in(key, 99))
    w5 = jax.random.normal(k5w, (1, 64, 1), jnp.float32) * 0.02   # lastcnn weight
    b5 = jax.random.normal(k5b, (1,), jnp.float32) * 0.02
    w5_row = w5[:, :, 0].astype(jnp.float32)              # (1, 64): used on the VPU, keep f32
    b5_r = b5.reshape(1, 1).astype(jnp.float32)           # (1, 1)
    return params, w5_row, b5_r


def response_model_pallas(x, params, w5, b5, tile_b=256):
    B, C_in = x.shape
    assert C_in == 1024
    n_tiles = pl.cdiv(B, tile_b)
    B_pad = n_tiles * tile_b

    x_bf16 = x.astype(jnp.bfloat16)                       # halve HBM bytes per row
    if B_pad != B:                                        # pad ragged batch, slice after
        x_bf16 = jnp.pad(x_bf16, ((0, B_pad - B), (0, 0)))

    (w1, b1), (w2, b2), (w3, b3), (w4, b4) = params

    def x_map(i):
        return (i, 0)

    def fixed(i):
        return (0, 0)

    # Constant index_map -> block is fetched once and stays resident across steps.
    resident = lambda a: pl.BlockSpec(a.shape, fixed)

    out = pl.pallas_call(
        response_kernel,
        out_shape=jax.ShapeDtypeStruct((B_pad, 1), jnp.float32),
        grid_spec=pltpu.PrefetchScalarGridSpec(
            num_scalar_prefetch=0,
            grid=(n_tiles,),
            in_specs=[
                pl.BlockSpec((tile_b, C_in), x_map),
                resident(w1), resident(b1),
                resident(w2), resident(b2),
                resident(w3), resident(b3),
                resident(w4), resident(b4),
                resident(w5), resident(b5),
            ],
            out_specs=pl.BlockSpec((tile_b, 1), x_map),
        ),
        compiler_params=pltpu.CompilerParams(
            dimension_semantics=("parallel",),
            vmem_limit_bytes=32 * 1024 * 1024),
    )(x_bf16, w1, b1, w2, b2, w3, b3, w4, b4, w5, b5)

    return out[:B]   # (B, 1) == PyTorch output after squeeze(1)


def response_model_ref(x, params, w5, b5):
    """Pure-JAX f32 reference (same folded params, f32 math throughout)."""
    h = x.astype(jnp.float32)
    for (w, b) in params:
        h = jnp.maximum(h @ w.astype(jnp.float32) + b, 0.0)
    return jnp.sum(h * w5, axis=-1, keepdims=True) + b5


if __name__ == "__main__":
    key = jax.random.PRNGKey(0)
    kx, kp = jax.random.split(key)

    B = 4
    x = jax.random.normal(kx, (B, 1024), jnp.float32)   # PyTorch (B, 1024) before unsqueeze(-1)
    params, w5, b5 = make_params(kp)

    out = response_model_pallas(x, params, w5, b5)
    out = jax.block_until_ready(out)

    ref = response_model_ref(x, params, w5, b5)
    assert out.shape == (B, 1), out.shape
    assert bool(jnp.all(jnp.isfinite(out)))
    # bf16 activations/weights with f32 accumulation -> loosened tolerance vs f32 ref.
    assert jnp.allclose(out, ref, atol=2e-3, rtol=5e-2), float(jnp.max(jnp.abs(out - ref)))

    # TODO(synk): Dropout is treated as identity and BatchNorm uses running stats
    # (eval-mode semantics); training-mode stochastic dropout / batch-stat BN are
    # not reproduced.
    print("KERNEL_OK")
</pallas_src>

<mosaic_0001>
module attributes {stable_mosaic.version = 11 : i64} {
  func.func @response_kernel(%arg0: i32, %arg1: memref<256x1024xbf16, #tpu.memory_space<vmem>>, %arg2: memref<1024x512xbf16, #tpu.memory_space<vmem>>, %arg3: memref<1x512xf32, #tpu.memory_space<vmem>>, %arg4: memref<512x256xbf16, #tpu.memory_space<vmem>>, %arg5: memref<1x256xf32, #tpu.memory_space<vmem>>, %arg6: memref<256x128xbf16, #tpu.memory_space<vmem>>, %arg7: memref<1x128xf32, #tpu.memory_space<vmem>>, %arg8: memref<128x64xbf16, #tpu.memory_space<vmem>>, %arg9: memref<1x64xf32, #tpu.memory_space<vmem>>, %arg10: memref<1x64xf32, #tpu.memory_space<vmem>>, %arg11: memref<1x1xf32, #tpu.memory_space<vmem>>, %arg12: memref<256x1xf32, #tpu.memory_space<vmem>>) attributes {dimension_semantics = [#tpu.dimension_semantics<parallel>], iteration_bounds = array<i64: 1>, scalar_prefetch = 0 : i64, scratch_operands = 0 : i64, tpu.core_type = #tpu.core_type<tc>, window_params = [{transform_indices = @transform_0, window_bounds = array<i64: 256, 1024>}, {pipeline_mode = #tpu.pipeline_mode<synchronous>, transform_indices = @transform_1, window_bounds = array<i64: 1024, 512>}, {pipeline_mode = #tpu.pipeline_mode<synchronous>, transform_indices = @transform_2, window_bounds = array<i64: 1, 512>}, {pipeline_mode = #tpu.pipeline_mode<synchronous>, transform_indices = @transform_3, window_bounds = array<i64: 512, 256>}, {pipeline_mode = #tpu.pipeline_mode<synchronous>, transform_indices = @transform_4, window_bounds = array<i64: 1, 256>}, {pipeline_mode = #tpu.pipeline_mode<synchronous>, transform_indices = @transform_5, window_bounds = array<i64: 256, 128>}, {pipeline_mode = #tpu.pipeline_mode<synchronous>, transform_indices = @transform_6, window_bounds = array<i64: 1, 128>}, {pipeline_mode = #tpu.pipeline_mode<synchronous>, transform_indices = @transform_7, window_bounds = array<i64: 128, 64>}, {pipeline_mode = #tpu.pipeline_mode<synchronous>, transform_indices = @transform_8, window_bounds = array<i64: 1, 64>}, {pipeline_mode = #tpu.pipeline_mode<synchronous>, transform_indices = @transform_9, window_bounds = array<i64: 1, 64>}, {pipeline_mode = #tpu.pipeline_mode<synchronous>, transform_indices = @transform_10, window_bounds = array<i64: 1, 1>}, {transform_indices = @transform_11, window_bounds = array<i64: 256, 1>}]} {
    %c0 = arith.constant 0 : index
    %c0_0 = arith.constant 0 : index
    %0 = vector.load %arg1[%c0, %c0_0] : memref<256x1024xbf16, #tpu.memory_space<vmem>>, vector<256x1024xbf16>
    %c0_1 = arith.constant 0 : index
    %c0_2 = arith.constant 0 : index
    %1 = vector.load %arg2[%c0_1, %c0_2] : memref<1024x512xbf16, #tpu.memory_space<vmem>>, vector<1024x512xbf16>
    %cst = arith.constant dense<0.000000e+00> : vector<256x512xf32>
    %2 = tpu.matmul %0, %1, %cst {dimension_numbers = #tpu.dot_dimension_numbers<[1], [0], [0], [1], [0, 0, 1, 1], [], []>} : vector<256x1024xbf16>, vector<1024x512xbf16>, vector<256x512xf32> -> vector<256x512xf32>
    %c0_3 = arith.constant 0 : index
    %c0_4 = arith.constant 0 : index
    %3 = vector.load %arg3[%c0_3, %c0_4] : memref<1x512xf32, #tpu.memory_space<vmem>>, vector<1x512xf32>
    %4 = vector.broadcast %3 : vector<1x512xf32> to vector<256x512xf32>
    %5 = arith.addf %2, %4 : vector<256x512xf32>
    %cst_5 = arith.constant 0.000000e+00 : f32
    %6 = vector.broadcast %cst_5 : f32 to vector<256x512xf32>
    %7 = arith.maximumf %5, %6 : vector<256x512xf32>
    %8 = arith.truncf %7 : vector<256x512xf32> to vector<256x512xbf16>
    %c0_6 = arith.constant 0 : index
    %c0_7 = arith.constant 0 : index
    %9 = vector.load %arg4[%c0_6, %c0_7] : memref<512x256xbf16, #tpu.memory_space<vmem>>, vector<512x256xbf16>
    %cst_8 = arith.constant dense<0.000000e+00> : vector<256x256xf32>
    %10 = tpu.matmul %8, %9, %cst_8 {dimension_numbers = #tpu.dot_dimension_numbers<[1], [0], [0], [1], [0, 0, 1, 1], [], []>} : vector<256x512xbf16>, vector<512x256xbf16>, vector<256x256xf32> -> vector<256x256xf32>
    %c0_9 = arith.constant 0 : index
    %c0_10 = arith.constant 0 : index
    %11 = vector.load %arg5[%c0_9, %c0_10] : memref<1x256xf32, #tpu.memory_space<vmem>>, vector<1x256xf32>
    %12 = vector.broadcast %11 : vector<1x256xf32> to vector<256x256xf32>
    %13 = arith.addf %10, %12 : vector<256x256xf32>
    %cst_11 = arith.constant 0.000000e+00 : f32
    %14 = vector.broadcast %cst_11 : f32 to vector<256x256xf32>
    %15 = arith.maximumf %13, %14 : vector<256x256xf32>
    %16 = arith.truncf %15 : vector<256x256xf32> to vector<256x256xbf16>
    %c0_12 = arith.constant 0 : index
    %c0_13 = arith.constant 0 : index
    %17 = vector.load %arg6[%c0_12, %c0_13] : memref<256x128xbf16, #tpu.memory_space<vmem>>, vector<256x128xbf16>
    %cst_14 = arith.constant dense<0.000000e+00> : vector<256x128xf32>
    %18 = tpu.matmul %16, %17, %cst_14 {dimension_numbers = #tpu.dot_dimension_numbers<[1], [0], [0], [1], [0, 0, 1, 1], [], []>} : vector<256x256xbf16>, vector<256x128xbf16>, vector<256x128xf32> -> vector<256x128xf32>
    %c0_15 = arith.constant 0 : index
    %c0_16 = arith.constant 0 : index
    %19 = vector.load %arg7[%c0_15, %c0_16] : memref<1x128xf32, #tpu.memory_space<vmem>>, vector<1x128xf32>
    %20 = vector.broadcast %19 : vector<1x128xf32> to vector<256x128xf32>
    %21 = arith.addf %18, %20 : vector<256x128xf32>
    %cst_17 = arith.constant 0.000000e+00 : f32
    %22 = vector.broadcast %cst_17 : f32 to vector<256x128xf32>
    %23 = arith.maximumf %21, %22 : vector<256x128xf32>
    %24 = arith.truncf %23 : vector<256x128xf32> to vector<256x128xbf16>
    %c0_18 = arith.constant 0 : index
    %c0_19 = arith.constant 0 : index
    %25 = vector.load %arg8[%c0_18, %c0_19] : memref<128x64xbf16, #tpu.memory_space<vmem>>, vector<128x64xbf16>
    %cst_20 = arith.constant dense<0.000000e+00> : vector<256x64xf32>
    %26 = tpu.matmul %24, %25, %cst_20 {dimension_numbers = #tpu.dot_dimension_numbers<[1], [0], [0], [1], [0, 0, 1, 1], [], []>} : vector<256x128xbf16>, vector<128x64xbf16>, vector<256x64xf32> -> vector<256x64xf32>
    %c0_21 = arith.constant 0 : index
    %c0_22 = arith.constant 0 : index
    %27 = vector.load %arg9[%c0_21, %c0_22] : memref<1x64xf32, #tpu.memory_space<vmem>>, vector<1x64xf32>
    %28 = vector.broadcast %27 : vector<1x64xf32> to vector<256x64xf32>
    %29 = arith.addf %26, %28 : vector<256x64xf32>
    %cst_23 = arith.constant 0.000000e+00 : f32
    %30 = vector.broadcast %cst_23 : f32 to vector<256x64xf32>
    %31 = arith.maximumf %29, %30 : vector<256x64xf32>
    %c0_24 = arith.constant 0 : index
    %c0_25 = arith.constant 0 : index
    %32 = vector.load %arg10[%c0_24, %c0_25] : memref<1x64xf32, #tpu.memory_space<vmem>>, vector<1x64xf32>
    %33 = vector.broadcast %32 : vector<1x64xf32> to vector<256x64xf32>
    %34 = arith.mulf %31, %33 : vector<256x64xf32>
    %cst_26 = arith.constant dense<0.000000e+00> : vector<256xf32>
    %35 = vector.multi_reduction <add>, %34, %cst_26 [1] : vector<256x64xf32> to vector<256xf32>
    %36 = vector.shape_cast %35 : vector<256xf32> to vector<256x1xf32>
    %c0_27 = arith.constant 0 : index
    %c0_28 = arith.constant 0 : index
    %37 = vector.load %arg11[%c0_27, %c0_28] : memref<1x1xf32, #tpu.memory_space<vmem>>, vector<1x1xf32>
    %38 = vector.broadcast %37 : vector<1x1xf32> to vector<256x1xf32>
    %39 = arith.addf %36, %38 : vector<256x1xf32>
    %c0_29 = arith.constant 0 : index
    %c0_30 = arith.constant 0 : index
    %40 = vector.load %arg12[%c0_29, %c0_30] : memref<256x1xf32, #tpu.memory_space<vmem>>, vector<256x1xf32>
    tpu.vector_store %arg12[%c0_29, %c0_30], %39 {strides = array<i32>} : memref<256x1xf32, #tpu.memory_space<vmem>>, vector<256x1xf32>,
    return
  }
  func.func @transform_0(%arg0: i32) -> (i32, i32) {
    %c0_i32 = arith.constant 0 : i32
    %c0_i32_0 = arith.constant 0 : i32
    return %arg0, %c0_i32 : i32, i32
  }
  func.func @transform_1(%arg0: i32) -> (i32, i32) {
    %c0_i32 = arith.constant 0 : i32
    %c0_i32_0 = arith.constant 0 : i32
    %c0_i32_1 = arith.constant 0 : i32
    return %c0_i32, %c0_i32_0 : i32, i32
  }
  func.func @transform_2(%arg0: i32) -> (i32, i32) {
    %c0_i32 = arith.constant 0 : i32
    %c0_i32_0 = arith.constant 0 : i32
    %c0_i32_1 = arith.constant 0 : i32
    return %c0_i32, %c0_i32_0 : i32, i32
  }
  func.func @transform_3(%arg0: i32) -> (i32, i32) {
    %c0_i32 = arith.constant 0 : i32
    %c0_i32_0 = arith.constant 0 : i32
    %c0_i32_1 = arith.constant 0 : i32
    return %c0_i32, %c0_i32_0 : i32, i32
  }
  func.func @transform_4(%arg0: i32) -> (i32, i32) {
    %c0_i32 = arith.constant 0 : i32
    %c0_i32_0 = arith.constant 0 : i32
    %c0_i32_1 = arith.constant 0 : i32
    return %c0_i32, %c0_i32_0 : i32, i32
  }
  func.func @transform_5(%arg0: i32) -> (i32, i32) {
    %c0_i32 = arith.constant 0 : i32
    %c0_i32_0 = arith.constant 0 : i32
    %c0_i32_1 = arith.constant 0 : i32
    return %c0_i32, %c0_i32_0 : i32, i32
  }
  func.func @transform_6(%arg0: i32) -> (i32, i32) {
    %c0_i32 = arith.constant 0 : i32
    %c0_i32_0 = arith.constant 0 : i32
    %c0_i32_1 = arith.constant 0 : i32
    return %c0_i32, %c0_i32_0 : i32, i32
  }
  func.func @transform_7(%arg0: i32) -> (i32, i32) {
    %c0_i32 = arith.constant 0 : i32
    %c0_i32_0 = arith.constant 0 : i32
    %c0_i32_1 = arith.constant 0 : i32
    return %c0_i32, %c0_i32_0 : i32, i32
  }
  func.func @transform_8(%arg0: i32) -> (i32, i32) {
    %c0_i32 = arith.constant 0 : i32
    %c0_i32_0 = arith.constant 0 : i32
    %c0_i32_1 = arith.constant 0 : i32
    return %c0_i32, %c0_i32_0 : i32, i32
  }
  func.func @transform_9(%arg0: i32) -> (i32, i32) {
    %c0_i32 = arith.constant 0 : i32
    %c0_i32_0 = arith.constant 0 : i32
    %c0_i32_1 = arith.constant 0 : i32
    return %c0_i32, %c0_i32_0 : i32, i32
  }
  func.func @transform_10(%arg0: i32) -> (i32, i32) {
    %c0_i32 = arith.constant 0 : i32
    %c0_i32_0 = arith.constant 0 : i32
    %c0_i32_1 = arith.constant 0 : i32
    return %c0_i32, %c0_i32_0 : i32, i32
  }
  func.func @transform_11(%arg0: i32) -> (i32, i32) {
    %c0_i32 = arith.constant 0 : i32
    %c0_i32_0 = arith.constant 0 : i32
    return %arg0, %c0_i32 : i32, i32
  }
}

</mosaic_0001>

<llo_original>
// kernel: tpu_custom_call.1
$region0: #{tpu_custom_call.1}
  #allocation0 [shape = 'u32[]', space=smem, size = 0x4, offset = 0x4, fixed_abs, tag = 'smem constant byte address 0x4 - core index']
  #allocation1 [shape = 'u32[72,128]{1,0:T(1,128)}', space=vmem, size = 0x9000, scoped, tag = 'internal scratch']
  #allocation2 [shape = 'f32[1,1]{1,0:T(1,128)S(1)}', space=vmem, size = 0x200, scoped, tag = 'scoped memory for tpu_custom_call.1']
  %s0 = inlined_call_operand.hbm [shape: bf16[256,1024], index: 0, kind: input, shape index: {}]
  %s1 = inlined_call_operand.hbm [shape: bf16[1024,512], index: 1, kind: input, shape index: {}]
  %s2 = inlined_call_operand.vmem [shape: f32[1,512], index: 2, kind: input, shape index: {}]
  %s3 = inlined_call_operand.hbm [shape: bf16[512,256], index: 3, kind: input, shape index: {}]
  %s4 = inlined_call_operand.vmem [shape: f32[1,256], index: 4, kind: input, shape index: {}]
  %s5 = inlined_call_operand.hbm [shape: bf16[256,128], index: 5, kind: input, shape index: {}]
  %s6 = inlined_call_operand.vmem [shape: f32[1,128], index: 6, kind: input, shape index: {}]
  %s7 = inlined_call_operand.vmem [shape: bf16[128,64], index: 7, kind: input, shape index: {}]
  %s8 = inlined_call_operand.vmem [shape: f32[1,64], index: 8, kind: input, shape index: {}]
  %s9 = inlined_call_operand.vmem [shape: f32[1,64], index: 9, kind: input, shape index: {}]
  %s10 = inlined_call_operand.<no memory space> [shape: f32[1,1], index: 10, kind: input, shape index: {}]
  %s11 = inlined_call_operand.vmem [shape: f32[256,1], index: 11, kind: output, shape index: {}]
  %s12 = sld [smem:[#allocation0]]
  $region70: #{tpu_custom_call.1} parent=0
    _
  %s14 = ssub.s32 1, %s12
  %s15 = scalar_select 0, %s14, %s12
  %v16 = vstv %s10
  %17 = vst [vmem:[#allocation2] sm:$0x1] %v16
  $region1: #{tpu_custom_call.1} parent=0
    #allocation3 [shape = 'u8[524288]{0}', space=vmem, size = 0x80000, scoped, tag = 'input window, operand 0, single buffered']
    #allocation4 [shape = 's32[1]{0}', space=sflag, size = 0x4, scoped, tag = 'scoped memory for tpu_custom_call.1']
    #allocation5 [shape = 'u8[1048576]{0}', space=vmem, size = 0x100000, scoped, tag = 'input window, operand 1, single buffered']
    #allocation6 [shape = 's32[1]{0}', space=sflag, size = 0x4, scoped, tag = 'scoped memory for tpu_custom_call.1']
    #allocation7 [shape = 'u8[262144]{0}', space=vmem, size = 0x40000, scoped, tag = 'input window, operand 3, single buffered']
    #allocation8 [shape = 'u8[65536]{0}', space=vmem, size = 0x10000, scoped, tag = 'input window, operand 5, single buffered']
    #allocation9 [shape = 's32[1]{0}', space=sflag, size = 0x4, scoped, tag = 'scoped memory for tpu_custom_call.1']
    %18 = vsyncpa [#allocation4], 0
    %19 = vsyncpa [#allocation6], 0
    %20 = vsyncpa [#allocation9], 0
    // Predicated region
    $region2: #{tpu_custom_call.1} parent=1 // pred_check
      _
    $region3: #{tpu_custom_call.1} parent=1 // pred_check_branch
      %22 = sbr.rel (0) target = $region5
    $region4: #{tpu_custom_call.1} parent=1 // pred_region
      %24 = vsyncadd [#allocation4], 0
      %s25 = sshll.u32 %s0, 4
      %s26 = int_to_ptr.hbm [resolvable:$true] %s25
      %s27 = sshll.u32 [#allocation3], 4
      %s28 = int_to_ptr.vmem [resolvable:$true] %s27
      %33 = dma.hbm_to_vmem [thread:$0]  %s26, 16384, %s28, [#allocation4], 512, 512, 32
    $region5: #{tpu_custom_call.1} parent=1 // pred_fallthru
      _
    // Predicated region
    $region6: #{tpu_custom_call.1} parent=1 // pred_check
      _
    $region7: #{tpu_custom_call.1} parent=1 // pred_check_branch
      %35 = sbr.rel (0) target = $region9
    $region8: #{tpu_custom_call.1} parent=1 // pred_region
      %37 = vsyncadd [#allocation6], 0
      %s38 = sshll.u32 %s1, 4
      %s39 = int_to_ptr.hbm [resolvable:$true] %s38
      %s40 = sshll.u32 [#allocation5], 4
      %s41 = int_to_ptr.vmem [resolvable:$true] %s40
      %46 = dma.hbm_to_vmem [thread:$0]  %s39, 32768, %s41, [#allocation6], 256, 256, 16
    $region9: #{tpu_custom_call.1} parent=1 // pred_fallthru
      _
    // Predicated region
    $region10: #{tpu_custom_call.1} parent=1 // pred_check
      _
    $region11: #{tpu_custom_call.1} parent=1 // pred_check_branch
      %48 = sbr.rel (0) target = $region13
    $region12: #{tpu_custom_call.1} parent=1 // pred_region
      _
    $region13: #{tpu_custom_call.1} parent=1 // pred_fallthru
      _
    // Predicated region
    $region14: #{tpu_custom_call.1} parent=1 // pred_check
      _
    $region15: #{tpu_custom_call.1} parent=1 // pred_check_branch
      %50 = sbr.rel (0) target = $region17
    $region16: #{tpu_custom_call.1} parent=1 // pred_region
      %52 = vsyncadd [#allocation6], 0
      %s53 = sshll.u32 %s3, 4
      %s54 = int_to_ptr.hbm [resolvable:$true] %s53
      %s55 = sshll.u32 [#allocation7], 4
      %s56 = int_to_ptr.vmem [resolvable:$true] %s55
      %61 = dma.hbm_to_vmem [thread:$0]  %s54, 8192, %s56, [#allocation6], 128, 128, 8
    $region17: #{tpu_custom_call.1} parent=1 // pred_fallthru
      _
    // Predicated region
    $region18: #{tpu_custom_call.1} parent=1 // pred_check
      _
    $region19: #{tpu_custom_call.1} parent=1 // pred_check_branch
      %63 = sbr.rel (0) target = $region21
    $region20: #{tpu_custom_call.1} parent=1 // pred_region
      _
    $region21: #{tpu_custom_call.1} parent=1 // pred_fallthru
      _
    // Predicated region
    $region22: #{tpu_custom_call.1} parent=1 // pred_check
      _
    $region23: #{tpu_custom_call.1} parent=1 // pred_check_branch
      %65 = sbr.rel (0) target = $region25
    $region24: #{tpu_custom_call.1} parent=1 // pred_region
      %67 = vsyncadd [#allocation9], 0
      %s68 = sshll.u32 %s5, 4
      %s69 = int_to_ptr.hbm [resolvable:$true] %s68
      %s70 = sshll.u32 [#allocation8], 4
      %s71 = int_to_ptr.vmem [resolvable:$true] %s70
      %76 = dma.hbm_to_vmem [thread:$0]  %s69, 2048, %s71, [#allocation9], 64, 64, 4
    $region25: #{tpu_custom_call.1} parent=1 // pred_fallthru
      _
    // Predicated region
    $region26: #{tpu_custom_call.1} parent=1 // pred_check
      _
    $region27: #{tpu_custom_call.1} parent=1 // pred_check_branch
      %78 = sbr.rel (0) target = $region29
    $region28: #{tpu_custom_call.1} parent=1 // pred_region
      _
    $region29: #{tpu_custom_call.1} parent=1 // pred_fallthru
      _
    // Predicated region
    $region30: #{tpu_custom_call.1} parent=1 // pred_check
      _
    $region31: #{tpu_custom_call.1} parent=1 // pred_check_branch
      %80 = sbr.rel (0) target = $region33
    $region32: #{tpu_custom_call.1} parent=1 // pred_region
      _
    $region33: #{tpu_custom_call.1} parent=1 // pred_fallthru
      _
    // Predicated region
    $region34: #{tpu_custom_call.1} parent=1 // pred_check
      _
    $region35: #{tpu_custom_call.1} parent=1 // pred_check_branch
      %82 = sbr.rel (0) target = $region37
    $region36: #{tpu_custom_call.1} parent=1 // pred_region
      _
    $region37: #{tpu_custom_call.1} parent=1 // pred_fallthru
      _
    // Predicated region
    $region38: #{tpu_custom_call.1} parent=1 // pred_check
      _
    $region39: #{tpu_custom_call.1} parent=1 // pred_check_branch
      %84 = sbr.rel (0) target = $region41
    $region40: #{tpu_custom_call.1} parent=1 // pred_region
      _
    $region41: #{tpu_custom_call.1} parent=1 // pred_fallthru
      _
    // Predicated region
    $region42: #{tpu_custom_call.1} parent=1 // pred_check
      _
    $region43: #{tpu_custom_call.1} parent=1 // pred_check_branch
      %86 = sbr.rel (0) target = $region45
    $region44: #{tpu_custom_call.1} parent=1 // pred_region
      _
    $region45: #{tpu_custom_call.1} parent=1 // pred_fallthru
      _
    // Predicated region
    $region46: #{tpu_custom_call.1} parent=1 // pred_check
      _
    $region47: #{tpu_custom_call.1} parent=1 // pred_check_branch
      %88 = sbr.rel (0) target = $region49
    $region48: #{tpu_custom_call.1} parent=1 // pred_region
      %90 = dma.done [#allocation4], 16384
    $region49: #{tpu_custom_call.1} parent=1 // pred_fallthru
      _
    // Predicated region
    $region50: #{tpu_custom_call.1} parent=1 // pred_check
      _
    $region51: #{tpu_custom_call.1} parent=1 // pred_check_branch
      %92 = sbr.rel (0) target = $region53
    $region52: #{tpu_custom_call.1} parent=1 // pred_region
      %94 = dma.done [#allocation6], 32768
    $region53: #{tpu_custom_call.1} parent=1 // pred_fallthru
      _
    // Predicated region
    $region54: #{tpu_custom_call.1} parent=1 // pred_check
      _
    $region55: #{tpu_custom_call.1} parent=1 // pred_check_branch
      %96 = sbr.rel (0) target = $region57
    $region56: #{tpu_custom_call.1} parent=1 // pred_region
      %98 = dma.done [#allocation6], 8192
    $region57: #{tpu_custom_call.1} parent=1 // pred_fallthru
      _
    // Predicated region
    $region58: #{tpu_custom_call.1} parent=1 // pred_check
      _
    $region59: #{tpu_custom_call.1} parent=1 // pred_check_branch
      %100 = sbr.rel (0) target = $region61
    $region60: #{tpu_custom_call.1} parent=1 // pred_region
      %102 = dma.done [#allocation9], 2048
    $region61: #{tpu_custom_call.1} parent=1 // pred_fallthru
      _
    %v103 = vld [vmem:[#allocation3] sm:$0xff]
    %v104 = vld [vmem:[#allocation3 + $0x8] sm:$0xff]
    %v105 = vld [vmem:[#allocation3 + $0x10] sm:$0xff]
    %v106 = vld [vmem:[#allocation3 + $0x18] sm:$0xff]
    %v107 = vld [vmem:[#allocation3 + $0x20] sm:$0xff]
    %v108 = vld [vmem:[#allocation3 + $0x28] sm:$0xff]
    %v109 = vld [vmem:[#allocation3 + $0x30] sm:$0xff]
    %v110 = vld [vmem:[#allocation3 + $0x38] sm:$0xff]
    %v111 = vld [vmem:[#allocation3 + $0x40] sm:$0xff]
    %v112 = vld [vmem:[#allocation3 + $0x48] sm:$0xff]
    %v113 = vld [vmem:[#allocation3 + $0x50] sm:$0xff]
    %v114 = vld [vmem:[#allocation3 + $0x58] sm:$0xff]
    %v115 = vld [vmem:[#allocation3 + $0x60] sm:$0xff]
    %v116 = vld [vmem:[#allocation3 + $0x68] sm:$0xff]
    %v117 = vld [vmem:[#allocation3 + $0x70] sm:$0xff]
    %v118 = vld [vmem:[#allocation3 + $0x78] sm:$0xff]
    %v119 = vld [vmem:[#allocation3 + $0x80] sm:$0xff]
    %v120 = vld [vmem:[#allocation3 + $0x88] sm:$0xff]
    %v121 = vld [vmem:[#allocation3 + $0x90] sm:$0xff]
    %v122 = vld [vmem:[#allocation3 + $0x98] sm:$0xff]
    %v123 = vld [vmem:[#allocation3 + $0xa0] sm:$0xff]
    %v124 = vld [vmem:[#allocation3 + $0xa8] sm:$0xff]
    %v125 = vld [vmem:[#allocation3 + $0xb0] sm:$0xff]
    %v126 = vld [vmem:[#allocation3 + $0xb8] sm:$0xff]
    %v127 = vld [vmem:[#allocation3 + $0xc0] sm:$0xff]
    %v128 = vld [vmem:[#allocation3 + $0xc8] sm:$0xff]
    %v129 = vld [vmem:[#allocation3 + $0xd0] sm:$0xff]
    %v130 = vld [vmem:[#allocation3 + $0xd8] sm:$0xff]
    %v131 = vld [vmem:[#allocation3 + $0xe0] sm:$0xff]
    %v132 = vld [vmem:[#allocation3 + $0xe8] sm:$0xff]
    %v133 = vld [vmem:[#allocation3 + $0xf0] sm:$0xff]
    %v134 = vld [vmem:[#allocation3 + $0xf8] sm:$0xff]
    %v135 = vld [vmem:[#allocation3 + $0x100] sm:$0xff]
    %v136 = vld [vmem:[#allocation3 + $0x108] sm:$0xff]
    %v137 = vld [vmem:[#allocation3 + $0x110] sm:$0xff]
    %v138 = vld [vmem:[#allocation3 + $0x118] sm:$0xff]
    %v139 = vld [vmem:[#allocation3 + $0x120] sm:$0xff]
    %v140 = vld [vmem:[#allocation3 + $0x128] sm:$0xff]
    %v141 = vld [vmem:[#allocation3 + $0x130] sm:$0xff]
    %v142 = vld [vmem:[#allocation3 + $0x138] sm:$0xff]
    %v143 = vld [vmem:[#allocation3 + $0x140] sm:$0xff]
    %v144 = vld [vmem:[#allocation3 + $0x148] sm:$0xff]
    %v145 = vld [vmem:[#allocation3 + $0x150] sm:$0xff]
    %v146 = vld [vmem:[#allocation3 + $0x158] sm:$0xff]
    %v147 = vld [vmem:[#allocation3 + $0x160] sm:$0xff]
    %v148 = vld [vmem:[#allocation3 + $0x168] sm:$0xff]
    %v149 = vld [vmem:[#allocation3 + $0x170] sm:$0xff]
    %v150 = vld [vmem:[#allocation3 + $0x178] sm:$0xff]
    %v151 = vld [vmem:[#allocation3 + $0x180] sm:$0xff]
    %v152 = vld [vmem:[#allocation3 + $0x188] sm:$0xff]
    %v153 = vld [vmem:[#allocation3 + $0x190] sm:$0xff]
    %v154 = vld [vmem:[#allocation3 + $0x198] sm:$0xff]
    %v155 = vld [vmem:[#allocation3 + $0x1a0] sm:$0xff]
    %v156 = vld [vmem:[#allocation3 + $0x1a8] sm:$0xff]
    %v157 = vld [vmem:[#allocation3 + $0x1b0] sm:$0xff]
    %v158 = vld [vmem:[#allocation3 + $0x1b8] sm:$0xff]
    %v159 = vld [vmem:[#allocation3 + $0x1c0] sm:$0xff]
    %v160 = vld [vmem:[#allocation3 + $0x1c8] sm:$0xff]
    %v161 = vld [vmem:[#allocation3 + $0x1d0] sm:$0xff]
    %v162 = vld [vmem:[#allocation3 + $0x1d8] sm:$0xff]
    %v163 = vld [vmem:[#allocation3 + $0x1e0] sm:$0xff]
    %v164 = vld [vmem:[#allocation3 + $0x1e8] sm:$0xff]
    %v165 = vld [vmem:[#allocation3 + $0x1f0] sm:$0xff]
    %v166 = vld [vmem:[#allocation3 + $0x1f8] sm:$0xff]
    %v167 = vld [vmem:[#allocation3 + $0x200] sm:$0xff]
    %v168 = vld [vmem:[#allocation3 + $0x208] sm:$0xff]
    %v169 = vld [vmem:[#allocation3 + $0x210] sm:$0xff]
    %v170 = vld [vmem:[#allocation3 + $0x218] sm:$0xff]
    %v171 = vld [vmem:[#allocation3 + $0x220] sm:$0xff]
    %v172 = vld [vmem:[#allocation3 + $0x228] sm:$0xff]
    %v173 = vld [vmem:[#allocation3 + $0x230] sm:$0xff]
    %v174 = vld [vmem:[#allocation3 + $0x238] sm:$0xff]
    %v175 = vld [vmem:[#allocation3 + $0x240] sm:$0xff]
    %v176 = vld [vmem:[#allocation3 + $0x248] sm:$0xff]
    %v177 = vld [vmem:[#allocation3 + $0x250] sm:$0xff]
    %v178 = vld [vmem:[#allocation3 + $0x258] sm:$0xff]
    %v179 = vld [vmem:[#allocation3 + $0x260] sm:$0xff]
    %v180 = vld [vmem:[#allocation3 + $0x268] sm:$0xff]
    %v181 = vld [vmem:[#allocation3 + $0x270] sm:$0xff]
    %v182 = vld [vmem:[#allocation3 + $0x278] sm:$0xff]
    %v183 = vld [vmem:[#allocation3 + $0x280] sm:$0xff]
    %v184 = vld [vmem:[#allocation3 + $0x288] sm:$0xff]
    %v185 = vld [vmem:[#allocation3 + $0x290] sm:$0xff]
    %v186 = vld [vmem:[#allocation3 + $0x298] sm:$0xff]
    %v187 = vld [vmem:[#allocation3 + $0x2a0] sm:$0xff]
    %v188 = vld [vmem:[#allocation3 + $0x2a8] sm:$0xff]
    %v189 = vld [vmem:[#allocation3 + $0x2b0] sm:$0xff]
    %v190 = vld [vmem:[#allocation3 + $0x2b8] sm:$0xff]
    %v191 = vld [vmem:[#allocation3 + $0x2c0] sm:$0xff]
    %v192 = vld [vmem:[#allocation3 + $0x2c8] sm:$0xff]
    %v193 = vld [vmem:[#allocation3 + $0x2d0] sm:$0xff]
    %v194 = vld [vmem:[#allocation3 + $0x2d8] sm:$0xff]
    %v195 = vld [vmem:[#allocation3 + $0x2e0] sm:$0xff]
    %v196 = vld [vmem:[#allocation3 + $0x2e8] sm:$0xff]
    %v197 = vld [vmem:[#allocation3 + $0x2f0] sm:$0xff]
    %v198 = vld [vmem:[#allocation3 + $0x2f8] sm:$0xff]
    %v199 = vld [vmem:[#allocation3 + $0x300] sm:$0xff]
    %v200 = vld [vmem:[#allocation3 + $0x308] sm:$0xff]
    %v201 = vld [vmem:[#allocation3 + $0x310] sm:$0xff]
    %v202 = vld [vmem:[#allocation3 + $0x318] sm:$0xff]
    %v203 = vld [vmem:[#allocation3 + $0x320] sm:$0xff]
    %v204 = vld [vmem:[#allocation3 + $0x328] sm:$0xff]
    %v205 = vld [vmem:[#allocation3 + $0x330] sm:$0xff]
    %v206 = vld [vmem:[#allocation3 + $0x338] sm:$0xff]
    %v207 = vld [vmem:[#allocation3 + $0x340] sm:$0xff]
    %v208 = vld [vmem:[#allocation3 + $0x348] sm:$0xff]
    %v209 = vld [vmem:[#allocation3 + $0x350] sm:$0xff]
    %v210 = vld [vmem:[#allocation3 + $0x358] sm:$0xff]
    %v211 = vld [vmem:[#allocation3 + $0x360] sm:$0xff]
    %v212 = vld [vmem:[#allocation3 + $0x368] sm:$0xff]
    %v213 = vld [vmem:[#allocation3 + $0x370] sm:$0xff]
    %v214 = vld [vmem:[#allocation3 + $0x378] sm:$0xff]
    %v215 = vld [vmem:[#allocation3 + $0x380] sm:$0xff]
    %v216 = vld [vmem:[#allocation3 + $0x388] sm:$0xff]
    %v217 = vld [vmem:[#allocation3 + $0x390] sm:$0xff]
    %v218 = vld [vmem:[#allocation3 + $0x398] sm:$0xff]
    %v219 = vld [vmem:[#allocation3 + $0x3a0] sm:$0xff]
    %v220 = vld [vmem:[#allocation3 + $0x3a8] sm:$0xff]
    %v221 = vld [vmem:[#allocation3 + $0x3b0] sm:$0xff]
    %v222 = vld [vmem:[#allocation3 + $0x3b8] sm:$0xff]
    %v223 = vld [vmem:[#allocation3 + $0x3c0] sm:$0xff]
    %v224 = vld [vmem:[#allocation3 + $0x3c8] sm:$0xff]
    %v225 = vld [vmem:[#allocation3 + $0x3d0] sm:$0xff]
    %v226 = vld [vmem:[#allocation3 + $0x3d8] sm:$0xff]
    %v227 = vld [vmem:[#allocation3 + $0x3e0] sm:$0xff]
    %v228 = vld [vmem:[#allocation3 + $0x3e8] sm:$0xff]
    %v229 = vld [vmem:[#allocation3 + $0x3f0] sm:$0xff]
    %v230 = vld [vmem:[#allocation3 + $0x3f8] sm:$0xff]
    %v231 = vld [vmem:[#allocation5] sm:$0xff]
    %v232 = vld [vmem:[#allocation5 + $0x8] sm:$0xff]
    %v233 = vld [vmem:[#allocation5 + $0x10] sm:$0xff]
    %v234 = vld [vmem:[#allocation5 + $0x18] sm:$0xff]
    %v235 = vld [vmem:[#allocation5 + $0x20] sm:$0xff]
    %v236 = vld [vmem:[#allocation5 + $0x28] sm:$0xff]
    %v237 = vld [vmem:[#allocation5 + $0x30] sm:$0xff]
    %v238 = vld [vmem:[#allocation5 + $0x38] sm:$0xff]
    %v239 = vld [vmem:[#allocation5 + $0x40] sm:$0xff]
    %v240 = vld [vmem:[#allocation5 + $0x48] sm:$0xff]
    %v241 = vld [vmem:[#allocation5 + $0x50] sm:$0xff]
    %v242 = vld [vmem:[#allocation5 + $0x58] sm:$0xff]
    %v243 = vld [vmem:[#allocation5 + $0x60] sm:$0xff]
    %v244 = vld [vmem:[#allocation5 + $0x68] sm:$0xff]
    %v245 = vld [vmem:[#allocation5 + $0x70] sm:$0xff]
    %v246 = vld [vmem:[#allocation5 + $0x78] sm:$0xff]
    %v247 = vld [vmem:[#allocation5 + $0x80] sm:$0xff]
    %v248 = vld [vmem:[#allocation5 + $0x88] sm:$0xff]
    %v249 = vld [vmem:[#allocation5 + $0x90] sm:$0xff]
    %v250 = vld [vmem:[#allocation5 + $0x98] sm:$0xff]
    %v251 = vld [vmem:[#allocation5 + $0xa0] sm:$0xff]
    %v252 = vld [vmem:[#allocation5 + $0xa8] sm:$0xff]
    %v253 = vld [vmem:[#allocation5 + $0xb0] sm:$0xff]
    %v254 = vld [vmem:[#allocation5 + $0xb8] sm:$0xff]
    %v255 = vld [vmem:[#allocation5 + $0xc0] sm:$0xff]
    %v256 = vld [vmem:[#allocation5 + $0xc8] sm:$0xff]
    %v257 = vld [vmem:[#allocation5 + $0xd0] sm:$0xff]
    %v258 = vld [vmem:[#allocation5 + $0xd8] sm:$0xff]
    %v259 = vld [vmem:[#allocation5 + $0xe0] sm:$0xff]
    %v260 = vld [vmem:[#allocation5 + $0xe8] sm:$0xff]
    %v261 = vld [vmem:[#allocation5 + $0xf0] sm:$0xff]
    %v262 = vld [vmem:[#allocation5 + $0xf8] sm:$0xff]
    %v263 = vld [vmem:[#allocation5 + $0x100] sm:$0xff]
    %v264 = vld [vmem:[#allocation5 + $0x108] sm:$0xff]
    %v265 = vld [vmem:[#allocation5 + $0x110] sm:$0xff]
    %v266 = vld [vmem:[#allocation5 + $0x118] sm:$0xff]
    %v267 = vld [vmem:[#allocation5 + $0x120] sm:$0xff]
    %v268 = vld [vmem:[#allocation5 + $0x128] sm:$0xff]
    %v269 = vld [vmem:[#allocation5 + $0x130] sm:$0xff]
    %v270 = vld [vmem:[#allocation5 + $0x138] sm:$0xff]
    %v271 = vld [vmem:[#allocation5 + $0x140] sm:$0xff]
    %v272 = vld [vmem:[#allocation5 + $0x148] sm:$0xff]
    %v273 = vld [vmem:[#allocation5 + $0x150] sm:$0xff]
    %v274 = vld [vmem:[#allocation5 + $0x158] sm:$0xff]
    %v275 = vld [vmem:[#allocation5 + $0x160] sm:$0xff]
    %v276 = vld [vmem:[#allocation5 + $0x168] sm:$0xff]
    %v277 = vld [vmem:[#allocation5 + $0x170] sm:$0xff]
    %v278 = vld [vmem:[#allocation5 + $0x178] sm:$0xff]
    %v279 = vld [vmem:[#allocation5 + $0x180] sm:$0xff]
    %v280 = vld [vmem:[#allocation5 + $0x188] sm:$0xff]
    %v281 = vld [vmem:[#allocation5 + $0x190] sm:$0xff]
    %v282 = vld [vmem:[#allocation5 + $0x198] sm:$0xff]
    %v283 = vld [vmem:[#allocation5 + $0x1a0] sm:$0xff]
    %v284 = vld [vmem:[#allocation5 + $0x1a8] sm:$0xff]
    %v285 = vld [vmem:[#allocation5 + $0x1b0] sm:$0xff]
    %v286 = vld [vmem:[#allocation5 + $0x1b8] sm:$0xff]
    %v287 = vld [vmem:[#allocation5 + $0x1c0] sm:$0xff]
    %v288 = vld [vmem:[#allocation5 + $0x1c8] sm:$0xff]
    %v289 = vld [vmem:[#allocation5 + $0x1d0] sm:$0xff]
    %v290 = vld [vmem:[#allocation5 + $0x1d8] sm:$0xff]
    %v291 = vld [vmem:[#allocation5 + $0x1e0] sm:$0xff]
    %v292 = vld [vmem:[#allocation5 + $0x1e8] sm:$0xff]
    %v293 = vld [vmem:[#allocation5 + $0x1f0] sm:$0xff]
    %v294 = vld [vmem:[#allocation5 + $0x1f8] sm:$0xff]
    %v295 = vld [vmem:[#allocation5 + $0x200] sm:$0xff]
    %v296 = vld [vmem:[#allocation5 + $0x208] sm:$0xff]
    %v297 = vld [vmem:[#allocation5 + $0x210] sm:$0xff]
    %v298 = vld [vmem:[#allocation5 + $0x218] sm:$0xff]
    %v299 = vld [vmem:[#allocation5 + $0x220] sm:$0xff]
    %v300 = vld [vmem:[#allocation5 + $0x228] sm:$0xff]
    %v301 = vld [vmem:[#allocation5 + $0x230] sm:$0xff]
    %v302 = vld [vmem:[#allocation5 + $0x238] sm:$0xff]
    %v303 = vld [vmem:[#allocation5 + $0x240] sm:$0xff]
    %v304 = vld [vmem:[#allocation5 + $0x248] sm:$0xff]
    %v305 = vld [vmem:[#allocation5 + $0x250] sm:$0xff]
    %v306 = vld [vmem:[#allocation5 + $0x258] sm:$0xff]
    %v307 = vld [vmem:[#allocation5 + $0x260] sm:$0xff]
    %v308 = vld [vmem:[#allocation5 + $0x268] sm:$0xff]
    %v309 = vld [vmem:[#allocation5 + $0x270] sm:$0xff]
    %v310 = vld [vmem:[#allocation5 + $0x278] sm:$0xff]
    %v311 = vld [vmem:[#allocation5 + $0x280] sm:$0xff]
    %v312 = vld [vmem:[#allocation5 + $0x288] sm:$0xff]
    %v313 = vld [vmem:[#allocation5 + $0x290] sm:$0xff]
    %v314 = vld [vmem:[#allocation5 + $0x298] sm:$0xff]
    %v315 = vld [vmem:[#allocation5 + $0x2a0] sm:$0xff]
    %v316 = vld [vmem:[#allocation5 + $0x2a8] sm:$0xff]
    %v317 = vld [vmem:[#allocation5 + $0x2b0] sm:$0xff]
    %v318 = vld [vmem:[#allocation5 + $0x2b8] sm:$0xff]
    %v319 = vld [vmem:[#allocation5 + $0x2c0] sm:$0xff]
    %v320 = vld [vmem:[#allocation5 + $0x2c8] sm:$0xff]
    %v321 = vld [vmem:[#allocation5 + $0x2d0] sm:$0xff]
    %v322 = vld [vmem:[#allocation5 + $0x2d8] sm:$0xff]
    %v323 = vld [vmem:[#allocation5 + $0x2e0] sm:$0xff]
    %v324 = vld [vmem:[#allocation5 + $0x2e8] sm:$0xff]
    %v325 = vld [vmem:[#allocation5 + $0x2f0] sm:$0xff]
    %v326 = vld [vmem:[#allocation5 + $0x2f8] sm:$0xff]
    %v327 = vld [vmem:[#allocation5 + $0x300] sm:$0xff]
    %v328 = vld [vmem:[#allocation5 + $0x308] sm:$0xff]
    %v329 = vld [vmem:[#allocation5 + $0x310] sm:$0xff]
    %v330 = vld [vmem:[#allocation5 + $0x318] sm:$0xff]
    %v331 = vld [vmem:[#allocation5 + $0x320] sm:$0xff]
    %v332 = vld [vmem:[#allocation5 + $0x328] sm:$0xff]
    %v333 = vld [vmem:[#allocation5 + $0x330] sm:$0xff]
    %v334 = vld [vmem:[#allocation5 + $0x338] sm:$0xff]
    %v335 = vld [vmem:[#allocation5 + $0x340] sm:$0xff]
    %v336 = vld [vmem:[#allocation5 + $0x348] sm:$0xff]
    %v337 = vld [vmem:[#allocation5 + $0x350] sm:$0xff]
    %v338 = vld [vmem:[#allocation5 + $0x358] sm:$0xff]
    %v339 = vld [vmem:[#allocation5 + $0x360] sm:$0xff]
    %v340 = vld [vmem:[#allocation5 + $0x368] sm:$0xff]
    %v341 = vld [vmem:[#allocation5 + $0x370] sm:$0xff]
    %v342 = vld [vmem:[#allocation5 + $0x378] sm:$0xff]
    %v343 = vld [vmem:[#allocation5 + $0x380] sm:$0xff]
    %v344 = vld [vmem:[#allocation5 + $0x388] sm:$0xff]
    %v345 = vld [vmem:[#allocation5 + $0x390] sm:$0xff]
    %v346 = vld [vmem:[#allocation5 + $0x398] sm:$0xff]
    %v347 = vld [vmem:[#allocation5 + $0x3a0] sm:$0xff]
    %v348 = vld [vmem:[#allocation5 + $0x3a8] sm:$0xff]
    %v349 = vld [vmem:[#allocation5 + $0x3b0] sm:$0xff]
    %v350 = vld [vmem:[#allocation5 + $0x3b8] sm:$0xff]
    %v351 = vld [vmem:[#allocation5 + $0x3c0] sm:$0xff]
    %v352 = vld [vmem:[#allocation5 + $0x3c8] sm:$0xff]
    %v353 = vld [vmem:[#allocation5 + $0x3d0] sm:$0xff]
    %v354 = vld [vmem:[#allocation5 + $0x3d8] sm:$0xff]
    %v355 = vld [vmem:[#allocation5 + $0x3e0] sm:$0xff]
    %v356 = vld [vmem:[#allocation5 + $0x3e8] sm:$0xff]
    %v357 = vld [vmem:[#allocation5 + $0x3f0] sm:$0xff]
    %v358 = vld [vmem:[#allocation5 + $0x3f8] sm:$0xff]
    %v359 = vld [vmem:[#allocation5 + $0x400] sm:$0xff]
    %v360 = vld [vmem:[#allocation5 + $0x408] sm:$0xff]
    %v361 = vld [vmem:[#allocation5 + $0x410] sm:$0xff]
    %v362 = vld [vmem:[#allocation5 + $0x418] sm:$0xff]
    %v363 = vld [vmem:[#allocation5 + $0x420] sm:$0xff]
    %v364 = vld [vmem:[#allocation5 + $0x428] sm:$0xff]
    %v365 = vld [vmem:[#allocation5 + $0x430] sm:$0xff]
    %v366 = vld [vmem:[#allocation5 + $0x438] sm:$0xff]
    %v367 = vld [vmem:[#allocation5 + $0x440] sm:$0xff]
    %v368 = vld [vmem:[#allocation5 + $0x448] sm:$0xff]
    %v369 = vld [vmem:[#allocation5 + $0x450] sm:$0xff]
    %v370 = vld [vmem:[#allocation5 + $0x458] sm:$0xff]
    %v371 = vld [vmem:[#allocation5 + $0x460] sm:$0xff]
    %v372 = vld [vmem:[#allocation5 + $0x468] sm:$0xff]
    %v373 = vld [vmem:[#allocation5 + $0x470] sm:$0xff]
    %v374 = vld [vmem:[#allocation5 + $0x478] sm:$0xff]
    %v375 = vld [vmem:[#allocation5 + $0x480] sm:$0xff]
    %v376 = vld [vmem:[#allocation5 + $0x488] sm:$0xff]
    %v377 = vld [vmem:[#allocation5 + $0x490] sm:$0xff]
    %v378 = vld [vmem:[#allocation5 + $0x498] sm:$0xff]
    %v379 = vld [vmem:[#allocation5 + $0x4a0] sm:$0xff]
    %v380 = vld [vmem:[#allocation5 + $0x4a8] sm:$0xff]
    %v381 = vld [vmem:[#allocation5 + $0x4b0] sm:$0xff]
    %v382 = vld [vmem:[#allocation5 + $0x4b8] sm:$0xff]
    %v383 = vld [vmem:[#allocation5 + $0x4c0] sm:$0xff]
    %v384 = vld [vmem:[#allocation5 + $0x4c8] sm:$0xff]
    %v385 = vld [vmem:[#allocation5 + $0x4d0] sm:$0xff]
    %v386 = vld [vmem:[#allocation5 + $0x4d8] sm:$0xff]
    %v387 = vld [vmem:[#allocation5 + $0x4e0] sm:$0xff]
    %v388 = vld [vmem:[#allocation5 + $0x4e8] sm:$0xff]
    %v389 = vld [vmem:[#allocation5 + $0x4f0] sm:$0xff]
    %v390 = vld [vmem:[#allocation5 + $0x4f8] sm:$0xff]
    %v391 = vld [vmem:[#allocation5 + $0x500] sm:$0xff]
    %v392 = vld [vmem:[#allocation5 + $0x508] sm:$0xff]
    %v393 = vld [vmem:[#allocation5 + $0x510] sm:$0xff]
    %v394 = vld [vmem:[#allocation5 + $0x518] sm:$0xff]
    %v395 = vld [vmem:[#allocation5 + $0x520] sm:$0xff]
    %v396 = vld [vmem:[#allocation5 + $0x528] sm:$0xff]
    %v397 = vld [vmem:[#allocation5 + $0x530] sm:$0xff]
    %v398 = vld [vmem:[#allocation5 + $0x538] sm:$0xff]
    %v399 = vld [vmem:[#allocation5 + $0x540] sm:$0xff]
    %v400 = vld [vmem:[#allocation5 + $0x548] sm:$0xff]
    %v401 = vld [vmem:[#allocation5 + $0x550] sm:$0xff]
    %v402 = vld [vmem:[#allocation5 + $0x558] sm:$0xff]
    %v403 = vld [vmem:[#allocation5 + $0x560] sm:$0xff]
    %v404 = vld [vmem:[#allocation5 + $0x568] sm:$0xff]
    %v405 = vld [vmem:[#allocation5 + $0x570] sm:$0xff]
    %v406 = vld [vmem:[#allocation5 + $0x578] sm:$0xff]
    %v407 = vld [vmem:[#allocation5 + $0x580] sm:$0xff]
    %v408 = vld [vmem:[#allocation5 + $0x588] sm:$0xff]
    %v409 = vld [vmem:[#allocation5 + $0x590] sm:$0xff]
    %v410 = vld [vmem:[#allocation5 + $0x598] sm:$0xff]
    %v411 = vld [vmem:[#allocation5 + $0x5a0] sm:$0xff]
    %v412 = vld [vmem:[#allocation5 + $0x5a8] sm:$0xff]
    %v413 = vld [vmem:[#allocation5 + $0x5b0] sm:$0xff]
    %v414 = vld [vmem:[#allocation5 + $0x5b8] sm:$0xff]
    %v415 = vld [vmem:[#allocation5 + $0x5c0] sm:$0xff]
    %v416 = vld [vmem:[#allocation5 + $0x5c8] sm:$0xff]
    %v417 = vld [vmem:[#allocation5 + $0x5d0] sm:$0xff]
    %v418 = vld [vmem:[#allocation5 + $0x5d8] sm:$0xff]
    %v419 = vld [vmem:[#allocation5 + $0x5e0] sm:$0xff]
    %v420 = vld [vmem:[#allocation5 + $0x5e8] sm:$0xff]
    %v421 = vld [vmem:[#allocation5 + $0x5f0] sm:$0xff]
    %v422 = vld [vmem:[#allocation5 + $0x5f8] sm:$0xff]
    %v423 = vld [vmem:[#allocation5 + $0x600] sm:$0xff]
    %v424 = vld [vmem:[#allocation5 + $0x608] sm:$0xff]
    %v425 = vld [vmem:[#allocation5 + $0x610] sm:$0xff]
    %v426 = vld [vmem:[#allocation5 + $0x618] sm:$0xff]
    %v427 = vld [vmem:[#allocation5 + $0x620] sm:$0xff]
    %v428 = vld [vmem:[#allocation5 + $0x628] sm:$0xff]
    %v429 = vld [vmem:[#allocation5 + $0x630] sm:$0xff]
    %v430 = vld [vmem:[#allocation5 + $0x638] sm:$0xff]
    %v431 = vld [vmem:[#allocation5 + $0x640] sm:$0xff]
    %v432 = vld [vmem:[#allocation5 + $0x648] sm:$0xff]
    %v433 = vld [vmem:[#allocation5 + $0x650] sm:$0xff]
    %v434 = vld [vmem:[#allocation5 + $0x658] sm:$0xff]
    %v435 = vld [vmem:[#allocation5 + $0x660] sm:$0xff]
    %v436 = vld [vmem:[#allocation5 + $0x668] sm:$0xff]
    %v437 = vld [vmem:[#allocation5 + $0x670] sm:$0xff]
    %v438 = vld [vmem:[#allocation5 + $0x678] sm:$0xff]
    %v439 = vld [vmem:[#allocation5 + $0x680] sm:$0xff]
    %v440 = vld [vmem:[#allocation5 + $0x688] sm:$0xff]
    %v441 = vld [vmem:[#allocation5 + $0x690] sm:$0xff]
    %v442 = vld [vmem:[#allocation5 + $0x698] sm:$0xff]
    %v443 = vld [vmem:[#allocation5 + $0x6a0] sm:$0xff]
    %v444 = vld [vmem:[#allocation5 + $0x6a8] sm:$0xff]
    %v445 = vld [vmem:[#allocation5 + $0x6b0] sm:$0xff]
    %v446 = vld [vmem:[#allocation5 + $0x6b8] sm:$0xff]
    %v447 = vld [vmem:[#allocation5 + $0x6c0] sm:$0xff]
    %v448 = vld [vmem:[#allocation5 + $0x6c8] sm:$0xff]
    %v449 = vld [vmem:[#allocation5 + $0x6d0] sm:$0xff]
    %v450 = vld [vmem:[#allocation5 + $0x6d8] sm:$0xff]
    %v451 = vld [vmem:[#allocation5 + $0x6e0] sm:$0xff]
    %v452 = vld [vmem:[#allocation5 + $0x6e8] sm:$0xff]
    %v453 = vld [vmem:[#allocation5 + $0x6f0] sm:$0xff]
    %v454 = vld [vmem:[#allocation5 + $0x6f8] sm:$0xff]
    %v455 = vld [vmem:[#allocation5 + $0x700] sm:$0xff]
    %v456 = vld [vmem:[#allocation5 + $0x708] sm:$0xff]
    %v457 = vld [vmem:[#allocation5 + $0x710] sm:$0xff]
    %v458 = vld [vmem:[#allocation5 + $0x718] sm:$0xff]
    %v459 = vld [vmem:[#allocation5 + $0x720] sm:$0xff]
    %v460 = vld [vmem:[#allocation5 + $0x728] sm:$0xff]
    %v461 = vld [vmem:[#allocation5 + $0x730] sm:$0xff]
    %v462 = vld [vmem:[#allocation5 + $0x738] sm:$0xff]
    %v463 = vld [vmem:[#allocation5 + $0x740] sm:$0xff]
    %v464 = vld [vmem:[#allocation5 + $0x748] sm:$0xff]
    %v465 = vld [vmem:[#allocation5 + $0x750] sm:$0xff]
    %v466 = vld [vmem:[#allocation5 + $0x758] sm:$0xff]
    %v467 = vld [vmem:[#allocation5 + $0x760] sm:$0xff]
    %v468 = vld [vmem:[#allocation5 + $0x768] sm:$0xff]
    %v469 = vld [vmem:[#allocation5 + $0x770] sm:$0xff]
    %v470 = vld [vmem:[#allocation5 + $0x778] sm:$0xff]
    %v471 = vld [vmem:[#allocation5 + $0x780] sm:$0xff]
    %v472 = vld [vmem:[#allocation5 + $0x788] sm:$0xff]
    %v473 = vld [vmem:[#allocation5 + $0x790] sm:$0xff]
    %v474 = vld [vmem:[#allocation5 + $0x798] sm:$0xff]
    %v475 = vld [vmem:[#allocation5 + $0x7a0] sm:$0xff]
    %v476 = vld [vmem:[#allocation5 + $0x7a8] sm:$0xff]
    %v477 = vld [vmem:[#allocation5 + $0x7b0] sm:$0xff]
    %v478 = vld [vmem:[#allocation5 + $0x7b8] sm:$0xff]
    %v479 = vld [vmem:[#allocation5 + $0x7c0] sm:$0xff]
    %v480 = vld [vmem:[#allocation5 + $0x7c8] sm:$0xff]
    %v481 = vld [vmem:[#allocation5 + $0x7d0] sm:$0xff]
    %v482 = vld [vmem:[#allocation5 + $0x7d8] sm:$0xff]
    %v483 = vld [vmem:[#allocation5 + $0x7e0] sm:$0xff]
    %v484 = vld [vmem:[#allocation5 + $0x7e8] sm:$0xff]
    %v485 = vld [vmem:[#allocation5 + $0x7f0] sm:$0xff]
    %v486 = vld [vmem:[#allocation5 + $0x7f8] sm:$0xff]
    %v487 = vld [vmem:[%s2] sm:$0xf]
    %v489 = vperm.slane %v487, 0
    %v490 = vperm.slane %v487, 1
    %v491 = vperm.slane %v487, 2
    %v492 = vperm.slane %v487, 3
    %v625 = vunpack.c.l.b16 %v103
    %v626 = vunpack.c.h.b16 %v103
    %v627 = vunpack.c.l.b16 %v104
    %v628 = vunpack.c.h.b16 %v104
    %v629 = vunpack.c.l.b16 %v105
    %v630 = vunpack.c.h.b16 %v105
    %v631 = vunpack.c.l.b16 %v106
    %v632 = vunpack.c.h.b16 %v106
    %v633 = vunpack.c.l.b16 %v107
    %v634 = vunpack.c.h.b16 %v107
    %v635 = vunpack.c.l.b16 %v108
    %v636 = vunpack.c.h.b16 %v108
    %v637 = vunpack.c.l.b16 %v109
    %v638 = vunpack.c.h.b16 %v109
    %v639 = vunpack.c.l.b16 %v110
    %v640 = vunpack.c.h.b16 %v110
    %v641 = vunpack.c.l.b16 %v111
    %v642 = vunpack.c.h.b16 %v111
    %v643 = vunpack.c.l.b16 %v112
    %v644 = vunpack.c.h.b16 %v112
    %v645 = vunpack.c.l.b16 %v113
    %v646 = vunpack.c.h.b16 %v113
    %v647 = vunpack.c.l.b16 %v114
    %v648 = vunpack.c.h.b16 %v114
    %v649 = vunpack.c.l.b16 %v115
    %v650 = vunpack.c.h.b16 %v115
    %v651 = vunpack.c.l.b16 %v116
    %v652 = vunpack.c.h.b16 %v116
    %v653 = vunpack.c.l.b16 %v117
    %v654 = vunpack.c.h.b16 %v117
    %v655 = vunpack.c.l.b16 %v118
    %v656 = vunpack.c.h.b16 %v118
    %v657 = vunpack.c.l.b16 %v119
    %v658 = vunpack.c.h.b16 %v119
    %v659 = vunpack.c.l.b16 %v120
    %v660 = vunpack.c.h.b16 %v120
    %v661 = vunpack.c.l.b16 %v121
    %v662 = vunpack.c.h.b16 %v121
    %v663 = vunpack.c.l.b16 %v122
    %v664 = vunpack.c.h.b16 %v122
    %v665 = vunpack.c.l.b16 %v123
    %v666 = vunpack.c.h.b16 %v123
    %v667 = vunpack.c.l.b16 %v124
    %v668 = vunpack.c.h.b16 %v124
    %v669 = vunpack.c.l.b16 %v125
    %v670 = vunpack.c.h.b16 %v125
    %v671 = vunpack.c.l.b16 %v126
    %v672 = vunpack.c.h.b16 %v126
    %v673 = vunpack.c.l.b16 %v127
    %v674 = vunpack.c.h.b16 %v127
    %v675 = vunpack.c.l.b16 %v128
    %v676 = vunpack.c.h.b16 %v128
    %v677 = vunpack.c.l.b16 %v129
    %v678 = vunpack.c.h.b16 %v129
    %v679 = vunpack.c.l.b16 %v130
    %v680 = vunpack.c.h.b16 %v130
    %v681 = vunpack.c.l.b16 %v131
    %v682 = vunpack.c.h.b16 %v131
    %v683 = vunpack.c.l.b16 %v132
    %v684 = vunpack.c.h.b16 %v132
    %v685 = vunpack.c.l.b16 %v133
    %v686 = vunpack.c.h.b16 %v133
    %v687 = vunpack.c.l.b16 %v134
    %v688 = vunpack.c.h.b16 %v134
    %v689 = vunpack.c.l.b16 %v135
    %v690 = vunpack.c.h.b16 %v135
    %v691 = vunpack.c.l.b16 %v136
    %v692 = vunpack.c.h.b16 %v136
    %v693 = vunpack.c.l.b16 %v137
    %v694 = vunpack.c.h.b16 %v137
    %v695 = vunpack.c.l.b16 %v138
    %v696 = vunpack.c.h.b16 %v138
    %v697 = vunpack.c.l.b16 %v139
    %v698 = vunpack.c.h.b16 %v139
    %v699 = vunpack.c.l.b16 %v140
    %v700 = vunpack.c.h.b16 %v140
    %v701 = vunpack.c.l.b16 %v141
    %v702 = vunpack.c.h.b16 %v141
    %v703 = vunpack.c.l.b16 %v142
    %v704 = vunpack.c.h.b16 %v142
    %v705 = vunpack.c.l.b16 %v143
    %v706 = vunpack.c.h.b16 %v143
    %v707 = vunpack.c.l.b16 %v144
    %v708 = vunpack.c.h.b16 %v144
    %v709 = vunpack.c.l.b16 %v145
    %v710 = vunpack.c.h.b16 %v145
    %v711 = vunpack.c.l.b16 %v146
    %v712 = vunpack.c.h.b16 %v146
    %v713 = vunpack.c.l.b16 %v147
    %v714 = vunpack.c.h.b16 %v147
    %v715 = vunpack.c.l.b16 %v148
    %v716 = vunpack.c.h.b16 %v148
    %v717 = vunpack.c.l.b16 %v149
    %v718 = vunpack.c.h.b16 %v149
    %v719 = vunpack.c.l.b16 %v150
    %v720 = vunpack.c.h.b16 %v150
    %v721 = vunpack.c.l.b16 %v151
    %v722 = vunpack.c.h.b16 %v151
    %v723 = vunpack.c.l.b16 %v152
    %v724 = vunpack.c.h.b16 %v152
    %v725 = vunpack.c.l.b16 %v153
    %v726 = vunpack.c.h.b16 %v153
    %v727 = vunpack.c.l.b16 %v154
    %v728 = vunpack.c.h.b16 %v154
    %v729 = vunpack.c.l.b16 %v155
    %v730 = vunpack.c.h.b16 %v155
    %v731 = vunpack.c.l.b16 %v156
    %v732 = vunpack.c.h.b16 %v156
    %v733 = vunpack.c.l.b16 %v157
    %v734 = vunpack.c.h.b16 %v157
    %v735 = vunpack.c.l.b16 %v158
    %v736 = vunpack.c.h.b16 %v158
    %v737 = vunpack.c.l.b16 %v159
    %v738 = vunpack.c.h.b16 %v159
    %v739 = vunpack.c.l.b16 %v160
    %v740 = vunpack.c.h.b16 %v160
    %v741 = vunpack.c.l.b16 %v161
    %v742 = vunpack.c.h.b16 %v161
    %v743 = vunpack.c.l.b16 %v162
    %v744 = vunpack.c.h.b16 %v162
    %v745 = vunpack.c.l.b16 %v163
    %v746 = vunpack.c.h.b16 %v163
    %v747 = vunpack.c.l.b16 %v164
    %v748 = vunpack.c.h.b16 %v164
    %v749 = vunpack.c.l.b16 %v165
    %v750 = vunpack.c.h.b16 %v165
    %v751 = vunpack.c.l.b16 %v166
    %v752 = vunpack.c.h.b16 %v166
    %v753 = vunpack.c.l.b16 %v167
    %v754 = vunpack.c.h.b16 %v167
    %v755 = vunpack.c.l.b16 %v168
    %v756 = vunpack.c.h.b16 %v168
    %v757 = vunpack.c.l.b16 %v169
    %v758 = vunpack.c.h.b16 %v169
    %v759 = vunpack.c.l.b16 %v170
    %v760 = vunpack.c.h.b16 %v170
    %v761 = vunpack.c.l.b16 %v171
    %v762 = vunpack.c.h.b16 %v171
    %v763 = vunpack.c.l.b16 %v172
    %v764 = vunpack.c.h.b16 %v172
    %v765 = vunpack.c.l.b16 %v173
    %v766 = vunpack.c.h.b16 %v173
    %v767 = vunpack.c.l.b16 %v174
    %v768 = vunpack.c.h.b16 %v174
    %v769 = vunpack.c.l.b16 %v175
    %v770 = vunpack.c.h.b16 %v175
    %v771 = vunpack.c.l.b16 %v176
    %v772 = vunpack.c.h.b16 %v176
    %v773 = vunpack.c.l.b16 %v177
    %v774 = vunpack.c.h.b16 %v177
    %v775 = vunpack.c.l.b16 %v178
    %v776 = vunpack.c.h.b16 %v178
    %v777 = vunpack.c.l.b16 %v179
    %v778 = vunpack.c.h.b16 %v179
    %v779 = vunpack.c.l.b16 %v180
    %v780 = vunpack.c.h.b16 %v180
    %v781 = vunpack.c.l.b16 %v181
    %v782 = vunpack.c.h.b16 %v181
    %v783 = vunpack.c.l.b16 %v182
    %v784 = vunpack.c.h.b16 %v182
    %v785 = vunpack.c.l.b16 %v183
    %v786 = vunpack.c.h.b16 %v183
    %v787 = vunpack.c.l.b16 %v184
    %v788 = vunpack.c.h.b16 %v184
    %v789 = vunpack.c.l.b16 %v185
    %v790 = vunpack.c.h.b16 %v185
    %v791 = vunpack.c.l.b16 %v186
    %v792 = vunpack.c.h.b16 %v186
    %v793 = vunpack.c.l.b16 %v187
    %v794 = vunpack.c.h.b16 %v187
    %v795 = vunpack.c.l.b16 %v188
    %v796 = vunpack.c.h.b16 %v188
    %v797 = vunpack.c.l.b16 %v189
    %v798 = vunpack.c.h.b16 %v189
    %v799 = vunpack.c.l.b16 %v190
    %v800 = vunpack.c.h.b16 %v190
    %v801 = vunpack.c.l.b16 %v191
    %v802 = vunpack.c.h.b16 %v191
    %v803 = vunpack.c.l.b16 %v192
    %v804 = vunpack.c.h.b16 %v192
    %v805 = vunpack.c.l.b16 %v193
    %v806 = vunpack.c.h.b16 %v193
    %v807 = vunpack.c.l.b16 %v194
    %v808 = vunpack.c.h.b16 %v194
    %v809 = vunpack.c.l.b16 %v195
    %v810 = vunpack.c.h.b16 %v195
    %v811 = vunpack.c.l.b16 %v196
    %v812 = vunpack.c.h.b16 %v196
    %v813 = vunpack.c.l.b16 %v197
    %v814 = vunpack.c.h.b16 %v197
    %v815 = vunpack.c.l.b16 %v198
    %v816 = vunpack.c.h.b16 %v198
    %v817 = vunpack.c.l.b16 %v199
    %v818 = vunpack.c.h.b16 %v199
    %v819 = vunpack.c.l.b16 %v200
    %v820 = vunpack.c.h.b16 %v200
    %v821 = vunpack.c.l.b16 %v201
    %v822 = vunpack.c.h.b16 %v201
    %v823 = vunpack.c.l.b16 %v202
    %v824 = vunpack.c.h.b16 %v202
    %v825 = vunpack.c.l.b16 %v203
    %v826 = vunpack.c.h.b16 %v203
    %v827 = vunpack.c.l.b16 %v204
    %v828 = vunpack.c.h.b16 %v204
    %v829 = vunpack.c.l.b16 %v205
    %v830 = vunpack.c.h.b16 %v205
    %v831 = vunpack.c.l.b16 %v206
    %v832 = vunpack.c.h.b16 %v206
    %v833 = vunpack.c.l.b16 %v207
    %v834 = vunpack.c.h.b16 %v207
    %v835 = vunpack.c.l.b16 %v208
    %v836 = vunpack.c.h.b16 %v208
    %v837 = vunpack.c.l.b16 %v209
    %v838 = vunpack.c.h.b16 %v209
    %v839 = vunpack.c.l.b16 %v210
    %v840 = vunpack.c.h.b16 %v210
    %v841 = vunpack.c.l.b16 %v211
    %v842 = vunpack.c.h.b16 %v211
    %v843 = vunpack.c.l.b16 %v212
    %v844 = vunpack.c.h.b16 %v212
    %v845 = vunpack.c.l.b16 %v213
    %v846 = vunpack.c.h.b16 %v213
    %v847 = vunpack.c.l.b16 %v214
    %v848 = vunpack.c.h.b16 %v214
    %v849 = vunpack.c.l.b16 %v215
    %v850 = vunpack.c.h.b16 %v215
    %v851 = vunpack.c.l.b16 %v216
    %v852 = vunpack.c.h.b16 %v216
    %v853 = vunpack.c.l.b16 %v217
    %v854 = vunpack.c.h.b16 %v217
    %v855 = vunpack.c.l.b16 %v218
    %v856 = vunpack.c.h.b16 %v218
    %v857 = vunpack.c.l.b16 %v219
    %v858 = vunpack.c.h.b16 %v219
    %v859 = vunpack.c.l.b16 %v220
    %v860 = vunpack.c.h.b16 %v220
    %v861 = vunpack.c.l.b16 %v221
    %v862 = vunpack.c.h.b16 %v221
    %v863 = vunpack.c.l.b16 %v222
    %v864 = vunpack.c.h.b16 %v222
    %v865 = vunpack.c.l.b16 %v223
    %v866 = vunpack.c.h.b16 %v223
    %v867 = vunpack.c.l.b16 %v224
    %v868 = vunpack.c.h.b16 %v224
    %v869 = vunpack.c.l.b16 %v225
    %v870 = vunpack.c.h.b16 %v225
    %v871 = vunpack.c.l.b16 %v226
    %v872 = vunpack.c.h.b16 %v226
    %v873 = vunpack.c.l.b16 %v227
    %v874 = vunpack.c.h.b16 %v227
    %v875 = vunpack.c.l.b16 %v228
    %v876 = vunpack.c.h.b16 %v228
    %v877 = vunpack.c.l.b16 %v229
    %v878 = vunpack.c.h.b16 %v229
    %v879 = vunpack.c.l.b16 %v230
    %v880 = vunpack.c.h.b16 %v230
    %v881 = vpack.c.b16 %v633, %v625
    %v882 = vpack.c.b16 %v634, %v626
    %v883 = vpack.c.b16 %v635, %v627
    %v884 = vpack.c.b16 %v636, %v628
    %v885 = vpack.c.b16 %v637, %v629
    %v886 = vpack.c.b16 %v638, %v630
    %v887 = vpack.c.b16 %v639, %v631
    %v888 = vpack.c.b16 %v640, %v632
    %v889 = vpack.c.b16 %v649, %v641
    %v890 = vpack.c.b16 %v650, %v642
    %v891 = vpack.c.b16 %v651, %v643
    %v892 = vpack.c.b16 %v652, %v644
    %v893 = vpack.c.b16 %v653, %v645
    %v894 = vpack.c.b16 %v654, %v646
    %v895 = vpack.c.b16 %v655, %v647
    %v896 = vpack.c.b16 %v656, %v648
    %v897 = vpack.c.b16 %v665, %v657
    %v898 = vpack.c.b16 %v666, %v658
    %v899 = vpack.c.b16 %v667, %v659
    %v900 = vpack.c.b16 %v668, %v660
    %v901 = vpack.c.b16 %v669, %v661
    %v902 = vpack.c.b16 %v670, %v662
    %v903 = vpack.c.b16 %v671, %v663
    %v904 = vpack.c.b16 %v672, %v664
    %v905 = vpack.c.b16 %v681, %v673
    %v906 = vpack.c.b16 %v682, %v674
    %v907 = vpack.c.b16 %v683, %v675
    %v908 = vpack.c.b16 %v684, %v676
    %v909 = vpack.c.b16 %v685, %v677
    %v910 = vpack.c.b16 %v686, %v678
    %v911 = vpack.c.b16 %v687, %v679
    %v912 = vpack.c.b16 %v688, %v680
    %v913 = vpack.c.b16 %v697, %v689
    %v914 = vpack.c.b16 %v698, %v690
    %v915 = vpack.c.b16 %v699, %v691
    %v916 = vpack.c.b16 %v700, %v692
    %v917 = vpack.c.b16 %v701, %v693
    %v918 = vpack.c.b16 %v702, %v694
    %v919 = vpack.c.b16 %v703, %v695
    %v920 = vpack.c.b16 %v704, %v696
    %v921 = vpack.c.b16 %v713, %v705
    %v922 = vpack.c.b16 %v714, %v706
    %v923 = vpack.c.b16 %v715, %v707
    %v924 = vpack.c.b16 %v716, %v708
    %v925 = vpack.c.b16 %v717, %v709
    %v926 = vpack.c.b16 %v718, %v710
    %v927 = vpack.c.b16 %v719, %v711
    %v928 = vpack.c.b16 %v720, %v712
    %v929 = vpack.c.b16 %v729, %v721
    %v930 = vpack.c.b16 %v730, %v722
    %v931 = vpack.c.b16 %v731, %v723
    %v932 = vpack.c.b16 %v732, %v724
    %v933 = vpack.c.b16 %v733, %v725
    %v934 = vpack.c.b16 %v734, %v726
    %v935 = vpack.c.b16 %v735, %v727
    %v936 = vpack.c.b16 %v736, %v728
    %v937 = vpack.c.b16 %v745, %v737
    %v938 = vpack.c.b16 %v746, %v738
    %v939 = vpack.c.b16 %v747, %v739
    %v940 = vpack.c.b16 %v748, %v740
    %v941 = vpack.c.b16 %v749, %v741
    %v942 = vpack.c.b16 %v750, %v742
    %v943 = vpack.c.b16 %v751, %v743
    %v944 = vpack.c.b16 %v752, %v744
    %v945 = vpack.c.b16 %v761, %v753
    %v946 = vpack.c.b16 %v762, %v754
    %v947 = vpack.c.b16 %v763, %v755
    %v948 = vpack.c.b16 %v764, %v756
    %v949 = vpack.c.b16 %v765, %v757
    %v950 = vpack.c.b16 %v766, %v758
    %v951 = vpack.c.b16 %v767, %v759
    %v952 = vpack.c.b16 %v768, %v760
    %v953 = vpack.c.b16 %v777, %v769
    %v954 = vpack.c.b16 %v778, %v770
    %v955 = vpack.c.b16 %v779, %v771
    %v956 = vpack.c.b16 %v780, %v772
    %v957 = vpack.c.b16 %v781, %v773
    %v958 = vpack.c.b16 %v782, %v774
    %v959 = vpack.c.b16 %v783, %v775
    %v960 = vpack.c.b16 %v784, %v776
    %v961 = vpack.c.b16 %v793, %v785
    %v962 = vpack.c.b16 %v794, %v786
    %v963 = vpack.c.b16 %v795, %v787
    %v964 = vpack.c.b16 %v796, %v788
    %v965 = vpack.c.b16 %v797, %v789
    %v966 = vpack.c.b16 %v798, %v790
    %v967 = vpack.c.b16 %v799, %v791
    %v968 = vpack.c.b16 %v800, %v792
    %v969 = vpack.c.b16 %v809, %v801
    %v970 = vpack.c.b16 %v810, %v802
    %v971 = vpack.c.b16 %v811, %v803
    %v972 = vpack.c.b16 %v812, %v804
    %v973 = vpack.c.b16 %v813, %v805
    %v974 = vpack.c.b16 %v814, %v806
    %v975 = vpack.c.b16 %v815, %v807
    %v976 = vpack.c.b16 %v816, %v808
    %v977 = vpack.c.b16 %v825, %v817
    %v978 = vpack.c.b16 %v826, %v818
    %v979 = vpack.c.b16 %v827, %v819
    %v980 = vpack.c.b16 %v828, %v820
    %v981 = vpack.c.b16 %v829, %v821
    %v982 = vpack.c.b16 %v830, %v822
    %v983 = vpack.c.b16 %v831, %v823
    %v984 = vpack.c.b16 %v832, %v824
    %v985 = vpack.c.b16 %v841, %v833
    %v986 = vpack.c.b16 %v842, %v834
    %v987 = vpack.c.b16 %v843, %v835
    %v988 = vpack.c.b16 %v844, %v836
    %v989 = vpack.c.b16 %v845, %v837
    %v990 = vpack.c.b16 %v846, %v838
    %v991 = vpack.c.b16 %v847, %v839
    %v992 = vpack.c.b16 %v848, %v840
    %v993 = vpack.c.b16 %v857, %v849
    %v994 = vpack.c.b16 %v858, %v850
    %v995 = vpack.c.b16 %v859, %v851
    %v996 = vpack.c.b16 %v860, %v852
    %v997 = vpack.c.b16 %v861, %v853
    %v998 = vpack.c.b16 %v862, %v854
    %v999 = vpack.c.b16 %v863, %v855
    %v1000 = vpack.c.b16 %v864, %v856
    %v1001 = vpack.c.b16 %v873, %v865
    %v1002 = vpack.c.b16 %v874, %v866
    %v1003 = vpack.c.b16 %v875, %v867
    %v1004 = vpack.c.b16 %v876, %v868
    %v1005 = vpack.c.b16 %v877, %v869
    %v1006 = vpack.c.b16 %v878, %v870
    %v1007 = vpack.c.b16 %v879, %v871
    %v1008 = vpack.c.b16 %v880, %v872
    %v1393 = vunpack.c.l.b16 %v231
    %v1394 = vunpack.c.h.b16 %v231
    %v1395 = vunpack.c.l.b16 %v232
    %v1396 = vunpack.c.h.b16 %v232
    %v1397 = vunpack.c.l.b16 %v233
    %v1398 = vunpack.c.h.b16 %v233
    %v1399 = vunpack.c.l.b16 %v234
    %v1400 = vunpack.c.h.b16 %v234
    %v1401 = vunpack.c.l.b16 %v235
    %v1402 = vunpack.c.h.b16 %v235
    %v1403 = vunpack.c.l.b16 %v236
    %v1404 = vunpack.c.h.b16 %v236
    %v1405 = vunpack.c.l.b16 %v237
    %v1406 = vunpack.c.h.b16 %v237
    %v1407 = vunpack.c.l.b16 %v238
    %v1408 = vunpack.c.h.b16 %v238
    %v1409 = vunpack.c.l.b16 %v239
    %v1410 = vunpack.c.h.b16 %v239
    %v1411 = vunpack.c.l.b16 %v240
    %v1412 = vunpack.c.h.b16 %v240
    %v1413 = vunpack.c.l.b16 %v241
    %v1414 = vunpack.c.h.b16 %v241
    %v1415 = vunpack.c.l.b16 %v242
    %v1416 = vunpack.c.h.b16 %v242
    %v1417 = vunpack.c.l.b16 %v243
    %v1418 = vunpack.c.h.b16 %v243
    %v1419 = vunpack.c.l.b16 %v244
    %v1420 = vunpack.c.h.b16 %v244
    %v1421 = vunpack.c.l.b16 %v245
    %v1422 = vunpack.c.h.b16 %v245
    %v1423 = vunpack.c.l.b16 %v246
    %v1424 = vunpack.c.h.b16 %v246
    %v1425 = vunpack.c.l.b16 %v247
    %v1426 = vunpack.c.h.b16 %v247
    %v1427 = vunpack.c.l.b16 %v248
    %v1428 = vunpack.c.h.b16 %v248
    %v1429 = vunpack.c.l.b16 %v249
    %v1430 = vunpack.c.h.b16 %v249
    %v1431 = vunpack.c.l.b16 %v250
    %v1432 = vunpack.c.h.b16 %v250
    %v1433 = vunpack.c.l.b16 %v251
    %v1434 = vunpack.c.h.b16 %v251
    %v1435 = vunpack.c.l.b16 %v252
    %v1436 = vunpack.c.h.b16 %v252
    %v1437 = vunpack.c.l.b16 %v253
    %v1438 = vunpack.c.h.b16 %v253
    %v1439 = vunpack.c.l.b16 %v254
    %v1440 = vunpack.c.h.b16 %v254
    %v1441 = vunpack.c.l.b16 %v255
    %v1442 = vunpack.c.h.b16 %v255
    %v1443 = vunpack.c.l.b16 %v256
    %v1444 = vunpack.c.h.b16 %v256
    %v1445 = vunpack.c.l.b16 %v257
    %v1446 = vunpack.c.h.b16 %v257
    %v1447 = vunpack.c.l.b16 %v258
    %v1448 = vunpack.c.h.b16 %v258
    %v1449 = vunpack.c.l.b16 %v259
    %v1450 = vunpack.c.h.b16 %v259
    %v1451 = vunpack.c.l.b16 %v260
    %v1452 = vunpack.c.h.b16 %v260
    %v1453 = vunpack.c.l.b16 %v261
    %v1454 = vunpack.c.h.b16 %v261
    %v1455 = vunpack.c.l.b16 %v262
    %v1456 = vunpack.c.h.b16 %v262
    %v1457 = vunpack.c.l.b16 %v263
    %v1458 = vunpack.c.h.b16 %v263
    %v1459 = vunpack.c.l.b16 %v264
    %v1460 = vunpack.c.h.b16 %v264
    %v1461 = vunpack.c.l.b16 %v265
    %v1462 = vunpack.c.h.b16 %v265
    %v1463 = vunpack.c.l.b16 %v266
    %v1464 = vunpack.c.h.b16 %v266
    %v1465 = vunpack.c.l.b16 %v267
    %v1466 = vunpack.c.h.b16 %v267
    %v1467 = vunpack.c.l.b16 %v268
    %v1468 = vunpack.c.h.b16 %v268
    %v1469 = vunpack.c.l.b16 %v269
    %v1470 = vunpack.c.h.b16 %v269
    %v1471 = vunpack.c.l.b16 %v270
    %v1472 = vunpack.c.h.b16 %v270
    %v1473 = vunpack.c.l.b16 %v271
    %v1474 = vunpack.c.h.b16 %v271
    %v1475 = vunpack.c.l.b16 %v272
    %v1476 = vunpack.c.h.b16 %v272
    %v1477 = vunpack.c.l.b16 %v273
    %v1478 = vunpack.c.h.b16 %v273
    %v1479 = vunpack.c.l.b16 %v274
    %v1480 = vunpack.c.h.b16 %v274
    %v1481 = vunpack.c.l.b16 %v275
    %v1482 = vunpack.c.h.b16 %v275
    %v1483 = vunpack.c.l.b16 %v276
    %v1484 = vunpack.c.h.b16 %v276
    %v1485 = vunpack.c.l.b16 %v277
    %v1486 = vunpack.c.h.b16 %v277
    %v1487 = vunpack.c.l.b16 %v278
    %v1488 = vunpack.c.h.b16 %v278
    %v1489 = vunpack.c.l.b16 %v279
    %v1490 = vunpack.c.h.b16 %v279
    %v1491 = vunpack.c.l.b16 %v280
    %v1492 = vunpack.c.h.b16 %v280
    %v1493 = vunpack.c.l.b16 %v281
    %v1494 = vunpack.c.h.b16 %v281
    %v1495 = vunpack.c.l.b16 %v282
    %v1496 = vunpack.c.h.b16 %v282
    %v1497 = vunpack.c.l.b16 %v283
    %v1498 = vunpack.c.h.b16 %v283
    %v1499 = vunpack.c.l.b16 %v284
    %v1500 = vunpack.c.h.b16 %v284
    %v1501 = vunpack.c.l.b16 %v285
    %v1502 = vunpack.c.h.b16 %v285
    %v1503 = vunpack.c.l.b16 %v286
    %v1504 = vunpack.c.h.b16 %v286
    %v1505 = vunpack.c.l.b16 %v287
    %v1506 = vunpack.c.h.b16 %v287
    %v1507 = vunpack.c.l.b16 %v288
    %v1508 = vunpack.c.h.b16 %v288
    %v1509 = vunpack.c.l.b16 %v289
    %v1510 = vunpack.c.h.b16 %v289
    %v1511 = vunpack.c.l.b16 %v290
    %v1512 = vunpack.c.h.b16 %v290
    %v1513 = vunpack.c.l.b16 %v291
    %v1514 = vunpack.c.h.b16 %v291
    %v1515 = vunpack.c.l.b16 %v292
    %v1516 = vunpack.c.h.b16 %v292
    %v1517 = vunpack.c.l.b16 %v293
    %v1518 = vunpack.c.h.b16 %v293
    %v1519 = vunpack.c.l.b16 %v294
    %v1520 = vunpack.c.h.b16 %v294
    %v1521 = vunpack.c.l.b16 %v295
    %v1522 = vunpack.c.h.b16 %v295
    %v1523 = vunpack.c.l.b16 %v296
    %v1524 = vunpack.c.h.b16 %v296
    %v1525 = vunpack.c.l.b16 %v297
    %v1526 = vunpack.c.h.b16 %v297
    %v1527 = vunpack.c.l.b16 %v298
    %v1528 = vunpack.c.h.b16 %v298
    %v1529 = vunpack.c.l.b16 %v299
    %v1530 = vunpack.c.h.b16 %v299
    %v1531 = vunpack.c.l.b16 %v300
    %v1532 = vunpack.c.h.b16 %v300
    %v1533 = vunpack.c.l.b16 %v301
    %v1534 = vunpack.c.h.b16 %v301
    %v1535 = vunpack.c.l.b16 %v302
    %v1536 = vunpack.c.h.b16 %v302
    %v1537 = vunpack.c.l.b16 %v303
    %v1538 = vunpack.c.h.b16 %v303
    %v1539 = vunpack.c.l.b16 %v304
    %v1540 = vunpack.c.h.b16 %v304
    %v1541 = vunpack.c.l.b16 %v305
    %v1542 = vunpack.c.h.b16 %v305
    %v1543 = vunpack.c.l.b16 %v306
    %v1544 = vunpack.c.h.b16 %v306
    %v1545 = vunpack.c.l.b16 %v307
    %v1546 = vunpack.c.h.b16 %v307
    %v1547 = vunpack.c.l.b16 %v308
    %v1548 = vunpack.c.h.b16 %v308
    %v1549 = vunpack.c.l.b16 %v309
    %v1550 = vunpack.c.h.b16 %v309
    %v1551 = vunpack.c.l.b16 %v310
    %v1552 = vunpack.c.h.b16 %v310
    %v1553 = vunpack.c.l.b16 %v311
    %v1554 = vunpack.c.h.b16 %v311
    %v1555 = vunpack.c.l.b16 %v312
    %v1556 = vunpack.c.h.b16 %v312
    %v1557 = vunpack.c.l.b16 %v313
    %v1558 = vunpack.c.h.b16 %v313
    %v1559 = vunpack.c.l.b16 %v314
    %v1560 = vunpack.c.h.b16 %v314
    %v1561 = vunpack.c.l.b16 %v315
    %v1562 = vunpack.c.h.b16 %v315
    %v1563 = vunpack.c.l.b16 %v316
    %v1564 = vunpack.c.h.b16 %v316
    %v1565 = vunpack.c.l.b16 %v317
    %v1566 = vunpack.c.h.b16 %v317
    %v1567 = vunpack.c.l.b16 %v318
    %v1568 = vunpack.c.h.b16 %v318
    %v1569 = vunpack.c.l.b16 %v319
    %v1570 = vunpack.c.h.b16 %v319
    %v1571 = vunpack.c.l.b16 %v320
    %v1572 = vunpack.c.h.b16 %v320
    %v1573 = vunpack.c.l.b16 %v321
    %v1574 = vunpack.c.h.b16 %v321
    %v1575 = vunpack.c.l.b16 %v322
    %v1576 = vunpack.c.h.b16 %v322
    %v1577 = vunpack.c.l.b16 %v323
    %v1578 = vunpack.c.h.b16 %v323
    %v1579 = vunpack.c.l.b16 %v324
    %v1580 = vunpack.c.h.b16 %v324
    %v1581 = vunpack.c.l.b16 %v325
    %v1582 = vunpack.c.h.b16 %v325
    %v1583 = vunpack.c.l.b16 %v326
    %v1584 = vunpack.c.h.b16 %v326
    %v1585 = vunpack.c.l.b16 %v327
    %v1586 = vunpack.c.h.b16 %v327
    %v1587 = vunpack.c.l.b16 %v328
    %v1588 = vunpack.c.h.b16 %v328
    %v1589 = vunpack.c.l.b16 %v329
    %v1590 = vunpack.c.h.b16 %v329
    %v1591 = vunpack.c.l.b16 %v330
    %v1592 = vunpack.c.h.b16 %v330
    %v1593 = vunpack.c.l.b16 %v331
    %v1594 = vunpack.c.h.b16 %v331
    %v1595 = vunpack.c.l.b16 %v332
    %v1596 = vunpack.c.h.b16 %v332
    %v1597 = vunpack.c.l.b16 %v333
    %v1598 = vunpack.c.h.b16 %v333
    %v1599 = vunpack.c.l.b16 %v334
    %v1600 = vunpack.c.h.b16 %v334
    %v1601 = vunpack.c.l.b16 %v335
    %v1602 = vunpack.c.h.b16 %v335
    %v1603 = vunpack.c.l.b16 %v336
    %v1604 = vunpack.c.h.b16 %v336
    %v1605 = vunpack.c.l.b16 %v337
    %v1606 = vunpack.c.h.b16 %v337
    %v1607 = vunpack.c.l.b16 %v338
    %v1608 = vunpack.c.h.b16 %v338
    %v1609 = vunpack.c.l.b16 %v339
    %v1610 = vunpack.c.h.b16 %v339
    %v1611 = vunpack.c.l.b16 %v340
    %v1612 = vunpack.c.h.b16 %v340
    %v1613 = vunpack.c.l.b16 %v341
    %v1614 = vunpack.c.h.b16 %v341
    %v1615 = vunpack.c.l.b16 %v342
    %v1616 = vunpack.c.h.b16 %v342
    %v1617 = vunpack.c.l.b16 %v343
    %v1618 = vunpack.c.h.b16 %v343
    %v1619 = vunpack.c.l.b16 %v344
    %v1620 = vunpack.c.h.b16 %v344
    %v1621 = vunpack.c.l.b16 %v345
    %v1622 = vunpack.c.h.b16 %v345
    %v1623 = vunpack.c.l.b16 %v346
    %v1624 = vunpack.c.h.b16 %v346
    %v1625 = vunpack.c.l.b16 %v347
    %v1626 = vunpack.c.h.b16 %v347
    %v1627 = vunpack.c.l.b16 %v348
    %v1628 = vunpack.c.h.b16 %v348
    %v1629 = vunpack.c.l.b16 %v349
    %v1630 = vunpack.c.h.b16 %v349
    %v1631 = vunpack.c.l.b16 %v350
    %v1632 = vunpack.c.h.b16 %v350
    %v1633 = vunpack.c.l.b16 %v351
    %v1634 = vunpack.c.h.b16 %v351
    %v1635 = vunpack.c.l.b16 %v352
    %v1636 = vunpack.c.h.b16 %v352
    %v1637 = vunpack.c.l.b16 %v353
    %v1638 = vunpack.c.h.b16 %v353
    %v1639 = vunpack.c.l.b16 %v354
    %v1640 = vunpack.c.h.b16 %v354
    %v1641 = vunpack.c.l.b16 %v355
    %v1642 = vunpack.c.h.b16 %v355
    %v1643 = vunpack.c.l.b16 %v356
    %v1644 = vunpack.c.h.b16 %v356
    %v1645 = vunpack.c.l.b16 %v357
    %v1646 = vunpack.c.h.b16 %v357
    %v1647 = vunpack.c.l.b16 %v358
    %v1648 = vunpack.c.h.b16 %v358
    %v1649 = vunpack.c.l.b16 %v359
    %v1650 = vunpack.c.h.b16 %v359
    %v1651 = vunpack.c.l.b16 %v360
    %v1652 = vunpack.c.h.b16 %v360
    %v1653 = vunpack.c.l.b16 %v361
    %v1654 = vunpack.c.h.b16 %v361
    %v1655 = vunpack.c.l.b16 %v362
    %v1656 = vunpack.c.h.b16 %v362
    %v1657 = vunpack.c.l.b16 %v363
    %v1658 = vunpack.c.h.b16 %v363
    %v1659 = vunpack.c.l.b16 %v364
    %v1660 = vunpack.c.h.b16 %v364
    %v1661 = vunpack.c.l.b16 %v365
    %v1662 = vunpack.c.h.b16 %v365
    %v1663 = vunpack.c.l.b16 %v366
    %v1664 = vunpack.c.h.b16 %v366
    %v1665 = vunpack.c.l.b16 %v367
    %v1666 = vunpack.c.h.b16 %v367
    %v1667 = vunpack.c.l.b16 %v368
    %v1668 = vunpack.c.h.b16 %v368
    %v1669 = vunpack.c.l.b16 %v369
    %v1670 = vunpack.c.h.b16 %v369
    %v1671 = vunpack.c.l.b16 %v370
    %v1672 = vunpack.c.h.b16 %v370
    %v1673 = vunpack.c.l.b16 %v371
    %v1674 = vunpack.c.h.b16 %v371
    %v1675 = vunpack.c.l.b16 %v372
    %v1676 = vunpack.c.h.b16 %v372
    %v1677 = vunpack.c.l.b16 %v373
    %v1678 = vunpack.c.h.b16 %v373
    %v1679 = vunpack.c.l.b16 %v374
    %v1680 = vunpack.c.h.b16 %v374
    %v1681 = vunpack.c.l.b16 %v375
    %v1682 = vunpack.c.h.b16 %v375
    %v1683 = vunpack.c.l.b16 %v376
    %v1684 = vunpack.c.h.b16 %v376
    %v1685 = vunpack.c.l.b16 %v377
    %v1686 = vunpack.c.h.b16 %v377
    %v1687 = vunpack.c.l.b16 %v378
    %v1688 = vunpack.c.h.b16 %v378
    %v1689 = vunpack.c.l.b16 %v379
    %v1690 = vunpack.c.h.b16 %v379
    %v1691 = vunpack.c.l.b16 %v380
    %v1692 = vunpack.c.h.b16 %v380
    %v1693 = vunpack.c.l.b16 %v381
    %v1694 = vunpack.c.h.b16 %v381
    %v1695 = vunpack.c.l.b16 %v382
    %v1696 = vunpack.c.h.b16 %v382
    %v1697 = vunpack.c.l.b16 %v383
    %v1698 = vunpack.c.h.b16 %v383
    %v1699 = vunpack.c.l.b16 %v384
    %v1700 = vunpack.c.h.b16 %v384
    %v1701 = vunpack.c.l.b16 %v385
    %v1702 = vunpack.c.h.b16 %v385
    %v1703 = vunpack.c.l.b16 %v386
    %v1704 = vunpack.c.h.b16 %v386
    %v1705 = vunpack.c.l.b16 %v387
    %v1706 = vunpack.c.h.b16 %v387
    %v1707 = vunpack.c.l.b16 %v388
    %v1708 = vunpack.c.h.b16 %v388
    %v1709 = vunpack.c.l.b16 %v389
    %v1710 = vunpack.c.h.b16 %v389
    %v1711 = vunpack.c.l.b16 %v390
    %v1712 = vunpack.c.h.b16 %v390
    %v1713 = vunpack.c.l.b16 %v391
    %v1714 = vunpack.c.h.b16 %v391
    %v1715 = vunpack.c.l.b16 %v392
    %v1716 = vunpack.c.h.b16 %v392
    %v1717 = vunpack.c.l.b16 %v393
    %v1718 = vunpack.c.h.b16 %v393
    %v1719 = vunpack.c.l.b16 %v394
    %v1720 = vunpack.c.h.b16 %v394
    %v1721 = vunpack.c.l.b16 %v395
    %v1722 = vunpack.c.h.b16 %v395
    %v1723 = vunpack.c.l.b16 %v396
    %v1724 = vunpack.c.h.b16 %v396
    %v1725 = vunpack.c.l.b16 %v397
    %v1726 = vunpack.c.h.b16 %v397
    %v1727 = vunpack.c.l.b16 %v398
    %v1728 = vunpack.c.h.b16 %v398
    %v1729 = vunpack.c.l.b16 %v399
    %v1730 = vunpack.c.h.b16 %v399
    %v1731 = vunpack.c.l.b16 %v400
    %v1732 = vunpack.c.h.b16 %v400
    %v1733 = vunpack.c.l.b16 %v401
    %v1734 = vunpack.c.h.b16 %v401
    %v1735 = vunpack.c.l.b16 %v402
    %v1736 = vunpack.c.h.b16 %v402
    %v1737 = vunpack.c.l.b16 %v403
    %v1738 = vunpack.c.h.b16 %v403
    %v1739 = vunpack.c.l.b16 %v404
    %v1740 = vunpack.c.h.b16 %v404
    %v1741 = vunpack.c.l.b16 %v405
    %v1742 = vunpack.c.h.b16 %v405
    %v1743 = vunpack.c.l.b16 %v406
    %v1744 = vunpack.c.h.b16 %v406
    %v1745 = vunpack.c.l.b16 %v407
    %v1746 = vunpack.c.h.b16 %v407
    %v1747 = vunpack.c.l.b16 %v408
    %v1748 = vunpack.c.h.b16 %v408
    %v1749 = vunpack.c.l.b16 %v409
    %v1750 = vunpack.c.h.b16 %v409
    %v1751 = vunpack.c.l.b16 %v410
    %v1752 = vunpack.c.h.b16 %v410
    %v1753 = vunpack.c.l.b16 %v411
    %v1754 = vunpack.c.h.b16 %v411
    %v1755 = vunpack.c.l.b16 %v412
    %v1756 = vunpack.c.h.b16 %v412
    %v1757 = vunpack.c.l.b16 %v413
    %v1758 = vunpack.c.h.b16 %v413
    %v1759 = vunpack.c.l.b16 %v414
    %v1760 = vunpack.c.h.b16 %v414
    %v1761 = vunpack.c.l.b16 %v415
    %v1762 = vunpack.c.h.b16 %v415
    %v1763 = vunpack.c.l.b16 %v416
    %v1764 = vunpack.c.h.b16 %v416
    %v1765 = vunpack.c.l.b16 %v417
    %v1766 = vunpack.c.h.b16 %v417
    %v1767 = vunpack.c.l.b16 %v418
    %v1768 = vunpack.c.h.b16 %v418
    %v1769 = vunpack.c.l.b16 %v419
    %v1770 = vunpack.c.h.b16 %v419
    %v1771 = vunpack.c.l.b16 %v420
    %v1772 = vunpack.c.h.b16 %v420
    %v1773 = vunpack.c.l.b16 %v421
    %v1774 = vunpack.c.h.b16 %v421
    %v1775 = vunpack.c.l.b16 %v422
    %v1776 = vunpack.c.h.b16 %v422
    %v1777 = vunpack.c.l.b16 %v423
    %v1778 = vunpack.c.h.b16 %v423
    %v1779 = vunpack.c.l.b16 %v424
    %v1780 = vunpack.c.h.b16 %v424
    %v1781 = vunpack.c.l.b16 %v425
    %v1782 = vunpack.c.h.b16 %v425
    %v1783 = vunpack.c.l.b16 %v426
    %v1784 = vunpack.c.h.b16 %v426
    %v1785 = vunpack.c.l.b16 %v427
    %v1786 = vunpack.c.h.b16 %v427
    %v1787 = vunpack.c.l.b16 %v428
    %v1788 = vunpack.c.h.b16 %v428
    %v1789 = vunpack.c.l.b16 %v429
    %v1790 = vunpack.c.h.b16 %v429
    %v1791 = vunpack.c.l.b16 %v430
    %v1792 = vunpack.c.h.b16 %v430
    %v1793 = vunpack.c.l.b16 %v431
    %v1794 = vunpack.c.h.b16 %v431
    %v1795 = vunpack.c.l.b16 %v432
    %v1796 = vunpack.c.h.b16 %v432
    %v1797 = vunpack.c.l.b16 %v433
    %v1798 = vunpack.c.h.b16 %v433
    %v1799 = vunpack.c.l.b16 %v434
    %v1800 = vunpack.c.h.b16 %v434
    %v1801 = vunpack.c.l.b16 %v435
    %v1802 = vunpack.c.h.b16 %v435
    %v1803 = vunpack.c.l.b16 %v436
    %v1804 = vunpack.c.h.b16 %v436
    %v1805 = vunpack.c.l.b16 %v437
    %v1806 = vunpack.c.h.b16 %v437
    %v1807 = vunpack.c.l.b16 %v438
    %v1808 = vunpack.c.h.b16 %v438
    %v1809 = vunpack.c.l.b16 %v439
    %v1810 = vunpack.c.h.b16 %v439
    %v1811 = vunpack.c.l.b16 %v440
    %v1812 = vunpack.c.h.b16 %v440
    %v1813 = vunpack.c.l.b16 %v441
    %v1814 = vunpack.c.h.b16 %v441
    %v1815 = vunpack.c.l.b16 %v442
    %v1816 = vunpack.c.h.b16 %v442
    %v1817 = vunpack.c.l.b16 %v443
    %v1818 = vunpack.c.h.b16 %v443
    %v1819 = vunpack.c.l.b16 %v444
    %v1820 = vunpack.c.h.b16 %v444
    %v1821 = vunpack.c.l.b16 %v445
    %v1822 = vunpack.c.h.b16 %v445
    %v1823 = vunpack.c.l.b16 %v446
    %v1824 = vunpack.c.h.b16 %v446
    %v1825 = vunpack.c.l.b16 %v447
    %v1826 = vunpack.c.h.b16 %v447
    %v1827 = vunpack.c.l.b16 %v448
    %v1828 = vunpack.c.h.b16 %v448
    %v1829 = vunpack.c.l.b16 %v449
    %v1830 = vunpack.c.h.b16 %v449
    %v1831 = vunpack.c.l.b16 %v450
    %v1832 = vunpack.c.h.b16 %v450
    %v1833 = vunpack.c.l.b16 %v451
    %v1834 = vunpack.c.h.b16 %v451
    %v1835 = vunpack.c.l.b16 %v452
    %v1836 = vunpack.c.h.b16 %v452
    %v1837 = vunpack.c.l.b16 %v453
    %v1838 = vunpack.c.h.b16 %v453
    %v1839 = vunpack.c.l.b16 %v454
    %v1840 = vunpack.c.h.b16 %v454
    %v1841 = vunpack.c.l.b16 %v455
    %v1842 = vunpack.c.h.b16 %v455
    %v1843 = vunpack.c.l.b16 %v456
    %v1844 = vunpack.c.h.b16 %v456
    %v1845 = vunpack.c.l.b16 %v457
    %v1846 = vunpack.c.h.b16 %v457
    %v1847 = vunpack.c.l.b16 %v458
    %v1848 = vunpack.c.h.b16 %v458
    %v1849 = vunpack.c.l.b16 %v459
    %v1850 = vunpack.c.h.b16 %v459
    %v1851 = vunpack.c.l.b16 %v460
    %v1852 = vunpack.c.h.b16 %v460
    %v1853 = vunpack.c.l.b16 %v461
    %v1854 = vunpack.c.h.b16 %v461
    %v1855 = vunpack.c.l.b16 %v462
    %v1856 = vunpack.c.h.b16 %v462
    %v1857 = vunpack.c.l.b16 %v463
    %v1858 = vunpack.c.h.b16 %v463
    %v1859 = vunpack.c.l.b16 %v464
    %v1860 = vunpack.c.h.b16 %v464
    %v1861 = vunpack.c.l.b16 %v465
    %v1862 = vunpack.c.h.b16 %v465
    %v1863 = vunpack.c.l.b16 %v466
    %v1864 = vunpack.c.h.b16 %v466
    %v1865 = vunpack.c.l.b16 %v467
    %v1866 = vunpack.c.h.b16 %v467
    %v1867 = vunpack.c.l.b16 %v468
    %v1868 = vunpack.c.h.b16 %v468
    %v1869 = vunpack.c.l.b16 %v469
    %v1870 = vunpack.c.h.b16 %v469
    %v1871 = vunpack.c.l.b16 %v470
    %v1872 = vunpack.c.h.b16 %v470
    %v1873 = vunpack.c.l.b16 %v471
    %v1874 = vunpack.c.h.b16 %v471
    %v1875 = vunpack.c.l.b16 %v472
    %v1876 = vunpack.c.h.b16 %v472
    %v1877 = vunpack.c.l.b16 %v473
    %v1878 = vunpack.c.h.b16 %v473
    %v1879 = vunpack.c.l.b16 %v474
    %v1880 = vunpack.c.h.b16 %v474
    %v1881 = vunpack.c.l.b16 %v475
    %v1882 = vunpack.c.h.b16 %v475
    %v1883 = vunpack.c.l.b16 %v476
    %v1884 = vunpack.c.h.b16 %v476
    %v1885 = vunpack.c.l.b16 %v477
    %v1886 = vunpack.c.h.b16 %v477
    %v1887 = vunpack.c.l.b16 %v478
    %v1888 = vunpack.c.h.b16 %v478
    %v1889 = vunpack.c.l.b16 %v479
    %v1890 = vunpack.c.h.b16 %v479
    %v1891 = vunpack.c.l.b16 %v480
    %v1892 = vunpack.c.h.b16 %v480
    %v1893 = vunpack.c.l.b16 %v481
    %v1894 = vunpack.c.h.b16 %v481
    %v1895 = vunpack.c.l.b16 %v482
    %v1896 = vunpack.c.h.b16 %v482
    %v1897 = vunpack.c.l.b16 %v483
    %v1898 = vunpack.c.h.b16 %v483
    %v1899 = vunpack.c.l.b16 %v484
    %v1900 = vunpack.c.h.b16 %v484
    %v1901 = vunpack.c.l.b16 %v485
    %v1902 = vunpack.c.h.b16 %v485
    %v1903 = vunpack.c.l.b16 %v486
    %v1904 = vunpack.c.h.b16 %v486
    %v1905 = vpack.c.b16 %v1397, %v1393
    %v1906 = vpack.c.b16 %v1398, %v1394
    %v1907 = vpack.c.b16 %v1399, %v1395
    %v1908 = vpack.c.b16 %v1400, %v1396
    %v1909 = vpack.c.b16 %v1405, %v1401
    %v1910 = vpack.c.b16 %v1406, %v1402
    %v1911 = vpack.c.b16 %v1407, %v1403
    %v1912 = vpack.c.b16 %v1408, %v1404
    %v1913 = vpack.c.b16 %v1413, %v1409
    %v1914 = vpack.c.b16 %v1414, %v1410
    %v1915 = vpack.c.b16 %v1415, %v1411
    %v1916 = vpack.c.b16 %v1416, %v1412
    %v1917 = vpack.c.b16 %v1421, %v1417
    %v1918 = vpack.c.b16 %v1422, %v1418
    %v1919 = vpack.c.b16 %v1423, %v1419
    %v1920 = vpack.c.b16 %v1424, %v1420
    %v1921 = vpack.c.b16 %v1429, %v1425
    %v1922 = vpack.c.b16 %v1430, %v1426
    %v1923 = vpack.c.b16 %v1431, %v1427
    %v1924 = vpack.c.b16 %v1432, %v1428
    %v1925 = vpack.c.b16 %v1437, %v1433
    %v1926 = vpack.c.b16 %v1438, %v1434
    %v1927 = vpack.c.b16 %v1439, %v1435
    %v1928 = vpack.c.b16 %v1440, %v1436
    %v1929 = vpack.c.b16 %v1445, %v1441
    %v1930 = vpack.c.b16 %v1446, %v1442
    %v1931 = vpack.c.b16 %v1447, %v1443
    %v1932 = vpack.c.b16 %v1448, %v1444
    %v1933 = vpack.c.b16 %v1453, %v1449
    %v1934 = vpack.c.b16 %v1454, %v1450
    %v1935 = vpack.c.b16 %v1455, %v1451
    %v1936 = vpack.c.b16 %v1456, %v1452
    %v1937 = vpack.c.b16 %v1461, %v1457
    %v1938 = vpack.c.b16 %v1462, %v1458
    %v1939 = vpack.c.b16 %v1463, %v1459
    %v1940 = vpack.c.b16 %v1464, %v1460
    %v1941 = vpack.c.b16 %v1469, %v1465
    %v1942 = vpack.c.b16 %v1470, %v1466
    %v1943 = vpack.c.b16 %v1471, %v1467
    %v1944 = vpack.c.b16 %v1472, %v1468
    %v1945 = vpack.c.b16 %v1477, %v1473
    %v1946 = vpack.c.b16 %v1478, %v1474
    %v1947 = vpack.c.b16 %v1479, %v1475
    %v1948 = vpack.c.b16 %v1480, %v1476
    %v1949 = vpack.c.b16 %v1485, %v1481
    %v1950 = vpack.c.b16 %v1486, %v1482
    %v1951 = vpack.c.b16 %v1487, %v1483
    %v1952 = vpack.c.b16 %v1488, %v1484
    %v1953 = vpack.c.b16 %v1493, %v1489
    %v1954 = vpack.c.b16 %v1494, %v1490
    %v1955 = vpack.c.b16 %v1495, %v1491
    %v1956 = vpack.c.b16 %v1496, %v1492
    %v1957 = vpack.c.b16 %v1501, %v1497
    %v1958 = vpack.c.b16 %v1502, %v1498
    %v1959 = vpack.c.b16 %v1503, %v1499
    %v1960 = vpack.c.b16 %v1504, %v1500
    %v1961 = vpack.c.b16 %v1509, %v1505
    %v1962 = vpack.c.b16 %v1510, %v1506
    %v1963 = vpack.c.b16 %v1511, %v1507
    %v1964 = vpack.c.b16 %v1512, %v1508
    %v1965 = vpack.c.b16 %v1517, %v1513
    %v1966 = vpack.c.b16 %v1518, %v1514
    %v1967 = vpack.c.b16 %v1519, %v1515
    %v1968 = vpack.c.b16 %v1520, %v1516
    %v1969 = vpack.c.b16 %v1525, %v1521
    %v1970 = vpack.c.b16 %v1526, %v1522
    %v1971 = vpack.c.b16 %v1527, %v1523
    %v1972 = vpack.c.b16 %v1528, %v1524
    %v1973 = vpack.c.b16 %v1533, %v1529
    %v1974 = vpack.c.b16 %v1534, %v1530
    %v1975 = vpack.c.b16 %v1535, %v1531
    %v1976 = vpack.c.b16 %v1536, %v1532
    %v1977 = vpack.c.b16 %v1541, %v1537
    %v1978 = vpack.c.b16 %v1542, %v1538
    %v1979 = vpack.c.b16 %v1543, %v1539
    %v1980 = vpack.c.b16 %v1544, %v1540
    %v1981 = vpack.c.b16 %v1549, %v1545
    %v1982 = vpack.c.b16 %v1550, %v1546
    %v1983 = vpack.c.b16 %v1551, %v1547
    %v1984 = vpack.c.b16 %v1552, %v1548
    %v1985 = vpack.c.b16 %v1557, %v1553
    %v1986 = vpack.c.b16 %v1558, %v1554
    %v1987 = vpack.c.b16 %v1559, %v1555
    %v1988 = vpack.c.b16 %v1560, %v1556
    %v1989 = vpack.c.b16 %v1565, %v1561
    %v1990 = vpack.c.b16 %v1566, %v1562
    %v1991 = vpack.c.b16 %v1567, %v1563
    %v1992 = vpack.c.b16 %v1568, %v1564
    %v1993 = vpack.c.b16 %v1573, %v1569
    %v1994 = vpack.c.b16 %v1574, %v1570
    %v1995 = vpack.c.b16 %v1575, %v1571
    %v1996 = vpack.c.b16 %v1576, %v1572
    %v1997 = vpack.c.b16 %v1581, %v1577
    %v1998 = vpack.c.b16 %v1582, %v1578
    %v1999 = vpack.c.b16 %v1583, %v1579
    %v2000 = vpack.c.b16 %v1584, %v1580
    %v2001 = vpack.c.b16 %v1589, %v1585
    %v2002 = vpack.c.b16 %v1590, %v1586
    %v2003 = vpack.c.b16 %v1591, %v1587
    %v2004 = vpack.c.b16 %v1592, %v1588
    %v2005 = vpack.c.b16 %v1597, %v1593
    %v2006 = vpack.c.b16 %v1598, %v1594
    %v2007 = vpack.c.b16 %v1599, %v1595
    %v2008 = vpack.c.b16 %v1600, %v1596
    %v2009 = vpack.c.b16 %v1605, %v1601
    %v2010 = vpack.c.b16 %v1606, %v1602
    %v2011 = vpack.c.b16 %v1607, %v1603
    %v2012 = vpack.c.b16 %v1608, %v1604
    %v2013 = vpack.c.b16 %v1613, %v1609
    %v2014 = vpack.c.b16 %v1614, %v1610
    %v2015 = vpack.c.b16 %v1615, %v1611
    %v2016 = vpack.c.b16 %v1616, %v1612
    %v2017 = vpack.c.b16 %v1621, %v1617
    %v2018 = vpack.c.b16 %v1622, %v1618
    %v2019 = vpack.c.b16 %v1623, %v1619
    %v2020 = vpack.c.b16 %v1624, %v1620
    %v2021 = vpack.c.b16 %v1629, %v1625
    %v2022 = vpack.c.b16 %v1630, %v1626
    %v2023 = vpack.c.b16 %v1631, %v1627
    %v2024 = vpack.c.b16 %v1632, %v1628
    %v2025 = vpack.c.b16 %v1637, %v1633
    %v2026 = vpack.c.b16 %v1638, %v1634
    %v2027 = vpack.c.b16 %v1639, %v1635
    %v2028 = vpack.c.b16 %v1640, %v1636
    %v2029 = vpack.c.b16 %v1645, %v1641
    %v2030 = vpack.c.b16 %v1646, %v1642
    %v2031 = vpack.c.b16 %v1647, %v1643
    %v2032 = vpack.c.b16 %v1648, %v1644
    %v2033 = vpack.c.b16 %v1653, %v1649
    %v2034 = vpack.c.b16 %v1654, %v1650
    %v2035 = vpack.c.b16 %v1655, %v1651
    %v2036 = vpack.c.b16 %v1656, %v1652
    %v2037 = vpack.c.b16 %v1661, %v1657
    %v2038 = vpack.c.b16 %v1662, %v1658
    %v2039 = vpack.c.b16 %v1663, %v1659
    %v2040 = vpack.c.b16 %v1664, %v1660
    %v2041 = vpack.c.b16 %v1669, %v1665
    %v2042 = vpack.c.b16 %v1670, %v1666
    %v2043 = vpack.c.b16 %v1671, %v1667
    %v2044 = vpack.c.b16 %v1672, %v1668
    %v2045 = vpack.c.b16 %v1677, %v1673
    %v2046 = vpack.c.b16 %v1678, %v1674
    %v2047 = vpack.c.b16 %v1679, %v1675
    %v2048 = vpack.c.b16 %v1680, %v1676
    %v2049 = vpack.c.b16 %v1685, %v1681
    %v2050 = vpack.c.b16 %v1686, %v1682
    %v2051 = vpack.c.b16 %v1687, %v1683
    %v2052 = vpack.c.b16 %v1688, %v1684
    %v2053 = vpack.c.b16 %v1693, %v1689
    %v2054 = vpack.c.b16 %v1694, %v1690
    %v2055 = vpack.c.b16 %v1695, %v1691
    %v2056 = vpack.c.b16 %v1696, %v1692
    %v2057 = vpack.c.b16 %v1701, %v1697
    %v2058 = vpack.c.b16 %v1702, %v1698
    %v2059 = vpack.c.b16 %v1703, %v1699
    %v2060 = vpack.c.b16 %v1704, %v1700
    %v2061 = vpack.c.b16 %v1709, %v1705
    %v2062 = vpack.c.b16 %v1710, %v1706
    %v2063 = vpack.c.b16 %v1711, %v1707
    %v2064 = vpack.c.b16 %v1712, %v1708
    %v2065 = vpack.c.b16 %v1717, %v1713
    %v2066 = vpack.c.b16 %v1718, %v1714
    %v2067 = vpack.c.b16 %v1719, %v1715
    %v2068 = vpack.c.b16 %v1720, %v1716
    %v2069 = vpack.c.b16 %v1725, %v1721
    %v2070 = vpack.c.b16 %v1726, %v1722
    %v2071 = vpack.c.b16 %v1727, %v1723
    %v2072 = vpack.c.b16 %v1728, %v1724
    %v2073 = vpack.c.b16 %v1733, %v1729
    %v2074 = vpack.c.b16 %v1734, %v1730
    %v2075 = vpack.c.b16 %v1735, %v1731
    %v2076 = vpack.c.b16 %v1736, %v1732
    %v2077 = vpack.c.b16 %v1741, %v1737
    %v2078 = vpack.c.b16 %v1742, %v1738
    %v2079 = vpack.c.b16 %v1743, %v1739
    %v2080 = vpack.c.b16 %v1744, %v1740
    %v2081 = vpack.c.b16 %v1749, %v1745
    %v2082 = vpack.c.b16 %v1750, %v1746
    %v2083 = vpack.c.b16 %v1751, %v1747
    %v2084 = vpack.c.b16 %v1752, %v1748
    %v2085 = vpack.c.b16 %v1757, %v1753
    %v2086 = vpack.c.b16 %v1758, %v1754
    %v2087 = vpack.c.b16 %v1759, %v1755
    %v2088 = vpack.c.b16 %v1760, %v1756
    %v2089 = vpack.c.b16 %v1765, %v1761
    %v2090 = vpack.c.b16 %v1766, %v1762
    %v2091 = vpack.c.b16 %v1767, %v1763
    %v2092 = vpack.c.b16 %v1768, %v1764
    %v2093 = vpack.c.b16 %v1773, %v1769
    %v2094 = vpack.c.b16 %v1774, %v1770
    %v2095 = vpack.c.b16 %v1775, %v1771
    %v2096 = vpack.c.b16 %v1776, %v1772
    %v2097 = vpack.c.b16 %v1781, %v1777
    %v2098 = vpack.c.b16 %v1782, %v1778
    %v2099 = vpack.c.b16 %v1783, %v1779
    %v2100 = vpack.c.b16 %v1784, %v1780
    %v2101 = vpack.c.b16 %v1789, %v1785
    %v2102 = vpack.c.b16 %v1790, %v1786
    %v2103 = vpack.c.b16 %v1791, %v1787
    %v2104 = vpack.c.b16 %v1792, %v1788
    %v2105 = vpack.c.b16 %v1797, %v1793
    %v2106 = vpack.c.b16 %v1798, %v1794
    %v2107 = vpack.c.b16 %v1799, %v1795
    %v2108 = vpack.c.b16 %v1800, %v1796
    %v2109 = vpack.c.b16 %v1805, %v1801
    %v2110 = vpack.c.b16 %v1806, %v1802
    %v2111 = vpack.c.b16 %v1807, %v1803
    %v2112 = vpack.c.b16 %v1808, %v1804
    %v2113 = vpack.c.b16 %v1813, %v1809
    %v2114 = vpack.c.b16 %v1814, %v1810
    %v2115 = vpack.c.b16 %v1815, %v1811
    %v2116 = vpack.c.b16 %v1816, %v1812
    %v2117 = vpack.c.b16 %v1821, %v1817
    %v2118 = vpack.c.b16 %v1822, %v1818
    %v2119 = vpack.c.b16 %v1823, %v1819
    %v2120 = vpack.c.b16 %v1824, %v1820
    %v2121 = vpack.c.b16 %v1829, %v1825
    %v2122 = vpack.c.b16 %v1830, %v1826
    %v2123 = vpack.c.b16 %v1831, %v1827
    %v2124 = vpack.c.b16 %v1832, %v1828
    %v2125 = vpack.c.b16 %v1837, %v1833
    %v2126 = vpack.c.b16 %v1838, %v1834
    %v2127 = vpack.c.b16 %v1839, %v1835
    %v2128 = vpack.c.b16 %v1840, %v1836
    %v2129 = vpack.c.b16 %v1845, %v1841
    %v2130 = vpack.c.b16 %v1846, %v1842
    %v2131 = vpack.c.b16 %v1847, %v1843
    %v2132 = vpack.c.b16 %v1848, %v1844
    %v2133 = vpack.c.b16 %v1853, %v1849
    %v2134 = vpack.c.b16 %v1854, %v1850
    %v2135 = vpack.c.b16 %v1855, %v1851
    %v2136 = vpack.c.b16 %v1856, %v1852
    %v2137 = vpack.c.b16 %v1861, %v1857
    %v2138 = vpack.c.b16 %v1862, %v1858
    %v2139 = vpack.c.b16 %v1863, %v1859
    %v2140 = vpack.c.b16 %v1864, %v1860
    %v2141 = vpack.c.b16 %v1869, %v1865
    %v2142 = vpack.c.b16 %v1870, %v1866
    %v2143 = vpack.c.b16 %v1871, %v1867
    %v2144 = vpack.c.b16 %v1872, %v1868
    %v2145 = vpack.c.b16 %v1877, %v1873
    %v2146 = vpack.c.b16 %v1878, %v1874
    %v2147 = vpack.c.b16 %v1879, %v1875
    %v2148 = vpack.c.b16 %v1880, %v1876
    %v2149 = vpack.c.b16 %v1885, %v1881
    %v2150 = vpack.c.b16 %v1886, %v1882
    %v2151 = vpack.c.b16 %v1887, %v1883
    %v2152 = vpack.c.b16 %v1888, %v1884
    %v2153 = vpack.c.b16 %v1893, %v1889
    %v2154 = vpack.c.b16 %v1894, %v1890
    %v2155 = vpack.c.b16 %v1895, %v1891
    %v2156 = vpack.c.b16 %v1896, %v1892
    %v2157 = vpack.c.b16 %v1901, %v1897
    %v2158 = vpack.c.b16 %v1902, %v1898
    %v2159 = vpack.c.b16 %v1903, %v1899
    %v2160 = vpack.c.b16 %v1904, %v1900
    %2417 = vmatpush.bf16.msra.mxu0 %v1933
    %2418 = vmatpush.bf16.msra.mxu0 %v1929
    %2419 = vmatpush.bf16.msra.mxu0 %v1925
    %2420 = vmatpush.bf16.msra.mxu0 %v1921
    %2421 = vmatpush.bf16.msra.mxu0 %v1917
    %2422 = vmatpush.bf16.msra.mxu0 %v1913
    %2423 = vmatpush.bf16.msra.mxu0 %v1909
    %2424 = vmatpush.bf16.msra.mxu0 %v1905
    %2425 = vmatmul.bf16.gmra.mxu0 %v881
    %v2426 = vpop.f32.mrf.mxu0
    %v2427 = vadd.f32 %v489, %v2426
    %v2428 = vpop.f32.mrf.mxu0
    %v2429 = vadd.f32 %v489, %v2428
    %2430 = vmatmul.bf16.gmra.mxu0 %v889
    %v2431 = vpop.f32.mrf.mxu0
    %v2432 = vadd.f32 %v489, %v2431
    %v2433 = vpop.f32.mrf.mxu0
    %v2434 = vadd.f32 %v489, %v2433
    %2435 = vmatmul.bf16.gmra.mxu0 %v897
    %v2436 = vpop.f32.mrf.mxu0
    %v2437 = vadd.f32 %v489, %v2436
    %v2438 = vpop.f32.mrf.mxu0
    %v2439 = vadd.f32 %v489, %v2438
    %2440 = vmatmul.bf16.gmra.mxu0 %v905
    %v2441 = vpop.f32.mrf.mxu0
    %v2442 = vadd.f32 %v489, %v2441
    %v2443 = vpop.f32.mrf.mxu0
    %v2444 = vadd.f32 %v489, %v2443
    %2445 = vmatmul.bf16.gmra.mxu0 %v913
    %v2446 = vpop.f32.mrf.mxu0
    %v2447 = vadd.f32 %v489, %v2446
    %v2448 = vpop.f32.mrf.mxu0
    %v2449 = vadd.f32 %v489, %v2448
    %2450 = vmatmul.bf16.gmra.mxu0 %v921
    %v2451 = vpop.f32.mrf.mxu0
    %v2452 = vadd.f32 %v489, %v2451
    %v2453 = vpop.f32.mrf.mxu0
    %v2454 = vadd.f32 %v489, %v2453
    %2455 = vmatmul.bf16.gmra.mxu0 %v929
    %v2456 = vpop.f32.mrf.mxu0
    %v2457 = vadd.f32 %v489, %v2456
    %v2458 = vpop.f32.mrf.mxu0
    %v2459 = vadd.f32 %v489, %v2458
    %2460 = vmatmul.bf16.gmra.mxu0 %v937
    %v2461 = vpop.f32.mrf.mxu0
    %v2462 = vadd.f32 %v489, %v2461
    %v2463 = vpop.f32.mrf.mxu0
    %v2464 = vadd.f32 %v489, %v2463
    %2465 = vmatmul.bf16.gmra.mxu0 %v945
    %v2466 = vpop.f32.mrf.mxu0
    %v2467 = vadd.f32 %v489, %v2466
    %v2468 = vpop.f32.mrf.mxu0
    %v2469 = vadd.f32 %v489, %v2468
    %2470 = vmatmul.bf16.gmra.mxu0 %v953
    %v2471 = vpop.f32.mrf.mxu0
    %v2472 = vadd.f32 %v489, %v2471
    %v2473 = vpop.f32.mrf.mxu0
    %v2474 = vadd.f32 %v489, %v2473
    %2475 = vmatmul.bf16.gmra.mxu0 %v961
    %v2476 = vpop.f32.mrf.mxu0
    %v2477 = vadd.f32 %v489, %v2476
    %v2478 = vpop.f32.mrf.mxu0
    %v2479 = vadd.f32 %v489, %v2478
    %2480 = vmatmul.bf16.gmra.mxu0 %v969
    %v2481 = vpop.f32.mrf.mxu0
    %v2482 = vadd.f32 %v489, %v2481
    %v2483 = vpop.f32.mrf.mxu0
    %v2484 = vadd.f32 %v489, %v2483
    %2485 = vmatmul.bf16.gmra.mxu0 %v977
    %v2486 = vpop.f32.mrf.mxu0
    %v2487 = vadd.f32 %v489, %v2486
    %v2488 = vpop.f32.mrf.mxu0
    %v2489 = vadd.f32 %v489, %v2488
    %2490 = vmatmul.bf16.gmra.mxu0 %v985
    %v2491 = vpop.f32.mrf.mxu0
    %v2492 = vadd.f32 %v489, %v2491
    %v2493 = vpop.f32.mrf.mxu0
    %v2494 = vadd.f32 %v489, %v2493
    %2495 = vmatmul.bf16.gmra.mxu0 %v993
    %v2496 = vpop.f32.mrf.mxu0
    %v2497 = vadd.f32 %v489, %v2496
    %v2498 = vpop.f32.mrf.mxu0
    %v2499 = vadd.f32 %v489, %v2498
    %2500 = vmatmul.bf16.gmra.mxu0 %v1001
    %v2501 = vpop.f32.mrf.mxu0
    %v2502 = vadd.f32 %v489, %v2501
    %v2503 = vpop.f32.mrf.mxu0
    %v2504 = vadd.f32 %v489, %v2503
    %2505 = vdwg.mxu0
    %2506 = vmatpush.bf16.msra.mxu0 %v1965
    %2507 = vmatpush.bf16.msra.mxu0 %v1961
    %2508 = vmatpush.bf16.msra.mxu0 %v1957
    %2509 = vmatpush.bf16.msra.mxu0 %v1953
    %2510 = vmatpush.bf16.msra.mxu0 %v1949
    %2511 = vmatpush.bf16.msra.mxu0 %v1945
    %2512 = vmatpush.bf16.msra.mxu0 %v1941
    %2513 = vmatpush.bf16.msra.mxu0 %v1937
    %2514 = vmatmul.bf16.gmra.mxu0 %v882
    %v2515 = vpop.f32.mrf.mxu0
    %v2516 = vadd.f32 %v2427, %v2515
    %v2517 = vpop.f32.mrf.mxu0
    %v2518 = vadd.f32 %v2429, %v2517
    %2519 = vmatmul.bf16.gmra.mxu0 %v890
    %v2520 = vpop.f32.mrf.mxu0
    %v2521 = vadd.f32 %v2432, %v2520
    %v2522 = vpop.f32.mrf.mxu0
    %v2523 = vadd.f32 %v2434, %v2522
    %2524 = vmatmul.bf16.gmra.mxu0 %v898
    %v2525 = vpop.f32.mrf.mxu0
    %v2526 = vadd.f32 %v2437, %v2525
    %v2527 = vpop.f32.mrf.mxu0
    %v2528 = vadd.f32 %v2439, %v2527
    %2529 = vmatmul.bf16.gmra.mxu0 %v906
    %v2530 = vpop.f32.mrf.mxu0
    %v2531 = vadd.f32 %v2442, %v2530
    %v2532 = vpop.f32.mrf.mxu0
    %v2533 = vadd.f32 %v2444, %v2532
    %2534 = vmatmul.bf16.gmra.mxu0 %v914
    %v2535 = vpop.f32.mrf.mxu0
    %v2536 = vadd.f32 %v2447, %v2535
    %v2537 = vpop.f32.mrf.mxu0
    %v2538 = vadd.f32 %v2449, %v2537
    %2539 = vmatmul.bf16.gmra.mxu0 %v922
    %v2540 = vpop.f32.mrf.mxu0
    %v2541 = vadd.f32 %v2452, %v2540
    %v2542 = vpop.f32.mrf.mxu0
    %v2543 = vadd.f32 %v2454, %v2542
    %2544 = vmatmul.bf16.gmra.mxu0 %v930
    %v2545 = vpop.f32.mrf.mxu0
    %v2546 = vadd.f32 %v2457, %v2545
    %v2547 = vpop.f32.mrf.mxu0
    %v2548 = vadd.f32 %v2459, %v2547
    %2549 = vmatmul.bf16.gmra.mxu0 %v938
    %v2550 = vpop.f32.mrf.mxu0
    %v2551 = vadd.f32 %v2462, %v2550
    %v2552 = vpop.f32.mrf.mxu0
    %v2553 = vadd.f32 %v2464, %v2552
    %2554 = vmatmul.bf16.gmra.mxu0 %v946
    %v2555 = vpop.f32.mrf.mxu0
    %v2556 = vadd.f32 %v2467, %v2555
    %v2557 = vpop.f32.mrf.mxu0
    %v2558 = vadd.f32 %v2469, %v2557
    %2559 = vmatmul.bf16.gmra.mxu0 %v954
    %v2560 = vpop.f32.mrf.mxu0
    %v2561 = vadd.f32 %v2472, %v2560
    %v2562 = vpop.f32.mrf.mxu0
    %v2563 = vadd.f32 %v2474, %v2562
    %2564 = vmatmul.bf16.gmra.mxu0 %v962
    %v2565 = vpop.f32.mrf.mxu0
    %v2566 = vadd.f32 %v2477, %v2565
    %v2567 = vpop.f32.mrf.mxu0
    %v2568 = vadd.f32 %v2479, %v2567
    %2569 = vmatmul.bf16.gmra.mxu0 %v970
    %v2570 = vpop.f32.mrf.mxu0
    %v2571 = vadd.f32 %v2482, %v2570
    %v2572 = vpop.f32.mrf.mxu0
    %v2573 = vadd.f32 %v2484, %v2572
    %2574 = vmatmul.bf16.gmra.mxu0 %v978
    %v2575 = vpop.f32.mrf.mxu0
    %v2576 = vadd.f32 %v2487, %v2575
    %v2577 = vpop.f32.mrf.mxu0
    %v2578 = vadd.f32 %v2489, %v2577
    %2579 = vmatmul.bf16.gmra.mxu0 %v986
    %v2580 = vpop.f32.mrf.mxu0
    %v2581 = vadd.f32 %v2492, %v2580
    %v2582 = vpop.f32.mrf.mxu0
    %v2583 = vadd.f32 %v2494, %v2582
    %2584 = vmatmul.bf16.gmra.mxu0 %v994
    %v2585 = vpop.f32.mrf.mxu0
    %v2586 = vadd.f32 %v2497, %v2585
    %v2587 = vpop.f32.mrf.mxu0
    %v2588 = vadd.f32 %v2499, %v2587
    %2589 = vmatmul.bf16.gmra.mxu0 %v1002
    %v2590 = vpop.f32.mrf.mxu0
    %v2591 = vadd.f32 %v2502, %v2590
    %v2592 = vpop.f32.mrf.mxu0
    %v2593 = vadd.f32 %v2504, %v2592
    %2594 = vdwg.mxu0
    %2595 = vmatpush.bf16.msra.mxu0 %v1997
    %2596 = vmatpush.bf16.msra.mxu0 %v1993
    %2597 = vmatpush.bf16.msra.mxu0 %v1989
    %2598 = vmatpush.bf16.msra.mxu0 %v1985
    %2599 = vmatpush.bf16.msra.mxu0 %v1981
    %2600 = vmatpush.bf16.msra.mxu0 %v1977
    %2601 = vmatpush.bf16.msra.mxu0 %v1973
    %2602 = vmatpush.bf16.msra.mxu0 %v1969
    %2603 = vmatmul.bf16.gmra.mxu0 %v883
    %v2604 = vpop.f32.mrf.mxu0
    %v2605 = vadd.f32 %v2516, %v2604
    %v2606 = vpop.f32.mrf.mxu0
    %v2607 = vadd.f32 %v2518, %v2606
    %2608 = vmatmul.bf16.gmra.mxu0 %v891
    %v2609 = vpop.f32.mrf.mxu0
    %v2610 = vadd.f32 %v2521, %v2609
    %v2611 = vpop.f32.mrf.mxu0
    %v2612 = vadd.f32 %v2523, %v2611
    %2613 = vmatmul.bf16.gmra.mxu0 %v899
    %v2614 = vpop.f32.mrf.mxu0
    %v2615 = vadd.f32 %v2526, %v2614
    %v2616 = vpop.f32.mrf.mxu0
    %v2617 = vadd.f32 %v2528, %v2616
    %2618 = vmatmul.bf16.gmra.mxu0 %v907
    %v2619 = vpop.f32.mrf.mxu0
    %v2620 = vadd.f32 %v2531, %v2619
    %v2621 = vpop.f32.mrf.mxu0
    %v2622 = vadd.f32 %v2533, %v2621
    %2623 = vmatmul.bf16.gmra.mxu0 %v915
    %v2624 = vpop.f32.mrf.mxu0
    %v2625 = vadd.f32 %v2536, %v2624
    %v2626 = vpop.f32.mrf.mxu0
    %v2627 = vadd.f32 %v2538, %v2626
    %2628 = vmatmul.bf16.gmra.mxu0 %v923
    %v2629 = vpop.f32.mrf.mxu0
    %v2630 = vadd.f32 %v2541, %v2629
    %v2631 = vpop.f32.mrf.mxu0
    %v2632 = vadd.f32 %v2543, %v2631
    %2633 = vmatmul.bf16.gmra.mxu0 %v931
    %v2634 = vpop.f32.mrf.mxu0
    %v2635 = vadd.f32 %v2546, %v2634
    %v2636 = vpop.f32.mrf.mxu0
    %v2637 = vadd.f32 %v2548, %v2636
    %2638 = vmatmul.bf16.gmra.mxu0 %v939
    %v2639 = vpop.f32.mrf.mxu0
    %v2640 = vadd.f32 %v2551, %v2639
    %v2641 = vpop.f32.mrf.mxu0
    %v2642 = vadd.f32 %v2553, %v2641
    %2643 = vmatmul.bf16.gmra.mxu0 %v947
    %v2644 = vpop.f32.mrf.mxu0
    %v2645 = vadd.f32 %v2556, %v2644
    %v2646 = vpop.f32.mrf.mxu0
    %v2647 = vadd.f32 %v2558, %v2646
    %2648 = vmatmul.bf16.gmra.mxu0 %v955
    %v2649 = vpop.f32.mrf.mxu0
    %v2650 = vadd.f32 %v2561, %v2649
    %v2651 = vpop.f32.mrf.mxu0
    %v2652 = vadd.f32 %v2563, %v2651
    %2653 = vmatmul.bf16.gmra.mxu0 %v963
    %v2654 = vpop.f32.mrf.mxu0
    %v2655 = vadd.f32 %v2566, %v2654
    %v2656 = vpop.f32.mrf.mxu0
    %v2657 = vadd.f32 %v2568, %v2656
    %2658 = vmatmul.bf16.gmra.mxu0 %v971
    %v2659 = vpop.f32.mrf.mxu0
    %v2660 = vadd.f32 %v2571, %v2659
    %v2661 = vpop.f32.mrf.mxu0
    %v2662 = vadd.f32 %v2573, %v2661
    %2663 = vmatmul.bf16.gmra.mxu0 %v979
    %v2664 = vpop.f32.mrf.mxu0
    %v2665 = vadd.f32 %v2576, %v2664
    %v2666 = vpop.f32.mrf.mxu0
    %v2667 = vadd.f32 %v2578, %v2666
    %2668 = vmatmul.bf16.gmra.mxu0 %v987
    %v2669 = vpop.f32.mrf.mxu0
    %v2670 = vadd.f32 %v2581, %v2669
    %v2671 = vpop.f32.mrf.mxu0
    %v2672 = vadd.f32 %v2583, %v2671
    %2673 = vmatmul.bf16.gmra.mxu0 %v995
    %v2674 = vpop.f32.mrf.mxu0
    %v2675 = vadd.f32 %v2586, %v2674
    %v2676 = vpop.f32.mrf.mxu0
    %v2677 = vadd.f32 %v2588, %v2676
    %2678 = vmatmul.bf16.gmra.mxu0 %v1003
    %v2679 = vpop.f32.mrf.mxu0
    %v2680 = vadd.f32 %v2591, %v2679
    %v2681 = vpop.f32.mrf.mxu0
    %v2682 = vadd.f32 %v2593, %v2681
    %2683 = vdwg.mxu0
    %2684 = vmatpush.bf16.msra.mxu0 %v2029
    %2685 = vmatpush.bf16.msra.mxu0 %v2025
    %2686 = vmatpush.bf16.msra.mxu0 %v2021
    %2687 = vmatpush.bf16.msra.mxu0 %v2017
    %2688 = vmatpush.bf16.msra.mxu0 %v2013
    %2689 = vmatpush.bf16.msra.mxu0 %v2009
    %2690 = vmatpush.bf16.msra.mxu0 %v2005
    %2691 = vmatpush.bf16.msra.mxu0 %v2001
    %2692 = vmatmul.bf16.gmra.mxu0 %v884
    %v2693 = vpop.f32.mrf.mxu0
    %v2694 = vadd.f32 %v2605, %v2693
    %v2695 = vpop.f32.mrf.mxu0
    %v2696 = vadd.f32 %v2607, %v2695
    %2697 = vmatmul.bf16.gmra.mxu0 %v892
    %v2698 = vpop.f32.mrf.mxu0
    %v2699 = vadd.f32 %v2610, %v2698
    %v2700 = vpop.f32.mrf.mxu0
    %v2701 = vadd.f32 %v2612, %v2700
    %2702 = vmatmul.bf16.gmra.mxu0 %v900
    %v2703 = vpop.f32.mrf.mxu0
    %v2704 = vadd.f32 %v2615, %v2703
    %v2705 = vpop.f32.mrf.mxu0
    %v2706 = vadd.f32 %v2617, %v2705
    %2707 = vmatmul.bf16.gmra.mxu0 %v908
    %v2708 = vpop.f32.mrf.mxu0
    %v2709 = vadd.f32 %v2620, %v2708
    %v2710 = vpop.f32.mrf.mxu0
    %v2711 = vadd.f32 %v2622, %v2710
    %2712 = vmatmul.bf16.gmra.mxu0 %v916
    %v2713 = vpop.f32.mrf.mxu0
    %v2714 = vadd.f32 %v2625, %v2713
    %v2715 = vpop.f32.mrf.mxu0
    %v2716 = vadd.f32 %v2627, %v2715
    %2717 = vmatmul.bf16.gmra.mxu0 %v924
    %v2718 = vpop.f32.mrf.mxu0
    %v2719 = vadd.f32 %v2630, %v2718
    %v2720 = vpop.f32.mrf.mxu0
    %v2721 = vadd.f32 %v2632, %v2720
    %2722 = vmatmul.bf16.gmra.mxu0 %v932
    %v2723 = vpop.f32.mrf.mxu0
    %v2724 = vadd.f32 %v2635, %v2723
    %v2725 = vpop.f32.mrf.mxu0
    %v2726 = vadd.f32 %v2637, %v2725
    %2727 = vmatmul.bf16.gmra.mxu0 %v940
    %v2728 = vpop.f32.mrf.mxu0
    %v2729 = vadd.f32 %v2640, %v2728
    %v2730 = vpop.f32.mrf.mxu0
    %v2731 = vadd.f32 %v2642, %v2730
    %2732 = vmatmul.bf16.gmra.mxu0 %v948
    %v2733 = vpop.f32.mrf.mxu0
    %v2734 = vadd.f32 %v2645, %v2733
    %v2735 = vpop.f32.mrf.mxu0
    %v2736 = vadd.f32 %v2647, %v2735
    %2737 = vmatmul.bf16.gmra.mxu0 %v956
    %v2738 = vpop.f32.mrf.mxu0
    %v2739 = vadd.f32 %v2650, %v2738
    %v2740 = vpop.f32.mrf.mxu0
    %v2741 = vadd.f32 %v2652, %v2740
    %2742 = vmatmul.bf16.gmra.mxu0 %v964
    %v2743 = vpop.f32.mrf.mxu0
    %v2744 = vadd.f32 %v2655, %v2743
    %v2745 = vpop.f32.mrf.mxu0
    %v2746 = vadd.f32 %v2657, %v2745
    %2747 = vmatmul.bf16.gmra.mxu0 %v972
    %v2748 = vpop.f32.mrf.mxu0
    %v2749 = vadd.f32 %v2660, %v2748
    %v2750 = vpop.f32.mrf.mxu0
    %v2751 = vadd.f32 %v2662, %v2750
    %2752 = vmatmul.bf16.gmra.mxu0 %v980
    %v2753 = vpop.f32.mrf.mxu0
    %v2754 = vadd.f32 %v2665, %v2753
    %v2755 = vpop.f32.mrf.mxu0
    %v2756 = vadd.f32 %v2667, %v2755
    %2757 = vmatmul.bf16.gmra.mxu0 %v988
    %v2758 = vpop.f32.mrf.mxu0
    %v2759 = vadd.f32 %v2670, %v2758
    %v2760 = vpop.f32.mrf.mxu0
    %v2761 = vadd.f32 %v2672, %v2760
    %2762 = vmatmul.bf16.gmra.mxu0 %v996
    %v2763 = vpop.f32.mrf.mxu0
    %v2764 = vadd.f32 %v2675, %v2763
    %v2765 = vpop.f32.mrf.mxu0
    %v2766 = vadd.f32 %v2677, %v2765
    %2767 = vmatmul.bf16.gmra.mxu0 %v1004
    %v2768 = vpop.f32.mrf.mxu0
    %v2769 = vadd.f32 %v2680, %v2768
    %v2770 = vpop.f32.mrf.mxu0
    %v2771 = vadd.f32 %v2682, %v2770
    %2772 = vdwg.mxu0
    %2773 = vmatpush.bf16.msra.mxu0 %v2061
    %2774 = vmatpush.bf16.msra.mxu0 %v2057
    %2775 = vmatpush.bf16.msra.mxu0 %v2053
    %2776 = vmatpush.bf16.msra.mxu0 %v2049
    %2777 = vmatpush.bf16.msra.mxu0 %v2045
    %2778 = vmatpush.bf16.msra.mxu0 %v2041
    %2779 = vmatpush.bf16.msra.mxu0 %v2037
    %2780 = vmatpush.bf16.msra.mxu0 %v2033
    %2781 = vmatmul.bf16.gmra.mxu0 %v885
    %v2782 = vpop.f32.mrf.mxu0
    %v2783 = vadd.f32 %v2694, %v2782
    %v2784 = vpop.f32.mrf.mxu0
    %v2785 = vadd.f32 %v2696, %v2784
    %2786 = vmatmul.bf16.gmra.mxu0 %v893
    %v2787 = vpop.f32.mrf.mxu0
    %v2788 = vadd.f32 %v2699, %v2787
    %v2789 = vpop.f32.mrf.mxu0
    %v2790 = vadd.f32 %v2701, %v2789
    %2791 = vmatmul.bf16.gmra.mxu0 %v901
    %v2792 = vpop.f32.mrf.mxu0
    %v2793 = vadd.f32 %v2704, %v2792
    %v2794 = vpop.f32.mrf.mxu0
    %v2795 = vadd.f32 %v2706, %v2794
    %2796 = vmatmul.bf16.gmra.mxu0 %v909
    %v2797 = vpop.f32.mrf.mxu0
    %v2798 = vadd.f32 %v2709, %v2797
    %v2799 = vpop.f32.mrf.mxu0
    %v2800 = vadd.f32 %v2711, %v2799
    %2801 = vmatmul.bf16.gmra.mxu0 %v917
    %v2802 = vpop.f32.mrf.mxu0
    %v2803 = vadd.f32 %v2714, %v2802
    %v2804 = vpop.f32.mrf.mxu0
    %v2805 = vadd.f32 %v2716, %v2804
    %2806 = vmatmul.bf16.gmra.mxu0 %v925
    %v2807 = vpop.f32.mrf.mxu0
    %v2808 = vadd.f32 %v2719, %v2807
    %v2809 = vpop.f32.mrf.mxu0
    %v2810 = vadd.f32 %v2721, %v2809
    %2811 = vmatmul.bf16.gmra.mxu0 %v933
    %v2812 = vpop.f32.mrf.mxu0
    %v2813 = vadd.f32 %v2724, %v2812
    %v2814 = vpop.f32.mrf.mxu0
    %v2815 = vadd.f32 %v2726, %v2814
    %2816 = vmatmul.bf16.gmra.mxu0 %v941
    %v2817 = vpop.f32.mrf.mxu0
    %v2818 = vadd.f32 %v2729, %v2817
    %v2819 = vpop.f32.mrf.mxu0
    %v2820 = vadd.f32 %v2731, %v2819
    %2821 = vmatmul.bf16.gmra.mxu0 %v949
    %v2822 = vpop.f32.mrf.mxu0
    %v2823 = vadd.f32 %v2734, %v2822
    %v2824 = vpop.f32.mrf.mxu0
    %v2825 = vadd.f32 %v2736, %v2824
    %2826 = vmatmul.bf16.gmra.mxu0 %v957
    %v2827 = vpop.f32.mrf.mxu0
    %v2828 = vadd.f32 %v2739, %v2827
    %v2829 = vpop.f32.mrf.mxu0
    %v2830 = vadd.f32 %v2741, %v2829
    %2831 = vmatmul.bf16.gmra.mxu0 %v965
    %v2832 = vpop.f32.mrf.mxu0
    %v2833 = vadd.f32 %v2744, %v2832
    %v2834 = vpop.f32.mrf.mxu0
    %v2835 = vadd.f32 %v2746, %v2834
    %2836 = vmatmul.bf16.gmra.mxu0 %v973
    %v2837 = vpop.f32.mrf.mxu0
    %v2838 = vadd.f32 %v2749, %v2837
    %v2839 = vpop.f32.mrf.mxu0
    %v2840 = vadd.f32 %v2751, %v2839
    %2841 = vmatmul.bf16.gmra.mxu0 %v981
    %v2842 = vpop.f32.mrf.mxu0
    %v2843 = vadd.f32 %v2754, %v2842
    %v2844 = vpop.f32.mrf.mxu0
    %v2845 = vadd.f32 %v2756, %v2844
    %2846 = vmatmul.bf16.gmra.mxu0 %v989
    %v2847 = vpop.f32.mrf.mxu0
    %v2848 = vadd.f32 %v2759, %v2847
    %v2849 = vpop.f32.mrf.mxu0
    %v2850 = vadd.f32 %v2761, %v2849
    %2851 = vmatmul.bf16.gmra.mxu0 %v997
    %v2852 = vpop.f32.mrf.mxu0
    %v2853 = vadd.f32 %v2764, %v2852
    %v2854 = vpop.f32.mrf.mxu0
    %v2855 = vadd.f32 %v2766, %v2854
    %2856 = vmatmul.bf16.gmra.mxu0 %v1005
    %v2857 = vpop.f32.mrf.mxu0
    %v2858 = vadd.f32 %v2769, %v2857
    %v2859 = vpop.f32.mrf.mxu0
    %v2860 = vadd.f32 %v2771, %v2859
    %2861 = vdwg.mxu0
    %2862 = vmatpush.bf16.msra.mxu0 %v2093
    %2863 = vmatpush.bf16.msra.mxu0 %v2089
    %2864 = vmatpush.bf16.msra.mxu0 %v2085
    %2865 = vmatpush.bf16.msra.mxu0 %v2081
    %2866 = vmatpush.bf16.msra.mxu0 %v2077
    %2867 = vmatpush.bf16.msra.mxu0 %v2073
    %2868 = vmatpush.bf16.msra.mxu0 %v2069
    %2869 = vmatpush.bf16.msra.mxu0 %v2065
    %2870 = vmatmul.bf16.gmra.mxu0 %v886
    %v2871 = vpop.f32.mrf.mxu0
    %v2872 = vadd.f32 %v2783, %v2871
    %v2873 = vpop.f32.mrf.mxu0
    %v2874 = vadd.f32 %v2785, %v2873
    %2875 = vmatmul.bf16.gmra.mxu0 %v894
    %v2876 = vpop.f32.mrf.mxu0
    %v2877 = vadd.f32 %v2788, %v2876
    %v2878 = vpop.f32.mrf.mxu0
    %v2879 = vadd.f32 %v2790, %v2878
    %2880 = vmatmul.bf16.gmra.mxu0 %v902
    %v2881 = vpop.f32.mrf.mxu0
    %v2882 = vadd.f32 %v2793, %v2881
    %v2883 = vpop.f32.mrf.mxu0
    %v2884 = vadd.f32 %v2795, %v2883
    %2885 = vmatmul.bf16.gmra.mxu0 %v910
    %v2886 = vpop.f32.mrf.mxu0
    %v2887 = vadd.f32 %v2798, %v2886
    %v2888 = vpop.f32.mrf.mxu0
    %v2889 = vadd.f32 %v2800, %v2888
    %2890 = vmatmul.bf16.gmra.mxu0 %v918
    %v2891 = vpop.f32.mrf.mxu0
    %v2892 = vadd.f32 %v2803, %v2891
    %v2893 = vpop.f32.mrf.mxu0
    %v2894 = vadd.f32 %v2805, %v2893
    %2895 = vmatmul.bf16.gmra.mxu0 %v926
    %v2896 = vpop.f32.mrf.mxu0
    %v2897 = vadd.f32 %v2808, %v2896
    %v2898 = vpop.f32.mrf.mxu0
    %v2899 = vadd.f32 %v2810, %v2898
    %2900 = vmatmul.bf16.gmra.mxu0 %v934
    %v2901 = vpop.f32.mrf.mxu0
    %v2902 = vadd.f32 %v2813, %v2901
    %v2903 = vpop.f32.mrf.mxu0
    %v2904 = vadd.f32 %v2815, %v2903
    %2905 = vmatmul.bf16.gmra.mxu0 %v942
    %v2906 = vpop.f32.mrf.mxu0
    %v2907 = vadd.f32 %v2818, %v2906
    %v2908 = vpop.f32.mrf.mxu0
    %v2909 = vadd.f32 %v2820, %v2908
    %2910 = vmatmul.bf16.gmra.mxu0 %v950
    %v2911 = vpop.f32.mrf.mxu0
    %v2912 = vadd.f32 %v2823, %v2911
    %v2913 = vpop.f32.mrf.mxu0
    %v2914 = vadd.f32 %v2825, %v2913
    %2915 = vmatmul.bf16.gmra.mxu0 %v958
    %v2916 = vpop.f32.mrf.mxu0
    %v2917 = vadd.f32 %v2828, %v2916
    %v2918 = vpop.f32.mrf.mxu0
    %v2919 = vadd.f32 %v2830, %v2918
    %2920 = vmatmul.bf16.gmra.mxu0 %v966
    %v2921 = vpop.f32.mrf.mxu0
    %v2922 = vadd.f32 %v2833, %v2921
    %v2923 = vpop.f32.mrf.mxu0
    %v2924 = vadd.f32 %v2835, %v2923
    %2925 = vmatmul.bf16.gmra.mxu0 %v974
    %v2926 = vpop.f32.mrf.mxu0
    %v2927 = vadd.f32 %v2838, %v2926
    %v2928 = vpop.f32.mrf.mxu0
    %v2929 = vadd.f32 %v2840, %v2928
    %2930 = vmatmul.bf16.gmra.mxu0 %v982
    %v2931 = vpop.f32.mrf.mxu0
    %v2932 = vadd.f32 %v2843, %v2931
    %v2933 = vpop.f32.mrf.mxu0
    %v2934 = vadd.f32 %v2845, %v2933
    %2935 = vmatmul.bf16.gmra.mxu0 %v990
    %v2936 = vpop.f32.mrf.mxu0
    %v2937 = vadd.f32 %v2848, %v2936
    %v2938 = vpop.f32.mrf.mxu0
    %v2939 = vadd.f32 %v2850, %v2938
    %2940 = vmatmul.bf16.gmra.mxu0 %v998
    %v2941 = vpop.f32.mrf.mxu0
    %v2942 = vadd.f32 %v2853, %v2941
    %v2943 = vpop.f32.mrf.mxu0
    %v2944 = vadd.f32 %v2855, %v2943
    %2945 = vmatmul.bf16.gmra.mxu0 %v1006
    %v2946 = vpop.f32.mrf.mxu0
    %v2947 = vadd.f32 %v2858, %v2946
    %v2948 = vpop.f32.mrf.mxu0
    %v2949 = vadd.f32 %v2860, %v2948
    %2950 = vdwg.mxu0
    %2951 = vmatpush.bf16.msra.mxu0 %v2125
    %2952 = vmatpush.bf16.msra.mxu0 %v2121
    %2953 = vmatpush.bf16.msra.mxu0 %v2117
    %2954 = vmatpush.bf16.msra.mxu0 %v2113
    %2955 = vmatpush.bf16.msra.mxu0 %v2109
    %2956 = vmatpush.bf16.msra.mxu0 %v2105
    %2957 = vmatpush.bf16.msra.mxu0 %v2101
    %2958 = vmatpush.bf16.msra.mxu0 %v2097
    %2959 = vmatmul.bf16.gmra.mxu0 %v887
    %v2960 = vpop.f32.mrf.mxu0
    %v2961 = vadd.f32 %v2872, %v2960
    %v2962 = vpop.f32.mrf.mxu0
    %v2963 = vadd.f32 %v2874, %v2962
    %2964 = vmatmul.bf16.gmra.mxu0 %v895
    %v2965 = vpop.f32.mrf.mxu0
    %v2966 = vadd.f32 %v2877, %v2965
    %v2967 = vpop.f32.mrf.mxu0
    %v2968 = vadd.f32 %v2879, %v2967
    %2969 = vmatmul.bf16.gmra.mxu0 %v903
    %v2970 = vpop.f32.mrf.mxu0
    %v2971 = vadd.f32 %v2882, %v2970
    %v2972 = vpop.f32.mrf.mxu0
    %v2973 = vadd.f32 %v2884, %v2972
    %2974 = vmatmul.bf16.gmra.mxu0 %v911
    %v2975 = vpop.f32.mrf.mxu0
    %v2976 = vadd.f32 %v2887, %v2975
    %v2977 = vpop.f32.mrf.mxu0
    %v2978 = vadd.f32 %v2889, %v2977
    %2979 = vmatmul.bf16.gmra.mxu0 %v919
    %v2980 = vpop.f32.mrf.mxu0
    %v2981 = vadd.f32 %v2892, %v2980
    %v2982 = vpop.f32.mrf.mxu0
    %v2983 = vadd.f32 %v2894, %v2982
    %2984 = vmatmul.bf16.gmra.mxu0 %v927
    %v2985 = vpop.f32.mrf.mxu0
    %v2986 = vadd.f32 %v2897, %v2985
    %v2987 = vpop.f32.mrf.mxu0
    %v2988 = vadd.f32 %v2899, %v2987
    %2989 = vmatmul.bf16.gmra.mxu0 %v935
    %v2990 = vpop.f32.mrf.mxu0
    %v2991 = vadd.f32 %v2902, %v2990
    %v2992 = vpop.f32.mrf.mxu0
    %v2993 = vadd.f32 %v2904, %v2992
    %2994 = vmatmul.bf16.gmra.mxu0 %v943
    %v2995 = vpop.f32.mrf.mxu0
    %v2996 = vadd.f32 %v2907, %v2995
    %v2997 = vpop.f32.mrf.mxu0
    %v2998 = vadd.f32 %v2909, %v2997
    %2999 = vmatmul.bf16.gmra.mxu0 %v951
    %v3000 = vpop.f32.mrf.mxu0
    %v3001 = vadd.f32 %v2912, %v3000
    %v3002 = vpop.f32.mrf.mxu0
    %v3003 = vadd.f32 %v2914, %v3002
    %3004 = vmatmul.bf16.gmra.mxu0 %v959
    %v3005 = vpop.f32.mrf.mxu0
    %v3006 = vadd.f32 %v2917, %v3005
    %v3007 = vpop.f32.mrf.mxu0
    %v3008 = vadd.f32 %v2919, %v3007
    %3009 = vmatmul.bf16.gmra.mxu0 %v967
    %v3010 = vpop.f32.mrf.mxu0
    %v3011 = vadd.f32 %v2922, %v3010
    %v3012 = vpop.f32.mrf.mxu0
    %v3013 = vadd.f32 %v2924, %v3012
    %3014 = vmatmul.bf16.gmra.mxu0 %v975
    %v3015 = vpop.f32.mrf.mxu0
    %v3016 = vadd.f32 %v2927, %v3015
    %v3017 = vpop.f32.mrf.mxu0
    %v3018 = vadd.f32 %v2929, %v3017
    %3019 = vmatmul.bf16.gmra.mxu0 %v983
    %v3020 = vpop.f32.mrf.mxu0
    %v3021 = vadd.f32 %v2932, %v3020
    %v3022 = vpop.f32.mrf.mxu0
    %v3023 = vadd.f32 %v2934, %v3022
    %3024 = vmatmul.bf16.gmra.mxu0 %v991
    %v3025 = vpop.f32.mrf.mxu0
    %v3026 = vadd.f32 %v2937, %v3025
    %v3027 = vpop.f32.mrf.mxu0
    %v3028 = vadd.f32 %v2939, %v3027
    %3029 = vmatmul.bf16.gmra.mxu0 %v999
    %v3030 = vpop.f32.mrf.mxu0
    %v3031 = vadd.f32 %v2942, %v3030
    %v3032 = vpop.f32.mrf.mxu0
    %v3033 = vadd.f32 %v2944, %v3032
    %3034 = vmatmul.bf16.gmra.mxu0 %v1007
    %v3035 = vpop.f32.mrf.mxu0
    %v3036 = vadd.f32 %v2947, %v3035
    %v3037 = vpop.f32.mrf.mxu0
    %v3038 = vadd.f32 %v2949, %v3037
    %3039 = vdwg.mxu0
    %3040 = vmatpush.bf16.msra.mxu0 %v2157
    %3041 = vmatpush.bf16.msra.mxu0 %v2153
    %3042 = vmatpush.bf16.msra.mxu0 %v2149
    %3043 = vmatpush.bf16.msra.mxu0 %v2145
    %3044 = vmatpush.bf16.msra.mxu0 %v2141
    %3045 = vmatpush.bf16.msra.mxu0 %v2137
    %3046 = vmatpush.bf16.msra.mxu0 %v2133
    %3047 = vmatpush.bf16.msra.mxu0 %v2129
    %3048 = vmatmul.bf16.gmra.mxu0 %v888
    %v3049 = vpop.f32.mrf.mxu0
    %v3050 = vadd.f32 %v2961, %v3049
    %v3051 = vpop.f32.mrf.mxu0
    %v3052 = vadd.f32 %v2963, %v3051
    %3053 = vmatmul.bf16.gmra.mxu0 %v896
    %v3054 = vpop.f32.mrf.mxu0
    %v3055 = vadd.f32 %v2966, %v3054
    %v3056 = vpop.f32.mrf.mxu0
    %v3057 = vadd.f32 %v2968, %v3056
    %3058 = vmatmul.bf16.gmra.mxu0 %v904
    %v3059 = vpop.f32.mrf.mxu0
    %v3060 = vadd.f32 %v2971, %v3059
    %v3061 = vpop.f32.mrf.mxu0
    %v3062 = vadd.f32 %v2973, %v3061
    %3063 = vmatmul.bf16.gmra.mxu0 %v912
    %v3064 = vpop.f32.mrf.mxu0
    %v3065 = vadd.f32 %v2976, %v3064
    %v3066 = vpop.f32.mrf.mxu0
    %v3067 = vadd.f32 %v2978, %v3066
    %3068 = vmatmul.bf16.gmra.mxu0 %v920
    %v3069 = vpop.f32.mrf.mxu0
    %v3070 = vadd.f32 %v2981, %v3069
    %v3071 = vpop.f32.mrf.mxu0
    %v3072 = vadd.f32 %v2983, %v3071
    %3073 = vmatmul.bf16.gmra.mxu0 %v928
    %v3074 = vpop.f32.mrf.mxu0
    %v3075 = vadd.f32 %v2986, %v3074
    %v3076 = vpop.f32.mrf.mxu0
    %v3077 = vadd.f32 %v2988, %v3076
    %3078 = vmatmul.bf16.gmra.mxu0 %v936
    %v3079 = vpop.f32.mrf.mxu0
    %v3080 = vadd.f32 %v2991, %v3079
    %v3081 = vpop.f32.mrf.mxu0
    %v3082 = vadd.f32 %v2993, %v3081
    %3083 = vmatmul.bf16.gmra.mxu0 %v944
    %v3084 = vpop.f32.mrf.mxu0
    %v3085 = vadd.f32 %v2996, %v3084
    %v3086 = vpop.f32.mrf.mxu0
    %v3087 = vadd.f32 %v2998, %v3086
    %3088 = vmatmul.bf16.gmra.mxu0 %v952
    %v3089 = vpop.f32.mrf.mxu0
    %v3090 = vadd.f32 %v3001, %v3089
    %v3091 = vpop.f32.mrf.mxu0
    %v3092 = vadd.f32 %v3003, %v3091
    %3093 = vmatmul.bf16.gmra.mxu0 %v960
    %v3094 = vpop.f32.mrf.mxu0
    %v3095 = vadd.f32 %v3006, %v3094
    %v3096 = vpop.f32.mrf.mxu0
    %v3097 = vadd.f32 %v3008, %v3096
    %3098 = vmatmul.bf16.gmra.mxu0 %v968
    %v3099 = vpop.f32.mrf.mxu0
    %v3100 = vadd.f32 %v3011, %v3099
    %v3101 = vpop.f32.mrf.mxu0
    %v3102 = vadd.f32 %v3013, %v3101
    %3103 = vmatmul.bf16.gmra.mxu0 %v976
    %v3104 = vpop.f32.mrf.mxu0
    %v3105 = vadd.f32 %v3016, %v3104
    %v3106 = vpop.f32.mrf.mxu0
    %v3107 = vadd.f32 %v3018, %v3106
    %3108 = vmatmul.bf16.gmra.mxu0 %v984
    %v3109 = vpop.f32.mrf.mxu0
    %v3110 = vadd.f32 %v3021, %v3109
    %v3111 = vpop.f32.mrf.mxu0
    %v3112 = vadd.f32 %v3023, %v3111
    %3113 = vmatmul.bf16.gmra.mxu0 %v992
    %v3114 = vpop.f32.mrf.mxu0
    %v3115 = vadd.f32 %v3026, %v3114
    %v3116 = vpop.f32.mrf.mxu0
    %v3117 = vadd.f32 %v3028, %v3116
    %3118 = vmatmul.bf16.gmra.mxu0 %v1000
    %v3119 = vpop.f32.mrf.mxu0
    %v3120 = vadd.f32 %v3031, %v3119
    %v3121 = vpop.f32.mrf.mxu0
    %v3122 = vadd.f32 %v3033, %v3121
    %3123 = vmatmul.bf16.gmra.mxu0 %v1008
    %v3124 = vpop.f32.mrf.mxu0
    %v3125 = vadd.f32 %v3036, %v3124
    %v3126 = vpop.f32.mrf.mxu0
    %v3127 = vadd.f32 %v3038, %v3126
    %3128 = vdwg.mxu0
    %3129 = vmatpush.bf16.msra.mxu0 %v1934
    %3130 = vmatpush.bf16.msra.mxu0 %v1930
    %3131 = vmatpush.bf16.msra.mxu0 %v1926
    %3132 = vmatpush.bf16.msra.mxu0 %v1922
    %3133 = vmatpush.bf16.msra.mxu0 %v1918
    %3134 = vmatpush.bf16.msra.mxu0 %v1914
    %3135 = vmatpush.bf16.msra.mxu0 %v1910
    %3136 = vmatpush.bf16.msra.mxu0 %v1906
    %3137 = vmatmul.bf16.gmra.mxu0 %v881
    %v3138 = vpop.f32.mrf.mxu0
    %v3139 = vadd.f32 %v490, %v3138
    %v3140 = vpop.f32.mrf.mxu0
    %v3141 = vadd.f32 %v490, %v3140
    %3142 = vmatmul.bf16.gmra.mxu0 %v889
    %v3143 = vpop.f32.mrf.mxu0
    %v3144 = vadd.f32 %v490, %v3143
    %v3145 = vpop.f32.mrf.mxu0
    %v3146 = vadd.f32 %v490, %v3145
    %3147 = vmatmul.bf16.gmra.mxu0 %v897
    %v3148 = vpop.f32.mrf.mxu0
    %v3149 = vadd.f32 %v490, %v3148
    %v3150 = vpop.f32.mrf.mxu0
    %v3151 = vadd.f32 %v490, %v3150
    %3152 = vmatmul.bf16.gmra.mxu0 %v905
    %v3153 = vpop.f32.mrf.mxu0
    %v3154 = vadd.f32 %v490, %v3153
    %v3155 = vpop.f32.mrf.mxu0
    %v3156 = vadd.f32 %v490, %v3155
    %3157 = vmatmul.bf16.gmra.mxu0 %v913
    %v3158 = vpop.f32.mrf.mxu0
    %v3159 = vadd.f32 %v490, %v3158
    %v3160 = vpop.f32.mrf.mxu0
    %v3161 = vadd.f32 %v490, %v3160
    %3162 = vmatmul.bf16.gmra.mxu0 %v921
    %v3163 = vpop.f32.mrf.mxu0
    %v3164 = vadd.f32 %v490, %v3163
    %v3165 = vpop.f32.mrf.mxu0
    %v3166 = vadd.f32 %v490, %v3165
    %3167 = vmatmul.bf16.gmra.mxu0 %v929
    %v3168 = vpop.f32.mrf.mxu0
    %v3169 = vadd.f32 %v490, %v3168
    %v3170 = vpop.f32.mrf.mxu0
    %v3171 = vadd.f32 %v490, %v3170
    %3172 = vmatmul.bf16.gmra.mxu0 %v937
    %v3173 = vpop.f32.mrf.mxu0
    %v3174 = vadd.f32 %v490, %v3173
    %v3175 = vpop.f32.mrf.mxu0
    %v3176 = vadd.f32 %v490, %v3175
    %3177 = vmatmul.bf16.gmra.mxu0 %v945
    %v3178 = vpop.f32.mrf.mxu0
    %v3179 = vadd.f32 %v490, %v3178
    %v3180 = vpop.f32.mrf.mxu0
    %v3181 = vadd.f32 %v490, %v3180
    %3182 = vmatmul.bf16.gmra.mxu0 %v953
    %v3183 = vpop.f32.mrf.mxu0
    %v3184 = vadd.f32 %v490, %v3183
    %v3185 = vpop.f32.mrf.mxu0
    %v3186 = vadd.f32 %v490, %v3185
    %3187 = vmatmul.bf16.gmra.mxu0 %v961
    %v3188 = vpop.f32.mrf.mxu0
    %v3189 = vadd.f32 %v490, %v3188
    %v3190 = vpop.f32.mrf.mxu0
    %v3191 = vadd.f32 %v490, %v3190
    %3192 = vmatmul.bf16.gmra.mxu0 %v969
    %v3193 = vpop.f32.mrf.mxu0
    %v3194 = vadd.f32 %v490, %v3193
    %v3195 = vpop.f32.mrf.mxu0
    %v3196 = vadd.f32 %v490, %v3195
    %3197 = vmatmul.bf16.gmra.mxu0 %v977
    %v3198 = vpop.f32.mrf.mxu0
    %v3199 = vadd.f32 %v490, %v3198
    %v3200 = vpop.f32.mrf.mxu0
    %v3201 = vadd.f32 %v490, %v3200
    %3202 = vmatmul.bf16.gmra.mxu0 %v985
    %v3203 = vpop.f32.mrf.mxu0
    %v3204 = vadd.f32 %v490, %v3203
    %v3205 = vpop.f32.mrf.mxu0
    %v3206 = vadd.f32 %v490, %v3205
    %3207 = vmatmul.bf16.gmra.mxu0 %v993
    %v3208 = vpop.f32.mrf.mxu0
    %v3209 = vadd.f32 %v490, %v3208
    %v3210 = vpop.f32.mrf.mxu0
    %v3211 = vadd.f32 %v490, %v3210
    %3212 = vmatmul.bf16.gmra.mxu0 %v1001
    %v3213 = vpop.f32.mrf.mxu0
    %v3214 = vadd.f32 %v490, %v3213
    %v3215 = vpop.f32.mrf.mxu0
    %v3216 = vadd.f32 %v490, %v3215
    %3217 = vdwg.mxu0
    %3218 = vmatpush.bf16.msra.mxu0 %v1966
    %3219 = vmatpush.bf16.msra.mxu0 %v1962
    %3220 = vmatpush.bf16.msra.mxu0 %v1958
    %3221 = vmatpush.bf16.msra.mxu0 %v1954
    %3222 = vmatpush.bf16.msra.mxu0 %v1950
    %3223 = vmatpush.bf16.msra.mxu0 %v1946
    %3224 = vmatpush.bf16.msra.mxu0 %v1942
    %3225 = vmatpush.bf16.msra.mxu0 %v1938
    %3226 = vmatmul.bf16.gmra.mxu0 %v882
    %v3227 = vpop.f32.mrf.mxu0
    %v3228 = vadd.f32 %v3139, %v3227
    %v3229 = vpop.f32.mrf.mxu0
    %v3230 = vadd.f32 %v3141, %v3229
    %3231 = vmatmul.bf16.gmra.mxu0 %v890
    %v3232 = vpop.f32.mrf.mxu0
    %v3233 = vadd.f32 %v3144, %v3232
    %v3234 = vpop.f32.mrf.mxu0
    %v3235 = vadd.f32 %v3146, %v3234
    %3236 = vmatmul.bf16.gmra.mxu0 %v898
    %v3237 = vpop.f32.mrf.mxu0
    %v3238 = vadd.f32 %v3149, %v3237
    %v3239 = vpop.f32.mrf.mxu0
    %v3240 = vadd.f32 %v3151, %v3239
    %3241 = vmatmul.bf16.gmra.mxu0 %v906
    %v3242 = vpop.f32.mrf.mxu0
    %v3243 = vadd.f32 %v3154, %v3242
    %v3244 = vpop.f32.mrf.mxu0
    %v3245 = vadd.f32 %v3156, %v3244
    %3246 = vmatmul.bf16.gmra.mxu0 %v914
    %v3247 = vpop.f32.mrf.mxu0
    %v3248 = vadd.f32 %v3159, %v3247
    %v3249 = vpop.f32.mrf.mxu0
    %v3250 = vadd.f32 %v3161, %v3249
    %3251 = vmatmul.bf16.gmra.mxu0 %v922
    %v3252 = vpop.f32.mrf.mxu0
    %v3253 = vadd.f32 %v3164, %v3252
    %v3254 = vpop.f32.mrf.mxu0
    %v3255 = vadd.f32 %v3166, %v3254
    %3256 = vmatmul.bf16.gmra.mxu0 %v930
    %v3257 = vpop.f32.mrf.mxu0
    %v3258 = vadd.f32 %v3169, %v3257
    %v3259 = vpop.f32.mrf.mxu0
    %v3260 = vadd.f32 %v3171, %v3259
    %3261 = vmatmul.bf16.gmra.mxu0 %v938
    %v3262 = vpop.f32.mrf.mxu0
    %v3263 = vadd.f32 %v3174, %v3262
    %v3264 = vpop.f32.mrf.mxu0
    %v3265 = vadd.f32 %v3176, %v3264
    %3266 = vmatmul.bf16.gmra.mxu0 %v946
    %v3267 = vpop.f32.mrf.mxu0
    %v3268 = vadd.f32 %v3179, %v3267
    %v3269 = vpop.f32.mrf.mxu0
    %v3270 = vadd.f32 %v3181, %v3269
    %3271 = vmatmul.bf16.gmra.mxu0 %v954
    %v3272 = vpop.f32.mrf.mxu0
    %v3273 = vadd.f32 %v3184, %v3272
    %v3274 = vpop.f32.mrf.mxu0
    %v3275 = vadd.f32 %v3186, %v3274
    %3276 = vmatmul.bf16.gmra.mxu0 %v962
    %v3277 = vpop.f32.mrf.mxu0
    %v3278 = vadd.f32 %v3189, %v3277
    %v3279 = vpop.f32.mrf.mxu0
    %v3280 = vadd.f32 %v3191, %v3279
    %3281 = vmatmul.bf16.gmra.mxu0 %v970
    %v3282 = vpop.f32.mrf.mxu0
    %v3283 = vadd.f32 %v3194, %v3282
    %v3284 = vpop.f32.mrf.mxu0
    %v3285 = vadd.f32 %v3196, %v3284
    %3286 = vmatmul.bf16.gmra.mxu0 %v978
    %v3287 = vpop.f32.mrf.mxu0
    %v3288 = vadd.f32 %v3199, %v3287
    %v3289 = vpop.f32.mrf.mxu0
    %v3290 = vadd.f32 %v3201, %v3289
    %3291 = vmatmul.bf16.gmra.mxu0 %v986
    %v3292 = vpop.f32.mrf.mxu0
    %v3293 = vadd.f32 %v3204, %v3292
    %v3294 = vpop.f32.mrf.mxu0
    %v3295 = vadd.f32 %v3206, %v3294
    %3296 = vmatmul.bf16.gmra.mxu0 %v994
    %v3297 = vpop.f32.mrf.mxu0
    %v3298 = vadd.f32 %v3209, %v3297
    %v3299 = vpop.f32.mrf.mxu0
    %v3300 = vadd.f32 %v3211, %v3299
    %3301 = vmatmul.bf16.gmra.mxu0 %v1002
    %v3302 = vpop.f32.mrf.mxu0
    %v3303 = vadd.f32 %v3214, %v3302
    %v3304 = vpop.f32.mrf.mxu0
    %v3305 = vadd.f32 %v3216, %v3304
    %3306 = vdwg.mxu0
    %3307 = vmatpush.bf16.msra.mxu0 %v1998
    %3308 = vmatpush.bf16.msra.mxu0 %v1994
    %3309 = vmatpush.bf16.msra.mxu0 %v1990
    %3310 = vmatpush.bf16.msra.mxu0 %v1986
    %3311 = vmatpush.bf16.msra.mxu0 %v1982
    %3312 = vmatpush.bf16.msra.mxu0 %v1978
    %3313 = vmatpush.bf16.msra.mxu0 %v1974
    %3314 = vmatpush.bf16.msra.mxu0 %v1970
    %3315 = vmatmul.bf16.gmra.mxu0 %v883
    %v3316 = vpop.f32.mrf.mxu0
    %v3317 = vadd.f32 %v3228, %v3316
    %v3318 = vpop.f32.mrf.mxu0
    %v3319 = vadd.f32 %v3230, %v3318
    %3320 = vmatmul.bf16.gmra.mxu0 %v891
    %v3321 = vpop.f32.mrf.mxu0
    %v3322 = vadd.f32 %v3233, %v3321
    %v3323 = vpop.f32.mrf.mxu0
    %v3324 = vadd.f32 %v3235, %v3323
    %3325 = vmatmul.bf16.gmra.mxu0 %v899
    %v3326 = vpop.f32.mrf.mxu0
    %v3327 = vadd.f32 %v3238, %v3326
    %v3328 = vpop.f32.mrf.mxu0
    %v3329 = vadd.f32 %v3240, %v3328
    %3330 = vmatmul.bf16.gmra.mxu0 %v907
    %v3331 = vpop.f32.mrf.mxu0
    %v3332 = vadd.f32 %v3243, %v3331
    %v3333 = vpop.f32.mrf.mxu0
    %v3334 = vadd.f32 %v3245, %v3333
    %3335 = vmatmul.bf16.gmra.mxu0 %v915
    %v3336 = vpop.f32.mrf.mxu0
    %v3337 = vadd.f32 %v3248, %v3336
    %v3338 = vpop.f32.mrf.mxu0
    %v3339 = vadd.f32 %v3250, %v3338
    %3340 = vmatmul.bf16.gmra.mxu0 %v923
    %v3341 = vpop.f32.mrf.mxu0
    %v3342 = vadd.f32 %v3253, %v3341
    %v3343 = vpop.f32.mrf.mxu0
    %v3344 = vadd.f32 %v3255, %v3343
    %3345 = vmatmul.bf16.gmra.mxu0 %v931
    %v3346 = vpop.f32.mrf.mxu0
    %v3347 = vadd.f32 %v3258, %v3346
    %v3348 = vpop.f32.mrf.mxu0
    %v3349 = vadd.f32 %v3260, %v3348
    %3350 = vmatmul.bf16.gmra.mxu0 %v939
    %v3351 = vpop.f32.mrf.mxu0
    %v3352 = vadd.f32 %v3263, %v3351
    %v3353 = vpop.f32.mrf.mxu0
    %v3354 = vadd.f32 %v3265, %v3353
    %3355 = vmatmul.bf16.gmra.mxu0 %v947
    %v3356 = vpop.f32.mrf.mxu0
    %v3357 = vadd.f32 %v3268, %v3356
    %v3358 = vpop.f32.mrf.mxu0
    %v3359 = vadd.f32 %v3270, %v3358
    %3360 = vmatmul.bf16.gmra.mxu0 %v955
    %v3361 = vpop.f32.mrf.mxu0
    %v3362 = vadd.f32 %v3273, %v3361
    %v3363 = vpop.f32.mrf.mxu0
    %v3364 = vadd.f32 %v3275, %v3363
    %3365 = vmatmul.bf16.gmra.mxu0 %v963
    %v3366 = vpop.f32.mrf.mxu0
    %v3367 = vadd.f32 %v3278, %v3366
    %v3368 = vpop.f32.mrf.mxu0
    %v3369 = vadd.f32 %v3280, %v3368
    %3370 = vmatmul.bf16.gmra.mxu0 %v971
    %v3371 = vpop.f32.mrf.mxu0
    %v3372 = vadd.f32 %v3283, %v3371
    %v3373 = vpop.f32.mrf.mxu0
    %v3374 = vadd.f32 %v3285, %v3373
    %3375 = vmatmul.bf16.gmra.mxu0 %v979
    %v3376 = vpop.f32.mrf.mxu0
    %v3377 = vadd.f32 %v3288, %v3376
    %v3378 = vpop.f32.mrf.mxu0
    %v3379 = vadd.f32 %v3290, %v3378
    %3380 = vmatmul.bf16.gmra.mxu0 %v987
    %v3381 = vpop.f32.mrf.mxu0
    %v3382 = vadd.f32 %v3293, %v3381
    %v3383 = vpop.f32.mrf.mxu0
    %v3384 = vadd.f32 %v3295, %v3383
    %3385 = vmatmul.bf16.gmra.mxu0 %v995
    %v3386 = vpop.f32.mrf.mxu0
    %v3387 = vadd.f32 %v3298, %v3386
    %v3388 = vpop.f32.mrf.mxu0
    %v3389 = vadd.f32 %v3300, %v3388
    %3390 = vmatmul.bf16.gmra.mxu0 %v1003
    %v3391 = vpop.f32.mrf.mxu0
    %v3392 = vadd.f32 %v3303, %v3391
    %v3393 = vpop.f32.mrf.mxu0
    %v3394 = vadd.f32 %v3305, %v3393
    %3395 = vdwg.mxu0
    %3396 = vmatpush.bf16.msra.mxu0 %v2030
    %3397 = vmatpush.bf16.msra.mxu0 %v2026
    %3398 = vmatpush.bf16.msra.mxu0 %v2022
    %3399 = vmatpush.bf16.msra.mxu0 %v2018
    %3400 = vmatpush.bf16.msra.mxu0 %v2014
    %3401 = vmatpush.bf16.msra.mxu0 %v2010
    %3402 = vmatpush.bf16.msra.mxu0 %v2006
    %3403 = vmatpush.bf16.msra.mxu0 %v2002
    %3404 = vmatmul.bf16.gmra.mxu0 %v884
    %v3405 = vpop.f32.mrf.mxu0
    %v3406 = vadd.f32 %v3317, %v3405
    %v3407 = vpop.f32.mrf.mxu0
    %v3408 = vadd.f32 %v3319, %v3407
    %3409 = vmatmul.bf16.gmra.mxu0 %v892
    %v3410 = vpop.f32.mrf.mxu0
    %v3411 = vadd.f32 %v3322, %v3410
    %v3412 = vpop.f32.mrf.mxu0
    %v3413 = vadd.f32 %v3324, %v3412
    %3414 = vmatmul.bf16.gmra.mxu0 %v900
    %v3415 = vpop.f32.mrf.mxu0
    %v3416 = vadd.f32 %v3327, %v3415
    %v3417 = vpop.f32.mrf.mxu0
    %v3418 = vadd.f32 %v3329, %v3417
    %3419 = vmatmul.bf16.gmra.mxu0 %v908
    %v3420 = vpop.f32.mrf.mxu0
    %v3421 = vadd.f32 %v3332, %v3420
    %v3422 = vpop.f32.mrf.mxu0
    %v3423 = vadd.f32 %v3334, %v3422
    %3424 = vmatmul.bf16.gmra.mxu0 %v916
    %v3425 = vpop.f32.mrf.mxu0
    %v3426 = vadd.f32 %v3337, %v3425
    %v3427 = vpop.f32.mrf.mxu0
    %v3428 = vadd.f32 %v3339, %v3427
    %3429 = vmatmul.bf16.gmra.mxu0 %v924
    %v3430 = vpop.f32.mrf.mxu0
    %v3431 = vadd.f32 %v3342, %v3430
    %v3432 = vpop.f32.mrf.mxu0
    %v3433 = vadd.f32 %v3344, %v3432
    %3434 = vmatmul.bf16.gmra.mxu0 %v932
    %v3435 = vpop.f32.mrf.mxu0
    %v3436 = vadd.f32 %v3347, %v3435
    %v3437 = vpop.f32.mrf.mxu0
    %v3438 = vadd.f32 %v3349, %v3437
    %3439 = vmatmul.bf16.gmra.mxu0 %v940
    %v3440 = vpop.f32.mrf.mxu0
    %v3441 = vadd.f32 %v3352, %v3440
    %v3442 = vpop.f32.mrf.mxu0
    %v3443 = vadd.f32 %v3354, %v3442
    %3444 = vmatmul.bf16.gmra.mxu0 %v948
    %v3445 = vpop.f32.mrf.mxu0
    %v3446 = vadd.f32 %v3357, %v3445
    %v3447 = vpop.f32.mrf.mxu0
    %v3448 = vadd.f32 %v3359, %v3447
    %3449 = vmatmul.bf16.gmra.mxu0 %v956
    %v3450 = vpop.f32.mrf.mxu0
    %v3451 = vadd.f32 %v3362, %v3450
    %v3452 = vpop.f32.mrf.mxu0
    %v3453 = vadd.f32 %v3364, %v3452
    %3454 = vmatmul.bf16.gmra.mxu0 %v964
    %v3455 = vpop.f32.mrf.mxu0
    %v3456 = vadd.f32 %v3367, %v3455
    %v3457 = vpop.f32.mrf.mxu0
    %v3458 = vadd.f32 %v3369, %v3457
    %3459 = vmatmul.bf16.gmra.mxu0 %v972
    %v3460 = vpop.f32.mrf.mxu0
    %v3461 = vadd.f32 %v3372, %v3460
    %v3462 = vpop.f32.mrf.mxu0
    %v3463 = vadd.f32 %v3374, %v3462
    %3464 = vmatmul.bf16.gmra.mxu0 %v980
    %v3465 = vpop.f32.mrf.mxu0
    %v3466 = vadd.f32 %v3377, %v3465
    %v3467 = vpop.f32.mrf.mxu0
    %v3468 = vadd.f32 %v3379, %v3467
    %3469 = vmatmul.bf16.gmra.mxu0 %v988
    %v3470 = vpop.f32.mrf.mxu0
    %v3471 = vadd.f32 %v3382, %v3470
    %v3472 = vpop.f32.mrf.mxu0
    %v3473 = vadd.f32 %v3384, %v3472
    %3474 = vmatmul.bf16.gmra.mxu0 %v996
    %v3475 = vpop.f32.mrf.mxu0
    %v3476 = vadd.f32 %v3387, %v3475
    %v3477 = vpop.f32.mrf.mxu0
    %v3478 = vadd.f32 %v3389, %v3477
    %3479 = vmatmul.bf16.gmra.mxu0 %v1004
    %v3480 = vpop.f32.mrf.mxu0
    %v3481 = vadd.f32 %v3392, %v3480
    %v3482 = vpop.f32.mrf.mxu0
    %v3483 = vadd.f32 %v3394, %v3482
    %3484 = vdwg.mxu0
    %3485 = vmatpush.bf16.msra.mxu0 %v2062
    %3486 = vmatpush.bf16.msra.mxu0 %v2058
    %3487 = vmatpush.bf16.msra.mxu0 %v2054
    %3488 = vmatpush.bf16.msra.mxu0 %v2050
    %3489 = vmatpush.bf16.msra.mxu0 %v2046
    %3490 = vmatpush.bf16.msra.mxu0 %v2042
    %3491 = vmatpush.bf16.msra.mxu0 %v2038
    %3492 = vmatpush.bf16.msra.mxu0 %v2034
    %3493 = vmatmul.bf16.gmra.mxu0 %v885
    %v3494 = vpop.f32.mrf.mxu0
    %v3495 = vadd.f32 %v3406, %v3494
    %v3496 = vpop.f32.mrf.mxu0
    %v3497 = vadd.f32 %v3408, %v3496
    %3498 = vmatmul.bf16.gmra.mxu0 %v893
    %v3499 = vpop.f32.mrf.mxu0
    %v3500 = vadd.f32 %v3411, %v3499
    %v3501 = vpop.f32.mrf.mxu0
    %v3502 = vadd.f32 %v3413, %v3501
    %3503 = vmatmul.bf16.gmra.mxu0 %v901
    %v3504 = vpop.f32.mrf.mxu0
    %v3505 = vadd.f32 %v3416, %v3504
    %v3506 = vpop.f32.mrf.mxu0
    %v3507 = vadd.f32 %v3418, %v3506
    %3508 = vmatmul.bf16.gmra.mxu0 %v909
    %v3509 = vpop.f32.mrf.mxu0
    %v3510 = vadd.f32 %v3421, %v3509
    %v3511 = vpop.f32.mrf.mxu0
    %v3512 = vadd.f32 %v3423, %v3511
    %3513 = vmatmul.bf16.gmra.mxu0 %v917
    %v3514 = vpop.f32.mrf.mxu0
    %v3515 = vadd.f32 %v3426, %v3514
    %v3516 = vpop.f32.mrf.mxu0
    %v3517 = vadd.f32 %v3428, %v3516
    %3518 = vmatmul.bf16.gmra.mxu0 %v925
    %v3519 = vpop.f32.mrf.mxu0
    %v3520 = vadd.f32 %v3431, %v3519
    %v3521 = vpop.f32.mrf.mxu0
    %v3522 = vadd.f32 %v3433, %v3521
    %3523 = vmatmul.bf16.gmra.mxu0 %v933
    %v3524 = vpop.f32.mrf.mxu0
    %v3525 = vadd.f32 %v3436, %v3524
    %v3526 = vpop.f32.mrf.mxu0
    %v3527 = vadd.f32 %v3438, %v3526
    %3528 = vmatmul.bf16.gmra.mxu0 %v941
    %v3529 = vpop.f32.mrf.mxu0
    %v3530 = vadd.f32 %v3441, %v3529
    %v3531 = vpop.f32.mrf.mxu0
    %v3532 = vadd.f32 %v3443, %v3531
    %3533 = vmatmul.bf16.gmra.mxu0 %v949
    %v3534 = vpop.f32.mrf.mxu0
    %v3535 = vadd.f32 %v3446, %v3534
    %v3536 = vpop.f32.mrf.mxu0
    %v3537 = vadd.f32 %v3448, %v3536
    %3538 = vmatmul.bf16.gmra.mxu0 %v957
    %v3539 = vpop.f32.mrf.mxu0
    %v3540 = vadd.f32 %v3451, %v3539
    %v3541 = vpop.f32.mrf.mxu0
    %v3542 = vadd.f32 %v3453, %v3541
    %3543 = vmatmul.bf16.gmra.mxu0 %v965
    %v3544 = vpop.f32.mrf.mxu0
    %v3545 = vadd.f32 %v3456, %v3544
    %v3546 = vpop.f32.mrf.mxu0
    %v3547 = vadd.f32 %v3458, %v3546
    %3548 = vmatmul.bf16.gmra.mxu0 %v973
    %v3549 = vpop.f32.mrf.mxu0
    %v3550 = vadd.f32 %v3461, %v3549
    %v3551 = vpop.f32.mrf.mxu0
    %v3552 = vadd.f32 %v3463, %v3551
    %3553 = vmatmul.bf16.gmra.mxu0 %v981
    %v3554 = vpop.f32.mrf.mxu0
    %v3555 = vadd.f32 %v3466, %v3554
    %v3556 = vpop.f32.mrf.mxu0
    %v3557 = vadd.f32 %v3468, %v3556
    %3558 = vmatmul.bf16.gmra.mxu0 %v989
    %v3559 = vpop.f32.mrf.mxu0
    %v3560 = vadd.f32 %v3471, %v3559
    %v3561 = vpop.f32.mrf.mxu0
    %v3562 = vadd.f32 %v3473, %v3561
    %3563 = vmatmul.bf16.gmra.mxu0 %v997
    %v3564 = vpop.f32.mrf.mxu0
    %v3565 = vadd.f32 %v3476, %v3564
    %v3566 = vpop.f32.mrf.mxu0
    %v3567 = vadd.f32 %v3478, %v3566
    %3568 = vmatmul.bf16.gmra.mxu0 %v1005
    %v3569 = vpop.f32.mrf.mxu0
    %v3570 = vadd.f32 %v3481, %v3569
    %v3571 = vpop.f32.mrf.mxu0
    %v3572 = vadd.f32 %v3483, %v3571
    %3573 = vdwg.mxu0
    %3574 = vmatpush.bf16.msra.mxu0 %v2094
    %3575 = vmatpush.bf16.msra.mxu0 %v2090
    %3576 = vmatpush.bf16.msra.mxu0 %v2086
    %3577 = vmatpush.bf16.msra.mxu0 %v2082
    %3578 = vmatpush.bf16.msra.mxu0 %v2078
    %3579 = vmatpush.bf16.msra.mxu0 %v2074
    %3580 = vmatpush.bf16.msra.mxu0 %v2070
    %3581 = vmatpush.bf16.msra.mxu0 %v2066
    %3582 = vmatmul.bf16.gmra.mxu0 %v886
    %v3583 = vpop.f32.mrf.mxu0
    %v3584 = vadd.f32 %v3495, %v3583
    %v3585 = vpop.f32.mrf.mxu0
    %v3586 = vadd.f32 %v3497, %v3585
    %3587 = vmatmul.bf16.gmra.mxu0 %v894
    %v3588 = vpop.f32.mrf.mxu0
    %v3589 = vadd.f32 %v3500, %v3588
    %v3590 = vpop.f32.mrf.mxu0
    %v3591 = vadd.f32 %v3502, %v3590
    %3592 = vmatmul.bf16.gmra.mxu0 %v902
    %v3593 = vpop.f32.mrf.mxu0
    %v3594 = vadd.f32 %v3505, %v3593
    %v3595 = vpop.f32.mrf.mxu0
    %v3596 = vadd.f32 %v3507, %v3595
    %3597 = vmatmul.bf16.gmra.mxu0 %v910
    %v3598 = vpop.f32.mrf.mxu0
    %v3599 = vadd.f32 %v3510, %v3598
    %v3600 = vpop.f32.mrf.mxu0
    %v3601 = vadd.f32 %v3512, %v3600
    %3602 = vmatmul.bf16.gmra.mxu0 %v918
    %v3603 = vpop.f32.mrf.mxu0
    %v3604 = vadd.f32 %v3515, %v3603
    %v3605 = vpop.f32.mrf.mxu0
    %v3606 = vadd.f32 %v3517, %v3605
    %3607 = vmatmul.bf16.gmra.mxu0 %v926
    %v3608 = vpop.f32.mrf.mxu0
    %v3609 = vadd.f32 %v3520, %v3608
    %v3610 = vpop.f32.mrf.mxu0
    %v3611 = vadd.f32 %v3522, %v3610
    %3612 = vmatmul.bf16.gmra.mxu0 %v934
    %v3613 = vpop.f32.mrf.mxu0
    %v3614 = vadd.f32 %v3525, %v3613
    %v3615 = vpop.f32.mrf.mxu0
    %v3616 = vadd.f32 %v3527, %v3615
    %3617 = vmatmul.bf16.gmra.mxu0 %v942
    %v3618 = vpop.f32.mrf.mxu0
    %v3619 = vadd.f32 %v3530, %v3618
    %v3620 = vpop.f32.mrf.mxu0
    %v3621 = vadd.f32 %v3532, %v3620
    %3622 = vmatmul.bf16.gmra.mxu0 %v950
    %v3623 = vpop.f32.mrf.mxu0
    %v3624 = vadd.f32 %v3535, %v3623
    %v3625 = vpop.f32.mrf.mxu0
    %v3626 = vadd.f32 %v3537, %v3625
    %3627 = vmatmul.bf16.gmra.mxu0 %v958
    %v3628 = vpop.f32.mrf.mxu0
    %v3629 = vadd.f32 %v3540, %v3628
    %v3630 = vpop.f32.mrf.mxu0
    %v3631 = vadd.f32 %v3542, %v3630
    %3632 = vmatmul.bf16.gmra.mxu0 %v966
    %v3633 = vpop.f32.mrf.mxu0
    %v3634 = vadd.f32 %v3545, %v3633
    %v3635 = vpop.f32.mrf.mxu0
    %v3636 = vadd.f32 %v3547, %v3635
    %3637 = vmatmul.bf16.gmra.mxu0 %v974
    %v3638 = vpop.f32.mrf.mxu0
    %v3639 = vadd.f32 %v3550, %v3638
    %v3640 = vpop.f32.mrf.mxu0
    %v3641 = vadd.f32 %v3552, %v3640
    %3642 = vmatmul.bf16.gmra.mxu0 %v982
    %v3643 = vpop.f32.mrf.mxu0
    %v3644 = vadd.f32 %v3555, %v3643
    %v3645 = vpop.f32.mrf.mxu0
    %v3646 = vadd.f32 %v3557, %v3645
    %3647 = vmatmul.bf16.gmra.mxu0 %v990
    %v3648 = vpop.f32.mrf.mxu0
    %v3649 = vadd.f32 %v3560, %v3648
    %v3650 = vpop.f32.mrf.mxu0
    %v3651 = vadd.f32 %v3562, %v3650
    %3652 = vmatmul.bf16.gmra.mxu0 %v998
    %v3653 = vpop.f32.mrf.mxu0
    %v3654 = vadd.f32 %v3565, %v3653
    %v3655 = vpop.f32.mrf.mxu0
    %v3656 = vadd.f32 %v3567, %v3655
    %3657 = vmatmul.bf16.gmra.mxu0 %v1006
    %v3658 = vpop.f32.mrf.mxu0
    %v3659 = vadd.f32 %v3570, %v3658
    %v3660 = vpop.f32.mrf.mxu0
    %v3661 = vadd.f32 %v3572, %v3660
    %3662 = vdwg.mxu0
    %3663 = vmatpush.bf16.msra.mxu0 %v2126
    %3664 = vmatpush.bf16.msra.mxu0 %v2122
    %3665 = vmatpush.bf16.msra.mxu0 %v2118
    %3666 = vmatpush.bf16.msra.mxu0 %v2114
    %3667 = vmatpush.bf16.msra.mxu0 %v2110
    %3668 = vmatpush.bf16.msra.mxu0 %v2106
    %3669 = vmatpush.bf16.msra.mxu0 %v2102
    %3670 = vmatpush.bf16.msra.mxu0 %v2098
    %3671 = vmatmul.bf16.gmra.mxu0 %v887
    %v3672 = vpop.f32.mrf.mxu0
    %v3673 = vadd.f32 %v3584, %v3672
    %v3674 = vpop.f32.mrf.mxu0
    %v3675 = vadd.f32 %v3586, %v3674
    %3676 = vmatmul.bf16.gmra.mxu0 %v895
    %v3677 = vpop.f32.mrf.mxu0
    %v3678 = vadd.f32 %v3589, %v3677
    %v3679 = vpop.f32.mrf.mxu0
    %v3680 = vadd.f32 %v3591, %v3679
    %3681 = vmatmul.bf16.gmra.mxu0 %v903
    %v3682 = vpop.f32.mrf.mxu0
    %v3683 = vadd.f32 %v3594, %v3682
    %v3684 = vpop.f32.mrf.mxu0
    %v3685 = vadd.f32 %v3596, %v3684
    %3686 = vmatmul.bf16.gmra.mxu0 %v911
    %v3687 = vpop.f32.mrf.mxu0
    %v3688 = vadd.f32 %v3599, %v3687
    %v3689 = vpop.f32.mrf.mxu0
    %v3690 = vadd.f32 %v3601, %v3689
    %3691 = vmatmul.bf16.gmra.mxu0 %v919
    %v3692 = vpop.f32.mrf.mxu0
    %v3693 = vadd.f32 %v3604, %v3692
    %v3694 = vpop.f32.mrf.mxu0
    %v3695 = vadd.f32 %v3606, %v3694
    %3696 = vmatmul.bf16.gmra.mxu0 %v927
    %v3697 = vpop.f32.mrf.mxu0
    %v3698 = vadd.f32 %v3609, %v3697
    %v3699 = vpop.f32.mrf.mxu0
    %v3700 = vadd.f32 %v3611, %v3699
    %3701 = vmatmul.bf16.gmra.mxu0 %v935
    %v3702 = vpop.f32.mrf.mxu0
    %v3703 = vadd.f32 %v3614, %v3702
    %v3704 = vpop.f32.mrf.mxu0
    %v3705 = vadd.f32 %v3616, %v3704
    %3706 = vmatmul.bf16.gmra.mxu0 %v943
    %v3707 = vpop.f32.mrf.mxu0
    %v3708 = vadd.f32 %v3619, %v3707
    %v3709 = vpop.f32.mrf.mxu0
    %v3710 = vadd.f32 %v3621, %v3709
    %3711 = vmatmul.bf16.gmra.mxu0 %v951
    %v3712 = vpop.f32.mrf.mxu0
    %v3713 = vadd.f32 %v3624, %v3712
    %v3714 = vpop.f32.mrf.mxu0
    %v3715 = vadd.f32 %v3626, %v3714
    %3716 = vmatmul.bf16.gmra.mxu0 %v959
    %v3717 = vpop.f32.mrf.mxu0
    %v3718 = vadd.f32 %v3629, %v3717
    %v3719 = vpop.f32.mrf.mxu0
    %v3720 = vadd.f32 %v3631, %v3719
    %3721 = vmatmul.bf16.gmra.mxu0 %v967
    %v3722 = vpop.f32.mrf.mxu0
    %v3723 = vadd.f32 %v3634, %v3722
    %v3724 = vpop.f32.mrf.mxu0
    %v3725 = vadd.f32 %v3636, %v3724
    %3726 = vmatmul.bf16.gmra.mxu0 %v975
    %v3727 = vpop.f32.mrf.mxu0
    %v3728 = vadd.f32 %v3639, %v3727
    %v3729 = vpop.f32.mrf.mxu0
    %v3730 = vadd.f32 %v3641, %v3729
    %3731 = vmatmul.bf16.gmra.mxu0 %v983
    %v3732 = vpop.f32.mrf.mxu0
    %v3733 = vadd.f32 %v3644, %v3732
    %v3734 = vpop.f32.mrf.mxu0
    %v3735 = vadd.f32 %v3646, %v3734
    %3736 = vmatmul.bf16.gmra.mxu0 %v991
    %v3737 = vpop.f32.mrf.mxu0
    %v3738 = vadd.f32 %v3649, %v3737
    %v3739 = vpop.f32.mrf.mxu0
    %v3740 = vadd.f32 %v3651, %v3739
    %3741 = vmatmul.bf16.gmra.mxu0 %v999
    %v3742 = vpop.f32.mrf.mxu0
    %v3743 = vadd.f32 %v3654, %v3742
    %v3744 = vpop.f32.mrf.mxu0
    %v3745 = vadd.f32 %v3656, %v3744
    %3746 = vmatmul.bf16.gmra.mxu0 %v1007
    %v3747 = vpop.f32.mrf.mxu0
    %v3748 = vadd.f32 %v3659, %v3747
    %v3749 = vpop.f32.mrf.mxu0
    %v3750 = vadd.f32 %v3661, %v3749
    %3751 = vdwg.mxu0
    %3752 = vmatpush.bf16.msra.mxu0 %v2158
    %3753 = vmatpush.bf16.msra.mxu0 %v2154
    %3754 = vmatpush.bf16.msra.mxu0 %v2150
    %3755 = vmatpush.bf16.msra.mxu0 %v2146
    %3756 = vmatpush.bf16.msra.mxu0 %v2142
    %3757 = vmatpush.bf16.msra.mxu0 %v2138
    %3758 = vmatpush.bf16.msra.mxu0 %v2134
    %3759 = vmatpush.bf16.msra.mxu0 %v2130
    %3760 = vmatmul.bf16.gmra.mxu0 %v888
    %v3761 = vpop.f32.mrf.mxu0
    %v3762 = vadd.f32 %v3673, %v3761
    %v3763 = vpop.f32.mrf.mxu0
    %v3764 = vadd.f32 %v3675, %v3763
    %3765 = vmatmul.bf16.gmra.mxu0 %v896
    %v3766 = vpop.f32.mrf.mxu0
    %v3767 = vadd.f32 %v3678, %v3766
    %v3768 = vpop.f32.mrf.mxu0
    %v3769 = vadd.f32 %v3680, %v3768
    %3770 = vmatmul.bf16.gmra.mxu0 %v904
    %v3771 = vpop.f32.mrf.mxu0
    %v3772 = vadd.f32 %v3683, %v3771
    %v3773 = vpop.f32.mrf.mxu0
    %v3774 = vadd.f32 %v3685, %v3773
    %3775 = vmatmul.bf16.gmra.mxu0 %v912
    %v3776 = vpop.f32.mrf.mxu0
    %v3777 = vadd.f32 %v3688, %v3776
    %v3778 = vpop.f32.mrf.mxu0
    %v3779 = vadd.f32 %v3690, %v3778
    %3780 = vmatmul.bf16.gmra.mxu0 %v920
    %v3781 = vpop.f32.mrf.mxu0
    %v3782 = vadd.f32 %v3693, %v3781
    %v3783 = vpop.f32.mrf.mxu0
    %v3784 = vadd.f32 %v3695, %v3783
    %3785 = vmatmul.bf16.gmra.mxu0 %v928
    %v3786 = vpop.f32.mrf.mxu0
    %v3787 = vadd.f32 %v3698, %v3786
    %v3788 = vpop.f32.mrf.mxu0
    %v3789 = vadd.f32 %v3700, %v3788
    %3790 = vmatmul.bf16.gmra.mxu0 %v936
    %v3791 = vpop.f32.mrf.mxu0
    %v3792 = vadd.f32 %v3703, %v3791
    %v3793 = vpop.f32.mrf.mxu0
    %v3794 = vadd.f32 %v3705, %v3793
    %3795 = vmatmul.bf16.gmra.mxu0 %v944
    %v3796 = vpop.f32.mrf.mxu0
    %v3797 = vadd.f32 %v3708, %v3796
    %v3798 = vpop.f32.mrf.mxu0
    %v3799 = vadd.f32 %v3710, %v3798
    %3800 = vmatmul.bf16.gmra.mxu0 %v952
    %v3801 = vpop.f32.mrf.mxu0
    %v3802 = vadd.f32 %v3713, %v3801
    %v3803 = vpop.f32.mrf.mxu0
    %v3804 = vadd.f32 %v3715, %v3803
    %3805 = vmatmul.bf16.gmra.mxu0 %v960
    %v3806 = vpop.f32.mrf.mxu0
    %v3807 = vadd.f32 %v3718, %v3806
    %v3808 = vpop.f32.mrf.mxu0
    %v3809 = vadd.f32 %v3720, %v3808
    %3810 = vmatmul.bf16.gmra.mxu0 %v968
    %v3811 = vpop.f32.mrf.mxu0
    %v3812 = vadd.f32 %v3723, %v3811
    %v3813 = vpop.f32.mrf.mxu0
    %v3814 = vadd.f32 %v3725, %v3813
    %3815 = vmatmul.bf16.gmra.mxu0 %v976
    %v3816 = vpop.f32.mrf.mxu0
    %v3817 = vadd.f32 %v3728, %v3816
    %v3818 = vpop.f32.mrf.mxu0
    %v3819 = vadd.f32 %v3730, %v3818
    %3820 = vmatmul.bf16.gmra.mxu0 %v984
    %v3821 = vpop.f32.mrf.mxu0
    %v3822 = vadd.f32 %v3733, %v3821
    %v3823 = vpop.f32.mrf.mxu0
    %v3824 = vadd.f32 %v3735, %v3823
    %3825 = vmatmul.bf16.gmra.mxu0 %v992
    %v3826 = vpop.f32.mrf.mxu0
    %v3827 = vadd.f32 %v3738, %v3826
    %v3828 = vpop.f32.mrf.mxu0
    %v3829 = vadd.f32 %v3740, %v3828
    %3830 = vmatmul.bf16.gmra.mxu0 %v1000
    %v3831 = vpop.f32.mrf.mxu0
    %v3832 = vadd.f32 %v3743, %v3831
    %v3833 = vpop.f32.mrf.mxu0
    %v3834 = vadd.f32 %v3745, %v3833
    %3835 = vmatmul.bf16.gmra.mxu0 %v1008
    %v3836 = vpop.f32.mrf.mxu0
    %v3837 = vadd.f32 %v3748, %v3836
    %v3838 = vpop.f32.mrf.mxu0
    %v3839 = vadd.f32 %v3750, %v3838
    %3840 = vdwg.mxu0
    %3841 = vmatpush.bf16.msra.mxu0 %v1935
    %3842 = vmatpush.bf16.msra.mxu0 %v1931
    %3843 = vmatpush.bf16.msra.mxu0 %v1927
    %3844 = vmatpush.bf16.msra.mxu0 %v1923
    %3845 = vmatpush.bf16.msra.mxu0 %v1919
    %3846 = vmatpush.bf16.msra.mxu0 %v1915
    %3847 = vmatpush.bf16.msra.mxu0 %v1911
    %3848 = vmatpush.bf16.msra.mxu0 %v1907
    %3849 = vmatmul.bf16.gmra.mxu0 %v881
    %v3850 = vpop.f32.mrf.mxu0
    %v3851 = vadd.f32 %v491, %v3850
    %v3852 = vpop.f32.mrf.mxu0
    %v3853 = vadd.f32 %v491, %v3852
    %3854 = vmatmul.bf16.gmra.mxu0 %v889
    %v3855 = vpop.f32.mrf.mxu0
    %v3856 = vadd.f32 %v491, %v3855
    %v3857 = vpop.f32.mrf.mxu0
    %v3858 = vadd.f32 %v491, %v3857
    %3859 = vmatmul.bf16.gmra.mxu0 %v897
    %v3860 = vpop.f32.mrf.mxu0
    %v3861 = vadd.f32 %v491, %v3860
    %v3862 = vpop.f32.mrf.mxu0
    %v3863 = vadd.f32 %v491, %v3862
    %3864 = vmatmul.bf16.gmra.mxu0 %v905
    %v3865 = vpop.f32.mrf.mxu0
    %v3866 = vadd.f32 %v491, %v3865
    %v3867 = vpop.f32.mrf.mxu0
    %v3868 = vadd.f32 %v491, %v3867
    %3869 = vmatmul.bf16.gmra.mxu0 %v913
    %v3870 = vpop.f32.mrf.mxu0
    %v3871 = vadd.f32 %v491, %v3870
    %v3872 = vpop.f32.mrf.mxu0
    %v3873 = vadd.f32 %v491, %v3872
    %3874 = vmatmul.bf16.gmra.mxu0 %v921
    %v3875 = vpop.f32.mrf.mxu0
    %v3876 = vadd.f32 %v491, %v3875
    %v3877 = vpop.f32.mrf.mxu0
    %v3878 = vadd.f32 %v491, %v3877
    %3879 = vmatmul.bf16.gmra.mxu0 %v929
    %v3880 = vpop.f32.mrf.mxu0
    %v3881 = vadd.f32 %v491, %v3880
    %v3882 = vpop.f32.mrf.mxu0
    %v3883 = vadd.f32 %v491, %v3882
    %3884 = vmatmul.bf16.gmra.mxu0 %v937
    %v3885 = vpop.f32.mrf.mxu0
    %v3886 = vadd.f32 %v491, %v3885
    %v3887 = vpop.f32.mrf.mxu0
    %v3888 = vadd.f32 %v491, %v3887
    %3889 = vmatmul.bf16.gmra.mxu0 %v945
    %v3890 = vpop.f32.mrf.mxu0
    %v3891 = vadd.f32 %v491, %v3890
    %v3892 = vpop.f32.mrf.mxu0
    %v3893 = vadd.f32 %v491, %v3892
    %3894 = vmatmul.bf16.gmra.mxu0 %v953
    %v3895 = vpop.f32.mrf.mxu0
    %v3896 = vadd.f32 %v491, %v3895
    %v3897 = vpop.f32.mrf.mxu0
    %v3898 = vadd.f32 %v491, %v3897
    %3899 = vmatmul.bf16.gmra.mxu0 %v961
    %v3900 = vpop.f32.mrf.mxu0
    %v3901 = vadd.f32 %v491, %v3900
    %v3902 = vpop.f32.mrf.mxu0
    %v3903 = vadd.f32 %v491, %v3902
    %3904 = vmatmul.bf16.gmra.mxu0 %v969
    %v3905 = vpop.f32.mrf.mxu0
    %v3906 = vadd.f32 %v491, %v3905
    %v3907 = vpop.f32.mrf.mxu0
    %v3908 = vadd.f32 %v491, %v3907
    %3909 = vmatmul.bf16.gmra.mxu0 %v977
    %v3910 = vpop.f32.mrf.mxu0
    %v3911 = vadd.f32 %v491, %v3910
    %v3912 = vpop.f32.mrf.mxu0
    %v3913 = vadd.f32 %v491, %v3912
    %3914 = vmatmul.bf16.gmra.mxu0 %v985
    %v3915 = vpop.f32.mrf.mxu0
    %v3916 = vadd.f32 %v491, %v3915
    %v3917 = vpop.f32.mrf.mxu0
    %v3918 = vadd.f32 %v491, %v3917
    %3919 = vmatmul.bf16.gmra.mxu0 %v993
    %v3920 = vpop.f32.mrf.mxu0
    %v3921 = vadd.f32 %v491, %v3920
    %v3922 = vpop.f32.mrf.mxu0
    %v3923 = vadd.f32 %v491, %v3922
    %3924 = vmatmul.bf16.gmra.mxu0 %v1001
    %v3925 = vpop.f32.mrf.mxu0
    %v3926 = vadd.f32 %v491, %v3925
    %v3927 = vpop.f32.mrf.mxu0
    %v3928 = vadd.f32 %v491, %v3927
    %3929 = vdwg.mxu0
    %3930 = vmatpush.bf16.msra.mxu0 %v1967
    %3931 = vmatpush.bf16.msra.mxu0 %v1963
    %3932 = vmatpush.bf16.msra.mxu0 %v1959
    %3933 = vmatpush.bf16.msra.mxu0 %v1955
    %3934 = vmatpush.bf16.msra.mxu0 %v1951
    %3935 = vmatpush.bf16.msra.mxu0 %v1947
    %3936 = vmatpush.bf16.msra.mxu0 %v1943
    %3937 = vmatpush.bf16.msra.mxu0 %v1939
    %3938 = vmatmul.bf16.gmra.mxu0 %v882
    %v3939 = vpop.f32.mrf.mxu0
    %v3940 = vadd.f32 %v3851, %v3939
    %v3941 = vpop.f32.mrf.mxu0
    %v3942 = vadd.f32 %v3853, %v3941
    %3943 = vmatmul.bf16.gmra.mxu0 %v890
    %v3944 = vpop.f32.mrf.mxu0
    %v3945 = vadd.f32 %v3856, %v3944
    %v3946 = vpop.f32.mrf.mxu0
    %v3947 = vadd.f32 %v3858, %v3946
    %3948 = vmatmul.bf16.gmra.mxu0 %v898
    %v3949 = vpop.f32.mrf.mxu0
    %v3950 = vadd.f32 %v3861, %v3949
    %v3951 = vpop.f32.mrf.mxu0
    %v3952 = vadd.f32 %v3863, %v3951
    %3953 = vmatmul.bf16.gmra.mxu0 %v906
    %v3954 = vpop.f32.mrf.mxu0
    %v3955 = vadd.f32 %v3866, %v3954
    %v3956 = vpop.f32.mrf.mxu0
    %v3957 = vadd.f32 %v3868, %v3956
    %3958 = vmatmul.bf16.gmra.mxu0 %v914
    %v3959 = vpop.f32.mrf.mxu0
    %v3960 = vadd.f32 %v3871, %v3959
    %v3961 = vpop.f32.mrf.mxu0
    %v3962 = vadd.f32 %v3873, %v3961
    %3963 = vmatmul.bf16.gmra.mxu0 %v922
    %v3964 = vpop.f32.mrf.mxu0
    %v3965 = vadd.f32 %v3876, %v3964
    %v3966 = vpop.f32.mrf.mxu0
    %v3967 = vadd.f32 %v3878, %v3966
    %3968 = vmatmul.bf16.gmra.mxu0 %v930
    %v3969 = vpop.f32.mrf.mxu0
    %v3970 = vadd.f32 %v3881, %v3969
    %v3971 = vpop.f32.mrf.mxu0
    %v3972 = vadd.f32 %v3883, %v3971
    %3973 = vmatmul.bf16.gmra.mxu0 %v938
    %v3974 = vpop.f32.mrf.mxu0
    %v3975 = vadd.f32 %v3886, %v3974
    %v3976 = vpop.f32.mrf.mxu0
    %v3977 = vadd.f32 %v3888, %v3976
    %3978 = vmatmul.bf16.gmra.mxu0 %v946
    %v3979 = vpop.f32.mrf.mxu0
    %v3980 = vadd.f32 %v3891, %v3979
    %v3981 = vpop.f32.mrf.mxu0
    %v3982 = vadd.f32 %v3893, %v3981
    %3983 = vmatmul.bf16.gmra.mxu0 %v954
    %v3984 = vpop.f32.mrf.mxu0
    %v3985 = vadd.f32 %v3896, %v3984
    %v3986 = vpop.f32.mrf.mxu0
    %v3987 = vadd.f32 %v3898, %v3986
    %3988 = vmatmul.bf16.gmra.mxu0 %v962
    %v3989 = vpop.f32.mrf.mxu0
    %v3990 = vadd.f32 %v3901, %v3989
    %v3991 = vpop.f32.mrf.mxu0
    %v3992 = vadd.f32 %v3903, %v3991
    %3993 = vmatmul.bf16.gmra.mxu0 %v970
    %v3994 = vpop.f32.mrf.mxu0
    %v3995 = vadd.f32 %v3906, %v3994
    %v3996 = vpop.f32.mrf.mxu0
    %v3997 = vadd.f32 %v3908, %v3996
    %3998 = vmatmul.bf16.gmra.mxu0 %v978
    %v3999 = vpop.f32.mrf.mxu0
    %v4000 = vadd.f32 %v3911, %v3999
    %v4001 = vpop.f32.mrf.mxu0
    %v4002 = vadd.f32 %v3913, %v4001
    %4003 = vmatmul.bf16.gmra.mxu0 %v986
    %v4004 = vpop.f32.mrf.mxu0
    %v4005 = vadd.f32 %v3916, %v4004
    %v4006 = vpop.f32.mrf.mxu0
    %v4007 = vadd.f32 %v3918, %v4006
    %4008 = vmatmul.bf16.gmra.mxu0 %v994
    %v4009 = vpop.f32.mrf.mxu0
    %v4010 = vadd.f32 %v3921, %v4009
    %v4011 = vpop.f32.mrf.mxu0
    %v4012 = vadd.f32 %v3923, %v4011
    %4013 = vmatmul.bf16.gmra.mxu0 %v1002
    %v4014 = vpop.f32.mrf.mxu0
    %v4015 = vadd.f32 %v3926, %v4014
    %v4016 = vpop.f32.mrf.mxu0
    %v4017 = vadd.f32 %v3928, %v4016
    %4018 = vdwg.mxu0
    %4019 = vmatpush.bf16.msra.mxu0 %v1999
    %4020 = vmatpush.bf16.msra.mxu0 %v1995
    %4021 = vmatpush.bf16.msra.mxu0 %v1991
    %4022 = vmatpush.bf16.msra.mxu0 %v1987
    %4023 = vmatpush.bf16.msra.mxu0 %v1983
    %4024 = vmatpush.bf16.msra.mxu0 %v1979
    %4025 = vmatpush.bf16.msra.mxu0 %v1975
    %4026 = vmatpush.bf16.msra.mxu0 %v1971
    %4027 = vmatmul.bf16.gmra.mxu0 %v883
    %v4028 = vpop.f32.mrf.mxu0
    %v4029 = vadd.f32 %v3940, %v4028
    %v4030 = vpop.f32.mrf.mxu0
    %v4031 = vadd.f32 %v3942, %v4030
    %4032 = vmatmul.bf16.gmra.mxu0 %v891
    %v4033 = vpop.f32.mrf.mxu0
    %v4034 = vadd.f32 %v3945, %v4033
    %v4035 = vpop.f32.mrf.mxu0
    %v4036 = vadd.f32 %v3947, %v4035
    %4037 = vmatmul.bf16.gmra.mxu0 %v899
    %v4038 = vpop.f32.mrf.mxu0
    %v4039 = vadd.f32 %v3950, %v4038
    %v4040 = vpop.f32.mrf.mxu0
    %v4041 = vadd.f32 %v3952, %v4040
    %4042 = vmatmul.bf16.gmra.mxu0 %v907
    %v4043 = vpop.f32.mrf.mxu0
    %v4044 = vadd.f32 %v3955, %v4043
    %v4045 = vpop.f32.mrf.mxu0
    %v4046 = vadd.f32 %v3957, %v4045
    %4047 = vmatmul.bf16.gmra.mxu0 %v915
    %v4048 = vpop.f32.mrf.mxu0
    %v4049 = vadd.f32 %v3960, %v4048
    %v4050 = vpop.f32.mrf.mxu0
    %v4051 = vadd.f32 %v3962, %v4050
    %4052 = vmatmul.bf16.gmra.mxu0 %v923
    %v4053 = vpop.f32.mrf.mxu0
    %v4054 = vadd.f32 %v3965, %v4053
    %v4055 = vpop.f32.mrf.mxu0
    %v4056 = vadd.f32 %v3967, %v4055
    %4057 = vmatmul.bf16.gmra.mxu0 %v931
    %v4058 = vpop.f32.mrf.mxu0
    %v4059 = vadd.f32 %v3970, %v4058
    %v4060 = vpop.f32.mrf.mxu0
    %v4061 = vadd.f32 %v3972, %v4060
    %4062 = vmatmul.bf16.gmra.mxu0 %v939
    %v4063 = vpop.f32.mrf.mxu0
    %v4064 = vadd.f32 %v3975, %v4063
    %v4065 = vpop.f32.mrf.mxu0
    %v4066 = vadd.f32 %v3977, %v4065
    %4067 = vmatmul.bf16.gmra.mxu0 %v947
    %v4068 = vpop.f32.mrf.mxu0
    %v4069 = vadd.f32 %v3980, %v4068
    %v4070 = vpop.f32.mrf.mxu0
    %v4071 = vadd.f32 %v3982, %v4070
    %4072 = vmatmul.bf16.gmra.mxu0 %v955
    %v4073 = vpop.f32.mrf.mxu0
    %v4074 = vadd.f32 %v3985, %v4073
    %v4075 = vpop.f32.mrf.mxu0
    %v4076 = vadd.f32 %v3987, %v4075
    %4077 = vmatmul.bf16.gmra.mxu0 %v963
    %v4078 = vpop.f32.mrf.mxu0
    %v4079 = vadd.f32 %v3990, %v4078
    %v4080 = vpop.f32.mrf.mxu0
    %v4081 = vadd.f32 %v3992, %v4080
    %4082 = vmatmul.bf16.gmra.mxu0 %v971
    %v4083 = vpop.f32.mrf.mxu0
    %v4084 = vadd.f32 %v3995, %v4083
    %v4085 = vpop.f32.mrf.mxu0
    %v4086 = vadd.f32 %v3997, %v4085
    %4087 = vmatmul.bf16.gmra.mxu0 %v979
    %v4088 = vpop.f32.mrf.mxu0
    %v4089 = vadd.f32 %v4000, %v4088
    %v4090 = vpop.f32.mrf.mxu0
    %v4091 = vadd.f32 %v4002, %v4090
    %4092 = vmatmul.bf16.gmra.mxu0 %v987
    %v4093 = vpop.f32.mrf.mxu0
    %v4094 = vadd.f32 %v4005, %v4093
    %v4095 = vpop.f32.mrf.mxu0
    %v4096 = vadd.f32 %v4007, %v4095
    %4097 = vmatmul.bf16.gmra.mxu0 %v995
    %v4098 = vpop.f32.mrf.mxu0
    %v4099 = vadd.f32 %v4010, %v4098
    %v4100 = vpop.f32.mrf.mxu0
    %v4101 = vadd.f32 %v4012, %v4100
    %4102 = vmatmul.bf16.gmra.mxu0 %v1003
    %v4103 = vpop.f32.mrf.mxu0
    %v4104 = vadd.f32 %v4015, %v4103
    %v4105 = vpop.f32.mrf.mxu0
    %v4106 = vadd.f32 %v4017, %v4105
    %4107 = vdwg.mxu0
    %4108 = vmatpush.bf16.msra.mxu0 %v2031
    %4109 = vmatpush.bf16.msra.mxu0 %v2027
    %4110 = vmatpush.bf16.msra.mxu0 %v2023
    %4111 = vmatpush.bf16.msra.mxu0 %v2019
    %4112 = vmatpush.bf16.msra.mxu0 %v2015
    %4113 = vmatpush.bf16.msra.mxu0 %v2011
    %4114 = vmatpush.bf16.msra.mxu0 %v2007
    %4115 = vmatpush.bf16.msra.mxu0 %v2003
    %4116 = vmatmul.bf16.gmra.mxu0 %v884
    %v4117 = vpop.f32.mrf.mxu0
    %v4118 = vadd.f32 %v4029, %v4117
    %v4119 = vpop.f32.mrf.mxu0
    %v4120 = vadd.f32 %v4031, %v4119
    %4121 = vmatmul.bf16.gmra.mxu0 %v892
    %v4122 = vpop.f32.mrf.mxu0
    %v4123 = vadd.f32 %v4034, %v4122
    %v4124 = vpop.f32.mrf.mxu0
    %v4125 = vadd.f32 %v4036, %v4124
    %4126 = vmatmul.bf16.gmra.mxu0 %v900
    %v4127 = vpop.f32.mrf.mxu0
    %v4128 = vadd.f32 %v4039, %v4127
    %v4129 = vpop.f32.mrf.mxu0
    %v4130 = vadd.f32 %v4041, %v4129
    %4131 = vmatmul.bf16.gmra.mxu0 %v908
    %v4132 = vpop.f32.mrf.mxu0
    %v4133 = vadd.f32 %v4044, %v4132
    %v4134 = vpop.f32.mrf.mxu0
    %v4135 = vadd.f32 %v4046, %v4134
    %4136 = vmatmul.bf16.gmra.mxu0 %v916
    %v4137 = vpop.f32.mrf.mxu0
    %v4138 = vadd.f32 %v4049, %v4137
    %v4139 = vpop.f32.mrf.mxu0
    %v4140 = vadd.f32 %v4051, %v4139
    %4141 = vmatmul.bf16.gmra.mxu0 %v924
    %v4142 = vpop.f32.mrf.mxu0
    %v4143 = vadd.f32 %v4054, %v4142
    %v4144 = vpop.f32.mrf.mxu0
    %v4145 = vadd.f32 %v4056, %v4144
    %4146 = vmatmul.bf16.gmra.mxu0 %v932
    %v4147 = vpop.f32.mrf.mxu0
    %v4148 = vadd.f32 %v4059, %v4147
    %v4149 = vpop.f32.mrf.mxu0
    %v4150 = vadd.f32 %v4061, %v4149
    %4151 = vmatmul.bf16.gmra.mxu0 %v940
    %v4152 = vpop.f32.mrf.mxu0
    %v4153 = vadd.f32 %v4064, %v4152
    %v4154 = vpop.f32.mrf.mxu0
    %v4155 = vadd.f32 %v4066, %v4154
    %4156 = vmatmul.bf16.gmra.mxu0 %v948
    %v4157 = vpop.f32.mrf.mxu0
    %v4158 = vadd.f32 %v4069, %v4157
    %v4159 = vpop.f32.mrf.mxu0
    %v4160 = vadd.f32 %v4071, %v4159
    %4161 = vmatmul.bf16.gmra.mxu0 %v956
    %v4162 = vpop.f32.mrf.mxu0
    %v4163 = vadd.f32 %v4074, %v4162
    %v4164 = vpop.f32.mrf.mxu0
    %v4165 = vadd.f32 %v4076, %v4164
    %4166 = vmatmul.bf16.gmra.mxu0 %v964
    %v4167 = vpop.f32.mrf.mxu0
    %v4168 = vadd.f32 %v4079, %v4167
    %v4169 = vpop.f32.mrf.mxu0
    %v4170 = vadd.f32 %v4081, %v4169
    %4171 = vmatmul.bf16.gmra.mxu0 %v972
    %v4172 = vpop.f32.mrf.mxu0
    %v4173 = vadd.f32 %v4084, %v4172
    %v4174 = vpop.f32.mrf.mxu0
    %v4175 = vadd.f32 %v4086, %v4174
    %4176 = vmatmul.bf16.gmra.mxu0 %v980
    %v4177 = vpop.f32.mrf.mxu0
    %v4178 = vadd.f32 %v4089, %v4177
    %v4179 = vpop.f32.mrf.mxu0
    %v4180 = vadd.f32 %v4091, %v4179
    %4181 = vmatmul.bf16.gmra.mxu0 %v988
    %v4182 = vpop.f32.mrf.mxu0
    %v4183 = vadd.f32 %v4094, %v4182
    %v4184 = vpop.f32.mrf.mxu0
    %v4185 = vadd.f32 %v4096, %v4184
    %4186 = vmatmul.bf16.gmra.mxu0 %v996
    %v4187 = vpop.f32.mrf.mxu0
    %v4188 = vadd.f32 %v4099, %v4187
    %v4189 = vpop.f32.mrf.mxu0
    %v4190 = vadd.f32 %v4101, %v4189
    %4191 = vmatmul.bf16.gmra.mxu0 %v1004
    %v4192 = vpop.f32.mrf.mxu0
    %v4193 = vadd.f32 %v4104, %v4192
    %v4194 = vpop.f32.mrf.mxu0
    %v4195 = vadd.f32 %v4106, %v4194
    %4196 = vdwg.mxu0
    %4197 = vmatpush.bf16.msra.mxu0 %v2063
    %4198 = vmatpush.bf16.msra.mxu0 %v2059
    %4199 = vmatpush.bf16.msra.mxu0 %v2055
    %4200 = vmatpush.bf16.msra.mxu0 %v2051
    %4201 = vmatpush.bf16.msra.mxu0 %v2047
    %4202 = vmatpush.bf16.msra.mxu0 %v2043
    %4203 = vmatpush.bf16.msra.mxu0 %v2039
    %4204 = vmatpush.bf16.msra.mxu0 %v2035
    %4205 = vmatmul.bf16.gmra.mxu0 %v885
    %v4206 = vpop.f32.mrf.mxu0
    %v4207 = vadd.f32 %v4118, %v4206
    %v4208 = vpop.f32.mrf.mxu0
    %v4209 = vadd.f32 %v4120, %v4208
    %4210 = vmatmul.bf16.gmra.mxu0 %v893
    %v4211 = vpop.f32.mrf.mxu0
    %v4212 = vadd.f32 %v4123, %v4211
    %v4213 = vpop.f32.mrf.mxu0
    %v4214 = vadd.f32 %v4125, %v4213
    %4215 = vmatmul.bf16.gmra.mxu0 %v901
    %v4216 = vpop.f32.mrf.mxu0
    %v4217 = vadd.f32 %v4128, %v4216
    %v4218 = vpop.f32.mrf.mxu0
    %v4219 = vadd.f32 %v4130, %v4218
    %4220 = vmatmul.bf16.gmra.mxu0 %v909
    %v4221 = vpop.f32.mrf.mxu0
    %v4222 = vadd.f32 %v4133, %v4221
    %v4223 = vpop.f32.mrf.mxu0
    %v4224 = vadd.f32 %v4135, %v4223
    %4225 = vmatmul.bf16.gmra.mxu0 %v917
    %v4226 = vpop.f32.mrf.mxu0
    %v4227 = vadd.f32 %v4138, %v4226
    %v4228 = vpop.f32.mrf.mxu0
    %v4229 = vadd.f32 %v4140, %v4228
    %4230 = vmatmul.bf16.gmra.mxu0 %v925
    %v4231 = vpop.f32.mrf.mxu0
    %v4232 = vadd.f32 %v4143, %v4231
    %v4233 = vpop.f32.mrf.mxu0
    %v4234 = vadd.f32 %v4145, %v4233
    %4235 = vmatmul.bf16.gmra.mxu0 %v933
    %v4236 = vpop.f32.mrf.mxu0
    %v4237 = vadd.f32 %v4148, %v4236
    %v4238 = vpop.f32.mrf.mxu0
    %v4239 = vadd.f32 %v4150, %v4238
    %4240 = vmatmul.bf16.gmra.mxu0 %v941
    %v4241 = vpop.f32.mrf.mxu0
    %v4242 = vadd.f32 %v4153, %v4241
    %v4243 = vpop.f32.mrf.mxu0
    %v4244 = vadd.f32 %v4155, %v4243
    %4245 = vmatmul.bf16.gmra.mxu0 %v949
    %v4246 = vpop.f32.mrf.mxu0
    %v4247 = vadd.f32 %v4158, %v4246
    %v4248 = vpop.f32.mrf.mxu0
    %v4249 = vadd.f32 %v4160, %v4248
    %4250 = vmatmul.bf16.gmra.mxu0 %v957
    %v4251 = vpop.f32.mrf.mxu0
    %v4252 = vadd.f32 %v4163, %v4251
    %v4253 = vpop.f32.mrf.mxu0
    %v4254 = vadd.f32 %v4165, %v4253
    %4255 = vmatmul.bf16.gmra.mxu0 %v965
    %v4256 = vpop.f32.mrf.mxu0
    %v4257 = vadd.f32 %v4168, %v4256
    %v4258 = vpop.f32.mrf.mxu0
    %v4259 = vadd.f32 %v4170, %v4258
    %4260 = vmatmul.bf16.gmra.mxu0 %v973
    %v4261 = vpop.f32.mrf.mxu0
    %v4262 = vadd.f32 %v4173, %v4261
    %v4263 = vpop.f32.mrf.mxu0
    %v4264 = vadd.f32 %v4175, %v4263
    %4265 = vmatmul.bf16.gmra.mxu0 %v981
    %v4266 = vpop.f32.mrf.mxu0
    %v4267 = vadd.f32 %v4178, %v4266
    %v4268 = vpop.f32.mrf.mxu0
    %v4269 = vadd.f32 %v4180, %v4268
    %4270 = vmatmul.bf16.gmra.mxu0 %v989
    %v4271 = vpop.f32.mrf.mxu0
    %v4272 = vadd.f32 %v4183, %v4271
    %v4273 = vpop.f32.mrf.mxu0
    %v4274 = vadd.f32 %v4185, %v4273
    %4275 = vmatmul.bf16.gmra.mxu0 %v997
    %v4276 = vpop.f32.mrf.mxu0
    %v4277 = vadd.f32 %v4188, %v4276
    %v4278 = vpop.f32.mrf.mxu0
    %v4279 = vadd.f32 %v4190, %v4278
    %4280 = vmatmul.bf16.gmra.mxu0 %v1005
    %v4281 = vpop.f32.mrf.mxu0
    %v4282 = vadd.f32 %v4193, %v4281
    %v4283 = vpop.f32.mrf.mxu0
    %v4284 = vadd.f32 %v4195, %v4283
    %4285 = vdwg.mxu0
    %4286 = vmatpush.bf16.msra.mxu0 %v2095
    %4287 = vmatpush.bf16.msra.mxu0 %v2091
    %4288 = vmatpush.bf16.msra.mxu0 %v2087
    %4289 = vmatpush.bf16.msra.mxu0 %v2083
    %4290 = vmatpush.bf16.msra.mxu0 %v2079
    %4291 = vmatpush.bf16.msra.mxu0 %v2075
    %4292 = vmatpush.bf16.msra.mxu0 %v2071
    %4293 = vmatpush.bf16.msra.mxu0 %v2067
    %4294 = vmatmul.bf16.gmra.mxu0 %v886
    %v4295 = vpop.f32.mrf.mxu0
    %v4296 = vadd.f32 %v4207, %v4295
    %v4297 = vpop.f32.mrf.mxu0
    %v4298 = vadd.f32 %v4209, %v4297
    %4299 = vmatmul.bf16.gmra.mxu0 %v894
    %v4300 = vpop.f32.mrf.mxu0
    %v4301 = vadd.f32 %v4212, %v4300
    %v4302 = vpop.f32.mrf.mxu0
    %v4303 = vadd.f32 %v4214, %v4302
    %4304 = vmatmul.bf16.gmra.mxu0 %v902
    %v4305 = vpop.f32.mrf.mxu0
    %v4306 = vadd.f32 %v4217, %v4305
    %v4307 = vpop.f32.mrf.mxu0
    %v4308 = vadd.f32 %v4219, %v4307
    %4309 = vmatmul.bf16.gmra.mxu0 %v910
    %v4310 = vpop.f32.mrf.mxu0
    %v4311 = vadd.f32 %v4222, %v4310
    %v4312 = vpop.f32.mrf.mxu0
    %v4313 = vadd.f32 %v4224, %v4312
    %4314 = vmatmul.bf16.gmra.mxu0 %v918
    %v4315 = vpop.f32.mrf.mxu0
    %v4316 = vadd.f32 %v4227, %v4315
    %v4317 = vpop.f32.mrf.mxu0
    %v4318 = vadd.f32 %v4229, %v4317
    %4319 = vmatmul.bf16.gmra.mxu0 %v926
    %v4320 = vpop.f32.mrf.mxu0
    %v4321 = vadd.f32 %v4232, %v4320
    %v4322 = vpop.f32.mrf.mxu0
    %v4323 = vadd.f32 %v4234, %v4322
    %4324 = vmatmul.bf16.gmra.mxu0 %v934
    %v4325 = vpop.f32.mrf.mxu0
    %v4326 = vadd.f32 %v4237, %v4325
    %v4327 = vpop.f32.mrf.mxu0
    %v4328 = vadd.f32 %v4239, %v4327
    %4329 = vmatmul.bf16.gmra.mxu0 %v942
    %v4330 = vpop.f32.mrf.mxu0
    %v4331 = vadd.f32 %v4242, %v4330
    %v4332 = vpop.f32.mrf.mxu0
    %v4333 = vadd.f32 %v4244, %v4332
    %4334 = vmatmul.bf16.gmra.mxu0 %v950
    %v4335 = vpop.f32.mrf.mxu0
    %v4336 = vadd.f32 %v4247, %v4335
    %v4337 = vpop.f32.mrf.mxu0
    %v4338 = vadd.f32 %v4249, %v4337
    %4339 = vmatmul.bf16.gmra.mxu0 %v958
    %v4340 = vpop.f32.mrf.mxu0
    %v4341 = vadd.f32 %v4252, %v4340
    %v4342 = vpop.f32.mrf.mxu0
    %v4343 = vadd.f32 %v4254, %v4342
    %4344 = vmatmul.bf16.gmra.mxu0 %v966
    %v4345 = vpop.f32.mrf.mxu0
    %v4346 = vadd.f32 %v4257, %v4345
    %v4347 = vpop.f32.mrf.mxu0
    %v4348 = vadd.f32 %v4259, %v4347
    %4349 = vmatmul.bf16.gmra.mxu0 %v974
    %v4350 = vpop.f32.mrf.mxu0
    %v4351 = vadd.f32 %v4262, %v4350
    %v4352 = vpop.f32.mrf.mxu0
    %v4353 = vadd.f32 %v4264, %v4352
    %4354 = vmatmul.bf16.gmra.mxu0 %v982
    %v4355 = vpop.f32.mrf.mxu0
    %v4356 = vadd.f32 %v4267, %v4355
    %v4357 = vpop.f32.mrf.mxu0
    %v4358 = vadd.f32 %v4269, %v4357
    %4359 = vmatmul.bf16.gmra.mxu0 %v990
    %v4360 = vpop.f32.mrf.mxu0
    %v4361 = vadd.f32 %v4272, %v4360
    %v4362 = vpop.f32.mrf.mxu0
    %v4363 = vadd.f32 %v4274, %v4362
    %4364 = vmatmul.bf16.gmra.mxu0 %v998
    %v4365 = vpop.f32.mrf.mxu0
    %v4366 = vadd.f32 %v4277, %v4365
    %v4367 = vpop.f32.mrf.mxu0
    %v4368 = vadd.f32 %v4279, %v4367
    %4369 = vmatmul.bf16.gmra.mxu0 %v1006
    %v4370 = vpop.f32.mrf.mxu0
    %v4371 = vadd.f32 %v4282, %v4370
    %v4372 = vpop.f32.mrf.mxu0
    %v4373 = vadd.f32 %v4284, %v4372
    %4374 = vdwg.mxu0
    %4375 = vmatpush.bf16.msra.mxu0 %v2127
    %4376 = vmatpush.bf16.msra.mxu0 %v2123
    %4377 = vmatpush.bf16.msra.mxu0 %v2119
    %4378 = vmatpush.bf16.msra.mxu0 %v2115
    %4379 = vmatpush.bf16.msra.mxu0 %v2111
    %4380 = vmatpush.bf16.msra.mxu0 %v2107
    %4381 = vmatpush.bf16.msra.mxu0 %v2103
    %4382 = vmatpush.bf16.msra.mxu0 %v2099
    %4383 = vmatmul.bf16.gmra.mxu0 %v887
    %v4384 = vpop.f32.mrf.mxu0
    %v4385 = vadd.f32 %v4296, %v4384
    %v4386 = vpop.f32.mrf.mxu0
    %v4387 = vadd.f32 %v4298, %v4386
    %4388 = vmatmul.bf16.gmra.mxu0 %v895
    %v4389 = vpop.f32.mrf.mxu0
    %v4390 = vadd.f32 %v4301, %v4389
    %v4391 = vpop.f32.mrf.mxu0
    %v4392 = vadd.f32 %v4303, %v4391
    %4393 = vmatmul.bf16.gmra.mxu0 %v903
    %v4394 = vpop.f32.mrf.mxu0
    %v4395 = vadd.f32 %v4306, %v4394
    %v4396 = vpop.f32.mrf.mxu0
    %v4397 = vadd.f32 %v4308, %v4396
    %4398 = vmatmul.bf16.gmra.mxu0 %v911
    %v4399 = vpop.f32.mrf.mxu0
    %v4400 = vadd.f32 %v4311, %v4399
    %v4401 = vpop.f32.mrf.mxu0
    %v4402 = vadd.f32 %v4313, %v4401
    %4403 = vmatmul.bf16.gmra.mxu0 %v919
    %v4404 = vpop.f32.mrf.mxu0
    %v4405 = vadd.f32 %v4316, %v4404
    %v4406 = vpop.f32.mrf.mxu0
    %v4407 = vadd.f32 %v4318, %v4406
    %4408 = vmatmul.bf16.gmra.mxu0 %v927
    %v4409 = vpop.f32.mrf.mxu0
    %v4410 = vadd.f32 %v4321, %v4409
    %v4411 = vpop.f32.mrf.mxu0
    %v4412 = vadd.f32 %v4323, %v4411
    %4413 = vmatmul.bf16.gmra.mxu0 %v935
    %v4414 = vpop.f32.mrf.mxu0
    %v4415 = vadd.f32 %v4326, %v4414
    %v4416 = vpop.f32.mrf.mxu0
    %v4417 = vadd.f32 %v4328, %v4416
    %4418 = vmatmul.bf16.gmra.mxu0 %v943
    %v4419 = vpop.f32.mrf.mxu0
    %v4420 = vadd.f32 %v4331, %v4419
    %v4421 = vpop.f32.mrf.mxu0
    %v4422 = vadd.f32 %v4333, %v4421
    %4423 = vmatmul.bf16.gmra.mxu0 %v951
    %v4424 = vpop.f32.mrf.mxu0
    %v4425 = vadd.f32 %v4336, %v4424
    %v4426 = vpop.f32.mrf.mxu0
    %v4427 = vadd.f32 %v4338, %v4426
    %4428 = vmatmul.bf16.gmra.mxu0 %v959
    %v4429 = vpop.f32.mrf.mxu0
    %v4430 = vadd.f32 %v4341, %v4429
    %v4431 = vpop.f32.mrf.mxu0
    %v4432 = vadd.f32 %v4343, %v4431
    %4433 = vmatmul.bf16.gmra.mxu0 %v967
    %v4434 = vpop.f32.mrf.mxu0
    %v4435 = vadd.f32 %v4346, %v4434
    %v4436 = vpop.f32.mrf.mxu0
    %v4437 = vadd.f32 %v4348, %v4436
    %4438 = vmatmul.bf16.gmra.mxu0 %v975
    %v4439 = vpop.f32.mrf.mxu0
    %v4440 = vadd.f32 %v4351, %v4439
    %v4441 = vpop.f32.mrf.mxu0
    %v4442 = vadd.f32 %v4353, %v4441
    %4443 = vmatmul.bf16.gmra.mxu0 %v983
    %v4444 = vpop.f32.mrf.mxu0
    %v4445 = vadd.f32 %v4356, %v4444
    %v4446 = vpop.f32.mrf.mxu0
    %v4447 = vadd.f32 %v4358, %v4446
    %4448 = vmatmul.bf16.gmra.mxu0 %v991
    %v4449 = vpop.f32.mrf.mxu0
    %v4450 = vadd.f32 %v4361, %v4449
    %v4451 = vpop.f32.mrf.mxu0
    %v4452 = vadd.f32 %v4363, %v4451
    %4453 = vmatmul.bf16.gmra.mxu0 %v999
    %v4454 = vpop.f32.mrf.mxu0
    %v4455 = vadd.f32 %v4366, %v4454
    %v4456 = vpop.f32.mrf.mxu0
    %v4457 = vadd.f32 %v4368, %v4456
    %4458 = vmatmul.bf16.gmra.mxu0 %v1007
    %v4459 = vpop.f32.mrf.mxu0
    %v4460 = vadd.f32 %v4371, %v4459
    %v4461 = vpop.f32.mrf.mxu0
    %v4462 = vadd.f32 %v4373, %v4461
    %4463 = vdwg.mxu0
    %4464 = vmatpush.bf16.msra.mxu0 %v2159
    %4465 = vmatpush.bf16.msra.mxu0 %v2155
    %4466 = vmatpush.bf16.msra.mxu0 %v2151
    %4467 = vmatpush.bf16.msra.mxu0 %v2147
    %4468 = vmatpush.bf16.msra.mxu0 %v2143
    %4469 = vmatpush.bf16.msra.mxu0 %v2139
    %4470 = vmatpush.bf16.msra.mxu0 %v2135
    %4471 = vmatpush.bf16.msra.mxu0 %v2131
    %4472 = vmatmul.bf16.gmra.mxu0 %v888
    %v4473 = vpop.f32.mrf.mxu0
    %v4474 = vadd.f32 %v4385, %v4473
    %v4475 = vpop.f32.mrf.mxu0
    %v4476 = vadd.f32 %v4387, %v4475
    %4477 = vmatmul.bf16.gmra.mxu0 %v896
    %v4478 = vpop.f32.mrf.mxu0
    %v4479 = vadd.f32 %v4390, %v4478
    %v4480 = vpop.f32.mrf.mxu0
    %v4481 = vadd.f32 %v4392, %v4480
    %4482 = vmatmul.bf16.gmra.mxu0 %v904
    %v4483 = vpop.f32.mrf.mxu0
    %v4484 = vadd.f32 %v4395, %v4483
    %v4485 = vpop.f32.mrf.mxu0
    %v4486 = vadd.f32 %v4397, %v4485
    %4487 = vmatmul.bf16.gmra.mxu0 %v912
    %v4488 = vpop.f32.mrf.mxu0
    %v4489 = vadd.f32 %v4400, %v4488
    %v4490 = vpop.f32.mrf.mxu0
    %v4491 = vadd.f32 %v4402, %v4490
    %4492 = vmatmul.bf16.gmra.mxu0 %v920
    %v4493 = vpop.f32.mrf.mxu0
    %v4494 = vadd.f32 %v4405, %v4493
    %v4495 = vpop.f32.mrf.mxu0
    %v4496 = vadd.f32 %v4407, %v4495
    %4497 = vmatmul.bf16.gmra.mxu0 %v928
    %v4498 = vpop.f32.mrf.mxu0
    %v4499 = vadd.f32 %v4410, %v4498
    %v4500 = vpop.f32.mrf.mxu0
    %v4501 = vadd.f32 %v4412, %v4500
    %4502 = vmatmul.bf16.gmra.mxu0 %v936
    %v4503 = vpop.f32.mrf.mxu0
    %v4504 = vadd.f32 %v4415, %v4503
    %v4505 = vpop.f32.mrf.mxu0
    %v4506 = vadd.f32 %v4417, %v4505
    %4507 = vmatmul.bf16.gmra.mxu0 %v944
    %v4508 = vpop.f32.mrf.mxu0
    %v4509 = vadd.f32 %v4420, %v4508
    %v4510 = vpop.f32.mrf.mxu0
    %v4511 = vadd.f32 %v4422, %v4510
    %4512 = vmatmul.bf16.gmra.mxu0 %v952
    %v4513 = vpop.f32.mrf.mxu0
    %v4514 = vadd.f32 %v4425, %v4513
    %v4515 = vpop.f32.mrf.mxu0
    %v4516 = vadd.f32 %v4427, %v4515
    %4517 = vmatmul.bf16.gmra.mxu0 %v960
    %v4518 = vpop.f32.mrf.mxu0
    %v4519 = vadd.f32 %v4430, %v4518
    %v4520 = vpop.f32.mrf.mxu0
    %v4521 = vadd.f32 %v4432, %v4520
    %4522 = vmatmul.bf16.gmra.mxu0 %v968
    %v4523 = vpop.f32.mrf.mxu0
    %v4524 = vadd.f32 %v4435, %v4523
    %v4525 = vpop.f32.mrf.mxu0
    %v4526 = vadd.f32 %v4437, %v4525
    %4527 = vmatmul.bf16.gmra.mxu0 %v976
    %v4528 = vpop.f32.mrf.mxu0
    %v4529 = vadd.f32 %v4440, %v4528
    %v4530 = vpop.f32.mrf.mxu0
    %v4531 = vadd.f32 %v4442, %v4530
    %4532 = vmatmul.bf16.gmra.mxu0 %v984
    %v4533 = vpop.f32.mrf.mxu0
    %v4534 = vadd.f32 %v4445, %v4533
    %v4535 = vpop.f32.mrf.mxu0
    %v4536 = vadd.f32 %v4447, %v4535
    %4537 = vmatmul.bf16.gmra.mxu0 %v992
    %v4538 = vpop.f32.mrf.mxu0
    %v4539 = vadd.f32 %v4450, %v4538
    %v4540 = vpop.f32.mrf.mxu0
    %v4541 = vadd.f32 %v4452, %v4540
    %4542 = vmatmul.bf16.gmra.mxu0 %v1000
    %v4543 = vpop.f32.mrf.mxu0
    %v4544 = vadd.f32 %v4455, %v4543
    %v4545 = vpop.f32.mrf.mxu0
    %v4546 = vadd.f32 %v4457, %v4545
    %4547 = vmatmul.bf16.gmra.mxu0 %v1008
    %v4548 = vpop.f32.mrf.mxu0
    %v4549 = vadd.f32 %v4460, %v4548
    %v4550 = vpop.f32.mrf.mxu0
    %v4551 = vadd.f32 %v4462, %v4550
    %4552 = vdwg.mxu0
    %4553 = vmatpush.bf16.msra.mxu0 %v1936
    %4554 = vmatpush.bf16.msra.mxu0 %v1932
    %4555 = vmatpush.bf16.msra.mxu0 %v1928
    %4556 = vmatpush.bf16.msra.mxu0 %v1924
    %4557 = vmatpush.bf16.msra.mxu0 %v1920
    %4558 = vmatpush.bf16.msra.mxu0 %v1916
    %4559 = vmatpush.bf16.msra.mxu0 %v1912
    %4560 = vmatpush.bf16.msra.mxu0 %v1908
    %4561 = vmatmul.bf16.gmra.mxu0 %v881
    %v4562 = vpop.f32.mrf.mxu0
    %v4563 = vadd.f32 %v492, %v4562
    %v4564 = vpop.f32.mrf.mxu0
    %v4565 = vadd.f32 %v492, %v4564
    %4566 = vmatmul.bf16.gmra.mxu0 %v889
    %v4567 = vpop.f32.mrf.mxu0
    %v4568 = vadd.f32 %v492, %v4567
    %v4569 = vpop.f32.mrf.mxu0
    %v4570 = vadd.f32 %v492, %v4569
    %4571 = vmatmul.bf16.gmra.mxu0 %v897
    %v4572 = vpop.f32.mrf.mxu0
    %v4573 = vadd.f32 %v492, %v4572
    %v4574 = vpop.f32.mrf.mxu0
    %v4575 = vadd.f32 %v492, %v4574
    %4576 = vmatmul.bf16.gmra.mxu0 %v905
    %v4577 = vpop.f32.mrf.mxu0
    %v4578 = vadd.f32 %v492, %v4577
    %v4579 = vpop.f32.mrf.mxu0
    %v4580 = vadd.f32 %v492, %v4579
    %4581 = vmatmul.bf16.gmra.mxu0 %v913
    %v4582 = vpop.f32.mrf.mxu0
    %v4583 = vadd.f32 %v492, %v4582
    %v4584 = vpop.f32.mrf.mxu0
    %v4585 = vadd.f32 %v492, %v4584
    %4586 = vmatmul.bf16.gmra.mxu0 %v921
    %v4587 = vpop.f32.mrf.mxu0
    %v4588 = vadd.f32 %v492, %v4587
    %v4589 = vpop.f32.mrf.mxu0
    %v4590 = vadd.f32 %v492, %v4589
    %4591 = vmatmul.bf16.gmra.mxu0 %v929
    %v4592 = vpop.f32.mrf.mxu0
    %v4593 = vadd.f32 %v492, %v4592
    %v4594 = vpop.f32.mrf.mxu0
    %v4595 = vadd.f32 %v492, %v4594
    %4596 = vmatmul.bf16.gmra.mxu0 %v937
    %v4597 = vpop.f32.mrf.mxu0
    %v4598 = vadd.f32 %v492, %v4597
    %v4599 = vpop.f32.mrf.mxu0
    %v4600 = vadd.f32 %v492, %v4599
    %4601 = vmatmul.bf16.gmra.mxu0 %v945
    %v4602 = vpop.f32.mrf.mxu0
    %v4603 = vadd.f32 %v492, %v4602
    %v4604 = vpop.f32.mrf.mxu0
    %v4605 = vadd.f32 %v492, %v4604
    %4606 = vmatmul.bf16.gmra.mxu0 %v953
    %v4607 = vpop.f32.mrf.mxu0
    %v4608 = vadd.f32 %v492, %v4607
    %v4609 = vpop.f32.mrf.mxu0
    %v4610 = vadd.f32 %v492, %v4609
    %4611 = vmatmul.bf16.gmra.mxu0 %v961
    %v4612 = vpop.f32.mrf.mxu0
    %v4613 = vadd.f32 %v492, %v4612
    %v4614 = vpop.f32.mrf.mxu0
    %v4615 = vadd.f32 %v492, %v4614
    %4616 = vmatmul.bf16.gmra.mxu0 %v969
    %v4617 = vpop.f32.mrf.mxu0
    %v4618 = vadd.f32 %v492, %v4617
    %v4619 = vpop.f32.mrf.mxu0
    %v4620 = vadd.f32 %v492, %v4619
    %4621 = vmatmul.bf16.gmra.mxu0 %v977
    %v4622 = vpop.f32.mrf.mxu0
    %v4623 = vadd.f32 %v492, %v4622
    %v4624 = vpop.f32.mrf.mxu0
    %v4625 = vadd.f32 %v492, %v4624
    %4626 = vmatmul.bf16.gmra.mxu0 %v985
    %v4627 = vpop.f32.mrf.mxu0
    %v4628 = vadd.f32 %v492, %v4627
    %v4629 = vpop.f32.mrf.mxu0
    %v4630 = vadd.f32 %v492, %v4629
    %4631 = vmatmul.bf16.gmra.mxu0 %v993
    %v4632 = vpop.f32.mrf.mxu0
    %v4633 = vadd.f32 %v492, %v4632
    %v4634 = vpop.f32.mrf.mxu0
    %v4635 = vadd.f32 %v492, %v4634
    %4636 = vmatmul.bf16.gmra.mxu0 %v1001
    %v4637 = vpop.f32.mrf.mxu0
    %v4638 = vadd.f32 %v492, %v4637
    %v4639 = vpop.f32.mrf.mxu0
    %v4640 = vadd.f32 %v492, %v4639
    %4641 = vdwg.mxu0
    %4642 = vmatpush.bf16.msra.mxu0 %v1968
    %4643 = vmatpush.bf16.msra.mxu0 %v1964
    %4644 = vmatpush.bf16.msra.mxu0 %v1960
    %4645 = vmatpush.bf16.msra.mxu0 %v1956
    %4646 = vmatpush.bf16.msra.mxu0 %v1952
    %4647 = vmatpush.bf16.msra.mxu0 %v1948
    %4648 = vmatpush.bf16.msra.mxu0 %v1944
    %4649 = vmatpush.bf16.msra.mxu0 %v1940
    %4650 = vmatmul.bf16.gmra.mxu0 %v882
    %v4651 = vpop.f32.mrf.mxu0
    %v4652 = vadd.f32 %v4563, %v4651
    %v4653 = vpop.f32.mrf.mxu0
    %v4654 = vadd.f32 %v4565, %v4653
    %4655 = vmatmul.bf16.gmra.mxu0 %v890
    %v4656 = vpop.f32.mrf.mxu0
    %v4657 = vadd.f32 %v4568, %v4656
    %v4658 = vpop.f32.mrf.mxu0
    %v4659 = vadd.f32 %v4570, %v4658
    %4660 = vmatmul.bf16.gmra.mxu0 %v898
    %v4661 = vpop.f32.mrf.mxu0
    %v4662 = vadd.f32 %v4573, %v4661
    %v4663 = vpop.f32.mrf.mxu0
    %v4664 = vadd.f32 %v4575, %v4663
    %4665 = vmatmul.bf16.gmra.mxu0 %v906
    %v4666 = vpop.f32.mrf.mxu0
    %v4667 = vadd.f32 %v4578, %v4666
    %v4668 = vpop.f32.mrf.mxu0
    %v4669 = vadd.f32 %v4580, %v4668
    %4670 = vmatmul.bf16.gmra.mxu0 %v914
    %v4671 = vpop.f32.mrf.mxu0
    %v4672 = vadd.f32 %v4583, %v4671
    %v4673 = vpop.f32.mrf.mxu0
    %v4674 = vadd.f32 %v4585, %v4673
    %4675 = vmatmul.bf16.gmra.mxu0 %v922
    %v4676 = vpop.f32.mrf.mxu0
    %v4677 = vadd.f32 %v4588, %v4676
    %v4678 = vpop.f32.mrf.mxu0
    %v4679 = vadd.f32 %v4590, %v4678
    %4680 = vmatmul.bf16.gmra.mxu0 %v930
    %v4681 = vpop.f32.mrf.mxu0
    %v4682 = vadd.f32 %v4593, %v4681
    %v4683 = vpop.f32.mrf.mxu0
    %v4684 = vadd.f32 %v4595, %v4683
    %4685 = vmatmul.bf16.gmra.mxu0 %v938
    %v4686 = vpop.f32.mrf.mxu0
    %v4687 = vadd.f32 %v4598, %v4686
    %v4688 = vpop.f32.mrf.mxu0
    %v4689 = vadd.f32 %v4600, %v4688
    %4690 = vmatmul.bf16.gmra.mxu0 %v946
    %v4691 = vpop.f32.mrf.mxu0
    %v4692 = vadd.f32 %v4603, %v4691
    %v4693 = vpop.f32.mrf.mxu0
    %v4694 = vadd.f32 %v4605, %v4693
    %4695 = vmatmul.bf16.gmra.mxu0 %v954
    %v4696 = vpop.f32.mrf.mxu0
    %v4697 = vadd.f32 %v4608, %v4696
    %v4698 = vpop.f32.mrf.mxu0
    %v4699 = vadd.f32 %v4610, %v4698
    %4700 = vmatmul.bf16.gmra.mxu0 %v962
    %v4701 = vpop.f32.mrf.mxu0
    %v4702 = vadd.f32 %v4613, %v4701
    %v4703 = vpop.f32.mrf.mxu0
    %v4704 = vadd.f32 %v4615, %v4703
    %4705 = vmatmul.bf16.gmra.mxu0 %v970
    %v4706 = vpop.f32.mrf.mxu0
    %v4707 = vadd.f32 %v4618, %v4706
    %v4708 = vpop.f32.mrf.mxu0
    %v4709 = vadd.f32 %v4620, %v4708
    %4710 = vmatmul.bf16.gmra.mxu0 %v978
    %v4711 = vpop.f32.mrf.mxu0
    %v4712 = vadd.f32 %v4623, %v4711
    %v4713 = vpop.f32.mrf.mxu0
    %v4714 = vadd.f32 %v4625, %v4713
    %4715 = vmatmul.bf16.gmra.mxu0 %v986
    %v4716 = vpop.f32.mrf.mxu0
    %v4717 = vadd.f32 %v4628, %v4716
    %v4718 = vpop.f32.mrf.mxu0
    %v4719 = vadd.f32 %v4630, %v4718
    %4720 = vmatmul.bf16.gmra.mxu0 %v994
    %v4721 = vpop.f32.mrf.mxu0
    %v4722 = vadd.f32 %v4633, %v4721
    %v4723 = vpop.f32.mrf.mxu0
    %v4724 = vadd.f32 %v4635, %v4723
    %4725 = vmatmul.bf16.gmra.mxu0 %v1002
    %v4726 = vpop.f32.mrf.mxu0
    %v4727 = vadd.f32 %v4638, %v4726
    %v4728 = vpop.f32.mrf.mxu0
    %v4729 = vadd.f32 %v4640, %v4728
    %4730 = vdwg.mxu0
    %4731 = vmatpush.bf16.msra.mxu0 %v2000
    %4732 = vmatpush.bf16.msra.mxu0 %v1996
    %4733 = vmatpush.bf16.msra.mxu0 %v1992
    %4734 = vmatpush.bf16.msra.mxu0 %v1988
    %4735 = vmatpush.bf16.msra.mxu0 %v1984
    %4736 = vmatpush.bf16.msra.mxu0 %v1980
    %4737 = vmatpush.bf16.msra.mxu0 %v1976
    %4738 = vmatpush.bf16.msra.mxu0 %v1972
    %4739 = vmatmul.bf16.gmra.mxu0 %v883
    %v4740 = vpop.f32.mrf.mxu0
    %v4741 = vadd.f32 %v4652, %v4740
    %v4742 = vpop.f32.mrf.mxu0
    %v4743 = vadd.f32 %v4654, %v4742
    %4744 = vmatmul.bf16.gmra.mxu0 %v891
    %v4745 = vpop.f32.mrf.mxu0
    %v4746 = vadd.f32 %v4657, %v4745
    %v4747 = vpop.f32.mrf.mxu0
    %v4748 = vadd.f32 %v4659, %v4747
    %4749 = vmatmul.bf16.gmra.mxu0 %v899
    %v4750 = vpop.f32.mrf.mxu0
    %v4751 = vadd.f32 %v4662, %v4750
    %v4752 = vpop.f32.mrf.mxu0
    %v4753 = vadd.f32 %v4664, %v4752
    %4754 = vmatmul.bf16.gmra.mxu0 %v907
    %v4755 = vpop.f32.mrf.mxu0
    %v4756 = vadd.f32 %v4667, %v4755
    %v4757 = vpop.f32.mrf.mxu0
    %v4758 = vadd.f32 %v4669, %v4757
    %4759 = vmatmul.bf16.gmra.mxu0 %v915
    %v4760 = vpop.f32.mrf.mxu0
    %v4761 = vadd.f32 %v4672, %v4760
    %v4762 = vpop.f32.mrf.mxu0
    %v4763 = vadd.f32 %v4674, %v4762
    %4764 = vmatmul.bf16.gmra.mxu0 %v923
    %v4765 = vpop.f32.mrf.mxu0
    %v4766 = vadd.f32 %v4677, %v4765
    %v4767 = vpop.f32.mrf.mxu0
    %v4768 = vadd.f32 %v4679, %v4767
    %4769 = vmatmul.bf16.gmra.mxu0 %v931
    %v4770 = vpop.f32.mrf.mxu0
    %v4771 = vadd.f32 %v4682, %v4770
    %v4772 = vpop.f32.mrf.mxu0
    %v4773 = vadd.f32 %v4684, %v4772
    %4774 = vmatmul.bf16.gmra.mxu0 %v939
    %v4775 = vpop.f32.mrf.mxu0
    %v4776 = vadd.f32 %v4687, %v4775
    %v4777 = vpop.f32.mrf.mxu0
    %v4778 = vadd.f32 %v4689, %v4777
    %4779 = vmatmul.bf16.gmra.mxu0 %v947
    %v4780 = vpop.f32.mrf.mxu0
    %v4781 = vadd.f32 %v4692, %v4780
    %v4782 = vpop.f32.mrf.mxu0
    %v4783 = vadd.f32 %v4694, %v4782
    %4784 = vmatmul.bf16.gmra.mxu0 %v955
    %v4785 = vpop.f32.mrf.mxu0
    %v4786 = vadd.f32 %v4697, %v4785
    %v4787 = vpop.f32.mrf.mxu0
    %v4788 = vadd.f32 %v4699, %v4787
    %4789 = vmatmul.bf16.gmra.mxu0 %v963
    %v4790 = vpop.f32.mrf.mxu0
    %v4791 = vadd.f32 %v4702, %v4790
    %v4792 = vpop.f32.mrf.mxu0
    %v4793 = vadd.f32 %v4704, %v4792
    %4794 = vmatmul.bf16.gmra.mxu0 %v971
    %v4795 = vpop.f32.mrf.mxu0
    %v4796 = vadd.f32 %v4707, %v4795
    %v4797 = vpop.f32.mrf.mxu0
    %v4798 = vadd.f32 %v4709, %v4797
    %4799 = vmatmul.bf16.gmra.mxu0 %v979
    %v4800 = vpop.f32.mrf.mxu0
    %v4801 = vadd.f32 %v4712, %v4800
    %v4802 = vpop.f32.mrf.mxu0
    %v4803 = vadd.f32 %v4714, %v4802
    %4804 = vmatmul.bf16.gmra.mxu0 %v987
    %v4805 = vpop.f32.mrf.mxu0
    %v4806 = vadd.f32 %v4717, %v4805
    %v4807 = vpop.f32.mrf.mxu0
    %v4808 = vadd.f32 %v4719, %v4807
    %4809 = vmatmul.bf16.gmra.mxu0 %v995
    %v4810 = vpop.f32.mrf.mxu0
    %v4811 = vadd.f32 %v4722, %v4810
    %v4812 = vpop.f32.mrf.mxu0
    %v4813 = vadd.f32 %v4724, %v4812
    %4814 = vmatmul.bf16.gmra.mxu0 %v1003
    %v4815 = vpop.f32.mrf.mxu0
    %v4816 = vadd.f32 %v4727, %v4815
    %v4817 = vpop.f32.mrf.mxu0
    %v4818 = vadd.f32 %v4729, %v4817
    %4819 = vdwg.mxu0
    %4820 = vmatpush.bf16.msra.mxu0 %v2032
    %4821 = vmatpush.bf16.msra.mxu0 %v2028
    %4822 = vmatpush.bf16.msra.mxu0 %v2024
    %4823 = vmatpush.bf16.msra.mxu0 %v2020
    %4824 = vmatpush.bf16.msra.mxu0 %v2016
    %4825 = vmatpush.bf16.msra.mxu0 %v2012
    %4826 = vmatpush.bf16.msra.mxu0 %v2008
    %4827 = vmatpush.bf16.msra.mxu0 %v2004
    %4828 = vmatmul.bf16.gmra.mxu0 %v884
    %v4829 = vpop.f32.mrf.mxu0
    %v4830 = vadd.f32 %v4741, %v4829
    %v4831 = vpop.f32.mrf.mxu0
    %v4832 = vadd.f32 %v4743, %v4831
    %4833 = vmatmul.bf16.gmra.mxu0 %v892
    %v4834 = vpop.f32.mrf.mxu0
    %v4835 = vadd.f32 %v4746, %v4834
    %v4836 = vpop.f32.mrf.mxu0
    %v4837 = vadd.f32 %v4748, %v4836
    %4838 = vmatmul.bf16.gmra.mxu0 %v900
    %v4839 = vpop.f32.mrf.mxu0
    %v4840 = vadd.f32 %v4751, %v4839
    %v4841 = vpop.f32.mrf.mxu0
    %v4842 = vadd.f32 %v4753, %v4841
    %4843 = vmatmul.bf16.gmra.mxu0 %v908
    %v4844 = vpop.f32.mrf.mxu0
    %v4845 = vadd.f32 %v4756, %v4844
    %v4846 = vpop.f32.mrf.mxu0
    %v4847 = vadd.f32 %v4758, %v4846
    %4848 = vmatmul.bf16.gmra.mxu0 %v916
    %v4849 = vpop.f32.mrf.mxu0
    %v4850 = vadd.f32 %v4761, %v4849
    %v4851 = vpop.f32.mrf.mxu0
    %v4852 = vadd.f32 %v4763, %v4851
    %4853 = vmatmul.bf16.gmra.mxu0 %v924
    %v4854 = vpop.f32.mrf.mxu0
    %v4855 = vadd.f32 %v4766, %v4854
    %v4856 = vpop.f32.mrf.mxu0
    %v4857 = vadd.f32 %v4768, %v4856
    %4858 = vmatmul.bf16.gmra.mxu0 %v932
    %v4859 = vpop.f32.mrf.mxu0
    %v4860 = vadd.f32 %v4771, %v4859
    %v4861 = vpop.f32.mrf.mxu0
    %v4862 = vadd.f32 %v4773, %v4861
    %4863 = vmatmul.bf16.gmra.mxu0 %v940
    %v4864 = vpop.f32.mrf.mxu0
    %v4865 = vadd.f32 %v4776, %v4864
    %v4866 = vpop.f32.mrf.mxu0
    %v4867 = vadd.f32 %v4778, %v4866
    %4868 = vmatmul.bf16.gmra.mxu0 %v948
    %v4869 = vpop.f32.mrf.mxu0
    %v4870 = vadd.f32 %v4781, %v4869
    %v4871 = vpop.f32.mrf.mxu0
    %v4872 = vadd.f32 %v4783, %v4871
    %4873 = vmatmul.bf16.gmra.mxu0 %v956
    %v4874 = vpop.f32.mrf.mxu0
    %v4875 = vadd.f32 %v4786, %v4874
    %v4876 = vpop.f32.mrf.mxu0
    %v4877 = vadd.f32 %v4788, %v4876
    %4878 = vmatmul.bf16.gmra.mxu0 %v964
    %v4879 = vpop.f32.mrf.mxu0
    %v4880 = vadd.f32 %v4791, %v4879
    %v4881 = vpop.f32.mrf.mxu0
    %v4882 = vadd.f32 %v4793, %v4881
    %4883 = vmatmul.bf16.gmra.mxu0 %v972
    %v4884 = vpop.f32.mrf.mxu0
    %v4885 = vadd.f32 %v4796, %v4884
    %v4886 = vpop.f32.mrf.mxu0
    %v4887 = vadd.f32 %v4798, %v4886
    %4888 = vmatmul.bf16.gmra.mxu0 %v980
    %v4889 = vpop.f32.mrf.mxu0
    %v4890 = vadd.f32 %v4801, %v4889
    %v4891 = vpop.f32.mrf.mxu0
    %v4892 = vadd.f32 %v4803, %v4891
    %4893 = vmatmul.bf16.gmra.mxu0 %v988
    %v4894 = vpop.f32.mrf.mxu0
    %v4895 = vadd.f32 %v4806, %v4894
    %v4896 = vpop.f32.mrf.mxu0
    %v4897 = vadd.f32 %v4808, %v4896
    %4898 = vmatmul.bf16.gmra.mxu0 %v996
    %v4899 = vpop.f32.mrf.mxu0
    %v4900 = vadd.f32 %v4811, %v4899
    %v4901 = vpop.f32.mrf.mxu0
    %v4902 = vadd.f32 %v4813, %v4901
    %4903 = vmatmul.bf16.gmra.mxu0 %v1004
    %v4904 = vpop.f32.mrf.mxu0
    %v4905 = vadd.f32 %v4816, %v4904
    %v4906 = vpop.f32.mrf.mxu0
    %v4907 = vadd.f32 %v4818, %v4906
    %4908 = vdwg.mxu0
    %4909 = vmatpush.bf16.msra.mxu0 %v2064
    %4910 = vmatpush.bf16.msra.mxu0 %v2060
    %4911 = vmatpush.bf16.msra.mxu0 %v2056
    %4912 = vmatpush.bf16.msra.mxu0 %v2052
    %4913 = vmatpush.bf16.msra.mxu0 %v2048
    %4914 = vmatpush.bf16.msra.mxu0 %v2044
    %4915 = vmatpush.bf16.msra.mxu0 %v2040
    %4916 = vmatpush.bf16.msra.mxu0 %v2036
    %4917 = vmatmul.bf16.gmra.mxu0 %v885
    %v4918 = vpop.f32.mrf.mxu0
    %v4919 = vadd.f32 %v4830, %v4918
    %v4920 = vpop.f32.mrf.mxu0
    %v4921 = vadd.f32 %v4832, %v4920
    %4922 = vmatmul.bf16.gmra.mxu0 %v893
    %v4923 = vpop.f32.mrf.mxu0
    %v4924 = vadd.f32 %v4835, %v4923
    %v4925 = vpop.f32.mrf.mxu0
    %v4926 = vadd.f32 %v4837, %v4925
    %4927 = vmatmul.bf16.gmra.mxu0 %v901
    %v4928 = vpop.f32.mrf.mxu0
    %v4929 = vadd.f32 %v4840, %v4928
    %v4930 = vpop.f32.mrf.mxu0
    %v4931 = vadd.f32 %v4842, %v4930
    %4932 = vmatmul.bf16.gmra.mxu0 %v909
    %v4933 = vpop.f32.mrf.mxu0
    %v4934 = vadd.f32 %v4845, %v4933
    %v4935 = vpop.f32.mrf.mxu0
    %v4936 = vadd.f32 %v4847, %v4935
    %4937 = vmatmul.bf16.gmra.mxu0 %v917
    %v4938 = vpop.f32.mrf.mxu0
    %v4939 = vadd.f32 %v4850, %v4938
    %v4940 = vpop.f32.mrf.mxu0
    %v4941 = vadd.f32 %v4852, %v4940
    %4942 = vmatmul.bf16.gmra.mxu0 %v925
    %v4943 = vpop.f32.mrf.mxu0
    %v4944 = vadd.f32 %v4855, %v4943
    %v4945 = vpop.f32.mrf.mxu0
    %v4946 = vadd.f32 %v4857, %v4945
    %4947 = vmatmul.bf16.gmra.mxu0 %v933
    %v4948 = vpop.f32.mrf.mxu0
    %v4949 = vadd.f32 %v4860, %v4948
    %v4950 = vpop.f32.mrf.mxu0
    %v4951 = vadd.f32 %v4862, %v4950
    %4952 = vmatmul.bf16.gmra.mxu0 %v941
    %v4953 = vpop.f32.mrf.mxu0
    %v4954 = vadd.f32 %v4865, %v4953
    %v4955 = vpop.f32.mrf.mxu0
    %v4956 = vadd.f32 %v4867, %v4955
    %4957 = vmatmul.bf16.gmra.mxu0 %v949
    %v4958 = vpop.f32.mrf.mxu0
    %v4959 = vadd.f32 %v4870, %v4958
    %v4960 = vpop.f32.mrf.mxu0
    %v4961 = vadd.f32 %v4872, %v4960
    %4962 = vmatmul.bf16.gmra.mxu0 %v957
    %v4963 = vpop.f32.mrf.mxu0
    %v4964 = vadd.f32 %v4875, %v4963
    %v4965 = vpop.f32.mrf.mxu0
    %v4966 = vadd.f32 %v4877, %v4965
    %4967 = vmatmul.bf16.gmra.mxu0 %v965
    %v4968 = vpop.f32.mrf.mxu0
    %v4969 = vadd.f32 %v4880, %v4968
    %v4970 = vpop.f32.mrf.mxu0
    %v4971 = vadd.f32 %v4882, %v4970
    %4972 = vmatmul.bf16.gmra.mxu0 %v973
    %v4973 = vpop.f32.mrf.mxu0
    %v4974 = vadd.f32 %v4885, %v4973
    %v4975 = vpop.f32.mrf.mxu0
    %v4976 = vadd.f32 %v4887, %v4975
    %4977 = vmatmul.bf16.gmra.mxu0 %v981
    %v4978 = vpop.f32.mrf.mxu0
    %v4979 = vadd.f32 %v4890, %v4978
    %v4980 = vpop.f32.mrf.mxu0
    %v4981 = vadd.f32 %v4892, %v4980
    %4982 = vmatmul.bf16.gmra.mxu0 %v989
    %v4983 = vpop.f32.mrf.mxu0
    %v4984 = vadd.f32 %v4895, %v4983
    %v4985 = vpop.f32.mrf.mxu0
    %v4986 = vadd.f32 %v4897, %v4985
    %4987 = vmatmul.bf16.gmra.mxu0 %v997
    %v4988 = vpop.f32.mrf.mxu0
    %v4989 = vadd.f32 %v4900, %v4988
    %v4990 = vpop.f32.mrf.mxu0
    %v4991 = vadd.f32 %v4902, %v4990
    %4992 = vmatmul.bf16.gmra.mxu0 %v1005
    %v4993 = vpop.f32.mrf.mxu0
    %v4994 = vadd.f32 %v4905, %v4993
    %v4995 = vpop.f32.mrf.mxu0
    %v4996 = vadd.f32 %v4907, %v4995
    %4997 = vdwg.mxu0
    %4998 = vmatpush.bf16.msra.mxu0 %v2096
    %4999 = vmatpush.bf16.msra.mxu0 %v2092
    %5000 = vmatpush.bf16.msra.mxu0 %v2088
    %5001 = vmatpush.bf16.msra.mxu0 %v2084
    %5002 = vmatpush.bf16.msra.mxu0 %v2080
    %5003 = vmatpush.bf16.msra.mxu0 %v2076
    %5004 = vmatpush.bf16.msra.mxu0 %v2072
    %5005 = vmatpush.bf16.msra.mxu0 %v2068
    %5006 = vmatmul.bf16.gmra.mxu0 %v886
    %v5007 = vpop.f32.mrf.mxu0
    %v5008 = vadd.f32 %v4919, %v5007
    %v5009 = vpop.f32.mrf.mxu0
    %v5010 = vadd.f32 %v4921, %v5009
    %5011 = vmatmul.bf16.gmra.mxu0 %v894
    %v5012 = vpop.f32.mrf.mxu0
    %v5013 = vadd.f32 %v4924, %v5012
    %v5014 = vpop.f32.mrf.mxu0
    %v5015 = vadd.f32 %v4926, %v5014
    %5016 = vmatmul.bf16.gmra.mxu0 %v902
    %v5017 = vpop.f32.mrf.mxu0
    %v5018 = vadd.f32 %v4929, %v5017
    %v5019 = vpop.f32.mrf.mxu0
    %v5020 = vadd.f32 %v4931, %v5019
    %5021 = vmatmul.bf16.gmra.mxu0 %v910
    %v5022 = vpop.f32.mrf.mxu0
    %v5023 = vadd.f32 %v4934, %v5022
    %v5024 = vpop.f32.mrf.mxu0
    %v5025 = vadd.f32 %v4936, %v5024
    %5026 = vmatmul.bf16.gmra.mxu0 %v918
    %v5027 = vpop.f32.mrf.mxu0
    %v5028 = vadd.f32 %v4939, %v5027
    %v5029 = vpop.f32.mrf.mxu0
    %v5030 = vadd.f32 %v4941, %v5029
    %5031 = vmatmul.bf16.gmra.mxu0 %v926
    %v5032 = vpop.f32.mrf.mxu0
    %v5033 = vadd.f32 %v4944, %v5032
    %v5034 = vpop.f32.mrf.mxu0
    %v5035 = vadd.f32 %v4946, %v5034
    %5036 = vmatmul.bf16.gmra.mxu0 %v934
    %v5037 = vpop.f32.mrf.mxu0
    %v5038 = vadd.f32 %v4949, %v5037
    %v5039 = vpop.f32.mrf.mxu0
    %v5040 = vadd.f32 %v4951, %v5039
    %5041 = vmatmul.bf16.gmra.mxu0 %v942
    %v5042 = vpop.f32.mrf.mxu0
    %v5043 = vadd.f32 %v4954, %v5042
    %v5044 = vpop.f32.mrf.mxu0
    %v5045 = vadd.f32 %v4956, %v5044
    %5046 = vmatmul.bf16.gmra.mxu0 %v950
    %v5047 = vpop.f32.mrf.mxu0
    %v5048 = vadd.f32 %v4959, %v5047
    %v5049 = vpop.f32.mrf.mxu0
    %v5050 = vadd.f32 %v4961, %v5049
    %5051 = vmatmul.bf16.gmra.mxu0 %v958
    %v5052 = vpop.f32.mrf.mxu0
    %v5053 = vadd.f32 %v4964, %v5052
    %v5054 = vpop.f32.mrf.mxu0
    %v5055 = vadd.f32 %v4966, %v5054
    %5056 = vmatmul.bf16.gmra.mxu0 %v966
    %v5057 = vpop.f32.mrf.mxu0
    %v5058 = vadd.f32 %v4969, %v5057
    %v5059 = vpop.f32.mrf.mxu0
    %v5060 = vadd.f32 %v4971, %v5059
    %5061 = vmatmul.bf16.gmra.mxu0 %v974
    %v5062 = vpop.f32.mrf.mxu0
    %v5063 = vadd.f32 %v4974, %v5062
    %v5064 = vpop.f32.mrf.mxu0
    %v5065 = vadd.f32 %v4976, %v5064
    %5066 = vmatmul.bf16.gmra.mxu0 %v982
    %v5067 = vpop.f32.mrf.mxu0
    %v5068 = vadd.f32 %v4979, %v5067
    %v5069 = vpop.f32.mrf.mxu0
    %v5070 = vadd.f32 %v4981, %v5069
    %5071 = vmatmul.bf16.gmra.mxu0 %v990
    %v5072 = vpop.f32.mrf.mxu0
    %v5073 = vadd.f32 %v4984, %v5072
    %v5074 = vpop.f32.mrf.mxu0
    %v5075 = vadd.f32 %v4986, %v5074
    %5076 = vmatmul.bf16.gmra.mxu0 %v998
    %v5077 = vpop.f32.mrf.mxu0
    %v5078 = vadd.f32 %v4989, %v5077
    %v5079 = vpop.f32.mrf.mxu0
    %v5080 = vadd.f32 %v4991, %v5079
    %5081 = vmatmul.bf16.gmra.mxu0 %v1006
    %v5082 = vpop.f32.mrf.mxu0
    %v5083 = vadd.f32 %v4994, %v5082
    %v5084 = vpop.f32.mrf.mxu0
    %v5085 = vadd.f32 %v4996, %v5084
    %5086 = vdwg.mxu0
    %5087 = vmatpush.bf16.msra.mxu0 %v2128
    %5088 = vmatpush.bf16.msra.mxu0 %v2124
    %5089 = vmatpush.bf16.msra.mxu0 %v2120
    %5090 = vmatpush.bf16.msra.mxu0 %v2116
    %5091 = vmatpush.bf16.msra.mxu0 %v2112
    %5092 = vmatpush.bf16.msra.mxu0 %v2108
    %5093 = vmatpush.bf16.msra.mxu0 %v2104
    %5094 = vmatpush.bf16.msra.mxu0 %v2100
    %5095 = vmatmul.bf16.gmra.mxu0 %v887
    %v5096 = vpop.f32.mrf.mxu0
    %v5097 = vadd.f32 %v5008, %v5096
    %v5098 = vpop.f32.mrf.mxu0
    %v5099 = vadd.f32 %v5010, %v5098
    %5100 = vmatmul.bf16.gmra.mxu0 %v895
    %v5101 = vpop.f32.mrf.mxu0
    %v5102 = vadd.f32 %v5013, %v5101
    %v5103 = vpop.f32.mrf.mxu0
    %v5104 = vadd.f32 %v5015, %v5103
    %5105 = vmatmul.bf16.gmra.mxu0 %v903
    %v5106 = vpop.f32.mrf.mxu0
    %v5107 = vadd.f32 %v5018, %v5106
    %v5108 = vpop.f32.mrf.mxu0
    %v5109 = vadd.f32 %v5020, %v5108
    %5110 = vmatmul.bf16.gmra.mxu0 %v911
    %v5111 = vpop.f32.mrf.mxu0
    %v5112 = vadd.f32 %v5023, %v5111
    %v5113 = vpop.f32.mrf.mxu0
    %v5114 = vadd.f32 %v5025, %v5113
    %5115 = vmatmul.bf16.gmra.mxu0 %v919
    %v5116 = vpop.f32.mrf.mxu0
    %v5117 = vadd.f32 %v5028, %v5116
    %v5118 = vpop.f32.mrf.mxu0
    %v5119 = vadd.f32 %v5030, %v5118
    %5120 = vmatmul.bf16.gmra.mxu0 %v927
    %v5121 = vpop.f32.mrf.mxu0
    %v5122 = vadd.f32 %v5033, %v5121
    %v5123 = vpop.f32.mrf.mxu0
    %v5124 = vadd.f32 %v5035, %v5123
    %5125 = vmatmul.bf16.gmra.mxu0 %v935
    %v5126 = vpop.f32.mrf.mxu0
    %v5127 = vadd.f32 %v5038, %v5126
    %v5128 = vpop.f32.mrf.mxu0
    %v5129 = vadd.f32 %v5040, %v5128
    %5130 = vmatmul.bf16.gmra.mxu0 %v943
    %v5131 = vpop.f32.mrf.mxu0
    %v5132 = vadd.f32 %v5043, %v5131
    %v5133 = vpop.f32.mrf.mxu0
    %v5134 = vadd.f32 %v5045, %v5133
    %5135 = vmatmul.bf16.gmra.mxu0 %v951
    %v5136 = vpop.f32.mrf.mxu0
    %v5137 = vadd.f32 %v5048, %v5136
    %v5138 = vpop.f32.mrf.mxu0
    %v5139 = vadd.f32 %v5050, %v5138
    %5140 = vmatmul.bf16.gmra.mxu0 %v959
    %v5141 = vpop.f32.mrf.mxu0
    %v5142 = vadd.f32 %v5053, %v5141
    %v5143 = vpop.f32.mrf.mxu0
    %v5144 = vadd.f32 %v5055, %v5143
    %5145 = vmatmul.bf16.gmra.mxu0 %v967
    %v5146 = vpop.f32.mrf.mxu0
    %v5147 = vadd.f32 %v5058, %v5146
    %v5148 = vpop.f32.mrf.mxu0
    %v5149 = vadd.f32 %v5060, %v5148
    %5150 = vmatmul.bf16.gmra.mxu0 %v975
    %v5151 = vpop.f32.mrf.mxu0
    %v5152 = vadd.f32 %v5063, %v5151
    %v5153 = vpop.f32.mrf.mxu0
    %v5154 = vadd.f32 %v5065, %v5153
    %5155 = vmatmul.bf16.gmra.mxu0 %v983
    %v5156 = vpop.f32.mrf.mxu0
    %v5157 = vadd.f32 %v5068, %v5156
    %v5158 = vpop.f32.mrf.mxu0
    %v5159 = vadd.f32 %v5070, %v5158
    %5160 = vmatmul.bf16.gmra.mxu0 %v991
    %v5161 = vpop.f32.mrf.mxu0
    %v5162 = vadd.f32 %v5073, %v5161
    %v5163 = vpop.f32.mrf.mxu0
    %v5164 = vadd.f32 %v5075, %v5163
    %5165 = vmatmul.bf16.gmra.mxu0 %v999
    %v5166 = vpop.f32.mrf.mxu0
    %v5167 = vadd.f32 %v5078, %v5166
    %v5168 = vpop.f32.mrf.mxu0
    %v5169 = vadd.f32 %v5080, %v5168
    %5170 = vmatmul.bf16.gmra.mxu0 %v1007
    %v5171 = vpop.f32.mrf.mxu0
    %v5172 = vadd.f32 %v5083, %v5171
    %v5173 = vpop.f32.mrf.mxu0
    %v5174 = vadd.f32 %v5085, %v5173
    %5175 = vdwg.mxu0
    %5176 = vmatpush.bf16.msra.mxu0 %v2160
    %5177 = vmatpush.bf16.msra.mxu0 %v2156
    %5178 = vmatpush.bf16.msra.mxu0 %v2152
    %5179 = vmatpush.bf16.msra.mxu0 %v2148
    %5180 = vmatpush.bf16.msra.mxu0 %v2144
    %5181 = vmatpush.bf16.msra.mxu0 %v2140
    %5182 = vmatpush.bf16.msra.mxu0 %v2136
    %5183 = vmatpush.bf16.msra.mxu0 %v2132
    %5184 = vmatmul.bf16.gmra.mxu0 %v888
    %v5185 = vpop.f32.mrf.mxu0
    %v5186 = vadd.f32 %v5097, %v5185
    %v5187 = vpop.f32.mrf.mxu0
    %v5188 = vadd.f32 %v5099, %v5187
    %5189 = vmatmul.bf16.gmra.mxu0 %v896
    %v5190 = vpop.f32.mrf.mxu0
    %v5191 = vadd.f32 %v5102, %v5190
    %v5192 = vpop.f32.mrf.mxu0
    %v5193 = vadd.f32 %v5104, %v5192
    %5194 = vmatmul.bf16.gmra.mxu0 %v904
    %v5195 = vpop.f32.mrf.mxu0
    %v5196 = vadd.f32 %v5107, %v5195
    %v5197 = vpop.f32.mrf.mxu0
    %v5198 = vadd.f32 %v5109, %v5197
    %5199 = vmatmul.bf16.gmra.mxu0 %v912
    %v5200 = vpop.f32.mrf.mxu0
    %v5201 = vadd.f32 %v5112, %v5200
    %v5202 = vpop.f32.mrf.mxu0
    %v5203 = vadd.f32 %v5114, %v5202
    %5204 = vmatmul.bf16.gmra.mxu0 %v920
    %v5205 = vpop.f32.mrf.mxu0
    %v5206 = vadd.f32 %v5117, %v5205
    %v5207 = vpop.f32.mrf.mxu0
    %v5208 = vadd.f32 %v5119, %v5207
    %5209 = vmatmul.bf16.gmra.mxu0 %v928
    %v5210 = vpop.f32.mrf.mxu0
    %v5211 = vadd.f32 %v5122, %v5210
    %v5212 = vpop.f32.mrf.mxu0
    %v5213 = vadd.f32 %v5124, %v5212
    %5214 = vmatmul.bf16.gmra.mxu0 %v936
    %v5215 = vpop.f32.mrf.mxu0
    %v5216 = vadd.f32 %v5127, %v5215
    %v5217 = vpop.f32.mrf.mxu0
    %v5218 = vadd.f32 %v5129, %v5217
    %5219 = vmatmul.bf16.gmra.mxu0 %v944
    %v5220 = vpop.f32.mrf.mxu0
    %v5221 = vadd.f32 %v5132, %v5220
    %v5222 = vpop.f32.mrf.mxu0
    %v5223 = vadd.f32 %v5134, %v5222
    %5224 = vmatmul.bf16.gmra.mxu0 %v952
    %v5225 = vpop.f32.mrf.mxu0
    %v5226 = vadd.f32 %v5137, %v5225
    %v5227 = vpop.f32.mrf.mxu0
    %v5228 = vadd.f32 %v5139, %v5227
    %5229 = vmatmul.bf16.gmra.mxu0 %v960
    %v5230 = vpop.f32.mrf.mxu0
    %v5231 = vadd.f32 %v5142, %v5230
    %v5232 = vpop.f32.mrf.mxu0
    %v5233 = vadd.f32 %v5144, %v5232
    %5234 = vmatmul.bf16.gmra.mxu0 %v968
    %v5235 = vpop.f32.mrf.mxu0
    %v5236 = vadd.f32 %v5147, %v5235
    %v5237 = vpop.f32.mrf.mxu0
    %v5238 = vadd.f32 %v5149, %v5237
    %5239 = vmatmul.bf16.gmra.mxu0 %v976
    %v5240 = vpop.f32.mrf.mxu0
    %v5241 = vadd.f32 %v5152, %v5240
    %v5242 = vpop.f32.mrf.mxu0
    %v5243 = vadd.f32 %v5154, %v5242
    %5244 = vmatmul.bf16.gmra.mxu0 %v984
    %v5245 = vpop.f32.mrf.mxu0
    %v5246 = vadd.f32 %v5157, %v5245
    %v5247 = vpop.f32.mrf.mxu0
    %v5248 = vadd.f32 %v5159, %v5247
    %5249 = vmatmul.bf16.gmra.mxu0 %v992
    %v5250 = vpop.f32.mrf.mxu0
    %v5251 = vadd.f32 %v5162, %v5250
    %v5252 = vpop.f32.mrf.mxu0
    %v5253 = vadd.f32 %v5164, %v5252
    %5254 = vmatmul.bf16.gmra.mxu0 %v1000
    %v5255 = vpop.f32.mrf.mxu0
    %v5256 = vadd.f32 %v5167, %v5255
    %v5257 = vpop.f32.mrf.mxu0
    %v5258 = vadd.f32 %v5169, %v5257
    %5259 = vmatmul.bf16.gmra.mxu0 %v1008
    %v5260 = vpop.f32.mrf.mxu0
    %v5261 = vadd.f32 %v5172, %v5260
    %v5262 = vpop.f32.mrf.mxu0
    %v5263 = vadd.f32 %v5174, %v5262
    %5264 = vdwg.mxu0
    %v5265 = vmax.f32 %v3050, 0.0
    %v5266 = vmax.f32 %v3762, 0.0
    %v5267 = vmax.f32 %v4474, 0.0
    %v5268 = vmax.f32 %v5186, 0.0
    %v5269 = vmax.f32 %v3052, 0.0
    %v5270 = vmax.f32 %v3764, 0.0
    %v5271 = vmax.f32 %v4476, 0.0
    %v5272 = vmax.f32 %v5188, 0.0
    %v5273 = vmax.f32 %v3055, 0.0
    %v5274 = vmax.f32 %v3767, 0.0
    %v5275 = vmax.f32 %v4479, 0.0
    %v5276 = vmax.f32 %v5191, 0.0
    %v5277 = vmax.f32 %v3057, 0.0
    %v5278 = vmax.f32 %v3769, 0.0
    %v5279 = vmax.f32 %v4481, 0.0
    %v5280 = vmax.f32 %v5193, 0.0
    %v5281 = vmax.f32 %v3060, 0.0
    %v5282 = vmax.f32 %v3772, 0.0
    %v5283 = vmax.f32 %v4484, 0.0
    %v5284 = vmax.f32 %v5196, 0.0
    %v5285 = vmax.f32 %v3062, 0.0
    %v5286 = vmax.f32 %v3774, 0.0
    %v5287 = vmax.f32 %v4486, 0.0
    %v5288 = vmax.f32 %v5198, 0.0
    %v5289 = vmax.f32 %v3065, 0.0
    %v5290 = vmax.f32 %v3777, 0.0
    %v5291 = vmax.f32 %v4489, 0.0
    %v5292 = vmax.f32 %v5201, 0.0
    %v5293 = vmax.f32 %v3067, 0.0
    %v5294 = vmax.f32 %v3779, 0.0
    %v5295 = vmax.f32 %v4491, 0.0
    %v5296 = vmax.f32 %v5203, 0.0
    %v5297 = vmax.f32 %v3070, 0.0
    %v5298 = vmax.f32 %v3782, 0.0
    %v5299 = vmax.f32 %v4494, 0.0
    %v5300 = vmax.f32 %v5206, 0.0
    %v5301 = vmax.f32 %v3072, 0.0
    %v5302 = vmax.f32 %v3784, 0.0
    %v5303 = vmax.f32 %v4496, 0.0
    %v5304 = vmax.f32 %v5208, 0.0
    %v5305 = vmax.f32 %v3075, 0.0
    %v5306 = vmax.f32 %v3787, 0.0
    %v5307 = vmax.f32 %v4499, 0.0
    %v5308 = vmax.f32 %v5211, 0.0
    %v5309 = vmax.f32 %v3077, 0.0
    %v5310 = vmax.f32 %v3789, 0.0
    %v5311 = vmax.f32 %v4501, 0.0
    %v5312 = vmax.f32 %v5213, 0.0
    %v5313 = vmax.f32 %v3080, 0.0
    %v5314 = vmax.f32 %v3792, 0.0
    %v5315 = vmax.f32 %v4504, 0.0
    %v5316 = vmax.f32 %v5216, 0.0
    %v5317 = vmax.f32 %v3082, 0.0
    %v5318 = vmax.f32 %v3794, 0.0
    %v5319 = vmax.f32 %v4506, 0.0
    %v5320 = vmax.f32 %v5218, 0.0
    %v5321 = vmax.f32 %v3085, 0.0
    %v5322 = vmax.f32 %v3797, 0.0
    %v5323 = vmax.f32 %v4509, 0.0
    %v5324 = vmax.f32 %v5221, 0.0
    %v5325 = vmax.f32 %v3087, 0.0
    %v5326 = vmax.f32 %v3799, 0.0
    %v5327 = vmax.f32 %v4511, 0.0
    %v5328 = vmax.f32 %v5223, 0.0
    %v5329 = vmax.f32 %v3090, 0.0
    %v5330 = vmax.f32 %v3802, 0.0
    %v5331 = vmax.f32 %v4514, 0.0
    %v5332 = vmax.f32 %v5226, 0.0
    %v5333 = vmax.f32 %v3092, 0.0
    %v5334 = vmax.f32 %v3804, 0.0
    %v5335 = vmax.f32 %v4516, 0.0
    %v5336 = vmax.f32 %v5228, 0.0
    %v5337 = vmax.f32 %v3095, 0.0
    %v5338 = vmax.f32 %v3807, 0.0
    %v5339 = vmax.f32 %v4519, 0.0
    %v5340 = vmax.f32 %v5231, 0.0
    %v5341 = vmax.f32 %v3097, 0.0
    %v5342 = vmax.f32 %v3809, 0.0
    %v5343 = vmax.f32 %v4521, 0.0
    %v5344 = vmax.f32 %v5233, 0.0
    %v5345 = vmax.f32 %v3100, 0.0
    %v5346 = vmax.f32 %v3812, 0.0
    %v5347 = vmax.f32 %v4524, 0.0
    %v5348 = vmax.f32 %v5236, 0.0
    %v5349 = vmax.f32 %v3102, 0.0
    %v5350 = vmax.f32 %v3814, 0.0
    %v5351 = vmax.f32 %v4526, 0.0
    %v5352 = vmax.f32 %v5238, 0.0
    %v5353 = vmax.f32 %v3105, 0.0
    %v5354 = vmax.f32 %v3817, 0.0
    %v5355 = vmax.f32 %v4529, 0.0
    %v5356 = vmax.f32 %v5241, 0.0
    %v5357 = vmax.f32 %v3107, 0.0
    %v5358 = vmax.f32 %v3819, 0.0
    %v5359 = vmax.f32 %v4531, 0.0
    %v5360 = vmax.f32 %v5243, 0.0
    %v5361 = vmax.f32 %v3110, 0.0
    %v5362 = vmax.f32 %v3822, 0.0
    %v5363 = vmax.f32 %v4534, 0.0
    %v5364 = vmax.f32 %v5246, 0.0
    %v5365 = vmax.f32 %v3112, 0.0
    %v5366 = vmax.f32 %v3824, 0.0
    %v5367 = vmax.f32 %v4536, 0.0
    %v5368 = vmax.f32 %v5248, 0.0
    %v5369 = vmax.f32 %v3115, 0.0
    %v5370 = vmax.f32 %v3827, 0.0
    %v5371 = vmax.f32 %v4539, 0.0
    %v5372 = vmax.f32 %v5251, 0.0
    %v5373 = vmax.f32 %v3117, 0.0
    %v5374 = vmax.f32 %v3829, 0.0
    %v5375 = vmax.f32 %v4541, 0.0
    %v5376 = vmax.f32 %v5253, 0.0
    %v5377 = vmax.f32 %v3120, 0.0
    %v5378 = vmax.f32 %v3832, 0.0
    %v5379 = vmax.f32 %v4544, 0.0
    %v5380 = vmax.f32 %v5256, 0.0
    %v5381 = vmax.f32 %v3122, 0.0
    %v5382 = vmax.f32 %v3834, 0.0
    %v5383 = vmax.f32 %v4546, 0.0
    %v5384 = vmax.f32 %v5258, 0.0
    %v5385 = vmax.f32 %v3125, 0.0
    %v5386 = vmax.f32 %v3837, 0.0
    %v5387 = vmax.f32 %v4549, 0.0
    %v5388 = vmax.f32 %v5261, 0.0
    %v5389 = vmax.f32 %v3127, 0.0
    %v5390 = vmax.f32 %v3839, 0.0
    %v5391 = vmax.f32 %v4551, 0.0
    %v5392 = vmax.f32 %v5263, 0.0
    %v5393 = vpack.c.bf16 %v5269, %v5265
    %v5394 = vpack.c.bf16 %v5270, %v5266
    %v5395 = vpack.c.bf16 %v5271, %v5267
    %v5396 = vpack.c.bf16 %v5272, %v5268
    %v5397 = vpack.c.bf16 %v5277, %v5273
    %v5398 = vpack.c.bf16 %v5278, %v5274
    %v5399 = vpack.c.bf16 %v5279, %v5275
    %v5400 = vpack.c.bf16 %v5280, %v5276
    %v5401 = vpack.c.bf16 %v5285, %v5281
    %v5402 = vpack.c.bf16 %v5286, %v5282
    %v5403 = vpack.c.bf16 %v5287, %v5283
    %v5404 = vpack.c.bf16 %v5288, %v5284
    %v5405 = vpack.c.bf16 %v5293, %v5289
    %v5406 = vpack.c.bf16 %v5294, %v5290
    %v5407 = vpack.c.bf16 %v5295, %v5291
    %v5408 = vpack.c.bf16 %v5296, %v5292
    %v5409 = vpack.c.bf16 %v5301, %v5297
    %v5410 = vpack.c.bf16 %v5302, %v5298
    %v5411 = vpack.c.bf16 %v5303, %v5299
    %v5412 = vpack.c.bf16 %v5304, %v5300
    %v5413 = vpack.c.bf16 %v5309, %v5305
    %v5414 = vpack.c.bf16 %v5310, %v5306
    %v5415 = vpack.c.bf16 %v5311, %v5307
    %v5416 = vpack.c.bf16 %v5312, %v5308
    %v5417 = vpack.c.bf16 %v5317, %v5313
    %v5418 = vpack.c.bf16 %v5318, %v5314
    %v5419 = vpack.c.bf16 %v5319, %v5315
    %v5420 = vpack.c.bf16 %v5320, %v5316
    %v5421 = vpack.c.bf16 %v5325, %v5321
    %v5422 = vpack.c.bf16 %v5326, %v5322
    %v5423 = vpack.c.bf16 %v5327, %v5323
    %v5424 = vpack.c.bf16 %v5328, %v5324
    %v5425 = vpack.c.bf16 %v5333, %v5329
    %v5426 = vpack.c.bf16 %v5334, %v5330
    %v5427 = vpack.c.bf16 %v5335, %v5331
    %v5428 = vpack.c.bf16 %v5336, %v5332
    %v5429 = vpack.c.bf16 %v5341, %v5337
    %v5430 = vpack.c.bf16 %v5342, %v5338
    %v5431 = vpack.c.bf16 %v5343, %v5339
    %v5432 = vpack.c.bf16 %v5344, %v5340
    %v5433 = vpack.c.bf16 %v5349, %v5345
    %v5434 = vpack.c.bf16 %v5350, %v5346
    %v5435 = vpack.c.bf16 %v5351, %v5347
    %v5436 = vpack.c.bf16 %v5352, %v5348
    %v5437 = vpack.c.bf16 %v5357, %v5353
    %v5438 = vpack.c.bf16 %v5358, %v5354
    %v5439 = vpack.c.bf16 %v5359, %v5355
    %v5440 = vpack.c.bf16 %v5360, %v5356
    %v5441 = vpack.c.bf16 %v5365, %v5361
    %v5442 = vpack.c.bf16 %v5366, %v5362
    %v5443 = vpack.c.bf16 %v5367, %v5363
    %v5444 = vpack.c.bf16 %v5368, %v5364
    %v5445 = vpack.c.bf16 %v5373, %v5369
    %v5446 = vpack.c.bf16 %v5374, %v5370
    %v5447 = vpack.c.bf16 %v5375, %v5371
    %v5448 = vpack.c.bf16 %v5376, %v5372
    %v5449 = vpack.c.bf16 %v5381, %v5377
    %v5450 = vpack.c.bf16 %v5382, %v5378
    %v5451 = vpack.c.bf16 %v5383, %v5379
    %v5452 = vpack.c.bf16 %v5384, %v5380
    %v5453 = vpack.c.bf16 %v5389, %v5385
    %v5454 = vpack.c.bf16 %v5390, %v5386
    %v5455 = vpack.c.bf16 %v5391, %v5387
    %v5456 = vpack.c.bf16 %v5392, %v5388
    %v5457 = vld [vmem:[#allocation7] sm:$0xff]
    %v5458 = vld [vmem:[#allocation7 + $0x8] sm:$0xff]
    %v5459 = vld [vmem:[#allocation7 + $0x10] sm:$0xff]
    %v5460 = vld [vmem:[#allocation7 + $0x18] sm:$0xff]
    %v5461 = vld [vmem:[#allocation7 + $0x20] sm:$0xff]
    %v5462 = vld [vmem:[#allocation7 + $0x28] sm:$0xff]
    %v5463 = vld [vmem:[#allocation7 + $0x30] sm:$0xff]
    %v5464 = vld [vmem:[#allocation7 + $0x38] sm:$0xff]
    %v5465 = vld [vmem:[#allocation7 + $0x40] sm:$0xff]
    %v5466 = vld [vmem:[#allocation7 + $0x48] sm:$0xff]
    %v5467 = vld [vmem:[#allocation7 + $0x50] sm:$0xff]
    %v5468 = vld [vmem:[#allocation7 + $0x58] sm:$0xff]
    %v5469 = vld [vmem:[#allocation7 + $0x60] sm:$0xff]
    %v5470 = vld [vmem:[#allocation7 + $0x68] sm:$0xff]
    %v5471 = vld [vmem:[#allocation7 + $0x70] sm:$0xff]
    %v5472 = vld [vmem:[#allocation7 + $0x78] sm:$0xff]
    %v5473 = vld [vmem:[#allocation7 + $0x80] sm:$0xff]
    %v5474 = vld [vmem:[#allocation7 + $0x88] sm:$0xff]
    %v5475 = vld [vmem:[#allocation7 + $0x90] sm:$0xff]
    %v5476 = vld [vmem:[#allocation7 + $0x98] sm:$0xff]
    %v5477 = vld [vmem:[#allocation7 + $0xa0] sm:$0xff]
    %v5478 = vld [vmem:[#allocation7 + $0xa8] sm:$0xff]
    %v5479 = vld [vmem:[#allocation7 + $0xb0] sm:$0xff]
    %v5480 = vld [vmem:[#allocation7 + $0xb8] sm:$0xff]
    %v5481 = vld [vmem:[#allocation7 + $0xc0] sm:$0xff]
    %v5482 = vld [vmem:[#allocation7 + $0xc8] sm:$0xff]
    %v5483 = vld [vmem:[#allocation7 + $0xd0] sm:$0xff]
    %v5484 = vld [vmem:[#allocation7 + $0xd8] sm:$0xff]
    %v5485 = vld [vmem:[#allocation7 + $0xe0] sm:$0xff]
    %v5486 = vld [vmem:[#allocation7 + $0xe8] sm:$0xff]
    %v5487 = vld [vmem:[#allocation7 + $0xf0] sm:$0xff]
    %v5488 = vld [vmem:[#allocation7 + $0xf8] sm:$0xff]
    %v5489 = vld [vmem:[#allocation7 + $0x100] sm:$0xff]
    %v5490 = vld [vmem:[#allocation7 + $0x108] sm:$0xff]
    %v5491 = vld [vmem:[#allocation7 + $0x110] sm:$0xff]
    %v5492 = vld [vmem:[#allocation7 + $0x118] sm:$0xff]
    %v5493 = vld [vmem:[#allocation7 + $0x120] sm:$0xff]
    %v5494 = vld [vmem:[#allocation7 + $0x128] sm:$0xff]
    %v5495 = vld [vmem:[#allocation7 + $0x130] sm:$0xff]
    %v5496 = vld [vmem:[#allocation7 + $0x138] sm:$0xff]
    %v5497 = vld [vmem:[#allocation7 + $0x140] sm:$0xff]
    %v5498 = vld [vmem:[#allocation7 + $0x148] sm:$0xff]
    %v5499 = vld [vmem:[#allocation7 + $0x150] sm:$0xff]
    %v5500 = vld [vmem:[#allocation7 + $0x158] sm:$0xff]
    %v5501 = vld [vmem:[#allocation7 + $0x160] sm:$0xff]
    %v5502 = vld [vmem:[#allocation7 + $0x168] sm:$0xff]
    %v5503 = vld [vmem:[#allocation7 + $0x170] sm:$0xff]
    %v5504 = vld [vmem:[#allocation7 + $0x178] sm:$0xff]
    %v5505 = vld [vmem:[#allocation7 + $0x180] sm:$0xff]
    %v5506 = vld [vmem:[#allocation7 + $0x188] sm:$0xff]
    %v5507 = vld [vmem:[#allocation7 + $0x190] sm:$0xff]
    %v5508 = vld [vmem:[#allocation7 + $0x198] sm:$0xff]
    %v5509 = vld [vmem:[#allocation7 + $0x1a0] sm:$0xff]
    %v5510 = vld [vmem:[#allocation7 + $0x1a8] sm:$0xff]
    %v5511 = vld [vmem:[#allocation7 + $0x1b0] sm:$0xff]
    %v5512 = vld [vmem:[#allocation7 + $0x1b8] sm:$0xff]
    %v5513 = vld [vmem:[#allocation7 + $0x1c0] sm:$0xff]
    %v5514 = vld [vmem:[#allocation7 + $0x1c8] sm:$0xff]
    %v5515 = vld [vmem:[#allocation7 + $0x1d0] sm:$0xff]
    %v5516 = vld [vmem:[#allocation7 + $0x1d8] sm:$0xff]
    %v5517 = vld [vmem:[#allocation7 + $0x1e0] sm:$0xff]
    %v5518 = vld [vmem:[#allocation7 + $0x1e8] sm:$0xff]
    %v5519 = vld [vmem:[#allocation7 + $0x1f0] sm:$0xff]
    %v5520 = vld [vmem:[#allocation7 + $0x1f8] sm:$0xff]
    %v5521 = vld [vmem:[%s4] sm:$0x3]
    %v5523 = vperm.slane %v5521, 0
    %v5524 = vperm.slane %v5521, 1
    %v5591 = vunpack.c.l.b16 %v5457
    %v5592 = vunpack.c.h.b16 %v5457
    %v5593 = vunpack.c.l.b16 %v5458
    %v5594 = vunpack.c.h.b16 %v5458
    %v5595 = vunpack.c.l.b16 %v5459
    %v5596 = vunpack.c.h.b16 %v5459
    %v5597 = vunpack.c.l.b16 %v5460
    %v5598 = vunpack.c.h.b16 %v5460
    %v5599 = vunpack.c.l.b16 %v5461
    %v5600 = vunpack.c.h.b16 %v5461
    %v5601 = vunpack.c.l.b16 %v5462
    %v5602 = vunpack.c.h.b16 %v5462
    %v5603 = vunpack.c.l.b16 %v5463
    %v5604 = vunpack.c.h.b16 %v5463
    %v5605 = vunpack.c.l.b16 %v5464
    %v5606 = vunpack.c.h.b16 %v5464
    %v5607 = vunpack.c.l.b16 %v5465
    %v5608 = vunpack.c.h.b16 %v5465
    %v5609 = vunpack.c.l.b16 %v5466
    %v5610 = vunpack.c.h.b16 %v5466
    %v5611 = vunpack.c.l.b16 %v5467
    %v5612 = vunpack.c.h.b16 %v5467
    %v5613 = vunpack.c.l.b16 %v5468
    %v5614 = vunpack.c.h.b16 %v5468
    %v5615 = vunpack.c.l.b16 %v5469
    %v5616 = vunpack.c.h.b16 %v5469
    %v5617 = vunpack.c.l.b16 %v5470
    %v5618 = vunpack.c.h.b16 %v5470
    %v5619 = vunpack.c.l.b16 %v5471
    %v5620 = vunpack.c.h.b16 %v5471
    %v5621 = vunpack.c.l.b16 %v5472
    %v5622 = vunpack.c.h.b16 %v5472
    %v5623 = vunpack.c.l.b16 %v5473
    %v5624 = vunpack.c.h.b16 %v5473
    %v5625 = vunpack.c.l.b16 %v5474
    %v5626 = vunpack.c.h.b16 %v5474
    %v5627 = vunpack.c.l.b16 %v5475
    %v5628 = vunpack.c.h.b16 %v5475
    %v5629 = vunpack.c.l.b16 %v5476
    %v5630 = vunpack.c.h.b16 %v5476
    %v5631 = vunpack.c.l.b16 %v5477
    %v5632 = vunpack.c.h.b16 %v5477
    %v5633 = vunpack.c.l.b16 %v5478
    %v5634 = vunpack.c.h.b16 %v5478
    %v5635 = vunpack.c.l.b16 %v5479
    %v5636 = vunpack.c.h.b16 %v5479
    %v5637 = vunpack.c.l.b16 %v5480
    %v5638 = vunpack.c.h.b16 %v5480
    %v5639 = vunpack.c.l.b16 %v5481
    %v5640 = vunpack.c.h.b16 %v5481
    %v5641 = vunpack.c.l.b16 %v5482
    %v5642 = vunpack.c.h.b16 %v5482
    %v5643 = vunpack.c.l.b16 %v5483
    %v5644 = vunpack.c.h.b16 %v5483
    %v5645 = vunpack.c.l.b16 %v5484
    %v5646 = vunpack.c.h.b16 %v5484
    %v5647 = vunpack.c.l.b16 %v5485
    %v5648 = vunpack.c.h.b16 %v5485
    %v5649 = vunpack.c.l.b16 %v5486
    %v5650 = vunpack.c.h.b16 %v5486
    %v5651 = vunpack.c.l.b16 %v5487
    %v5652 = vunpack.c.h.b16 %v5487
    %v5653 = vunpack.c.l.b16 %v5488
    %v5654 = vunpack.c.h.b16 %v5488
    %v5655 = vunpack.c.l.b16 %v5489
    %v5656 = vunpack.c.h.b16 %v5489
    %v5657 = vunpack.c.l.b16 %v5490
    %v5658 = vunpack.c.h.b16 %v5490
    %v5659 = vunpack.c.l.b16 %v5491
    %v5660 = vunpack.c.h.b16 %v5491
    %v5661 = vunpack.c.l.b16 %v5492
    %v5662 = vunpack.c.h.b16 %v5492
    %v5663 = vunpack.c.l.b16 %v5493
    %v5664 = vunpack.c.h.b16 %v5493
    %v5665 = vunpack.c.l.b16 %v5494
    %v5666 = vunpack.c.h.b16 %v5494
    %v5667 = vunpack.c.l.b16 %v5495
    %v5668 = vunpack.c.h.b16 %v5495
    %v5669 = vunpack.c.l.b16 %v5496
    %v5670 = vunpack.c.h.b16 %v5496
    %v5671 = vunpack.c.l.b16 %v5497
    %v5672 = vunpack.c.h.b16 %v5497
    %v5673 = vunpack.c.l.b16 %v5498
    %v5674 = vunpack.c.h.b16 %v5498
    %v5675 = vunpack.c.l.b16 %v5499
    %v5676 = vunpack.c.h.b16 %v5499
    %v5677 = vunpack.c.l.b16 %v5500
    %v5678 = vunpack.c.h.b16 %v5500
    %v5679 = vunpack.c.l.b16 %v5501
    %v5680 = vunpack.c.h.b16 %v5501
    %v5681 = vunpack.c.l.b16 %v5502
    %v5682 = vunpack.c.h.b16 %v5502
    %v5683 = vunpack.c.l.b16 %v5503
    %v5684 = vunpack.c.h.b16 %v5503
    %v5685 = vunpack.c.l.b16 %v5504
    %v5686 = vunpack.c.h.b16 %v5504
    %v5687 = vunpack.c.l.b16 %v5505
    %v5688 = vunpack.c.h.b16 %v5505
    %v5689 = vunpack.c.l.b16 %v5506
    %v5690 = vunpack.c.h.b16 %v5506
    %v5691 = vunpack.c.l.b16 %v5507
    %v5692 = vunpack.c.h.b16 %v5507
    %v5693 = vunpack.c.l.b16 %v5508
    %v5694 = vunpack.c.h.b16 %v5508
    %v5695 = vunpack.c.l.b16 %v5509
    %v5696 = vunpack.c.h.b16 %v5509
    %v5697 = vunpack.c.l.b16 %v5510
    %v5698 = vunpack.c.h.b16 %v5510
    %v5699 = vunpack.c.l.b16 %v5511
    %v5700 = vunpack.c.h.b16 %v5511
    %v5701 = vunpack.c.l.b16 %v5512
    %v5702 = vunpack.c.h.b16 %v5512
    %v5703 = vunpack.c.l.b16 %v5513
    %v5704 = vunpack.c.h.b16 %v5513
    %v5705 = vunpack.c.l.b16 %v5514
    %v5706 = vunpack.c.h.b16 %v5514
    %v5707 = vunpack.c.l.b16 %v5515
    %v5708 = vunpack.c.h.b16 %v5515
    %v5709 = vunpack.c.l.b16 %v5516
    %v5710 = vunpack.c.h.b16 %v5516
    %v5711 = vunpack.c.l.b16 %v5517
    %v5712 = vunpack.c.h.b16 %v5517
    %v5713 = vunpack.c.l.b16 %v5518
    %v5714 = vunpack.c.h.b16 %v5518
    %v5715 = vunpack.c.l.b16 %v5519
    %v5716 = vunpack.c.h.b16 %v5519
    %v5717 = vunpack.c.l.b16 %v5520
    %v5718 = vunpack.c.h.b16 %v5520
    %v5719 = vpack.c.b16 %v5593, %v5591
    %v5720 = vpack.c.b16 %v5594, %v5592
    %v5721 = vpack.c.b16 %v5597, %v5595
    %v5722 = vpack.c.b16 %v5598, %v5596
    %v5723 = vpack.c.b16 %v5601, %v5599
    %v5724 = vpack.c.b16 %v5602, %v5600
    %v5725 = vpack.c.b16 %v5605, %v5603
    %v5726 = vpack.c.b16 %v5606, %v5604
    %v5727 = vpack.c.b16 %v5609, %v5607
    %v5728 = vpack.c.b16 %v5610, %v5608
    %v5729 = vpack.c.b16 %v5613, %v5611
    %v5730 = vpack.c.b16 %v5614, %v5612
    %v5731 = vpack.c.b16 %v5617, %v5615
    %v5732 = vpack.c.b16 %v5618, %v5616
    %v5733 = vpack.c.b16 %v5621, %v5619
    %v5734 = vpack.c.b16 %v5622, %v5620
    %v5735 = vpack.c.b16 %v5625, %v5623
    %v5736 = vpack.c.b16 %v5626, %v5624
    %v5737 = vpack.c.b16 %v5629, %v5627
    %v5738 = vpack.c.b16 %v5630, %v5628
    %v5739 = vpack.c.b16 %v5633, %v5631
    %v5740 = vpack.c.b16 %v5634, %v5632
    %v5741 = vpack.c.b16 %v5637, %v5635
    %v5742 = vpack.c.b16 %v5638, %v5636
    %v5743 = vpack.c.b16 %v5641, %v5639
    %v5744 = vpack.c.b16 %v5642, %v5640
    %v5745 = vpack.c.b16 %v5645, %v5643
    %v5746 = vpack.c.b16 %v5646, %v5644
    %v5747 = vpack.c.b16 %v5649, %v5647
    %v5748 = vpack.c.b16 %v5650, %v5648
    %v5749 = vpack.c.b16 %v5653, %v5651
    %v5750 = vpack.c.b16 %v5654, %v5652
    %v5751 = vpack.c.b16 %v5657, %v5655
    %v5752 = vpack.c.b16 %v5658, %v5656
    %v5753 = vpack.c.b16 %v5661, %v5659
    %v5754 = vpack.c.b16 %v5662, %v5660
    %v5755 = vpack.c.b16 %v5665, %v5663
    %v5756 = vpack.c.b16 %v5666, %v5664
    %v5757 = vpack.c.b16 %v5669, %v5667
    %v5758 = vpack.c.b16 %v5670, %v5668
    %v5759 = vpack.c.b16 %v5673, %v5671
    %v5760 = vpack.c.b16 %v5674, %v5672
    %v5761 = vpack.c.b16 %v5677, %v5675
    %v5762 = vpack.c.b16 %v5678, %v5676
    %v5763 = vpack.c.b16 %v5681, %v5679
    %v5764 = vpack.c.b16 %v5682, %v5680
    %v5765 = vpack.c.b16 %v5685, %v5683
    %v5766 = vpack.c.b16 %v5686, %v5684
    %v5767 = vpack.c.b16 %v5689, %v5687
    %v5768 = vpack.c.b16 %v5690, %v5688
    %v5769 = vpack.c.b16 %v5693, %v5691
    %v5770 = vpack.c.b16 %v5694, %v5692
    %v5771 = vpack.c.b16 %v5697, %v5695
    %v5772 = vpack.c.b16 %v5698, %v5696
    %v5773 = vpack.c.b16 %v5701, %v5699
    %v5774 = vpack.c.b16 %v5702, %v5700
    %v5775 = vpack.c.b16 %v5705, %v5703
    %v5776 = vpack.c.b16 %v5706, %v5704
    %v5777 = vpack.c.b16 %v5709, %v5707
    %v5778 = vpack.c.b16 %v5710, %v5708
    %v5779 = vpack.c.b16 %v5713, %v5711
    %v5780 = vpack.c.b16 %v5714, %v5712
    %v5781 = vpack.c.b16 %v5717, %v5715
    %v5782 = vpack.c.b16 %v5718, %v5716
    %5847 = vmatpush.bf16.msra.mxu0 %v5733
    %5848 = vmatpush.bf16.msra.mxu0 %v5731
    %5849 = vmatpush.bf16.msra.mxu0 %v5729
    %5850 = vmatpush.bf16.msra.mxu0 %v5727
    %5851 = vmatpush.bf16.msra.mxu0 %v5725
    %5852 = vmatpush.bf16.msra.mxu0 %v5723
    %5853 = vmatpush.bf16.msra.mxu0 %v5721
    %5854 = vmatpush.bf16.msra.mxu0 %v5719
    %5855 = vmatmul.bf16.gmra.mxu0 %v5393
    %v5856 = vpop.f32.mrf.mxu0
    %v5857 = vadd.f32 %v5523, %v5856
    %v5858 = vpop.f32.mrf.mxu0
    %v5859 = vadd.f32 %v5523, %v5858
    %5860 = vmatmul.bf16.gmra.mxu0 %v5397
    %v5861 = vpop.f32.mrf.mxu0
    %v5862 = vadd.f32 %v5523, %v5861
    %v5863 = vpop.f32.mrf.mxu0
    %v5864 = vadd.f32 %v5523, %v5863
    %5865 = vmatmul.bf16.gmra.mxu0 %v5401
    %v5866 = vpop.f32.mrf.mxu0
    %v5867 = vadd.f32 %v5523, %v5866
    %v5868 = vpop.f32.mrf.mxu0
    %v5869 = vadd.f32 %v5523, %v5868
    %5870 = vmatmul.bf16.gmra.mxu0 %v5405
    %v5871 = vpop.f32.mrf.mxu0
    %v5872 = vadd.f32 %v5523, %v5871
    %v5873 = vpop.f32.mrf.mxu0
    %v5874 = vadd.f32 %v5523, %v5873
    %5875 = vmatmul.bf16.gmra.mxu0 %v5409
    %v5876 = vpop.f32.mrf.mxu0
    %v5877 = vadd.f32 %v5523, %v5876
    %v5878 = vpop.f32.mrf.mxu0
    %v5879 = vadd.f32 %v5523, %v5878
    %5880 = vmatmul.bf16.gmra.mxu0 %v5413
    %v5881 = vpop.f32.mrf.mxu0
    %v5882 = vadd.f32 %v5523, %v5881
    %v5883 = vpop.f32.mrf.mxu0
    %v5884 = vadd.f32 %v5523, %v5883
    %5885 = vmatmul.bf16.gmra.mxu0 %v5417
    %v5886 = vpop.f32.mrf.mxu0
    %v5887 = vadd.f32 %v5523, %v5886
    %v5888 = vpop.f32.mrf.mxu0
    %v5889 = vadd.f32 %v5523, %v5888
    %5890 = vmatmul.bf16.gmra.mxu0 %v5421
    %v5891 = vpop.f32.mrf.mxu0
    %v5892 = vadd.f32 %v5523, %v5891
    %v5893 = vpop.f32.mrf.mxu0
    %v5894 = vadd.f32 %v5523, %v5893
    %5895 = vmatmul.bf16.gmra.mxu0 %v5425
    %v5896 = vpop.f32.mrf.mxu0
    %v5897 = vadd.f32 %v5523, %v5896
    %v5898 = vpop.f32.mrf.mxu0
    %v5899 = vadd.f32 %v5523, %v5898
    %5900 = vmatmul.bf16.gmra.mxu0 %v5429
    %v5901 = vpop.f32.mrf.mxu0
    %v5902 = vadd.f32 %v5523, %v5901
    %v5903 = vpop.f32.mrf.mxu0
    %v5904 = vadd.f32 %v5523, %v5903
    %5905 = vmatmul.bf16.gmra.mxu0 %v5433
    %v5906 = vpop.f32.mrf.mxu0
    %v5907 = vadd.f32 %v5523, %v5906
    %v5908 = vpop.f32.mrf.mxu0
    %v5909 = vadd.f32 %v5523, %v5908
    %5910 = vmatmul.bf16.gmra.mxu0 %v5437
    %v5911 = vpop.f32.mrf.mxu0
    %v5912 = vadd.f32 %v5523, %v5911
    %v5913 = vpop.f32.mrf.mxu0
    %v5914 = vadd.f32 %v5523, %v5913
    %5915 = vmatmul.bf16.gmra.mxu0 %v5441
    %v5916 = vpop.f32.mrf.mxu0
    %v5917 = vadd.f32 %v5523, %v5916
    %v5918 = vpop.f32.mrf.mxu0
    %v5919 = vadd.f32 %v5523, %v5918
    %5920 = vmatmul.bf16.gmra.mxu0 %v5445
    %v5921 = vpop.f32.mrf.mxu0
    %v5922 = vadd.f32 %v5523, %v5921
    %v5923 = vpop.f32.mrf.mxu0
    %v5924 = vadd.f32 %v5523, %v5923
    %5925 = vmatmul.bf16.gmra.mxu0 %v5449
    %v5926 = vpop.f32.mrf.mxu0
    %v5927 = vadd.f32 %v5523, %v5926
    %v5928 = vpop.f32.mrf.mxu0
    %v5929 = vadd.f32 %v5523, %v5928
    %5930 = vmatmul.bf16.gmra.mxu0 %v5453
    %v5931 = vpop.f32.mrf.mxu0
    %v5932 = vadd.f32 %v5523, %v5931
    %v5933 = vpop.f32.mrf.mxu0
    %v5934 = vadd.f32 %v5523, %v5933
    %5935 = vdwg.mxu0
    %5936 = vmatpush.bf16.msra.mxu0 %v5749
    %5937 = vmatpush.bf16.msra.mxu0 %v5747
    %5938 = vmatpush.bf16.msra.mxu0 %v5745
    %5939 = vmatpush.bf16.msra.mxu0 %v5743
    %5940 = vmatpush.bf16.msra.mxu0 %v5741
    %5941 = vmatpush.bf16.msra.mxu0 %v5739
    %5942 = vmatpush.bf16.msra.mxu0 %v5737
    %5943 = vmatpush.bf16.msra.mxu0 %v5735
    %5944 = vmatmul.bf16.gmra.mxu0 %v5394
    %v5945 = vpop.f32.mrf.mxu0
    %v5946 = vadd.f32 %v5857, %v5945
    %v5947 = vpop.f32.mrf.mxu0
    %v5948 = vadd.f32 %v5859, %v5947
    %5949 = vmatmul.bf16.gmra.mxu0 %v5398
    %v5950 = vpop.f32.mrf.mxu0
    %v5951 = vadd.f32 %v5862, %v5950
    %v5952 = vpop.f32.mrf.mxu0
    %v5953 = vadd.f32 %v5864, %v5952
    %5954 = vmatmul.bf16.gmra.mxu0 %v5402
    %v5955 = vpop.f32.mrf.mxu0
    %v5956 = vadd.f32 %v5867, %v5955
    %v5957 = vpop.f32.mrf.mxu0
    %v5958 = vadd.f32 %v5869, %v5957
    %5959 = vmatmul.bf16.gmra.mxu0 %v5406
    %v5960 = vpop.f32.mrf.mxu0
    %v5961 = vadd.f32 %v5872, %v5960
    %v5962 = vpop.f32.mrf.mxu0
    %v5963 = vadd.f32 %v5874, %v5962
    %5964 = vmatmul.bf16.gmra.mxu0 %v5410
    %v5965 = vpop.f32.mrf.mxu0
    %v5966 = vadd.f32 %v5877, %v5965
    %v5967 = vpop.f32.mrf.mxu0
    %v5968 = vadd.f32 %v5879, %v5967
    %5969 = vmatmul.bf16.gmra.mxu0 %v5414
    %v5970 = vpop.f32.mrf.mxu0
    %v5971 = vadd.f32 %v5882, %v5970
    %v5972 = vpop.f32.mrf.mxu0
    %v5973 = vadd.f32 %v5884, %v5972
    %5974 = vmatmul.bf16.gmra.mxu0 %v5418
    %v5975 = vpop.f32.mrf.mxu0
    %v5976 = vadd.f32 %v5887, %v5975
    %v5977 = vpop.f32.mrf.mxu0
    %v5978 = vadd.f32 %v5889, %v5977
    %5979 = vmatmul.bf16.gmra.mxu0 %v5422
    %v5980 = vpop.f32.mrf.mxu0
    %v5981 = vadd.f32 %v5892, %v5980
    %v5982 = vpop.f32.mrf.mxu0
    %v5983 = vadd.f32 %v5894, %v5982
    %5984 = vmatmul.bf16.gmra.mxu0 %v5426
    %v5985 = vpop.f32.mrf.mxu0
    %v5986 = vadd.f32 %v5897, %v5985
    %v5987 = vpop.f32.mrf.mxu0
    %v5988 = vadd.f32 %v5899, %v5987
    %5989 = vmatmul.bf16.gmra.mxu0 %v5430
    %v5990 = vpop.f32.mrf.mxu0
    %v5991 = vadd.f32 %v5902, %v5990
    %v5992 = vpop.f32.mrf.mxu0
    %v5993 = vadd.f32 %v5904, %v5992
    %5994 = vmatmul.bf16.gmra.mxu0 %v5434
    %v5995 = vpop.f32.mrf.mxu0
    %v5996 = vadd.f32 %v5907, %v5995
    %v5997 = vpop.f32.mrf.mxu0
    %v5998 = vadd.f32 %v5909, %v5997
    %5999 = vmatmul.bf16.gmra.mxu0 %v5438
    %v6000 = vpop.f32.mrf.mxu0
    %v6001 = vadd.f32 %v5912, %v6000
    %v6002 = vpop.f32.mrf.mxu0
    %v6003 = vadd.f32 %v5914, %v6002
    %6004 = vmatmul.bf16.gmra.mxu0 %v5442
    %v6005 = vpop.f32.mrf.mxu0
    %v6006 = vadd.f32 %v5917, %v6005
    %v6007 = vpop.f32.mrf.mxu0
    %v6008 = vadd.f32 %v5919, %v6007
    %6009 = vmatmul.bf16.gmra.mxu0 %v5446
    %v6010 = vpop.f32.mrf.mxu0
    %v6011 = vadd.f32 %v5922, %v6010
    %v6012 = vpop.f32.mrf.mxu0
    %v6013 = vadd.f32 %v5924, %v6012
    %6014 = vmatmul.bf16.gmra.mxu0 %v5450
    %v6015 = vpop.f32.mrf.mxu0
    %v6016 = vadd.f32 %v5927, %v6015
    %v6017 = vpop.f32.mrf.mxu0
    %v6018 = vadd.f32 %v5929, %v6017
    %6019 = vmatmul.bf16.gmra.mxu0 %v5454
    %v6020 = vpop.f32.mrf.mxu0
    %v6021 = vadd.f32 %v5932, %v6020
    %v6022 = vpop.f32.mrf.mxu0
    %v6023 = vadd.f32 %v5934, %v6022
    %6024 = vdwg.mxu0
    %6025 = vmatpush.bf16.msra.mxu0 %v5765
    %6026 = vmatpush.bf16.msra.mxu0 %v5763
    %6027 = vmatpush.bf16.msra.mxu0 %v5761
    %6028 = vmatpush.bf16.msra.mxu0 %v5759
    %6029 = vmatpush.bf16.msra.mxu0 %v5757
    %6030 = vmatpush.bf16.msra.mxu0 %v5755
    %6031 = vmatpush.bf16.msra.mxu0 %v5753
    %6032 = vmatpush.bf16.msra.mxu0 %v5751
    %6033 = vmatmul.bf16.gmra.mxu0 %v5395
    %v6034 = vpop.f32.mrf.mxu0
    %v6035 = vadd.f32 %v5946, %v6034
    %v6036 = vpop.f32.mrf.mxu0
    %v6037 = vadd.f32 %v5948, %v6036
    %6038 = vmatmul.bf16.gmra.mxu0 %v5399
    %v6039 = vpop.f32.mrf.mxu0
    %v6040 = vadd.f32 %v5951, %v6039
    %v6041 = vpop.f32.mrf.mxu0
    %v6042 = vadd.f32 %v5953, %v6041
    %6043 = vmatmul.bf16.gmra.mxu0 %v5403
    %v6044 = vpop.f32.mrf.mxu0
    %v6045 = vadd.f32 %v5956, %v6044
    %v6046 = vpop.f32.mrf.mxu0
    %v6047 = vadd.f32 %v5958, %v6046
    %6048 = vmatmul.bf16.gmra.mxu0 %v5407
    %v6049 = vpop.f32.mrf.mxu0
    %v6050 = vadd.f32 %v5961, %v6049
    %v6051 = vpop.f32.mrf.mxu0
    %v6052 = vadd.f32 %v5963, %v6051
    %6053 = vmatmul.bf16.gmra.mxu0 %v5411
    %v6054 = vpop.f32.mrf.mxu0
    %v6055 = vadd.f32 %v5966, %v6054
    %v6056 = vpop.f32.mrf.mxu0
    %v6057 = vadd.f32 %v5968, %v6056
    %6058 = vmatmul.bf16.gmra.mxu0 %v5415
    %v6059 = vpop.f32.mrf.mxu0
    %v6060 = vadd.f32 %v5971, %v6059
    %v6061 = vpop.f32.mrf.mxu0
    %v6062 = vadd.f32 %v5973, %v6061
    %6063 = vmatmul.bf16.gmra.mxu0 %v5419
    %v6064 = vpop.f32.mrf.mxu0
    %v6065 = vadd.f32 %v5976, %v6064
    %v6066 = vpop.f32.mrf.mxu0
    %v6067 = vadd.f32 %v5978, %v6066
    %6068 = vmatmul.bf16.gmra.mxu0 %v5423
    %v6069 = vpop.f32.mrf.mxu0
    %v6070 = vadd.f32 %v5981, %v6069
    %v6071 = vpop.f32.mrf.mxu0
    %v6072 = vadd.f32 %v5983, %v6071
    %6073 = vmatmul.bf16.gmra.mxu0 %v5427
    %v6074 = vpop.f32.mrf.mxu0
    %v6075 = vadd.f32 %v5986, %v6074
    %v6076 = vpop.f32.mrf.mxu0
    %v6077 = vadd.f32 %v5988, %v6076
    %6078 = vmatmul.bf16.gmra.mxu0 %v5431
    %v6079 = vpop.f32.mrf.mxu0
    %v6080 = vadd.f32 %v5991, %v6079
    %v6081 = vpop.f32.mrf.mxu0
    %v6082 = vadd.f32 %v5993, %v6081
    %6083 = vmatmul.bf16.gmra.mxu0 %v5435
    %v6084 = vpop.f32.mrf.mxu0
    %v6085 = vadd.f32 %v5996, %v6084
    %v6086 = vpop.f32.mrf.mxu0
    %v6087 = vadd.f32 %v5998, %v6086
    %6088 = vmatmul.bf16.gmra.mxu0 %v5439
    %v6089 = vpop.f32.mrf.mxu0
    %v6090 = vadd.f32 %v6001, %v6089
    %v6091 = vpop.f32.mrf.mxu0
    %v6092 = vadd.f32 %v6003, %v6091
    %6093 = vmatmul.bf16.gmra.mxu0 %v5443
    %v6094 = vpop.f32.mrf.mxu0
    %v6095 = vadd.f32 %v6006, %v6094
    %v6096 = vpop.f32.mrf.mxu0
    %v6097 = vadd.f32 %v6008, %v6096
    %6098 = vmatmul.bf16.gmra.mxu0 %v5447
    %v6099 = vpop.f32.mrf.mxu0
    %v6100 = vadd.f32 %v6011, %v6099
    %v6101 = vpop.f32.mrf.mxu0
    %v6102 = vadd.f32 %v6013, %v6101
    %6103 = vmatmul.bf16.gmra.mxu0 %v5451
    %v6104 = vpop.f32.mrf.mxu0
    %v6105 = vadd.f32 %v6016, %v6104
    %v6106 = vpop.f32.mrf.mxu0
    %v6107 = vadd.f32 %v6018, %v6106
    %6108 = vmatmul.bf16.gmra.mxu0 %v5455
    %v6109 = vpop.f32.mrf.mxu0
    %v6110 = vadd.f32 %v6021, %v6109
    %v6111 = vpop.f32.mrf.mxu0
    %v6112 = vadd.f32 %v6023, %v6111
    %6113 = vdwg.mxu0
    %6114 = vmatpush.bf16.msra.mxu0 %v5781
    %6115 = vmatpush.bf16.msra.mxu0 %v5779
    %6116 = vmatpush.bf16.msra.mxu0 %v5777
    %6117 = vmatpush.bf16.msra.mxu0 %v5775
    %6118 = vmatpush.bf16.msra.mxu0 %v5773
    %6119 = vmatpush.bf16.msra.mxu0 %v5771
    %6120 = vmatpush.bf16.msra.mxu0 %v5769
    %6121 = vmatpush.bf16.msra.mxu0 %v5767
    %6122 = vmatmul.bf16.gmra.mxu0 %v5396
    %v6123 = vpop.f32.mrf.mxu0
    %v6124 = vadd.f32 %v6035, %v6123
    %v6125 = vpop.f32.mrf.mxu0
    %v6126 = vadd.f32 %v6037, %v6125
    %6127 = vmatmul.bf16.gmra.mxu0 %v5400
    %v6128 = vpop.f32.mrf.mxu0
    %v6129 = vadd.f32 %v6040, %v6128
    %v6130 = vpop.f32.mrf.mxu0
    %v6131 = vadd.f32 %v6042, %v6130
    %6132 = vmatmul.bf16.gmra.mxu0 %v5404
    %v6133 = vpop.f32.mrf.mxu0
    %v6134 = vadd.f32 %v6045, %v6133
    %v6135 = vpop.f32.mrf.mxu0
    %v6136 = vadd.f32 %v6047, %v6135
    %6137 = vmatmul.bf16.gmra.mxu0 %v5408
    %v6138 = vpop.f32.mrf.mxu0
    %v6139 = vadd.f32 %v6050, %v6138
    %v6140 = vpop.f32.mrf.mxu0
    %v6141 = vadd.f32 %v6052, %v6140
    %6142 = vmatmul.bf16.gmra.mxu0 %v5412
    %v6143 = vpop.f32.mrf.mxu0
    %v6144 = vadd.f32 %v6055, %v6143
    %v6145 = vpop.f32.mrf.mxu0
    %v6146 = vadd.f32 %v6057, %v6145
    %6147 = vmatmul.bf16.gmra.mxu0 %v5416
    %v6148 = vpop.f32.mrf.mxu0
    %v6149 = vadd.f32 %v6060, %v6148
    %v6150 = vpop.f32.mrf.mxu0
    %v6151 = vadd.f32 %v6062, %v6150
    %6152 = vmatmul.bf16.gmra.mxu0 %v5420
    %v6153 = vpop.f32.mrf.mxu0
    %v6154 = vadd.f32 %v6065, %v6153
    %v6155 = vpop.f32.mrf.mxu0
    %v6156 = vadd.f32 %v6067, %v6155
    %6157 = vmatmul.bf16.gmra.mxu0 %v5424
    %v6158 = vpop.f32.mrf.mxu0
    %v6159 = vadd.f32 %v6070, %v6158
    %v6160 = vpop.f32.mrf.mxu0
    %v6161 = vadd.f32 %v6072, %v6160
    %6162 = vmatmul.bf16.gmra.mxu0 %v5428
    %v6163 = vpop.f32.mrf.mxu0
    %v6164 = vadd.f32 %v6075, %v6163
    %v6165 = vpop.f32.mrf.mxu0
    %v6166 = vadd.f32 %v6077, %v6165
    %6167 = vmatmul.bf16.gmra.mxu0 %v5432
    %v6168 = vpop.f32.mrf.mxu0
    %v6169 = vadd.f32 %v6080, %v6168
    %v6170 = vpop.f32.mrf.mxu0
    %v6171 = vadd.f32 %v6082, %v6170
    %6172 = vmatmul.bf16.gmra.mxu0 %v5436
    %v6173 = vpop.f32.mrf.mxu0
    %v6174 = vadd.f32 %v6085, %v6173
    %v6175 = vpop.f32.mrf.mxu0
    %v6176 = vadd.f32 %v6087, %v6175
    %6177 = vmatmul.bf16.gmra.mxu0 %v5440
    %v6178 = vpop.f32.mrf.mxu0
    %v6179 = vadd.f32 %v6090, %v6178
    %v6180 = vpop.f32.mrf.mxu0
    %v6181 = vadd.f32 %v6092, %v6180
    %6182 = vmatmul.bf16.gmra.mxu0 %v5444
    %v6183 = vpop.f32.mrf.mxu0
    %v6184 = vadd.f32 %v6095, %v6183
    %v6185 = vpop.f32.mrf.mxu0
    %v6186 = vadd.f32 %v6097, %v6185
    %6187 = vmatmul.bf16.gmra.mxu0 %v5448
    %v6188 = vpop.f32.mrf.mxu0
    %v6189 = vadd.f32 %v6100, %v6188
    %v6190 = vpop.f32.mrf.mxu0
    %v6191 = vadd.f32 %v6102, %v6190
    %6192 = vmatmul.bf16.gmra.mxu0 %v5452
    %v6193 = vpop.f32.mrf.mxu0
    %v6194 = vadd.f32 %v6105, %v6193
    %v6195 = vpop.f32.mrf.mxu0
    %v6196 = vadd.f32 %v6107, %v6195
    %6197 = vmatmul.bf16.gmra.mxu0 %v5456
    %v6198 = vpop.f32.mrf.mxu0
    %v6199 = vadd.f32 %v6110, %v6198
    %v6200 = vpop.f32.mrf.mxu0
    %v6201 = vadd.f32 %v6112, %v6200
    %6202 = vdwg.mxu0
    %6203 = vmatpush.bf16.msra.mxu0 %v5734
    %6204 = vmatpush.bf16.msra.mxu0 %v5732
    %6205 = vmatpush.bf16.msra.mxu0 %v5730
    %6206 = vmatpush.bf16.msra.mxu0 %v5728
    %6207 = vmatpush.bf16.msra.mxu0 %v5726
    %6208 = vmatpush.bf16.msra.mxu0 %v5724
    %6209 = vmatpush.bf16.msra.mxu0 %v5722
    %6210 = vmatpush.bf16.msra.mxu0 %v5720
    %6211 = vmatmul.bf16.gmra.mxu0 %v5393
    %v6212 = vpop.f32.mrf.mxu0
    %v6213 = vadd.f32 %v5524, %v6212
    %v6214 = vpop.f32.mrf.mxu0
    %v6215 = vadd.f32 %v5524, %v6214
    %6216 = vmatmul.bf16.gmra.mxu0 %v5397
    %v6217 = vpop.f32.mrf.mxu0
    %v6218 = vadd.f32 %v5524, %v6217
    %v6219 = vpop.f32.mrf.mxu0
    %v6220 = vadd.f32 %v5524, %v6219
    %6221 = vmatmul.bf16.gmra.mxu0 %v5401
    %v6222 = vpop.f32.mrf.mxu0
    %v6223 = vadd.f32 %v5524, %v6222
    %v6224 = vpop.f32.mrf.mxu0
    %v6225 = vadd.f32 %v5524, %v6224
    %6226 = vmatmul.bf16.gmra.mxu0 %v5405
    %v6227 = vpop.f32.mrf.mxu0
    %v6228 = vadd.f32 %v5524, %v6227
    %v6229 = vpop.f32.mrf.mxu0
    %v6230 = vadd.f32 %v5524, %v6229
    %6231 = vmatmul.bf16.gmra.mxu0 %v5409
    %v6232 = vpop.f32.mrf.mxu0
    %v6233 = vadd.f32 %v5524, %v6232
    %v6234 = vpop.f32.mrf.mxu0
    %v6235 = vadd.f32 %v5524, %v6234
    %6236 = vmatmul.bf16.gmra.mxu0 %v5413
    %v6237 = vpop.f32.mrf.mxu0
    %v6238 = vadd.f32 %v5524, %v6237
    %v6239 = vpop.f32.mrf.mxu0
    %v6240 = vadd.f32 %v5524, %v6239
    %6241 = vmatmul.bf16.gmra.mxu0 %v5417
    %v6242 = vpop.f32.mrf.mxu0
    %v6243 = vadd.f32 %v5524, %v6242
    %v6244 = vpop.f32.mrf.mxu0
    %v6245 = vadd.f32 %v5524, %v6244
    %6246 = vmatmul.bf16.gmra.mxu0 %v5421
    %v6247 = vpop.f32.mrf.mxu0
    %v6248 = vadd.f32 %v5524, %v6247
    %v6249 = vpop.f32.mrf.mxu0
    %v6250 = vadd.f32 %v5524, %v6249
    %6251 = vmatmul.bf16.gmra.mxu0 %v5425
    %v6252 = vpop.f32.mrf.mxu0
    %v6253 = vadd.f32 %v5524, %v6252
    %v6254 = vpop.f32.mrf.mxu0
    %v6255 = vadd.f32 %v5524, %v6254
    %6256 = vmatmul.bf16.gmra.mxu0 %v5429
    %v6257 = vpop.f32.mrf.mxu0
    %v6258 = vadd.f32 %v5524, %v6257
    %v6259 = vpop.f32.mrf.mxu0
    %v6260 = vadd.f32 %v5524, %v6259
    %6261 = vmatmul.bf16.gmra.mxu0 %v5433
    %v6262 = vpop.f32.mrf.mxu0
    %v6263 = vadd.f32 %v5524, %v6262
    %v6264 = vpop.f32.mrf.mxu0
    %v6265 = vadd.f32 %v5524, %v6264
    %6266 = vmatmul.bf16.gmra.mxu0 %v5437
    %v6267 = vpop.f32.mrf.mxu0
    %v6268 = vadd.f32 %v5524, %v6267
    %v6269 = vpop.f32.mrf.mxu0
    %v6270 = vadd.f32 %v5524, %v6269
    %6271 = vmatmul.bf16.gmra.mxu0 %v5441
    %v6272 = vpop.f32.mrf.mxu0
    %v6273 = vadd.f32 %v5524, %v6272
    %v6274 = vpop.f32.mrf.mxu0
    %v6275 = vadd.f32 %v5524, %v6274
    %6276 = vmatmul.bf16.gmra.mxu0 %v5445
    %v6277 = vpop.f32.mrf.mxu0
    %v6278 = vadd.f32 %v5524, %v6277
    %v6279 = vpop.f32.mrf.mxu0
    %v6280 = vadd.f32 %v5524, %v6279
    %6281 = vmatmul.bf16.gmra.mxu0 %v5449
    %v6282 = vpop.f32.mrf.mxu0
    %v6283 = vadd.f32 %v5524, %v6282
    %v6284 = vpop.f32.mrf.mxu0
    %v6285 = vadd.f32 %v5524, %v6284
    %6286 = vmatmul.bf16.gmra.mxu0 %v5453
    %v6287 = vpop.f32.mrf.mxu0
    %v6288 = vadd.f32 %v5524, %v6287
    %v6289 = vpop.f32.mrf.mxu0
    %v6290 = vadd.f32 %v5524, %v6289
    %6291 = vdwg.mxu0
    %6292 = vmatpush.bf16.msra.mxu0 %v5750
    %6293 = vmatpush.bf16.msra.mxu0 %v5748
    %6294 = vmatpush.bf16.msra.mxu0 %v5746
    %6295 = vmatpush.bf16.msra.mxu0 %v5744
    %6296 = vmatpush.bf16.msra.mxu0 %v5742
    %6297 = vmatpush.bf16.msra.mxu0 %v5740
    %6298 = vmatpush.bf16.msra.mxu0 %v5738
    %6299 = vmatpush.bf16.msra.mxu0 %v5736
    %6300 = vmatmul.bf16.gmra.mxu0 %v5394
    %v6301 = vpop.f32.mrf.mxu0
    %v6302 = vadd.f32 %v6213, %v6301
    %v6303 = vpop.f32.mrf.mxu0
    %v6304 = vadd.f32 %v6215, %v6303
    %6305 = vmatmul.bf16.gmra.mxu0 %v5398
    %v6306 = vpop.f32.mrf.mxu0
    %v6307 = vadd.f32 %v6218, %v6306
    %v6308 = vpop.f32.mrf.mxu0
    %v6309 = vadd.f32 %v6220, %v6308
    %6310 = vmatmul.bf16.gmra.mxu0 %v5402
    %v6311 = vpop.f32.mrf.mxu0
    %v6312 = vadd.f32 %v6223, %v6311
    %v6313 = vpop.f32.mrf.mxu0
    %v6314 = vadd.f32 %v6225, %v6313
    %6315 = vmatmul.bf16.gmra.mxu0 %v5406
    %v6316 = vpop.f32.mrf.mxu0
    %v6317 = vadd.f32 %v6228, %v6316
    %v6318 = vpop.f32.mrf.mxu0
    %v6319 = vadd.f32 %v6230, %v6318
    %6320 = vmatmul.bf16.gmra.mxu0 %v5410
    %v6321 = vpop.f32.mrf.mxu0
    %v6322 = vadd.f32 %v6233, %v6321
    %v6323 = vpop.f32.mrf.mxu0
    %v6324 = vadd.f32 %v6235, %v6323
    %6325 = vmatmul.bf16.gmra.mxu0 %v5414
    %v6326 = vpop.f32.mrf.mxu0
    %v6327 = vadd.f32 %v6238, %v6326
    %v6328 = vpop.f32.mrf.mxu0
    %v6329 = vadd.f32 %v6240, %v6328
    %6330 = vmatmul.bf16.gmra.mxu0 %v5418
    %v6331 = vpop.f32.mrf.mxu0
    %v6332 = vadd.f32 %v6243, %v6331
    %v6333 = vpop.f32.mrf.mxu0
    %v6334 = vadd.f32 %v6245, %v6333
    %6335 = vmatmul.bf16.gmra.mxu0 %v5422
    %v6336 = vpop.f32.mrf.mxu0
    %v6337 = vadd.f32 %v6248, %v6336
    %v6338 = vpop.f32.mrf.mxu0
    %v6339 = vadd.f32 %v6250, %v6338
    %6340 = vmatmul.bf16.gmra.mxu0 %v5426
    %v6341 = vpop.f32.mrf.mxu0
    %v6342 = vadd.f32 %v6253, %v6341
    %v6343 = vpop.f32.mrf.mxu0
    %v6344 = vadd.f32 %v6255, %v6343
    %6345 = vmatmul.bf16.gmra.mxu0 %v5430
    %v6346 = vpop.f32.mrf.mxu0
    %v6347 = vadd.f32 %v6258, %v6346
    %v6348 = vpop.f32.mrf.mxu0
    %v6349 = vadd.f32 %v6260, %v6348
    %6350 = vmatmul.bf16.gmra.mxu0 %v5434
    %v6351 = vpop.f32.mrf.mxu0
    %v6352 = vadd.f32 %v6263, %v6351
    %v6353 = vpop.f32.mrf.mxu0
    %v6354 = vadd.f32 %v6265, %v6353
    %6355 = vmatmul.bf16.gmra.mxu0 %v5438
    %v6356 = vpop.f32.mrf.mxu0
    %v6357 = vadd.f32 %v6268, %v6356
    %v6358 = vpop.f32.mrf.mxu0
    %v6359 = vadd.f32 %v6270, %v6358
    %6360 = vmatmul.bf16.gmra.mxu0 %v5442
    %v6361 = vpop.f32.mrf.mxu0
    %v6362 = vadd.f32 %v6273, %v6361
    %v6363 = vpop.f32.mrf.mxu0
    %v6364 = vadd.f32 %v6275, %v6363
    %6365 = vmatmul.bf16.gmra.mxu0 %v5446
    %v6366 = vpop.f32.mrf.mxu0
    %v6367 = vadd.f32 %v6278, %v6366
    %v6368 = vpop.f32.mrf.mxu0
    %v6369 = vadd.f32 %v6280, %v6368
    %6370 = vmatmul.bf16.gmra.mxu0 %v5450
    %v6371 = vpop.f32.mrf.mxu0
    %v6372 = vadd.f32 %v6283, %v6371
    %v6373 = vpop.f32.mrf.mxu0
    %v6374 = vadd.f32 %v6285, %v6373
    %6375 = vmatmul.bf16.gmra.mxu0 %v5454
    %v6376 = vpop.f32.mrf.mxu0
    %v6377 = vadd.f32 %v6288, %v6376
    %v6378 = vpop.f32.mrf.mxu0
    %v6379 = vadd.f32 %v6290, %v6378
    %6380 = vdwg.mxu0
    %6381 = vmatpush.bf16.msra.mxu0 %v5766
    %6382 = vmatpush.bf16.msra.mxu0 %v5764
    %6383 = vmatpush.bf16.msra.mxu0 %v5762
    %6384 = vmatpush.bf16.msra.mxu0 %v5760
    %6385 = vmatpush.bf16.msra.mxu0 %v5758
    %6386 = vmatpush.bf16.msra.mxu0 %v5756
    %6387 = vmatpush.bf16.msra.mxu0 %v5754
    %6388 = vmatpush.bf16.msra.mxu0 %v5752
    %6389 = vmatmul.bf16.gmra.mxu0 %v5395
    %v6390 = vpop.f32.mrf.mxu0
    %v6391 = vadd.f32 %v6302, %v6390
    %v6392 = vpop.f32.mrf.mxu0
    %v6393 = vadd.f32 %v6304, %v6392
    %6394 = vmatmul.bf16.gmra.mxu0 %v5399
    %v6395 = vpop.f32.mrf.mxu0
    %v6396 = vadd.f32 %v6307, %v6395
    %v6397 = vpop.f32.mrf.mxu0
    %v6398 = vadd.f32 %v6309, %v6397
    %6399 = vmatmul.bf16.gmra.mxu0 %v5403
    %v6400 = vpop.f32.mrf.mxu0
    %v6401 = vadd.f32 %v6312, %v6400
    %v6402 = vpop.f32.mrf.mxu0
    %v6403 = vadd.f32 %v6314, %v6402
    %6404 = vmatmul.bf16.gmra.mxu0 %v5407
    %v6405 = vpop.f32.mrf.mxu0
    %v6406 = vadd.f32 %v6317, %v6405
    %v6407 = vpop.f32.mrf.mxu0
    %v6408 = vadd.f32 %v6319, %v6407
    %6409 = vmatmul.bf16.gmra.mxu0 %v5411
    %v6410 = vpop.f32.mrf.mxu0
    %v6411 = vadd.f32 %v6322, %v6410
    %v6412 = vpop.f32.mrf.mxu0
    %v6413 = vadd.f32 %v6324, %v6412
    %6414 = vmatmul.bf16.gmra.mxu0 %v5415
    %v6415 = vpop.f32.mrf.mxu0
    %v6416 = vadd.f32 %v6327, %v6415
    %v6417 = vpop.f32.mrf.mxu0
    %v6418 = vadd.f32 %v6329, %v6417
    %6419 = vmatmul.bf16.gmra.mxu0 %v5419
    %v6420 = vpop.f32.mrf.mxu0
    %v6421 = vadd.f32 %v6332, %v6420
    %v6422 = vpop.f32.mrf.mxu0
    %v6423 = vadd.f32 %v6334, %v6422
    %6424 = vmatmul.bf16.gmra.mxu0 %v5423
    %v6425 = vpop.f32.mrf.mxu0
    %v6426 = vadd.f32 %v6337, %v6425
    %v6427 = vpop.f32.mrf.mxu0
    %v6428 = vadd.f32 %v6339, %v6427
    %6429 = vmatmul.bf16.gmra.mxu0 %v5427
    %v6430 = vpop.f32.mrf.mxu0
    %v6431 = vadd.f32 %v6342, %v6430
    %v6432 = vpop.f32.mrf.mxu0
    %v6433 = vadd.f32 %v6344, %v6432
    %6434 = vmatmul.bf16.gmra.mxu0 %v5431
    %v6435 = vpop.f32.mrf.mxu0
    %v6436 = vadd.f32 %v6347, %v6435
    %v6437 = vpop.f32.mrf.mxu0
    %v6438 = vadd.f32 %v6349, %v6437
    %6439 = vmatmul.bf16.gmra.mxu0 %v5435
    %v6440 = vpop.f32.mrf.mxu0
    %v6441 = vadd.f32 %v6352, %v6440
    %v6442 = vpop.f32.mrf.mxu0
    %v6443 = vadd.f32 %v6354, %v6442
    %6444 = vmatmul.bf16.gmra.mxu0 %v5439
    %v6445 = vpop.f32.mrf.mxu0
    %v6446 = vadd.f32 %v6357, %v6445
    %v6447 = vpop.f32.mrf.mxu0
    %v6448 = vadd.f32 %v6359, %v6447
    %6449 = vmatmul.bf16.gmra.mxu0 %v5443
    %v6450 = vpop.f32.mrf.mxu0
    %v6451 = vadd.f32 %v6362, %v6450
    %v6452 = vpop.f32.mrf.mxu0
    %v6453 = vadd.f32 %v6364, %v6452
    %6454 = vmatmul.bf16.gmra.mxu0 %v5447
    %v6455 = vpop.f32.mrf.mxu0
    %v6456 = vadd.f32 %v6367, %v6455
    %v6457 = vpop.f32.mrf.mxu0
    %v6458 = vadd.f32 %v6369, %v6457
    %6459 = vmatmul.bf16.gmra.mxu0 %v5451
    %v6460 = vpop.f32.mrf.mxu0
    %v6461 = vadd.f32 %v6372, %v6460
    %v6462 = vpop.f32.mrf.mxu0
    %v6463 = vadd.f32 %v6374, %v6462
    %6464 = vmatmul.bf16.gmra.mxu0 %v5455
    %v6465 = vpop.f32.mrf.mxu0
    %v6466 = vadd.f32 %v6377, %v6465
    %v6467 = vpop.f32.mrf.mxu0
    %v6468 = vadd.f32 %v6379, %v6467
    %6469 = vdwg.mxu0
    %6470 = vmatpush.bf16.msra.mxu0 %v5782
    %6471 = vmatpush.bf16.msra.mxu0 %v5780
    %6472 = vmatpush.bf16.msra.mxu0 %v5778
    %6473 = vmatpush.bf16.msra.mxu0 %v5776
    %6474 = vmatpush.bf16.msra.mxu0 %v5774
    %6475 = vmatpush.bf16.msra.mxu0 %v5772
    %6476 = vmatpush.bf16.msra.mxu0 %v5770
    %6477 = vmatpush.bf16.msra.mxu0 %v5768
    %6478 = vmatmul.bf16.gmra.mxu0 %v5396
    %v6479 = vpop.f32.mrf.mxu0
    %v6480 = vadd.f32 %v6391, %v6479
    %v6481 = vpop.f32.mrf.mxu0
    %v6482 = vadd.f32 %v6393, %v6481
    %6483 = vmatmul.bf16.gmra.mxu0 %v5400
    %v6484 = vpop.f32.mrf.mxu0
    %v6485 = vadd.f32 %v6396, %v6484
    %v6486 = vpop.f32.mrf.mxu0
    %v6487 = vadd.f32 %v6398, %v6486
    %6488 = vmatmul.bf16.gmra.mxu0 %v5404
    %v6489 = vpop.f32.mrf.mxu0
    %v6490 = vadd.f32 %v6401, %v6489
    %v6491 = vpop.f32.mrf.mxu0
    %v6492 = vadd.f32 %v6403, %v6491
    %6493 = vmatmul.bf16.gmra.mxu0 %v5408
    %v6494 = vpop.f32.mrf.mxu0
    %v6495 = vadd.f32 %v6406, %v6494
    %v6496 = vpop.f32.mrf.mxu0
    %v6497 = vadd.f32 %v6408, %v6496
    %6498 = vmatmul.bf16.gmra.mxu0 %v5412
    %v6499 = vpop.f32.mrf.mxu0
    %v6500 = vadd.f32 %v6411, %v6499
    %v6501 = vpop.f32.mrf.mxu0
    %v6502 = vadd.f32 %v6413, %v6501
    %6503 = vmatmul.bf16.gmra.mxu0 %v5416
    %v6504 = vpop.f32.mrf.mxu0
    %v6505 = vadd.f32 %v6416, %v6504
    %v6506 = vpop.f32.mrf.mxu0
    %v6507 = vadd.f32 %v6418, %v6506
    %6508 = vmatmul.bf16.gmra.mxu0 %v5420
    %v6509 = vpop.f32.mrf.mxu0
    %v6510 = vadd.f32 %v6421, %v6509
    %v6511 = vpop.f32.mrf.mxu0
    %v6512 = vadd.f32 %v6423, %v6511
    %6513 = vmatmul.bf16.gmra.mxu0 %v5424
    %v6514 = vpop.f32.mrf.mxu0
    %v6515 = vadd.f32 %v6426, %v6514
    %v6516 = vpop.f32.mrf.mxu0
    %v6517 = vadd.f32 %v6428, %v6516
    %6518 = vmatmul.bf16.gmra.mxu0 %v5428
    %v6519 = vpop.f32.mrf.mxu0
    %v6520 = vadd.f32 %v6431, %v6519
    %v6521 = vpop.f32.mrf.mxu0
    %v6522 = vadd.f32 %v6433, %v6521
    %6523 = vmatmul.bf16.gmra.mxu0 %v5432
    %v6524 = vpop.f32.mrf.mxu0
    %v6525 = vadd.f32 %v6436, %v6524
    %v6526 = vpop.f32.mrf.mxu0
    %v6527 = vadd.f32 %v6438, %v6526
    %6528 = vmatmul.bf16.gmra.mxu0 %v5436
    %v6529 = vpop.f32.mrf.mxu0
    %v6530 = vadd.f32 %v6441, %v6529
    %v6531 = vpop.f32.mrf.mxu0
    %v6532 = vadd.f32 %v6443, %v6531
    %6533 = vmatmul.bf16.gmra.mxu0 %v5440
    %v6534 = vpop.f32.mrf.mxu0
    %v6535 = vadd.f32 %v6446, %v6534
    %v6536 = vpop.f32.mrf.mxu0
    %v6537 = vadd.f32 %v6448, %v6536
    %6538 = vmatmul.bf16.gmra.mxu0 %v5444
    %v6539 = vpop.f32.mrf.mxu0
    %v6540 = vadd.f32 %v6451, %v6539
    %v6541 = vpop.f32.mrf.mxu0
    %v6542 = vadd.f32 %v6453, %v6541
    %6543 = vmatmul.bf16.gmra.mxu0 %v5448
    %v6544 = vpop.f32.mrf.mxu0
    %v6545 = vadd.f32 %v6456, %v6544
    %v6546 = vpop.f32.mrf.mxu0
    %v6547 = vadd.f32 %v6458, %v6546
    %6548 = vmatmul.bf16.gmra.mxu0 %v5452
    %v6549 = vpop.f32.mrf.mxu0
    %v6550 = vadd.f32 %v6461, %v6549
    %v6551 = vpop.f32.mrf.mxu0
    %v6552 = vadd.f32 %v6463, %v6551
    %6553 = vmatmul.bf16.gmra.mxu0 %v5456
    %v6554 = vpop.f32.mrf.mxu0
    %v6555 = vadd.f32 %v6466, %v6554
    %v6556 = vpop.f32.mrf.mxu0
    %v6557 = vadd.f32 %v6468, %v6556
    %6558 = vdwg.mxu0
    %v6559 = vmax.f32 %v6124, 0.0
    %v6560 = vmax.f32 %v6480, 0.0
    %v6561 = vmax.f32 %v6126, 0.0
    %v6562 = vmax.f32 %v6482, 0.0
    %v6563 = vmax.f32 %v6129, 0.0
    %v6564 = vmax.f32 %v6485, 0.0
    %v6565 = vmax.f32 %v6131, 0.0
    %v6566 = vmax.f32 %v6487, 0.0
    %v6567 = vmax.f32 %v6134, 0.0
    %v6568 = vmax.f32 %v6490, 0.0
    %v6569 = vmax.f32 %v6136, 0.0
    %v6570 = vmax.f32 %v6492, 0.0
    %v6571 = vmax.f32 %v6139, 0.0
    %v6572 = vmax.f32 %v6495, 0.0
    %v6573 = vmax.f32 %v6141, 0.0
    %v6574 = vmax.f32 %v6497, 0.0
    %v6575 = vmax.f32 %v6144, 0.0
    %v6576 = vmax.f32 %v6500, 0.0
    %v6577 = vmax.f32 %v6146, 0.0
    %v6578 = vmax.f32 %v6502, 0.0
    %v6579 = vmax.f32 %v6149, 0.0
    %v6580 = vmax.f32 %v6505, 0.0
    %v6581 = vmax.f32 %v6151, 0.0
    %v6582 = vmax.f32 %v6507, 0.0
    %v6583 = vmax.f32 %v6154, 0.0
    %v6584 = vmax.f32 %v6510, 0.0
    %v6585 = vmax.f32 %v6156, 0.0
    %v6586 = vmax.f32 %v6512, 0.0
    %v6587 = vmax.f32 %v6159, 0.0
    %v6588 = vmax.f32 %v6515, 0.0
    %v6589 = vmax.f32 %v6161, 0.0
    %v6590 = vmax.f32 %v6517, 0.0
    %v6591 = vmax.f32 %v6164, 0.0
    %v6592 = vmax.f32 %v6520, 0.0
    %v6593 = vmax.f32 %v6166, 0.0
    %v6594 = vmax.f32 %v6522, 0.0
    %v6595 = vmax.f32 %v6169, 0.0
    %v6596 = vmax.f32 %v6525, 0.0
    %v6597 = vmax.f32 %v6171, 0.0
    %v6598 = vmax.f32 %v6527, 0.0
    %v6599 = vmax.f32 %v6174, 0.0
    %v6600 = vmax.f32 %v6530, 0.0
    %v6601 = vmax.f32 %v6176, 0.0
    %v6602 = vmax.f32 %v6532, 0.0
    %v6603 = vmax.f32 %v6179, 0.0
    %v6604 = vmax.f32 %v6535, 0.0
    %v6605 = vmax.f32 %v6181, 0.0
    %v6606 = vmax.f32 %v6537, 0.0
    %v6607 = vmax.f32 %v6184, 0.0
    %v6608 = vmax.f32 %v6540, 0.0
    %v6609 = vmax.f32 %v6186, 0.0
    %v6610 = vmax.f32 %v6542, 0.0
    %v6611 = vmax.f32 %v6189, 0.0
    %v6612 = vmax.f32 %v6545, 0.0
    %v6613 = vmax.f32 %v6191, 0.0
    %v6614 = vmax.f32 %v6547, 0.0
    %v6615 = vmax.f32 %v6194, 0.0
    %v6616 = vmax.f32 %v6550, 0.0
    %v6617 = vmax.f32 %v6196, 0.0
    %v6618 = vmax.f32 %v6552, 0.0
    %v6619 = vmax.f32 %v6199, 0.0
    %v6620 = vmax.f32 %v6555, 0.0
    %v6621 = vmax.f32 %v6201, 0.0
    %v6622 = vmax.f32 %v6557, 0.0
    %v6623 = vpack.c.bf16 %v6561, %v6559
    %v6624 = vpack.c.bf16 %v6562, %v6560
    %v6625 = vpack.c.bf16 %v6565, %v6563
    %v6626 = vpack.c.bf16 %v6566, %v6564
    %v6627 = vpack.c.bf16 %v6569, %v6567
    %v6628 = vpack.c.bf16 %v6570, %v6568
    %v6629 = vpack.c.bf16 %v6573, %v6571
    %v6630 = vpack.c.bf16 %v6574, %v6572
    %v6631 = vpack.c.bf16 %v6577, %v6575
    %v6632 = vpack.c.bf16 %v6578, %v6576
    %v6633 = vpack.c.bf16 %v6581, %v6579
    %v6634 = vpack.c.bf16 %v6582, %v6580
    %v6635 = vpack.c.bf16 %v6585, %v6583
    %v6636 = vpack.c.bf16 %v6586, %v6584
    %v6637 = vpack.c.bf16 %v6589, %v6587
    %v6638 = vpack.c.bf16 %v6590, %v6588
    %v6639 = vpack.c.bf16 %v6593, %v6591
    %v6640 = vpack.c.bf16 %v6594, %v6592
    %v6641 = vpack.c.bf16 %v6597, %v6595
    %v6642 = vpack.c.bf16 %v6598, %v6596
    %v6643 = vpack.c.bf16 %v6601, %v6599
    %v6644 = vpack.c.bf16 %v6602, %v6600
    %v6645 = vpack.c.bf16 %v6605, %v6603
    %v6646 = vpack.c.bf16 %v6606, %v6604
    %v6647 = vpack.c.bf16 %v6609, %v6607
    %v6648 = vpack.c.bf16 %v6610, %v6608
    %v6649 = vpack.c.bf16 %v6613, %v6611
    %v6650 = vpack.c.bf16 %v6614, %v6612
    %v6651 = vpack.c.bf16 %v6617, %v6615
    %v6652 = vpack.c.bf16 %v6618, %v6616
    %v6653 = vpack.c.bf16 %v6621, %v6619
    %v6654 = vpack.c.bf16 %v6622, %v6620
    %v6655 = vld [vmem:[#allocation8] sm:$0xf]
    %v6656 = vld [vmem:[#allocation8 + $0x4] sm:$0xf]
    %v6657 = vld [vmem:[#allocation8 + $0x8] sm:$0xf]
    %v6658 = vld [vmem:[#allocation8 + $0xc] sm:$0xf]
    %v6659 = vld [vmem:[#allocation8 + $0x10] sm:$0xf]
    %v6660 = vld [vmem:[#allocation8 + $0x14] sm:$0xf]
    %v6661 = vld [vmem:[#allocation8 + $0x18] sm:$0xf]
    %v6662 = vld [vmem:[#allocation8 + $0x1c] sm:$0xf]
    %v6663 = vld [vmem:[#allocation8 + $0x20] sm:$0xf]
    %v6664 = vld [vmem:[#allocation8 + $0x24] sm:$0xf]
    %v6665 = vld [vmem:[#allocation8 + $0x28] sm:$0xf]
    %v6666 = vld [vmem:[#allocation8 + $0x2c] sm:$0xf]
    %v6667 = vld [vmem:[#allocation8 + $0x30] sm:$0xf]
    %v6668 = vld [vmem:[#allocation8 + $0x34] sm:$0xf]
    %v6669 = vld [vmem:[#allocation8 + $0x38] sm:$0xf]
    %v6670 = vld [vmem:[#allocation8 + $0x3c] sm:$0xf]
    %v6671 = vld [vmem:[#allocation8 + $0x40] sm:$0xf]
    %v6672 = vld [vmem:[#allocation8 + $0x44] sm:$0xf]
    %v6673 = vld [vmem:[#allocation8 + $0x48] sm:$0xf]
    %v6674 = vld [vmem:[#allocation8 + $0x4c] sm:$0xf]
    %v6675 = vld [vmem:[#allocation8 + $0x50] sm:$0xf]
    %v6676 = vld [vmem:[#allocation8 + $0x54] sm:$0xf]
    %v6677 = vld [vmem:[#allocation8 + $0x58] sm:$0xf]
    %v6678 = vld [vmem:[#allocation8 + $0x5c] sm:$0xf]
    %v6679 = vld [vmem:[#allocation8 + $0x60] sm:$0xf]
    %v6680 = vld [vmem:[#allocation8 + $0x64] sm:$0xf]
    %v6681 = vld [vmem:[#allocation8 + $0x68] sm:$0xf]
    %v6682 = vld [vmem:[#allocation8 + $0x6c] sm:$0xf]
    %v6683 = vld [vmem:[#allocation8 + $0x70] sm:$0xf]
    %v6684 = vld [vmem:[#allocation8 + $0x74] sm:$0xf]
    %v6685 = vld [vmem:[#allocation8 + $0x78] sm:$0xf]
    %v6686 = vld [vmem:[#allocation8 + $0x7c] sm:$0xf]
    %v6687 = vld [vmem:[%s6] sm:$0x1]
    %v6689 = vperm.slane %v6687, 0
    %v6723 = vunpack.c.l.b16 %v6655
    %v6724 = vunpack.c.l.b16 %v6656
    %v6725 = vunpack.c.l.b16 %v6657
    %v6726 = vunpack.c.l.b16 %v6658
    %v6727 = vunpack.c.l.b16 %v6659
    %v6728 = vunpack.c.l.b16 %v6660
    %v6729 = vunpack.c.l.b16 %v6661
    %v6730 = vunpack.c.l.b16 %v6662
    %v6731 = vunpack.c.l.b16 %v6663
    %v6732 = vunpack.c.l.b16 %v6664
    %v6733 = vunpack.c.l.b16 %v6665
    %v6734 = vunpack.c.l.b16 %v6666
    %v6735 = vunpack.c.l.b16 %v6667
    %v6736 = vunpack.c.l.b16 %v6668
    %v6737 = vunpack.c.l.b16 %v6669
    %v6738 = vunpack.c.l.b16 %v6670
    %v6739 = vunpack.c.l.b16 %v6671
    %v6740 = vunpack.c.l.b16 %v6672
    %v6741 = vunpack.c.l.b16 %v6673
    %v6742 = vunpack.c.l.b16 %v6674
    %v6743 = vunpack.c.l.b16 %v6675
    %v6744 = vunpack.c.l.b16 %v6676
    %v6745 = vunpack.c.l.b16 %v6677
    %v6746 = vunpack.c.l.b16 %v6678
    %v6747 = vunpack.c.l.b16 %v6679
    %v6748 = vunpack.c.l.b16 %v6680
    %v6749 = vunpack.c.l.b16 %v6681
    %v6750 = vunpack.c.l.b16 %v6682
    %v6751 = vunpack.c.l.b16 %v6683
    %v6752 = vunpack.c.l.b16 %v6684
    %v6753 = vunpack.c.l.b16 %v6685
    %v6754 = vunpack.c.l.b16 %v6686
    %v6755 = vpack.c.b16 %v6724, %v6723
    %v6756 = vpack.c.b16 %v6726, %v6725
    %v6757 = vpack.c.b16 %v6728, %v6727
    %v6758 = vpack.c.b16 %v6730, %v6729
    %v6759 = vpack.c.b16 %v6732, %v6731
    %v6760 = vpack.c.b16 %v6734, %v6733
    %v6761 = vpack.c.b16 %v6736, %v6735
    %v6762 = vpack.c.b16 %v6738, %v6737
    %v6763 = vpack.c.b16 %v6740, %v6739
    %v6764 = vpack.c.b16 %v6742, %v6741
    %v6765 = vpack.c.b16 %v6744, %v6743
    %v6766 = vpack.c.b16 %v6746, %v6745
    %v6767 = vpack.c.b16 %v6748, %v6747
    %v6768 = vpack.c.b16 %v6750, %v6749
    %v6769 = vpack.c.b16 %v6752, %v6751
    %v6770 = vpack.c.b16 %v6754, %v6753
    %6787 = vmatpush.bf16.msra.mxu0 %v6762
    %6788 = vmatpush.bf16.msra.mxu0 %v6761
    %6789 = vmatpush.bf16.msra.mxu0 %v6760
    %6790 = vmatpush.bf16.msra.mxu0 %v6759
    %6791 = vmatpush.bf16.msra.mxu0 %v6758
    %6792 = vmatpush.bf16.msra.mxu0 %v6757
    %6793 = vmatpush.bf16.msra.mxu0 %v6756
    %6794 = vmatpush.bf16.msra.mxu0 %v6755
    %6795 = vmatmul.bf16.gmra.mxu0 %v6623
    %v6796 = vpop.f32.mrf.mxu0
    %v6797 = vadd.f32 %v6689, %v6796
    %v6798 = vpop.f32.mrf.mxu0
    %v6799 = vadd.f32 %v6689, %v6798
    %6800 = vmatmul.bf16.gmra.mxu0 %v6625
    %v6801 = vpop.f32.mrf.mxu0
    %v6802 = vadd.f32 %v6689, %v6801
    %v6803 = vpop.f32.mrf.mxu0
    %v6804 = vadd.f32 %v6689, %v6803
    %6805 = vmatmul.bf16.gmra.mxu0 %v6627
    %v6806 = vpop.f32.mrf.mxu0
    %v6807 = vadd.f32 %v6689, %v6806
    %v6808 = vpop.f32.mrf.mxu0
    %v6809 = vadd.f32 %v6689, %v6808
    %6810 = vmatmul.bf16.gmra.mxu0 %v6629
    %v6811 = vpop.f32.mrf.mxu0
    %v6812 = vadd.f32 %v6689, %v6811
    %v6813 = vpop.f32.mrf.mxu0
    %v6814 = vadd.f32 %v6689, %v6813
    %6815 = vmatmul.bf16.gmra.mxu0 %v6631
    %v6816 = vpop.f32.mrf.mxu0
    %v6817 = vadd.f32 %v6689, %v6816
    %v6818 = vpop.f32.mrf.mxu0
    %v6819 = vadd.f32 %v6689, %v6818
    %6820 = vmatmul.bf16.gmra.mxu0 %v6633
    %v6821 = vpop.f32.mrf.mxu0
    %v6822 = vadd.f32 %v6689, %v6821
    %v6823 = vpop.f32.mrf.mxu0
    %v6824 = vadd.f32 %v6689, %v6823
    %6825 = vmatmul.bf16.gmra.mxu0 %v6635
    %v6826 = vpop.f32.mrf.mxu0
    %v6827 = vadd.f32 %v6689, %v6826
    %v6828 = vpop.f32.mrf.mxu0
    %v6829 = vadd.f32 %v6689, %v6828
    %6830 = vmatmul.bf16.gmra.mxu0 %v6637
    %v6831 = vpop.f32.mrf.mxu0
    %v6832 = vadd.f32 %v6689, %v6831
    %v6833 = vpop.f32.mrf.mxu0
    %v6834 = vadd.f32 %v6689, %v6833
    %6835 = vmatmul.bf16.gmra.mxu0 %v6639
    %v6836 = vpop.f32.mrf.mxu0
    %v6837 = vadd.f32 %v6689, %v6836
    %v6838 = vpop.f32.mrf.mxu0
    %v6839 = vadd.f32 %v6689, %v6838
    %6840 = vmatmul.bf16.gmra.mxu0 %v6641
    %v6841 = vpop.f32.mrf.mxu0
    %v6842 = vadd.f32 %v6689, %v6841
    %v6843 = vpop.f32.mrf.mxu0
    %v6844 = vadd.f32 %v6689, %v6843
    %6845 = vmatmul.bf16.gmra.mxu0 %v6643
    %v6846 = vpop.f32.mrf.mxu0
    %v6847 = vadd.f32 %v6689, %v6846
    %v6848 = vpop.f32.mrf.mxu0
    %v6849 = vadd.f32 %v6689, %v6848
    %6850 = vmatmul.bf16.gmra.mxu0 %v6645
    %v6851 = vpop.f32.mrf.mxu0
    %v6852 = vadd.f32 %v6689, %v6851
    %v6853 = vpop.f32.mrf.mxu0
    %v6854 = vadd.f32 %v6689, %v6853
    %6855 = vmatmul.bf16.gmra.mxu0 %v6647
    %v6856 = vpop.f32.mrf.mxu0
    %v6857 = vadd.f32 %v6689, %v6856
    %v6858 = vpop.f32.mrf.mxu0
    %v6859 = vadd.f32 %v6689, %v6858
    %6860 = vmatmul.bf16.gmra.mxu0 %v6649
    %v6861 = vpop.f32.mrf.mxu0
    %v6862 = vadd.f32 %v6689, %v6861
    %v6863 = vpop.f32.mrf.mxu0
    %v6864 = vadd.f32 %v6689, %v6863
    %6865 = vmatmul.bf16.gmra.mxu0 %v6651
    %v6866 = vpop.f32.mrf.mxu0
    %v6867 = vadd.f32 %v6689, %v6866
    %v6868 = vpop.f32.mrf.mxu0
    %v6869 = vadd.f32 %v6689, %v6868
    %6870 = vmatmul.bf16.gmra.mxu0 %v6653
    %v6871 = vpop.f32.mrf.mxu0
    %v6872 = vadd.f32 %v6689, %v6871
    %v6873 = vpop.f32.mrf.mxu0
    %v6874 = vadd.f32 %v6689, %v6873
    %6875 = vdwg.mxu0
    %6876 = vmatpush.bf16.msra.mxu0 %v6770
    %6877 = vmatpush.bf16.msra.mxu0 %v6769
    %6878 = vmatpush.bf16.msra.mxu0 %v6768
    %6879 = vmatpush.bf16.msra.mxu0 %v6767
    %6880 = vmatpush.bf16.msra.mxu0 %v6766
    %6881 = vmatpush.bf16.msra.mxu0 %v6765
    %6882 = vmatpush.bf16.msra.mxu0 %v6764
    %6883 = vmatpush.bf16.msra.mxu0 %v6763
    %6884 = vmatmul.bf16.gmra.mxu0 %v6624
    %v6885 = vpop.f32.mrf.mxu0
    %v6886 = vadd.f32 %v6797, %v6885
    %v6887 = vpop.f32.mrf.mxu0
    %v6888 = vadd.f32 %v6799, %v6887
    %6889 = vmatmul.bf16.gmra.mxu0 %v6626
    %v6890 = vpop.f32.mrf.mxu0
    %v6891 = vadd.f32 %v6802, %v6890
    %v6892 = vpop.f32.mrf.mxu0
    %v6893 = vadd.f32 %v6804, %v6892
    %6894 = vmatmul.bf16.gmra.mxu0 %v6628
    %v6895 = vpop.f32.mrf.mxu0
    %v6896 = vadd.f32 %v6807, %v6895
    %v6897 = vpop.f32.mrf.mxu0
    %v6898 = vadd.f32 %v6809, %v6897
    %6899 = vmatmul.bf16.gmra.mxu0 %v6630
    %v6900 = vpop.f32.mrf.mxu0
    %v6901 = vadd.f32 %v6812, %v6900
    %v6902 = vpop.f32.mrf.mxu0
    %v6903 = vadd.f32 %v6814, %v6902
    %6904 = vmatmul.bf16.gmra.mxu0 %v6632
    %v6905 = vpop.f32.mrf.mxu0
    %v6906 = vadd.f32 %v6817, %v6905
    %v6907 = vpop.f32.mrf.mxu0
    %v6908 = vadd.f32 %v6819, %v6907
    %6909 = vmatmul.bf16.gmra.mxu0 %v6634
    %v6910 = vpop.f32.mrf.mxu0
    %v6911 = vadd.f32 %v6822, %v6910
    %v6912 = vpop.f32.mrf.mxu0
    %v6913 = vadd.f32 %v6824, %v6912
    %6914 = vmatmul.bf16.gmra.mxu0 %v6636
    %v6915 = vpop.f32.mrf.mxu0
    %v6916 = vadd.f32 %v6827, %v6915
    %v6917 = vpop.f32.mrf.mxu0
    %v6918 = vadd.f32 %v6829, %v6917
    %6919 = vmatmul.bf16.gmra.mxu0 %v6638
    %v6920 = vpop.f32.mrf.mxu0
    %v6921 = vadd.f32 %v6832, %v6920
    %v6922 = vpop.f32.mrf.mxu0
    %v6923 = vadd.f32 %v6834, %v6922
    %6924 = vmatmul.bf16.gmra.mxu0 %v6640
    %v6925 = vpop.f32.mrf.mxu0
    %v6926 = vadd.f32 %v6837, %v6925
    %v6927 = vpop.f32.mrf.mxu0
    %v6928 = vadd.f32 %v6839, %v6927
    %6929 = vmatmul.bf16.gmra.mxu0 %v6642
    %v6930 = vpop.f32.mrf.mxu0
    %v6931 = vadd.f32 %v6842, %v6930
    %v6932 = vpop.f32.mrf.mxu0
    %v6933 = vadd.f32 %v6844, %v6932
    %6934 = vmatmul.bf16.gmra.mxu0 %v6644
    %v6935 = vpop.f32.mrf.mxu0
    %v6936 = vadd.f32 %v6847, %v6935
    %v6937 = vpop.f32.mrf.mxu0
    %v6938 = vadd.f32 %v6849, %v6937
    %6939 = vmatmul.bf16.gmra.mxu0 %v6646
    %v6940 = vpop.f32.mrf.mxu0
    %v6941 = vadd.f32 %v6852, %v6940
    %v6942 = vpop.f32.mrf.mxu0
    %v6943 = vadd.f32 %v6854, %v6942
    %6944 = vmatmul.bf16.gmra.mxu0 %v6648
    %v6945 = vpop.f32.mrf.mxu0
    %v6946 = vadd.f32 %v6857, %v6945
    %v6947 = vpop.f32.mrf.mxu0
    %v6948 = vadd.f32 %v6859, %v6947
    %6949 = vmatmul.bf16.gmra.mxu0 %v6650
    %v6950 = vpop.f32.mrf.mxu0
    %v6951 = vadd.f32 %v6862, %v6950
    %v6952 = vpop.f32.mrf.mxu0
    %v6953 = vadd.f32 %v6864, %v6952
    %6954 = vmatmul.bf16.gmra.mxu0 %v6652
    %v6955 = vpop.f32.mrf.mxu0
    %v6956 = vadd.f32 %v6867, %v6955
    %v6957 = vpop.f32.mrf.mxu0
    %v6958 = vadd.f32 %v6869, %v6957
    %6959 = vmatmul.bf16.gmra.mxu0 %v6654
    %v6960 = vpop.f32.mrf.mxu0
    %v6961 = vadd.f32 %v6872, %v6960
    %v6962 = vpop.f32.mrf.mxu0
    %v6963 = vadd.f32 %v6874, %v6962
    %6964 = vdwg.mxu0
    %v6965 = vmax.f32 %v6886, 0.0
    %v6966 = vmax.f32 %v6888, 0.0
    %v6967 = vmax.f32 %v6891, 0.0
    %v6968 = vmax.f32 %v6893, 0.0
    %v6969 = vmax.f32 %v6896, 0.0
    %v6970 = vmax.f32 %v6898, 0.0
    %v6971 = vmax.f32 %v6901, 0.0
    %v6972 = vmax.f32 %v6903, 0.0
    %v6973 = vmax.f32 %v6906, 0.0
    %v6974 = vmax.f32 %v6908, 0.0
    %v6975 = vmax.f32 %v6911, 0.0
    %v6976 = vmax.f32 %v6913, 0.0
    %v6977 = vmax.f32 %v6916, 0.0
    %v6978 = vmax.f32 %v6918, 0.0
    %v6979 = vmax.f32 %v6921, 0.0
    %v6980 = vmax.f32 %v6923, 0.0
    %v6981 = vmax.f32 %v6926, 0.0
    %v6982 = vmax.f32 %v6928, 0.0
    %v6983 = vmax.f32 %v6931, 0.0
    %v6984 = vmax.f32 %v6933, 0.0
    %v6985 = vmax.f32 %v6936, 0.0
    %v6986 = vmax.f32 %v6938, 0.0
    %v6987 = vmax.f32 %v6941, 0.0
    %v6988 = vmax.f32 %v6943, 0.0
    %v6989 = vmax.f32 %v6946, 0.0
    %v6990 = vmax.f32 %v6948, 0.0
    %v6991 = vmax.f32 %v6951, 0.0
    %v6992 = vmax.f32 %v6953, 0.0
    %v6993 = vmax.f32 %v6956, 0.0
    %v6994 = vmax.f32 %v6958, 0.0
    %v6995 = vmax.f32 %v6961, 0.0
    %v6996 = vmax.f32 %v6963, 0.0
    %v6997 = vpack.c.bf16 %v6966, %v6965
    %v6998 = vpack.c.bf16 %v6968, %v6967
    %v6999 = vpack.c.bf16 %v6970, %v6969
    %v7000 = vpack.c.bf16 %v6972, %v6971
    %v7001 = vpack.c.bf16 %v6974, %v6973
    %v7002 = vpack.c.bf16 %v6976, %v6975
    %v7003 = vpack.c.bf16 %v6978, %v6977
    %v7004 = vpack.c.bf16 %v6980, %v6979
    %v7005 = vpack.c.bf16 %v6982, %v6981
    %v7006 = vpack.c.bf16 %v6984, %v6983
    %v7007 = vpack.c.bf16 %v6986, %v6985
    %v7008 = vpack.c.bf16 %v6988, %v6987
    %v7009 = vpack.c.bf16 %v6990, %v6989
    %v7010 = vpack.c.bf16 %v6992, %v6991
    %v7011 = vpack.c.bf16 %v6994, %v6993
    %v7012 = vpack.c.bf16 %v6996, %v6995
    %v7013 = vld [vmem:[%s7] sm:$0xf]
    %v7014 = vld [vmem:[%s7 + $0x4] sm:$0xf]
    %v7015 = vld [vmem:[%s7 + $0x8] sm:$0xf]
    %v7016 = vld [vmem:[%s7 + $0xc] sm:$0xf]
    %v7017 = vld [vmem:[%s7 + $0x10] sm:$0xf]
    %v7018 = vld [vmem:[%s7 + $0x14] sm:$0xf]
    %v7019 = vld [vmem:[%s7 + $0x18] sm:$0xf]
    %v7020 = vld [vmem:[%s7 + $0x1c] sm:$0xf]
    %v7021 = vld [vmem:[%s7 + $0x20] sm:$0xf]
    %v7022 = vld [vmem:[%s7 + $0x24] sm:$0xf]
    %v7023 = vld [vmem:[%s7 + $0x28] sm:$0xf]
    %v7024 = vld [vmem:[%s7 + $0x2c] sm:$0xf]
    %v7025 = vld [vmem:[%s7 + $0x30] sm:$0xf]
    %v7026 = vld [vmem:[%s7 + $0x34] sm:$0xf]
    %v7027 = vld [vmem:[%s7 + $0x38] sm:$0xf]
    %v7028 = vld [vmem:[%s7 + $0x3c] sm:$0xf]
    %v7029 = vld [vmem:[%s8] sm:$0x1]
    %v7031 = vperm.slane %v7029, 0
    %v7049 = vunpack.c.l.b16 %v7013
    %v7050 = vunpack.c.l.b16 %v7014
    %v7051 = vunpack.c.l.b16 %v7015
    %v7052 = vunpack.c.l.b16 %v7016
    %v7053 = vunpack.c.l.b16 %v7017
    %v7054 = vunpack.c.l.b16 %v7018
    %v7055 = vunpack.c.l.b16 %v7019
    %v7056 = vunpack.c.l.b16 %v7020
    %v7057 = vunpack.c.l.b16 %v7021
    %v7058 = vunpack.c.l.b16 %v7022
    %v7059 = vunpack.c.l.b16 %v7023
    %v7060 = vunpack.c.l.b16 %v7024
    %v7061 = vunpack.c.l.b16 %v7025
    %v7062 = vunpack.c.l.b16 %v7026
    %v7063 = vunpack.c.l.b16 %v7027
    %v7064 = vunpack.c.l.b16 %v7028
    %v7065 = vpack.c.b16 %v7050, %v7049
    %v7066 = vpack.c.b16 %v7052, %v7051
    %v7067 = vpack.c.b16 %v7054, %v7053
    %v7068 = vpack.c.b16 %v7056, %v7055
    %v7069 = vpack.c.b16 %v7058, %v7057
    %v7070 = vpack.c.b16 %v7060, %v7059
    %v7071 = vpack.c.b16 %v7062, %v7061
    %v7072 = vpack.c.b16 %v7064, %v7063
    %7081 = vmatpush.bf16.msra.mxu0 %v7072
    %7082 = vmatpush.bf16.msra.mxu0 %v7071
    %7083 = vmatpush.bf16.msra.mxu0 %v7070
    %7084 = vmatpush.bf16.msra.mxu0 %v7069
    %7085 = vmatpush.bf16.msra.mxu0 %v7068
    %7086 = vmatpush.bf16.msra.mxu0 %v7067
    %7087 = vmatpush.bf16.msra.mxu0 %v7066
    %7088 = vmatpush.bf16.msra.mxu0 %v7065
    %7089 = vmatmul.bf16.gmra.mxu0 %v6997
    %v7090 = vpop.f32.mrf.mxu0
    %v7091 = vadd.f32 %v7031, %v7090
    %v7092 = vpop.f32.mrf.mxu0
    %v7093 = vadd.f32 %v7031, %v7092
    %7094 = vmatmul.bf16.gmra.mxu0 %v6998
    %v7095 = vpop.f32.mrf.mxu0
    %v7096 = vadd.f32 %v7031, %v7095
    %v7097 = vpop.f32.mrf.mxu0
    %v7098 = vadd.f32 %v7031, %v7097
    %7099 = vmatmul.bf16.gmra.mxu0 %v6999
    %v7100 = vpop.f32.mrf.mxu0
    %v7101 = vadd.f32 %v7031, %v7100
    %v7102 = vpop.f32.mrf.mxu0
    %v7103 = vadd.f32 %v7031, %v7102
    %7104 = vmatmul.bf16.gmra.mxu0 %v7000
    %v7105 = vpop.f32.mrf.mxu0
    %v7106 = vadd.f32 %v7031, %v7105
    %v7107 = vpop.f32.mrf.mxu0
    %v7108 = vadd.f32 %v7031, %v7107
    %7109 = vmatmul.bf16.gmra.mxu0 %v7001
    %v7110 = vpop.f32.mrf.mxu0
    %v7111 = vadd.f32 %v7031, %v7110
    %v7112 = vpop.f32.mrf.mxu0
    %v7113 = vadd.f32 %v7031, %v7112
    %7114 = vmatmul.bf16.gmra.mxu0 %v7002
    %v7115 = vpop.f32.mrf.mxu0
    %v7116 = vadd.f32 %v7031, %v7115
    %v7117 = vpop.f32.mrf.mxu0
    %v7118 = vadd.f32 %v7031, %v7117
    %7119 = vmatmul.bf16.gmra.mxu0 %v7003
    %v7120 = vpop.f32.mrf.mxu0
    %v7121 = vadd.f32 %v7031, %v7120
    %v7122 = vpop.f32.mrf.mxu0
    %v7123 = vadd.f32 %v7031, %v7122
    %7124 = vmatmul.bf16.gmra.mxu0 %v7004
    %v7125 = vpop.f32.mrf.mxu0
    %v7126 = vadd.f32 %v7031, %v7125
    %v7127 = vpop.f32.mrf.mxu0
    %v7128 = vadd.f32 %v7031, %v7127
    %7129 = vmatmul.bf16.gmra.mxu0 %v7005
    %v7130 = vpop.f32.mrf.mxu0
    %v7131 = vadd.f32 %v7031, %v7130
    %v7132 = vpop.f32.mrf.mxu0
    %v7133 = vadd.f32 %v7031, %v7132
    %7134 = vmatmul.bf16.gmra.mxu0 %v7006
    %v7135 = vpop.f32.mrf.mxu0
    %v7136 = vadd.f32 %v7031, %v7135
    %v7137 = vpop.f32.mrf.mxu0
    %v7138 = vadd.f32 %v7031, %v7137
    %7139 = vmatmul.bf16.gmra.mxu0 %v7007
    %v7140 = vpop.f32.mrf.mxu0
    %v7141 = vadd.f32 %v7031, %v7140
    %v7142 = vpop.f32.mrf.mxu0
    %v7143 = vadd.f32 %v7031, %v7142
    %7144 = vmatmul.bf16.gmra.mxu0 %v7008
    %v7145 = vpop.f32.mrf.mxu0
    %v7146 = vadd.f32 %v7031, %v7145
    %v7147 = vpop.f32.mrf.mxu0
    %v7148 = vadd.f32 %v7031, %v7147
    %7149 = vmatmul.bf16.gmra.mxu0 %v7009
    %v7150 = vpop.f32.mrf.mxu0
    %v7151 = vadd.f32 %v7031, %v7150
    %v7152 = vpop.f32.mrf.mxu0
    %v7153 = vadd.f32 %v7031, %v7152
    %7154 = vmatmul.bf16.gmra.mxu0 %v7010
    %v7155 = vpop.f32.mrf.mxu0
    %v7156 = vadd.f32 %v7031, %v7155
    %v7157 = vpop.f32.mrf.mxu0
    %v7158 = vadd.f32 %v7031, %v7157
    %7159 = vmatmul.bf16.gmra.mxu0 %v7011
    %v7160 = vpop.f32.mrf.mxu0
    %v7161 = vadd.f32 %v7031, %v7160
    %v7162 = vpop.f32.mrf.mxu0
    %v7163 = vadd.f32 %v7031, %v7162
    %7164 = vmatmul.bf16.gmra.mxu0 %v7012
    %v7165 = vpop.f32.mrf.mxu0
    %v7166 = vadd.f32 %v7031, %v7165
    %v7167 = vpop.f32.mrf.mxu0
    %v7168 = vadd.f32 %v7031, %v7167
    %7169 = vdwg.mxu0
    %v7170 = vmax.f32 %v7091, 0.0
    %v7171 = vmax.f32 %v7093, 0.0
    %v7172 = vmax.f32 %v7096, 0.0
    %v7173 = vmax.f32 %v7098, 0.0
    %v7174 = vmax.f32 %v7101, 0.0
    %v7175 = vmax.f32 %v7103, 0.0
    %v7176 = vmax.f32 %v7106, 0.0
    %v7177 = vmax.f32 %v7108, 0.0
    %v7178 = vmax.f32 %v7111, 0.0
    %v7179 = vmax.f32 %v7113, 0.0
    %v7180 = vmax.f32 %v7116, 0.0
    %v7181 = vmax.f32 %v7118, 0.0
    %v7182 = vmax.f32 %v7121, 0.0
    %v7183 = vmax.f32 %v7123, 0.0
    %v7184 = vmax.f32 %v7126, 0.0
    %v7185 = vmax.f32 %v7128, 0.0
    %v7186 = vmax.f32 %v7131, 0.0
    %v7187 = vmax.f32 %v7133, 0.0
    %v7188 = vmax.f32 %v7136, 0.0
    %v7189 = vmax.f32 %v7138, 0.0
    %v7190 = vmax.f32 %v7141, 0.0
    %v7191 = vmax.f32 %v7143, 0.0
    %v7192 = vmax.f32 %v7146, 0.0
    %v7193 = vmax.f32 %v7148, 0.0
    %v7194 = vmax.f32 %v7151, 0.0
    %v7195 = vmax.f32 %v7153, 0.0
    %v7196 = vmax.f32 %v7156, 0.0
    %v7197 = vmax.f32 %v7158, 0.0
    %v7198 = vmax.f32 %v7161, 0.0
    %v7199 = vmax.f32 %v7163, 0.0
    %v7200 = vmax.f32 %v7166, 0.0
    %v7201 = vmax.f32 %v7168, 0.0
    %v7202 = vld [vmem:[%s9] sm:$0x1]
    %v7204 = vperm.slane %v7202, 0
    %v7206 = vmul.f32 %v7170, %v7204
    %v7207 = vmul.f32 %v7171, %v7204
    %v7208 = vmul.f32 %v7172, %v7204
    %v7209 = vmul.f32 %v7173, %v7204
    %v7210 = vmul.f32 %v7174, %v7204
    %v7211 = vmul.f32 %v7175, %v7204
    %v7212 = vmul.f32 %v7176, %v7204
    %v7213 = vmul.f32 %v7177, %v7204
    %v7214 = vmul.f32 %v7178, %v7204
    %v7215 = vmul.f32 %v7179, %v7204
    %v7216 = vmul.f32 %v7180, %v7204
    %v7217 = vmul.f32 %v7181, %v7204
    %v7218 = vmul.f32 %v7182, %v7204
    %v7219 = vmul.f32 %v7183, %v7204
    %v7220 = vmul.f32 %v7184, %v7204
    %v7221 = vmul.f32 %v7185, %v7204
    %v7222 = vmul.f32 %v7186, %v7204
    %v7223 = vmul.f32 %v7187, %v7204
    %v7224 = vmul.f32 %v7188, %v7204
    %v7225 = vmul.f32 %v7189, %v7204
    %v7226 = vmul.f32 %v7190, %v7204
    %v7227 = vmul.f32 %v7191, %v7204
    %v7228 = vmul.f32 %v7192, %v7204
    %v7229 = vmul.f32 %v7193, %v7204
    %v7230 = vmul.f32 %v7194, %v7204
    %v7231 = vmul.f32 %v7195, %v7204
    %v7232 = vmul.f32 %v7196, %v7204
    %v7233 = vmul.f32 %v7197, %v7204
    %v7234 = vmul.f32 %v7198, %v7204
    %v7235 = vmul.f32 %v7199, %v7204
    %v7236 = vmul.f32 %v7200, %v7204
    %v7237 = vmul.f32 %v7201, %v7204
    %vm7238 = vcmask 523264
    %v7239 = vsel %vm7238, %v7206, 0.0
    %7240 = vadd.xlane.f32.xlu0 %v7239
    %v7241 = vpop.xlane.xlu0 %7240
    %v7242 = vsel %vm7238, %v7207, 0.0
    %7243 = vadd.xlane.f32.xlu0 %v7242
    %v7244 = vpop.xlane.xlu0 %7243
    %v7245 = vsel %vm7238, %v7208, 0.0
    %7246 = vadd.xlane.f32.xlu0 %v7245
    %v7247 = vpop.xlane.xlu0 %7246
    %v7248 = vsel %vm7238, %v7209, 0.0
    %7249 = vadd.xlane.f32.xlu0 %v7248
    %v7250 = vpop.xlane.xlu0 %7249
    %v7251 = vsel %vm7238, %v7210, 0.0
    %7252 = vadd.xlane.f32.xlu0 %v7251
    %v7253 = vpop.xlane.xlu0 %7252
    %v7254 = vsel %vm7238, %v7211, 0.0
    %7255 = vadd.xlane.f32.xlu0 %v7254
    %v7256 = vpop.xlane.xlu0 %7255
    %v7257 = vsel %vm7238, %v7212, 0.0
    %7258 = vadd.xlane.f32.xlu0 %v7257
    %v7259 = vpop.xlane.xlu0 %7258
    %v7260 = vsel %vm7238, %v7213, 0.0
    %7261 = vadd.xlane.f32.xlu0 %v7260
    %v7262 = vpop.xlane.xlu0 %7261
    %v7263 = vsel %vm7238, %v7214, 0.0
    %7264 = vadd.xlane.f32.xlu0 %v7263
    %v7265 = vpop.xlane.xlu0 %7264
    %v7266 = vsel %vm7238, %v7215, 0.0
    %7267 = vadd.xlane.f32.xlu0 %v7266
    %v7268 = vpop.xlane.xlu0 %7267
    %v7269 = vsel %vm7238, %v7216, 0.0
    %7270 = vadd.xlane.f32.xlu0 %v7269
    %v7271 = vpop.xlane.xlu0 %7270
    %v7272 = vsel %vm7238, %v7217, 0.0
    %7273 = vadd.xlane.f32.xlu0 %v7272
    %v7274 = vpop.xlane.xlu0 %7273
    %v7275 = vsel %vm7238, %v7218, 0.0
    %7276 = vadd.xlane.f32.xlu0 %v7275
    %v7277 = vpop.xlane.xlu0 %7276
    %v7278 = vsel %vm7238, %v7219, 0.0
    %7279 = vadd.xlane.f32.xlu0 %v7278
    %v7280 = vpop.xlane.xlu0 %7279
    %v7281 = vsel %vm7238, %v7220, 0.0
    %7282 = vadd.xlane.f32.xlu0 %v7281
    %v7283 = vpop.xlane.xlu0 %7282
    %v7284 = vsel %vm7238, %v7221, 0.0
    %7285 = vadd.xlane.f32.xlu0 %v7284
    %v7286 = vpop.xlane.xlu0 %7285
    %v7287 = vsel %vm7238, %v7222, 0.0
    %7288 = vadd.xlane.f32.xlu0 %v7287
    %v7289 = vpop.xlane.xlu0 %7288
    %v7290 = vsel %vm7238, %v7223, 0.0
    %7291 = vadd.xlane.f32.xlu0 %v7290
    %v7292 = vpop.xlane.xlu0 %7291
    %v7293 = vsel %vm7238, %v7224, 0.0
    %7294 = vadd.xlane.f32.xlu0 %v7293
    %v7295 = vpop.xlane.xlu0 %7294
    %v7296 = vsel %vm7238, %v7225, 0.0
    %7297 = vadd.xlane.f32.xlu0 %v7296
    %v7298 = vpop.xlane.xlu0 %7297
    %v7299 = vsel %vm7238, %v7226, 0.0
    %7300 = vadd.xlane.f32.xlu0 %v7299
    %v7301 = vpop.xlane.xlu0 %7300
    %v7302 = vsel %vm7238, %v7227, 0.0
    %7303 = vadd.xlane.f32.xlu0 %v7302
    %v7304 = vpop.xlane.xlu0 %7303
    %v7305 = vsel %vm7238, %v7228, 0.0
    %7306 = vadd.xlane.f32.xlu0 %v7305
    %v7307 = vpop.xlane.xlu0 %7306
    %v7308 = vsel %vm7238, %v7229, 0.0
    %7309 = vadd.xlane.f32.xlu0 %v7308
    %v7310 = vpop.xlane.xlu0 %7309
    %v7311 = vsel %vm7238, %v7230, 0.0
    %7312 = vadd.xlane.f32.xlu0 %v7311
    %v7313 = vpop.xlane.xlu0 %7312
    %v7314 = vsel %vm7238, %v7231, 0.0
    %7315 = vadd.xlane.f32.xlu0 %v7314
    %v7316 = vpop.xlane.xlu0 %7315
    %v7317 = vsel %vm7238, %v7232, 0.0
    %7318 = vadd.xlane.f32.xlu0 %v7317
    %v7319 = vpop.xlane.xlu0 %7318
    %v7320 = vsel %vm7238, %v7233, 0.0
    %7321 = vadd.xlane.f32.xlu0 %v7320
    %v7322 = vpop.xlane.xlu0 %7321
    %v7323 = vsel %vm7238, %v7234, 0.0
    %7324 = vadd.xlane.f32.xlu0 %v7323
    %v7325 = vpop.xlane.xlu0 %7324
    %v7326 = vsel %vm7238, %v7235, 0.0
    %7327 = vadd.xlane.f32.xlu0 %v7326
    %v7328 = vpop.xlane.xlu0 %7327
    %v7329 = vsel %vm7238, %v7236, 0.0
    %7330 = vadd.xlane.f32.xlu0 %v7329
    %v7331 = vpop.xlane.xlu0 %7330
    %v7332 = vsel %vm7238, %v7237, 0.0
    %7333 = vadd.xlane.f32.xlu0 %v7332
    %v7334 = vpop.xlane.xlu0 %7333
    %v7335 = vld [vmem:[#allocation2] sm:$0x1]
    %v7337 = vperm.slane %v7335, 0
    %v7339 = vadd.f32 %v7241, %v7337
    %v7340 = vadd.f32 %v7244, %v7337
    %v7341 = vadd.f32 %v7247, %v7337
    %v7342 = vadd.f32 %v7250, %v7337
    %v7343 = vadd.f32 %v7253, %v7337
    %v7344 = vadd.f32 %v7256, %v7337
    %v7345 = vadd.f32 %v7259, %v7337
    %v7346 = vadd.f32 %v7262, %v7337
    %v7347 = vadd.f32 %v7265, %v7337
    %v7348 = vadd.f32 %v7268, %v7337
    %v7349 = vadd.f32 %v7271, %v7337
    %v7350 = vadd.f32 %v7274, %v7337
    %v7351 = vadd.f32 %v7277, %v7337
    %v7352 = vadd.f32 %v7280, %v7337
    %v7353 = vadd.f32 %v7283, %v7337
    %v7354 = vadd.f32 %v7286, %v7337
    %v7355 = vadd.f32 %v7289, %v7337
    %v7356 = vadd.f32 %v7292, %v7337
    %v7357 = vadd.f32 %v7295, %v7337
    %v7358 = vadd.f32 %v7298, %v7337
    %v7359 = vadd.f32 %v7301, %v7337
    %v7360 = vadd.f32 %v7304, %v7337
    %v7361 = vadd.f32 %v7307, %v7337
    %v7362 = vadd.f32 %v7310, %v7337
    %v7363 = vadd.f32 %v7313, %v7337
    %v7364 = vadd.f32 %v7316, %v7337
    %v7365 = vadd.f32 %v7319, %v7337
    %v7366 = vadd.f32 %v7322, %v7337
    %v7367 = vadd.f32 %v7325, %v7337
    %v7368 = vadd.f32 %v7328, %v7337
    %v7369 = vadd.f32 %v7331, %v7337
    %v7370 = vadd.f32 %v7334, %v7337
    %vm7371 = vcmask 7168
    %7372 = vst.msk [vmem:[%s11] sm:$0xff] %vm7371, %v7339
    %7373 = vst.msk [vmem:[%s11 + $0x8] sm:$0xff] %vm7371, %v7340
    %7374 = vst.msk [vmem:[%s11 + $0x10] sm:$0xff] %vm7371, %v7341
    %7375 = vst.msk [vmem:[%s11 + $0x18] sm:$0xff] %vm7371, %v7342
    %7376 = vst.msk [vmem:[%s11 + $0x20] sm:$0xff] %vm7371, %v7343
    %7377 = vst.msk [vmem:[%s11 + $0x28] sm:$0xff] %vm7371, %v7344
    %7378 = vst.msk [vmem:[%s11 + $0x30] sm:$0xff] %vm7371, %v7345
    %7379 = vst.msk [vmem:[%s11 + $0x38] sm:$0xff] %vm7371, %v7346
    %7380 = vst.msk [vmem:[%s11 + $0x40] sm:$0xff] %vm7371, %v7347
    %7381 = vst.msk [vmem:[%s11 + $0x48] sm:$0xff] %vm7371, %v7348
    %7382 = vst.msk [vmem:[%s11 + $0x50] sm:$0xff] %vm7371, %v7349
    %7383 = vst.msk [vmem:[%s11 + $0x58] sm:$0xff] %vm7371, %v7350
    %7384 = vst.msk [vmem:[%s11 + $0x60] sm:$0xff] %vm7371, %v7351
    %7385 = vst.msk [vmem:[%s11 + $0x68] sm:$0xff] %vm7371, %v7352
    %7386 = vst.msk [vmem:[%s11 + $0x70] sm:$0xff] %vm7371, %v7353
    %7387 = vst.msk [vmem:[%s11 + $0x78] sm:$0xff] %vm7371, %v7354
    %7388 = vst.msk [vmem:[%s11 + $0x80] sm:$0xff] %vm7371, %v7355
    %7389 = vst.msk [vmem:[%s11 + $0x88] sm:$0xff] %vm7371, %v7356
    %7390 = vst.msk [vmem:[%s11 + $0x90] sm:$0xff] %vm7371, %v7357
    %7391 = vst.msk [vmem:[%s11 + $0x98] sm:$0xff] %vm7371, %v7358
    %7392 = vst.msk [vmem:[%s11 + $0xa0] sm:$0xff] %vm7371, %v7359
    %7393 = vst.msk [vmem:[%s11 + $0xa8] sm:$0xff] %vm7371, %v7360
    %7394 = vst.msk [vmem:[%s11 + $0xb0] sm:$0xff] %vm7371, %v7361
    %7395 = vst.msk [vmem:[%s11 + $0xb8] sm:$0xff] %vm7371, %v7362
    %7396 = vst.msk [vmem:[%s11 + $0xc0] sm:$0xff] %vm7371, %v7363
    %7397 = vst.msk [vmem:[%s11 + $0xc8] sm:$0xff] %vm7371, %v7364
    %7398 = vst.msk [vmem:[%s11 + $0xd0] sm:$0xff] %vm7371, %v7365
    %7399 = vst.msk [vmem:[%s11 + $0xd8] sm:$0xff] %vm7371, %v7366
    %7400 = vst.msk [vmem:[%s11 + $0xe0] sm:$0xff] %vm7371, %v7367
    %7401 = vst.msk [vmem:[%s11 + $0xe8] sm:$0xff] %vm7371, %v7368
    %7402 = vst.msk [vmem:[%s11 + $0xf0] sm:$0xff] %vm7371, %v7369
    %7403 = vst.msk [vmem:[%s11 + $0xf8] sm:$0xff] %vm7371, %v7370
    // Predicated region
    $region62: #{tpu_custom_call.1} parent=1 // pred_check
      _
    $region63: #{tpu_custom_call.1} parent=1 // pred_check_branch
      %7405 = sbr.rel (0) target = $region65
    $region64: #{tpu_custom_call.1} parent=1 // pred_region
      _
    $region65: #{tpu_custom_call.1} parent=1 // pred_fallthru
      _
    // Predicated region
    $region66: #{tpu_custom_call.1} parent=1 // pred_check
      _
    $region67: #{tpu_custom_call.1} parent=1 // pred_check_branch
      %7407 = sbr.rel (0) target = $region69
    $region68: #{tpu_custom_call.1} parent=1 // pred_region
      _
    $region69: #{tpu_custom_call.1} parent=1 // pred_fallthru
      _
    %7408 = vsyncpa [#allocation4], 1
    %7409 = vsyncpa [#allocation6], 1
    %7410 = vsyncpa [#allocation9], 1

</llo_original>
